<compile_context>
chip_gen: v5e
topology: v5e:2x2
jax: 0.10.0
libtpu: 0.0.40
codegen_flags: <defaults>
</compile_context>

<pallas_src>
import jax
import jax.numpy as jnp
from jax.experimental import pallas as pl
from jax.experimental.pallas import tpu as pltpu

F32 = jnp.float32
BF16 = jnp.bfloat16
VMEM = pltpu.MemorySpace.VMEM
LANE = 128


def _pad128(n):
    return max(LANE, ((n + LANE - 1) // LANE) * LANE)


def _vmem_specs(n):
    return [pl.BlockSpec(memory_space=VMEM) for _ in range(n)]


# --------------------- kernel 1: fused hierarchical encoder ------------------

def _encoder_kernel(emb_ref, tm_ref, pool_ref, invcnt_ref,
                    we_ref, be_ref, wc_ref, bc_ref,
                    hid_ref, basic_ref, comm_ref):
    """token masked-mean -> linear+tanh -> segment masked-mean -> community
    head; all intermediates stay in VMEM (single launch)."""
    x = emb_ref[...]                                        # [NS, T, H]
    m = tm_ref[...]                                         # [NS, T, 1] (lane bcast free)
    ssum = jnp.sum(x * m, axis=1)                           # [NS, H]
    cnt = jnp.maximum(jnp.sum(m, axis=1), 1.0)              # [NS, 1]
    seg = ssum / cnt
    hid = jnp.tanh(jnp.dot(seg.astype(BF16), we_ref[...],
                           preferred_element_type=jnp.float32) + be_ref[...])
    hid_ref[...] = hid                                      # [NS, H]
    segm = (jnp.sum(m, axis=1) > 0.0).astype(jnp.float32)   # [NS, 1] == mask.any(-1)
    # segment masked mean as an MXU pooling matmul (no in-kernel [N,S,H] reshape)
    basic = jnp.dot(pool_ref[...], hid * segm,
                    preferred_element_type=jnp.float32) * invcnt_ref[...]
    basic_ref[...] = basic                                  # [N, H]
    comm_ref[...] = (jnp.dot(basic.astype(BF16), wc_ref[...],
                             preferred_element_type=jnp.float32) + bc_ref[...])


def hier_encoder(params, input_ids, attention_mask):
    # TODO(synk): `hier_encoder` is external/undefined in the reference module;
    # deterministic stand-in: embedding -> masked token mean -> linear+tanh ->
    # masked segment mean (+ community head folded in), one fused pallas_call.
    N, S, T = input_ids.shape
    H = params["emb"].shape[1]
    NS = N * S
    CP = params["w_comm_pad"].shape[1]

    emb = params["emb"][input_ids].reshape(NS, T, H)        # gather stays in XLA
    tok_mask = attention_mask.reshape(NS, T, 1).astype(F32)
    pool = ((jnp.arange(NS) // S)[None, :] == jnp.arange(N)[:, None]).astype(F32)
    seg_cnt = (attention_mask.sum(-1) > 0).sum(-1, keepdims=True).astype(F32)
    invcnt = 1.0 / jnp.maximum(seg_cnt, 1.0)                # [N, 1]

    hid2d, basic, comm_pad = pl.pallas_call(
        _encoder_kernel,
        out_shape=(jax.ShapeDtypeStruct((NS, H), F32),
                   jax.ShapeDtypeStruct((N, H), F32),
                   jax.ShapeDtypeStruct((N, CP), F32)),
        in_specs=_vmem_specs(8),
        out_specs=tuple(_vmem_specs(3)),
    )(emb, tok_mask, pool, invcnt,
      params["w_enc_bf"], params["b_enc_row"],
      params["w_comm_pad"], params["b_comm_pad"])
    return hid2d, basic, comm_pad


# ------------------ kernel 2: fused LstmAttn + fusion + heads ----------------

def _fused_lstm_attn_kernel(x_ref, m_ref, basic_ref, flags_ref, vmm_ref,
                            wih_ref, bih_ref, whh_ref,
                            wa_ref, ba_ref, wlc_ref, blc_ref,
                            wcls_ref, bcls_ref, logits_ref):
    """Fused LstmAttn + label-context linear + community fusion + classifier.

    x_ref    : [B, S, H] batch-major input hidden states
    m_ref    : [S, B, 1] segment mask (attention_mask.any(-1), time-major)
    basic_ref: [B, H]    input_basic_states
    flags_ref: [B, CP]   lane-padded community flags (community_preds, eval mode)
    vmm_ref  : [CP, 2H]  lane-padded [vmax || vmin] per community
    """
    B, S, H = x_ref.shape
    hh = H // 2
    CP = flags_ref.shape[1]

    # --- one fused input projection for BOTH directions: [B*S,H]@[H,8*hh] ----
    x2d = x_ref[...].reshape(B * S, H)
    xproj = (jnp.dot(x2d.astype(BF16), wih_ref[...],
                     preferred_element_type=jnp.float32)
             + bih_ref[...]).reshape(B, S, 8 * hh)
    whh = whh_ref[...]                       # block-diag [2*hh, 8*hh] (f32 state math)

    def cell(g, c_prev):
        i = jax.nn.sigmoid(g[:, 0 * hh:1 * hh])
        f = jax.nn.sigmoid(g[:, 1 * hh:2 * hh])
        gg = jnp.tanh(g[:, 2 * hh:3 * hh])
        o = jax.nn.sigmoid(g[:, 3 * hh:4 * hh])
        c_new = f * c_prev + i * gg
        return o * jnp.tanh(c_new), c_new

    # --- both LSTM directions, unrolled; single 256-deep recurrence matmul ---
    h_f = jnp.zeros((B, hh), jnp.float32)
    c_f = jnp.zeros((B, hh), jnp.float32)
    h_b = jnp.zeros((B, hh), jnp.float32)
    c_b = jnp.zeros((B, hh), jnp.float32)
    hs_f = [None] * S
    hs_b = [None] * S
    for t in range(S):
        tb = S - 1 - t
        h_cat = jnp.concatenate([h_f, h_b], axis=-1)             # [B, 2*hh]
        g = jnp.dot(h_cat, whh, preferred_element_type=jnp.float32)  # [B, 8*hh]
        gf = xproj[:, t, :4 * hh] + g[:, :4 * hh]
        gb = xproj[:, tb, 4 * hh:] + g[:, 4 * hh:]
        h_f, c_f = cell(gf, c_f)
        h_b, c_b = cell(gb, c_b)
        hs_f[t] = h_f
        hs_b[tb] = h_b

    # LSTM outputs stay in vregs (no scratch round-trip): [S*B, H], row = t*B+b
    o2d = jnp.concatenate(
        [jnp.concatenate([hs_f[t], hs_b[t]], axis=-1) for t in range(S)], axis=0)

    # --- attention against ALL (lane-padded) community label contexts --------
    a = jnp.tanh(jnp.dot(o2d.astype(BF16), wa_ref[...],
                         preferred_element_type=jnp.float32) + ba_ref[...])
    ctx = (jnp.dot(vmm_ref[...].astype(BF16), wlc_ref[...],
                   preferred_element_type=jnp.float32) + blc_ref[...])   # [CP, H]
    scores = jax.lax.dot_general(
        a.astype(BF16), ctx.astype(BF16),
        dimension_numbers=(((1,), (1,)), ((), ())),
        preferred_element_type=jnp.float32).reshape(S, B, CP)

    m3 = m_ref[...]                                       # [S, B, 1]
    # Matches reference masked_fill(~mask, -1e-32) (numerically ~0, kept faithful).
    masked = jnp.where(m3 > 0, scores, -1e-32)
    mx = jnp.max(masked, axis=0, keepdims=True)
    e = jnp.exp(masked - mx)
    p = e / jnp.sum(e, axis=0, keepdims=True)             # softmax over time

    # fusion[b,h] = sum_c flag[b,c] * sum_s o[s,b,h] * p[s,b,c]
    w3 = jnp.sum(flags_ref[...][None, :, :] * p, axis=-1, keepdims=True)  # [S, B, 1]
    o3 = o2d.reshape(S, B, H)
    fusion = jnp.sum(o3 * w3, axis=0)                     # [B, H]

    # --- classifier head folded into the epilogue -----------------------------
    final = basic_ref[...] + fusion
    logits_ref[...] = (jnp.dot(final.astype(BF16), wcls_ref[...],
                               preferred_element_type=jnp.float32) + bcls_ref[...])


def fused_lstm_attn(params, inputs_bsh, mask_sb1, basic_b, flags_pad, vminmax_pad):
    B, S, H = inputs_bsh.shape
    LP = params["w_cls_pad"].shape[1]
    return pl.pallas_call(
        _fused_lstm_attn_kernel,
        out_shape=jax.ShapeDtypeStruct((B, LP), F32),
        in_specs=_vmem_specs(14),
        out_specs=pl.BlockSpec(memory_space=VMEM),
    )(inputs_bsh.astype(F32), mask_sb1.astype(F32), basic_b.astype(F32),
      flags_pad.astype(F32), vminmax_pad.astype(F32),
      params["wih_cat"], params["b_cat"], params["whh_blk"],
      params["w_attn_bf"], params["b_attn_row"],
      params["w_lc_bf"], params["b_lc_row"],
      params["w_cls_pad"], params["b_cls_pad"])


# ----------------------- model pieces (glue in plain JAX) -------------------

def graph_distillation(params, x, edges):
    # TODO(synk): graph distillation kept in plain JAX (tiny [8,256] matmuls);
    # the scatter-add aggregation is expressed as a dense incidence matmul so
    # XLA fuses it instead of serializing .at[].add.
    row, col = edges[0], edges[1]
    L = x.shape[0]
    lbl = jnp.arange(L)
    src_oh = (row[:, None] == lbl[None, :]).astype(F32)     # [E, L]: x_j = src_oh @ x
    dst_oh = (col[:, None] == lbl[None, :]).astype(F32)     # [E, L]: x_i = dst_oh @ x
    deg = jnp.sum(dst_oh, axis=0)                           # degree(col)
    norm = (1.0 / deg)[row]                                  # deg.pow(-1)[row]
    for k in range(2):
        out = jnp.dot(x, params["gdl_w1"][k])                # lin1 (bias=False)
        x_i = jnp.dot(dst_oh, x)
        x_j = jnp.dot(src_oh, x)
        msg = jnp.dot(jnp.concatenate([x_i, x_j], axis=-1), params["gdl_w2"][k])
        msg = norm[:, None] * msg
        agg = jnp.dot(dst_oh.T, msg)                         # aggr='add' at col
        x = jax.nn.gelu(out - agg + params["gdl_bias"][k][None, :],
                        approximate=False)                   # nn.GELU() (exact)
    return x


def bce_with_logits(logits, targets, weight):
    # nn.BCEWithLogitsLoss(weight), reduction='mean'
    l = (jnp.maximum(logits, 0.0) - logits * targets
         + jnp.log1p(jnp.exp(-jnp.abs(logits))))
    return jnp.mean(weight * l)


def ladan_forward(params, input_ids, attention_mask, label_input_ids,
                  label_attention_mask, community2label, edges,
                  community_labels, labels):
    B, S, T = input_ids.shape
    H = params["emb"].shape[1]
    C = params["w_comm"].shape[1]
    L = params["w_cls"].shape[1]
    CP = params["w_comm_pad"].shape[1]

    # One fused encoder pass over inputs + label descriptions (per-example, so
    # batching the two reference calls is semantically identical).
    all_ids = jnp.concatenate([input_ids, label_input_ids], axis=0)
    all_mask = jnp.concatenate([attention_mask, label_attention_mask], axis=0)
    hid2d, basic_all, comm_pad = hier_encoder(params, all_ids, all_mask)
    input_hidden_states = hid2d[:B * S].reshape(B, S, H)
    input_basic_states = basic_all[:B]
    label_hidden_states = basic_all[B:]

    community_logits = comm_pad[:B, :C]
    # padded head columns have zero weight+bias -> logit 0 -> pred 0, so the
    # padded flags are exactly 0 and never contribute to the fusion.
    community_preds_pad = (jax.nn.sigmoid(comm_pad[:B]) > 0.5).astype(F32)  # [B, CP]
    community_preds = community_preds_pad[:, :C]

    label_distinguish_states = graph_distillation(params, label_hidden_states,
                                                  edges)

    # Batched per-community label contexts (vmax || vmin), lane-padded to CP.
    lflag = community2label > 0                              # [C, L]
    lds = label_distinguish_states                           # [L, H]
    vmax = jnp.max(jnp.where(lflag[:, :, None], lds[None], -jnp.inf), axis=1)
    vmin = jnp.min(jnp.where(lflag[:, :, None], lds[None], jnp.inf), axis=1)
    vminmax = jnp.concatenate([vmax, vmin], axis=-1)         # [C, 2H]
    vminmax_pad = jnp.pad(vminmax, ((0, CP - C), (0, 0)))    # [CP, 2H]

    # segment mask (attention_mask.any(-1)), time-major [S, B, 1] for the kernel
    seg_mask = (attention_mask.sum(-1) > 0).astype(F32)      # [B, S]
    mask_sb1 = jnp.transpose(seg_mask, (1, 0))[:, :, None]

    # Fused LstmAttn + label-context linear + community fusion + classifier.
    # Boolean-indexed `+=` in the reference == masked accumulation here
    # (LSTM/attention are per-example, so subset vs. full batch is identical;
    #  `if flag.sum()==0: continue` == adding zeros).
    logits_pad = fused_lstm_attn(params, input_hidden_states, mask_sb1,
                                 input_basic_states, community_preds_pad,
                                 vminmax_pad)
    logits = logits_pad[:, :L]
    preds = (jax.nn.sigmoid(logits) > 0.5).astype(F32)

    community_loss = bce_with_logits(community_logits, community_labels,
                                     params["community_weights"])
    non_community_loss = bce_with_logits(logits, labels, params["label_weights"])
    loss = 0.5 * community_loss + non_community_loss
    return {"loss": loss, "preds": preds, "community_preds": community_preds}


# ------------------------------ parameters ----------------------------------

def init_params(key, vocab, H, C, L):
    keys = jax.random.split(key, 22)
    hh = H // 2

    def nrm(k, shape, scale=0.05):
        return scale * jax.random.normal(k, shape, F32)

    p = {}
    p["emb"] = nrm(keys[0], (vocab, H))
    p["w_enc"] = nrm(keys[1], (H, H)); p["b_enc"] = jnp.zeros((H,), F32)
    p["gdl_w1"] = [nrm(keys[2], (H, H)), nrm(keys[3], (H, H))]
    p["gdl_w2"] = [nrm(keys[4], (2 * H, H)), nrm(keys[5], (2 * H, H))]
    p["gdl_bias"] = [jnp.zeros((H,), F32), jnp.zeros((H,), F32)]     # bias.zero_()
    p["w_lc"] = nrm(keys[6], (2 * H, H)); p["b_lc"] = nrm(keys[7], (H,))
    # final_tf = LstmAttn(H): bidirectional LSTM (gate order i,f,g,o) + attn_fc.
    # (final_tf.context exists in the module but is unused: dynamic_context is
    #  always supplied on this code path.)
    p["wih_f"] = nrm(keys[8], (H, 4 * hh)); p["whh_f"] = nrm(keys[9], (hh, 4 * hh))
    p["bih_f"] = nrm(keys[10], (4 * hh,)); p["bhh_f"] = nrm(keys[11], (4 * hh,))
    p["wih_b"] = nrm(keys[12], (H, 4 * hh)); p["whh_b"] = nrm(keys[13], (hh, 4 * hh))
    p["bih_b"] = nrm(keys[14], (4 * hh,)); p["bhh_b"] = nrm(keys[15], (4 * hh,))
    p["w_attn"] = nrm(keys[16], (H, H)); p["b_attn"] = nrm(keys[17], (H,))
    p["w_comm"] = nrm(keys[18], (H, C)); p["b_comm"] = nrm(keys[19], (C,))
    p["w_cls"] = nrm(keys[20], (H, L)); p["b_cls"] = nrm(keys[21], (L,))
    p["community_weights"] = jnp.ones((C,), F32)
    p["label_weights"] = jnp.ones((L,), F32)
    return p


def prepare_params(p):
    """One-time derived weights (outside the hot path, per perf review):
    concatenated/block-diagonal LSTM mats, bf16 copies, lane-padded heads."""
    H = p["w_enc"].shape[0]
    hh = H // 2
    C = p["w_comm"].shape[1]
    L = p["w_cls"].shape[1]
    CP = _pad128(C)
    LP = _pad128(L)
    d = dict(p)
    # fused input projection: xproj = x @ [wih_f || wih_b] + [b_f || b_b]
    d["wih_cat"] = jnp.concatenate([p["wih_f"], p["wih_b"]], axis=1).astype(BF16)
    d["b_cat"] = jnp.concatenate([p["bih_f"] + p["bhh_f"],
                                  p["bih_b"] + p["bhh_b"]])[None, :].astype(F32)
    # block-diagonal recurrence: [h_f || h_b] @ blkdiag(whh_f, whh_b)
    whh_blk = jnp.zeros((2 * hh, 8 * hh), F32)
    whh_blk = whh_blk.at[:hh, :4 * hh].set(p["whh_f"])
    whh_blk = whh_blk.at[hh:, 4 * hh:].set(p["whh_b"])
    d["whh_blk"] = whh_blk                               # f32 (state accuracy)
    d["w_enc_bf"] = p["w_enc"].astype(BF16)
    d["b_enc_row"] = p["b_enc"][None, :].astype(F32)
    d["w_attn_bf"] = p["w_attn"].astype(BF16)
    d["b_attn_row"] = p["b_attn"][None, :].astype(F32)
    d["w_lc_bf"] = p["w_lc"].astype(BF16)
    d["b_lc_row"] = p["b_lc"][None, :].astype(F32)
    d["w_comm_pad"] = jnp.pad(p["w_comm"], ((0, 0), (0, CP - C))).astype(BF16)
    d["b_comm_pad"] = jnp.pad(p["b_comm"], (0, CP - C))[None, :].astype(F32)
    d["w_cls_pad"] = jnp.pad(p["w_cls"], ((0, 0), (0, LP - L))).astype(BF16)
    d["b_cls_pad"] = jnp.pad(p["b_cls"], (0, LP - L))[None, :].astype(F32)
    return d


# --------------------------------- main --------------------------------------

if __name__ == "__main__":
    B, S, T, H = 2, 4, 8, 256          # batch, segments, tokens/segment, hidden
    vocab, C, L = 50, 3, 8             # vocab, num_communities, num_labels

    key = jax.random.PRNGKey(0)
    k1, k2, k3, k4, kp = jax.random.split(key, 5)

    input_ids = jax.random.randint(k1, (B, S, T), 0, vocab)
    attention_mask = jnp.ones((B, S, T), jnp.int32)
    attention_mask = attention_mask.at[1, S - 1, :].set(0)   # fully padded segment
    attention_mask = attention_mask.at[0, :, T - 2:].set(0)  # some padded tokens

    label_input_ids = jax.random.randint(k2, (L, S, T), 0, vocab)
    label_attention_mask = jnp.ones((L, S, T), jnp.int32)

    # Directed cycle both ways -> every label node has in-degree >= 1 (avoids
    # the 1/deg inf that the PyTorch code would also hit on isolated nodes).
    idx = jnp.arange(L)
    row = jnp.concatenate([idx, (idx + 1) % L])
    col = jnp.concatenate([(idx + 1) % L, idx])
    edges = jnp.stack([row, col]).astype(jnp.int32)          # [2, 2L]

    community2label = (idx[None, :] % C == jnp.arange(C)[:, None]).astype(F32)
    community_labels = (jax.random.uniform(k3, (B, C)) > 0.5).astype(F32)
    labels = (jax.random.uniform(k4, (B, L)) > 0.5).astype(F32)

    params = prepare_params(init_params(kp, vocab, H, C, L))

    fwd = jax.jit(ladan_forward)
    out = fwd(params, input_ids, attention_mask, label_input_ids,
              label_attention_mask, community2label, edges,
              community_labels, labels)
    jax.block_until_ready(out)

    assert out["preds"].shape == (B, L)
    assert out["community_preds"].shape == (B, C)
    assert bool(jnp.isfinite(out["loss"]))
    print("KERNEL_OK")
</pallas_src>

<mosaic_0001>
module attributes {stable_mosaic.version = 11 : i64} {
  func.func @_encoder_kernel(%arg0: memref<40x8x256xf32, #tpu.memory_space<vmem>>, %arg1: memref<40x8x1xf32, #tpu.memory_space<vmem>>, %arg2: memref<10x40xf32, #tpu.memory_space<vmem>>, %arg3: memref<10x1xf32, #tpu.memory_space<vmem>>, %arg4: memref<256x256xbf16, #tpu.memory_space<vmem>>, %arg5: memref<1x256xf32, #tpu.memory_space<vmem>>, %arg6: memref<256x128xbf16, #tpu.memory_space<vmem>>, %arg7: memref<1x128xf32, #tpu.memory_space<vmem>>, %arg8: memref<40x256xf32, #tpu.memory_space<vmem>>, %arg9: memref<10x256xf32, #tpu.memory_space<vmem>>, %arg10: memref<10x128xf32, #tpu.memory_space<vmem>>) attributes {dimension_semantics = [], scalar_prefetch = 0 : i64, scratch_operands = 0 : i64, tpu.core_type = #tpu.core_type<tc>} {
    %c0 = arith.constant 0 : index
    %c0_0 = arith.constant 0 : index
    %c0_1 = arith.constant 0 : index
    %0 = vector.load %arg0[%c0, %c0_0, %c0_1] : memref<40x8x256xf32, #tpu.memory_space<vmem>>, vector<40x8x256xf32>
    %c0_2 = arith.constant 0 : index
    %c0_3 = arith.constant 0 : index
    %c0_4 = arith.constant 0 : index
    %1 = vector.load %arg1[%c0_2, %c0_3, %c0_4] : memref<40x8x1xf32, #tpu.memory_space<vmem>>, vector<40x8x1xf32>
    %2 = vector.broadcast %1 : vector<40x8x1xf32> to vector<40x8x256xf32>
    %3 = arith.mulf %0, %2 : vector<40x8x256xf32>
    %cst = arith.constant dense<0.000000e+00> : vector<40x256xf32>
    %4 = vector.multi_reduction <add>, %3, %cst [1] : vector<40x8x256xf32> to vector<40x256xf32>
    %cst_5 = arith.constant dense<0.000000e+00> : vector<40x1xf32>
    %5 = vector.multi_reduction <add>, %1, %cst_5 [1] : vector<40x8x1xf32> to vector<40x1xf32>
    %cst_6 = arith.constant 1.000000e+00 : f32
    %6 = vector.broadcast %cst_6 : f32 to vector<40x1xf32>
    %7 = arith.maximumf %5, %6 : vector<40x1xf32>
    %8 = vector.broadcast %7 : vector<40x1xf32> to vector<40x256xf32>
    %9 = arith.divf %4, %8 : vector<40x256xf32>
    %10 = arith.truncf %9 : vector<40x256xf32> to vector<40x256xbf16>
    %c0_7 = arith.constant 0 : index
    %c0_8 = arith.constant 0 : index
    %11 = vector.load %arg4[%c0_7, %c0_8] : memref<256x256xbf16, #tpu.memory_space<vmem>>, vector<256x256xbf16>
    %cst_9 = arith.constant dense<0.000000e+00> : vector<40x256xf32>
    %12 = tpu.matmul %10, %11, %cst_9 {dimension_numbers = #tpu.dot_dimension_numbers<[1], [0], [0], [1], [0, 0, 1, 1], [], []>} : vector<40x256xbf16>, vector<256x256xbf16>, vector<40x256xf32> -> vector<40x256xf32>
    %c0_10 = arith.constant 0 : index
    %c0_11 = arith.constant 0 : index
    %13 = vector.load %arg5[%c0_10, %c0_11] : memref<1x256xf32, #tpu.memory_space<vmem>>, vector<1x256xf32>
    %14 = vector.broadcast %13 : vector<1x256xf32> to vector<40x256xf32>
    %15 = arith.addf %12, %14 : vector<40x256xf32>
    %16 = math.tanh %15 : vector<40x256xf32>
    %c0_12 = arith.constant 0 : index
    %c0_13 = arith.constant 0 : index
    %17 = vector.load %arg8[%c0_12, %c0_13] : memref<40x256xf32, #tpu.memory_space<vmem>>, vector<40x256xf32>
    tpu.vector_store %arg8[%c0_12, %c0_13], %16 {strides = array<i32>} : memref<40x256xf32, #tpu.memory_space<vmem>>, vector<40x256xf32>,
    %cst_14 = arith.constant dense<0.000000e+00> : vector<40x1xf32>
    %18 = vector.multi_reduction <add>, %1, %cst_14 [1] : vector<40x8x1xf32> to vector<40x1xf32>
    %cst_15 = arith.constant 0.000000e+00 : f32
    %19 = vector.broadcast %cst_15 : f32 to vector<40x1xf32>
    %20 = arith.cmpf ogt, %18, %19 : vector<40x1xf32>
    %21 = arith.extui %20 : vector<40x1xi1> to vector<40x1xi32>
    %22 = arith.sitofp %21 : vector<40x1xi32> to vector<40x1xf32>
    %c0_16 = arith.constant 0 : index
    %c0_17 = arith.constant 0 : index
    %23 = vector.load %arg2[%c0_16, %c0_17] : memref<10x40xf32, #tpu.memory_space<vmem>>, vector<10x40xf32>
    %24 = vector.broadcast %22 : vector<40x1xf32> to vector<40x256xf32>
    %25 = arith.mulf %16, %24 : vector<40x256xf32>
    %cst_18 = arith.constant dense<0.000000e+00> : vector<10x256xf32>
    %26 = tpu.matmul %23, %25, %cst_18 {dimension_numbers = #tpu.dot_dimension_numbers<[1], [0], [0], [1], [0, 0, 1, 1], [], []>} : vector<10x40xf32>, vector<40x256xf32>, vector<10x256xf32> -> vector<10x256xf32>
    %c0_19 = arith.constant 0 : index
    %c0_20 = arith.constant 0 : index
    %27 = vector.load %arg3[%c0_19, %c0_20] : memref<10x1xf32, #tpu.memory_space<vmem>>, vector<10x1xf32>
    %28 = vector.broadcast %27 : vector<10x1xf32> to vector<10x256xf32>
    %29 = arith.mulf %26, %28 : vector<10x256xf32>
    %c0_21 = arith.constant 0 : index
    %c0_22 = arith.constant 0 : index
    %30 = vector.load %arg9[%c0_21, %c0_22] : memref<10x256xf32, #tpu.memory_space<vmem>>, vector<10x256xf32>
    tpu.vector_store %arg9[%c0_21, %c0_22], %29 {strides = array<i32>} : memref<10x256xf32, #tpu.memory_space<vmem>>, vector<10x256xf32>,
    %31 = arith.truncf %29 : vector<10x256xf32> to vector<10x256xbf16>
    %c0_23 = arith.constant 0 : index
    %c0_24 = arith.constant 0 : index
    %32 = vector.load %arg6[%c0_23, %c0_24] : memref<256x128xbf16, #tpu.memory_space<vmem>>, vector<256x128xbf16>
    %cst_25 = arith.constant dense<0.000000e+00> : vector<10x128xf32>
    %33 = tpu.matmul %31, %32, %cst_25 {dimension_numbers = #tpu.dot_dimension_numbers<[1], [0], [0], [1], [0, 0, 1, 1], [], []>} : vector<10x256xbf16>, vector<256x128xbf16>, vector<10x128xf32> -> vector<10x128xf32>
    %c0_26 = arith.constant 0 : index
    %c0_27 = arith.constant 0 : index
    %34 = vector.load %arg7[%c0_26, %c0_27] : memref<1x128xf32, #tpu.memory_space<vmem>>, vector<1x128xf32>
    %35 = vector.broadcast %34 : vector<1x128xf32> to vector<10x128xf32>
    %36 = arith.addf %33, %35 : vector<10x128xf32>
    %c0_28 = arith.constant 0 : index
    %c0_29 = arith.constant 0 : index
    %37 = vector.load %arg10[%c0_28, %c0_29] : memref<10x128xf32, #tpu.memory_space<vmem>>, vector<10x128xf32>
    tpu.vector_store %arg10[%c0_28, %c0_29], %36 {strides = array<i32>} : memref<10x128xf32, #tpu.memory_space<vmem>>, vector<10x128xf32>,
    return
  }
}

module attributes {stable_mosaic.version = 11 : i64} {
  func.func @_fused_lstm_attn_kernel(%arg0: memref<2x4x256xf32, #tpu.memory_space<vmem>>, %arg1: memref<4x2x1xf32, #tpu.memory_space<vmem>>, %arg2: memref<2x256xf32, #tpu.memory_space<vmem>>, %arg3: memref<2x128xf32, #tpu.memory_space<vmem>>, %arg4: memref<128x512xf32, #tpu.memory_space<vmem>>, %arg5: memref<256x1024xbf16, #tpu.memory_space<vmem>>, %arg6: memref<1x1024xf32, #tpu.memory_space<vmem>>, %arg7: memref<256x1024xf32, #tpu.memory_space<vmem>>, %arg8: memref<256x256xbf16, #tpu.memory_space<vmem>>, %arg9: memref<1x256xf32, #tpu.memory_space<vmem>>, %arg10: memref<512x256xbf16, #tpu.memory_space<vmem>>, %arg11: memref<1x256xf32, #tpu.memory_space<vmem>>, %arg12: memref<256x128xbf16, #tpu.memory_space<vmem>>, %arg13: memref<1x128xf32, #tpu.memory_space<vmem>>, %arg14: memref<2x128xf32, #tpu.memory_space<vmem>>) attributes {dimension_semantics = [], scalar_prefetch = 0 : i64, scratch_operands = 0 : i64, tpu.core_type = #tpu.core_type<tc>} {
    %c0 = arith.constant 0 : index
    %c0_0 = arith.constant 0 : index
    %c0_1 = arith.constant 0 : index
    %0 = vector.load %arg0[%c0, %c0_0, %c0_1] : memref<2x4x256xf32, #tpu.memory_space<vmem>>, vector<2x4x256xf32>
    %1 = vector.shape_cast %0 : vector<2x4x256xf32> to vector<8x256xf32>
    %2 = arith.truncf %1 : vector<8x256xf32> to vector<8x256xbf16>
    %c0_2 = arith.constant 0 : index
    %c0_3 = arith.constant 0 : index
    %3 = vector.load %arg5[%c0_2, %c0_3] : memref<256x1024xbf16, #tpu.memory_space<vmem>>, vector<256x1024xbf16>
    %cst = arith.constant dense<0.000000e+00> : vector<8x1024xf32>
    %4 = tpu.matmul %2, %3, %cst {dimension_numbers = #tpu.dot_dimension_numbers<[1], [0], [0], [1], [0, 0, 1, 1], [], []>} : vector<8x256xbf16>, vector<256x1024xbf16>, vector<8x1024xf32> -> vector<8x1024xf32>
    %c0_4 = arith.constant 0 : index
    %c0_5 = arith.constant 0 : index
    %5 = vector.load %arg6[%c0_4, %c0_5] : memref<1x1024xf32, #tpu.memory_space<vmem>>, vector<1x1024xf32>
    %6 = vector.broadcast %5 : vector<1x1024xf32> to vector<8x1024xf32>
    %7 = arith.addf %4, %6 : vector<8x1024xf32>
    %8 = vector.shape_cast %7 : vector<8x1024xf32> to vector<2x4x1024xf32>
    %c0_6 = arith.constant 0 : index
    %c0_7 = arith.constant 0 : index
    %9 = vector.load %arg7[%c0_6, %c0_7] : memref<256x1024xf32, #tpu.memory_space<vmem>>, vector<256x1024xf32>
    %cst_8 = arith.constant 0.000000e+00 : f32
    %10 = vector.broadcast %cst_8 : f32 to vector<2x128xf32>
    %cst_9 = arith.constant 0.000000e+00 : f32
    %11 = vector.broadcast %cst_9 : f32 to vector<2x128xf32>
    %cst_10 = arith.constant 0.000000e+00 : f32
    %12 = vector.broadcast %cst_10 : f32 to vector<2x128xf32>
    %cst_11 = arith.constant 0.000000e+00 : f32
    %13 = vector.broadcast %cst_11 : f32 to vector<2x128xf32>
    %14 = tpu.concatenate %10, %12 in 1 : vector<2x128xf32>, vector<2x128xf32> -> vector<2x256xf32>
    %cst_12 = arith.constant dense<0.000000e+00> : vector<2x1024xf32>
    %15 = tpu.matmul %14, %9, %cst_12 {dimension_numbers = #tpu.dot_dimension_numbers<[1], [0], [0], [1], [0, 0, 1, 1], [], []>} : vector<2x256xf32>, vector<256x1024xf32>, vector<2x1024xf32> -> vector<2x1024xf32>
    %16 = vector.extract_strided_slice %8 {offsets = [0, 0, 0], sizes = [2, 1, 512], strides = [1, 1, 1]} : vector<2x4x1024xf32> to vector<2x1x512xf32>
    %17 = vector.shape_cast %16 : vector<2x1x512xf32> to vector<2x512xf32>
    %18 = vector.extract_strided_slice %15 {offsets = [0, 0], sizes = [2, 512], strides = [1, 1]} : vector<2x1024xf32> to vector<2x512xf32>
    %19 = arith.addf %17, %18 : vector<2x512xf32>
    %20 = vector.extract_strided_slice %8 {offsets = [0, 3, 512], sizes = [2, 1, 512], strides = [1, 1, 1]} : vector<2x4x1024xf32> to vector<2x1x512xf32>
    %21 = vector.shape_cast %20 : vector<2x1x512xf32> to vector<2x512xf32>
    %22 = vector.extract_strided_slice %15 {offsets = [0, 512], sizes = [2, 512], strides = [1, 1]} : vector<2x1024xf32> to vector<2x512xf32>
    %23 = arith.addf %21, %22 : vector<2x512xf32>
    %24 = vector.extract_strided_slice %19 {offsets = [0, 0], sizes = [2, 128], strides = [1, 1]} : vector<2x512xf32> to vector<2x128xf32>
    %25 = arith.negf %24 : vector<2x128xf32>
    %26 = math.exp %25 : vector<2x128xf32>
    %cst_13 = arith.constant 1.000000e+00 : f32
    %27 = vector.broadcast %cst_13 : f32 to vector<2x128xf32>
    %28 = arith.addf %27, %26 : vector<2x128xf32>
    %29 = arith.divf %27, %28 : vector<2x128xf32>
    %30 = vector.extract_strided_slice %19 {offsets = [0, 128], sizes = [2, 128], strides = [1, 1]} : vector<2x512xf32> to vector<2x128xf32>
    %31 = arith.negf %30 : vector<2x128xf32>
    %32 = math.exp %31 : vector<2x128xf32>
    %cst_14 = arith.constant 1.000000e+00 : f32
    %33 = vector.broadcast %cst_14 : f32 to vector<2x128xf32>
    %34 = arith.addf %33, %32 : vector<2x128xf32>
    %35 = arith.divf %33, %34 : vector<2x128xf32>
    %36 = vector.extract_strided_slice %19 {offsets = [0, 256], sizes = [2, 128], strides = [1, 1]} : vector<2x512xf32> to vector<2x128xf32>
    %37 = math.tanh %36 : vector<2x128xf32>
    %38 = vector.extract_strided_slice %19 {offsets = [0, 384], sizes = [2, 128], strides = [1, 1]} : vector<2x512xf32> to vector<2x128xf32>
    %39 = arith.negf %38 : vector<2x128xf32>
    %40 = math.exp %39 : vector<2x128xf32>
    %cst_15 = arith.constant 1.000000e+00 : f32
    %41 = vector.broadcast %cst_15 : f32 to vector<2x128xf32>
    %42 = arith.addf %41, %40 : vector<2x128xf32>
    %43 = arith.divf %41, %42 : vector<2x128xf32>
    %44 = arith.mulf %35, %11 : vector<2x128xf32>
    %45 = arith.mulf %29, %37 : vector<2x128xf32>
    %46 = arith.addf %44, %45 : vector<2x128xf32>
    %47 = math.tanh %46 : vector<2x128xf32>
    %48 = arith.mulf %43, %47 : vector<2x128xf32>
    %49 = vector.extract_strided_slice %23 {offsets = [0, 0], sizes = [2, 128], strides = [1, 1]} : vector<2x512xf32> to vector<2x128xf32>
    %50 = arith.negf %49 : vector<2x128xf32>
    %51 = math.exp %50 : vector<2x128xf32>
    %cst_16 = arith.constant 1.000000e+00 : f32
    %52 = vector.broadcast %cst_16 : f32 to vector<2x128xf32>
    %53 = arith.addf %52, %51 : vector<2x128xf32>
    %54 = arith.divf %52, %53 : vector<2x128xf32>
    %55 = vector.extract_strided_slice %23 {offsets = [0, 128], sizes = [2, 128], strides = [1, 1]} : vector<2x512xf32> to vector<2x128xf32>
    %56 = arith.negf %55 : vector<2x128xf32>
    %57 = math.exp %56 : vector<2x128xf32>
    %cst_17 = arith.constant 1.000000e+00 : f32
    %58 = vector.broadcast %cst_17 : f32 to vector<2x128xf32>
    %59 = arith.addf %58, %57 : vector<2x128xf32>
    %60 = arith.divf %58, %59 : vector<2x128xf32>
    %61 = vector.extract_strided_slice %23 {offsets = [0, 256], sizes = [2, 128], strides = [1, 1]} : vector<2x512xf32> to vector<2x128xf32>
    %62 = math.tanh %61 : vector<2x128xf32>
    %63 = vector.extract_strided_slice %23 {offsets = [0, 384], sizes = [2, 128], strides = [1, 1]} : vector<2x512xf32> to vector<2x128xf32>
    %64 = arith.negf %63 : vector<2x128xf32>
    %65 = math.exp %64 : vector<2x128xf32>
    %cst_18 = arith.constant 1.000000e+00 : f32
    %66 = vector.broadcast %cst_18 : f32 to vector<2x128xf32>
    %67 = arith.addf %66, %65 : vector<2x128xf32>
    %68 = arith.divf %66, %67 : vector<2x128xf32>
    %69 = arith.mulf %60, %13 : vector<2x128xf32>
    %70 = arith.mulf %54, %62 : vector<2x128xf32>
    %71 = arith.addf %69, %70 : vector<2x128xf32>
    %72 = math.tanh %71 : vector<2x128xf32>
    %73 = arith.mulf %68, %72 : vector<2x128xf32>
    %74 = tpu.concatenate %48, %73 in 1 : vector<2x128xf32>, vector<2x128xf32> -> vector<2x256xf32>
    %cst_19 = arith.constant dense<0.000000e+00> : vector<2x1024xf32>
    %75 = tpu.matmul %74, %9, %cst_19 {dimension_numbers = #tpu.dot_dimension_numbers<[1], [0], [0], [1], [0, 0, 1, 1], [], []>} : vector<2x256xf32>, vector<256x1024xf32>, vector<2x1024xf32> -> vector<2x1024xf32>
    %76 = vector.extract_strided_slice %8 {offsets = [0, 1, 0], sizes = [2, 1, 512], strides = [1, 1, 1]} : vector<2x4x1024xf32> to vector<2x1x512xf32>
    %77 = vector.shape_cast %76 : vector<2x1x512xf32> to vector<2x512xf32>
    %78 = vector.extract_strided_slice %75 {offsets = [0, 0], sizes = [2, 512], strides = [1, 1]} : vector<2x1024xf32> to vector<2x512xf32>
    %79 = arith.addf %77, %78 : vector<2x512xf32>
    %80 = vector.extract_strided_slice %8 {offsets = [0, 2, 512], sizes = [2, 1, 512], strides = [1, 1, 1]} : vector<2x4x1024xf32> to vector<2x1x512xf32>
    %81 = vector.shape_cast %80 : vector<2x1x512xf32> to vector<2x512xf32>
    %82 = vector.extract_strided_slice %75 {offsets = [0, 512], sizes = [2, 512], strides = [1, 1]} : vector<2x1024xf32> to vector<2x512xf32>
    %83 = arith.addf %81, %82 : vector<2x512xf32>
    %84 = vector.extract_strided_slice %79 {offsets = [0, 0], sizes = [2, 128], strides = [1, 1]} : vector<2x512xf32> to vector<2x128xf32>
    %85 = arith.negf %84 : vector<2x128xf32>
    %86 = math.exp %85 : vector<2x128xf32>
    %cst_20 = arith.constant 1.000000e+00 : f32
    %87 = vector.broadcast %cst_20 : f32 to vector<2x128xf32>
    %88 = arith.addf %87, %86 : vector<2x128xf32>
    %89 = arith.divf %87, %88 : vector<2x128xf32>
    %90 = vector.extract_strided_slice %79 {offsets = [0, 128], sizes = [2, 128], strides = [1, 1]} : vector<2x512xf32> to vector<2x128xf32>
    %91 = arith.negf %90 : vector<2x128xf32>
    %92 = math.exp %91 : vector<2x128xf32>
    %cst_21 = arith.constant 1.000000e+00 : f32
    %93 = vector.broadcast %cst_21 : f32 to vector<2x128xf32>
    %94 = arith.addf %93, %92 : vector<2x128xf32>
    %95 = arith.divf %93, %94 : vector<2x128xf32>
    %96 = vector.extract_strided_slice %79 {offsets = [0, 256], sizes = [2, 128], strides = [1, 1]} : vector<2x512xf32> to vector<2x128xf32>
    %97 = math.tanh %96 : vector<2x128xf32>
    %98 = vector.extract_strided_slice %79 {offsets = [0, 384], sizes = [2, 128], strides = [1, 1]} : vector<2x512xf32> to vector<2x128xf32>
    %99 = arith.negf %98 : vector<2x128xf32>
    %100 = math.exp %99 : vector<2x128xf32>
    %cst_22 = arith.constant 1.000000e+00 : f32
    %101 = vector.broadcast %cst_22 : f32 to vector<2x128xf32>
    %102 = arith.addf %101, %100 : vector<2x128xf32>
    %103 = arith.divf %101, %102 : vector<2x128xf32>
    %104 = arith.mulf %95, %46 : vector<2x128xf32>
    %105 = arith.mulf %89, %97 : vector<2x128xf32>
    %106 = arith.addf %104, %105 : vector<2x128xf32>
    %107 = math.tanh %106 : vector<2x128xf32>
    %108 = arith.mulf %103, %107 : vector<2x128xf32>
    %109 = vector.extract_strided_slice %83 {offsets = [0, 0], sizes = [2, 128], strides = [1, 1]} : vector<2x512xf32> to vector<2x128xf32>
    %110 = arith.negf %109 : vector<2x128xf32>
    %111 = math.exp %110 : vector<2x128xf32>
    %cst_23 = arith.constant 1.000000e+00 : f32
    %112 = vector.broadcast %cst_23 : f32 to vector<2x128xf32>
    %113 = arith.addf %112, %111 : vector<2x128xf32>
    %114 = arith.divf %112, %113 : vector<2x128xf32>
    %115 = vector.extract_strided_slice %83 {offsets = [0, 128], sizes = [2, 128], strides = [1, 1]} : vector<2x512xf32> to vector<2x128xf32>
    %116 = arith.negf %115 : vector<2x128xf32>
    %117 = math.exp %116 : vector<2x128xf32>
    %cst_24 = arith.constant 1.000000e+00 : f32
    %118 = vector.broadcast %cst_24 : f32 to vector<2x128xf32>
    %119 = arith.addf %118, %117 : vector<2x128xf32>
    %120 = arith.divf %118, %119 : vector<2x128xf32>
    %121 = vector.extract_strided_slice %83 {offsets = [0, 256], sizes = [2, 128], strides = [1, 1]} : vector<2x512xf32> to vector<2x128xf32>
    %122 = math.tanh %121 : vector<2x128xf32>
    %123 = vector.extract_strided_slice %83 {offsets = [0, 384], sizes = [2, 128], strides = [1, 1]} : vector<2x512xf32> to vector<2x128xf32>
    %124 = arith.negf %123 : vector<2x128xf32>
    %125 = math.exp %124 : vector<2x128xf32>
    %cst_25 = arith.constant 1.000000e+00 : f32
    %126 = vector.broadcast %cst_25 : f32 to vector<2x128xf32>
    %127 = arith.addf %126, %125 : vector<2x128xf32>
    %128 = arith.divf %126, %127 : vector<2x128xf32>
    %129 = arith.mulf %120, %71 : vector<2x128xf32>
    %130 = arith.mulf %114, %122 : vector<2x128xf32>
    %131 = arith.addf %129, %130 : vector<2x128xf32>
    %132 = math.tanh %131 : vector<2x128xf32>
    %133 = arith.mulf %128, %132 : vector<2x128xf32>
    %134 = tpu.concatenate %108, %133 in 1 : vector<2x128xf32>, vector<2x128xf32> -> vector<2x256xf32>
    %cst_26 = arith.constant dense<0.000000e+00> : vector<2x1024xf32>
    %135 = tpu.matmul %134, %9, %cst_26 {dimension_numbers = #tpu.dot_dimension_numbers<[1], [0], [0], [1], [0, 0, 1, 1], [], []>} : vector<2x256xf32>, vector<256x1024xf32>, vector<2x1024xf32> -> vector<2x1024xf32>
    %136 = vector.extract_strided_slice %8 {offsets = [0, 2, 0], sizes = [2, 1, 512], strides = [1, 1, 1]} : vector<2x4x1024xf32> to vector<2x1x512xf32>
    %137 = vector.shape_cast %136 : vector<2x1x512xf32> to vector<2x512xf32>
    %138 = vector.extract_strided_slice %135 {offsets = [0, 0], sizes = [2, 512], strides = [1, 1]} : vector<2x1024xf32> to vector<2x512xf32>
    %139 = arith.addf %137, %138 : vector<2x512xf32>
    %140 = vector.extract_strided_slice %8 {offsets = [0, 1, 512], sizes = [2, 1, 512], strides = [1, 1, 1]} : vector<2x4x1024xf32> to vector<2x1x512xf32>
    %141 = vector.shape_cast %140 : vector<2x1x512xf32> to vector<2x512xf32>
    %142 = vector.extract_strided_slice %135 {offsets = [0, 512], sizes = [2, 512], strides = [1, 1]} : vector<2x1024xf32> to vector<2x512xf32>
    %143 = arith.addf %141, %142 : vector<2x512xf32>
    %144 = vector.extract_strided_slice %139 {offsets = [0, 0], sizes = [2, 128], strides = [1, 1]} : vector<2x512xf32> to vector<2x128xf32>
    %145 = arith.negf %144 : vector<2x128xf32>
    %146 = math.exp %145 : vector<2x128xf32>
    %cst_27 = arith.constant 1.000000e+00 : f32
    %147 = vector.broadcast %cst_27 : f32 to vector<2x128xf32>
    %148 = arith.addf %147, %146 : vector<2x128xf32>
    %149 = arith.divf %147, %148 : vector<2x128xf32>
    %150 = vector.extract_strided_slice %139 {offsets = [0, 128], sizes = [2, 128], strides = [1, 1]} : vector<2x512xf32> to vector<2x128xf32>
    %151 = arith.negf %150 : vector<2x128xf32>
    %152 = math.exp %151 : vector<2x128xf32>
    %cst_28 = arith.constant 1.000000e+00 : f32
    %153 = vector.broadcast %cst_28 : f32 to vector<2x128xf32>
    %154 = arith.addf %153, %152 : vector<2x128xf32>
    %155 = arith.divf %153, %154 : vector<2x128xf32>
    %156 = vector.extract_strided_slice %139 {offsets = [0, 256], sizes = [2, 128], strides = [1, 1]} : vector<2x512xf32> to vector<2x128xf32>
    %157 = math.tanh %156 : vector<2x128xf32>
    %158 = vector.extract_strided_slice %139 {offsets = [0, 384], sizes = [2, 128], strides = [1, 1]} : vector<2x512xf32> to vector<2x128xf32>
    %159 = arith.negf %158 : vector<2x128xf32>
    %160 = math.exp %159 : vector<2x128xf32>
    %cst_29 = arith.constant 1.000000e+00 : f32
    %161 = vector.broadcast %cst_29 : f32 to vector<2x128xf32>
    %162 = arith.addf %161, %160 : vector<2x128xf32>
    %163 = arith.divf %161, %162 : vector<2x128xf32>
    %164 = arith.mulf %155, %106 : vector<2x128xf32>
    %165 = arith.mulf %149, %157 : vector<2x128xf32>
    %166 = arith.addf %164, %165 : vector<2x128xf32>
    %167 = math.tanh %166 : vector<2x128xf32>
    %168 = arith.mulf %163, %167 : vector<2x128xf32>
    %169 = vector.extract_strided_slice %143 {offsets = [0, 0], sizes = [2, 128], strides = [1, 1]} : vector<2x512xf32> to vector<2x128xf32>
    %170 = arith.negf %169 : vector<2x128xf32>
    %171 = math.exp %170 : vector<2x128xf32>
    %cst_30 = arith.constant 1.000000e+00 : f32
    %172 = vector.broadcast %cst_30 : f32 to vector<2x128xf32>
    %173 = arith.addf %172, %171 : vector<2x128xf32>
    %174 = arith.divf %172, %173 : vector<2x128xf32>
    %175 = vector.extract_strided_slice %143 {offsets = [0, 128], sizes = [2, 128], strides = [1, 1]} : vector<2x512xf32> to vector<2x128xf32>
    %176 = arith.negf %175 : vector<2x128xf32>
    %177 = math.exp %176 : vector<2x128xf32>
    %cst_31 = arith.constant 1.000000e+00 : f32
    %178 = vector.broadcast %cst_31 : f32 to vector<2x128xf32>
    %179 = arith.addf %178, %177 : vector<2x128xf32>
    %180 = arith.divf %178, %179 : vector<2x128xf32>
    %181 = vector.extract_strided_slice %143 {offsets = [0, 256], sizes = [2, 128], strides = [1, 1]} : vector<2x512xf32> to vector<2x128xf32>
    %182 = math.tanh %181 : vector<2x128xf32>
    %183 = vector.extract_strided_slice %143 {offsets = [0, 384], sizes = [2, 128], strides = [1, 1]} : vector<2x512xf32> to vector<2x128xf32>
    %184 = arith.negf %183 : vector<2x128xf32>
    %185 = math.exp %184 : vector<2x128xf32>
    %cst_32 = arith.constant 1.000000e+00 : f32
    %186 = vector.broadcast %cst_32 : f32 to vector<2x128xf32>
    %187 = arith.addf %186, %185 : vector<2x128xf32>
    %188 = arith.divf %186, %187 : vector<2x128xf32>
    %189 = arith.mulf %180, %131 : vector<2x128xf32>
    %190 = arith.mulf %174, %182 : vector<2x128xf32>
    %191 = arith.addf %189, %190 : vector<2x128xf32>
    %192 = math.tanh %191 : vector<2x128xf32>
    %193 = arith.mulf %188, %192 : vector<2x128xf32>
    %194 = tpu.concatenate %168, %193 in 1 : vector<2x128xf32>, vector<2x128xf32> -> vector<2x256xf32>
    %cst_33 = arith.constant dense<0.000000e+00> : vector<2x1024xf32>
    %195 = tpu.matmul %194, %9, %cst_33 {dimension_numbers = #tpu.dot_dimension_numbers<[1], [0], [0], [1], [0, 0, 1, 1], [], []>} : vector<2x256xf32>, vector<256x1024xf32>, vector<2x1024xf32> -> vector<2x1024xf32>
    %196 = vector.extract_strided_slice %8 {offsets = [0, 3, 0], sizes = [2, 1, 512], strides = [1, 1, 1]} : vector<2x4x1024xf32> to vector<2x1x512xf32>
    %197 = vector.shape_cast %196 : vector<2x1x512xf32> to vector<2x512xf32>
    %198 = vector.extract_strided_slice %195 {offsets = [0, 0], sizes = [2, 512], strides = [1, 1]} : vector<2x1024xf32> to vector<2x512xf32>
    %199 = arith.addf %197, %198 : vector<2x512xf32>
    %200 = vector.extract_strided_slice %8 {offsets = [0, 0, 512], sizes = [2, 1, 512], strides = [1, 1, 1]} : vector<2x4x1024xf32> to vector<2x1x512xf32>
    %201 = vector.shape_cast %200 : vector<2x1x512xf32> to vector<2x512xf32>
    %202 = vector.extract_strided_slice %195 {offsets = [0, 512], sizes = [2, 512], strides = [1, 1]} : vector<2x1024xf32> to vector<2x512xf32>
    %203 = arith.addf %201, %202 : vector<2x512xf32>
    %204 = vector.extract_strided_slice %199 {offsets = [0, 0], sizes = [2, 128], strides = [1, 1]} : vector<2x512xf32> to vector<2x128xf32>
    %205 = arith.negf %204 : vector<2x128xf32>
    %206 = math.exp %205 : vector<2x128xf32>
    %cst_34 = arith.constant 1.000000e+00 : f32
    %207 = vector.broadcast %cst_34 : f32 to vector<2x128xf32>
    %208 = arith.addf %207, %206 : vector<2x128xf32>
    %209 = arith.divf %207, %208 : vector<2x128xf32>
    %210 = vector.extract_strided_slice %199 {offsets = [0, 128], sizes = [2, 128], strides = [1, 1]} : vector<2x512xf32> to vector<2x128xf32>
    %211 = arith.negf %210 : vector<2x128xf32>
    %212 = math.exp %211 : vector<2x128xf32>
    %cst_35 = arith.constant 1.000000e+00 : f32
    %213 = vector.broadcast %cst_35 : f32 to vector<2x128xf32>
    %214 = arith.addf %213, %212 : vector<2x128xf32>
    %215 = arith.divf %213, %214 : vector<2x128xf32>
    %216 = vector.extract_strided_slice %199 {offsets = [0, 256], sizes = [2, 128], strides = [1, 1]} : vector<2x512xf32> to vector<2x128xf32>
    %217 = math.tanh %216 : vector<2x128xf32>
    %218 = vector.extract_strided_slice %199 {offsets = [0, 384], sizes = [2, 128], strides = [1, 1]} : vector<2x512xf32> to vector<2x128xf32>
    %219 = arith.negf %218 : vector<2x128xf32>
    %220 = math.exp %219 : vector<2x128xf32>
    %cst_36 = arith.constant 1.000000e+00 : f32
    %221 = vector.broadcast %cst_36 : f32 to vector<2x128xf32>
    %222 = arith.addf %221, %220 : vector<2x128xf32>
    %223 = arith.divf %221, %222 : vector<2x128xf32>
    %224 = arith.mulf %215, %166 : vector<2x128xf32>
    %225 = arith.mulf %209, %217 : vector<2x128xf32>
    %226 = arith.addf %224, %225 : vector<2x128xf32>
    %227 = math.tanh %226 : vector<2x128xf32>
    %228 = arith.mulf %223, %227 : vector<2x128xf32>
    %229 = vector.extract_strided_slice %203 {offsets = [0, 0], sizes = [2, 128], strides = [1, 1]} : vector<2x512xf32> to vector<2x128xf32>
    %230 = arith.negf %229 : vector<2x128xf32>
    %231 = math.exp %230 : vector<2x128xf32>
    %cst_37 = arith.constant 1.000000e+00 : f32
    %232 = vector.broadcast %cst_37 : f32 to vector<2x128xf32>
    %233 = arith.addf %232, %231 : vector<2x128xf32>
    %234 = arith.divf %232, %233 : vector<2x128xf32>
    %235 = vector.extract_strided_slice %203 {offsets = [0, 128], sizes = [2, 128], strides = [1, 1]} : vector<2x512xf32> to vector<2x128xf32>
    %236 = arith.negf %235 : vector<2x128xf32>
    %237 = math.exp %236 : vector<2x128xf32>
    %cst_38 = arith.constant 1.000000e+00 : f32
    %238 = vector.broadcast %cst_38 : f32 to vector<2x128xf32>
    %239 = arith.addf %238, %237 : vector<2x128xf32>
    %240 = arith.divf %238, %239 : vector<2x128xf32>
    %241 = vector.extract_strided_slice %203 {offsets = [0, 256], sizes = [2, 128], strides = [1, 1]} : vector<2x512xf32> to vector<2x128xf32>
    %242 = math.tanh %241 : vector<2x128xf32>
    %243 = vector.extract_strided_slice %203 {offsets = [0, 384], sizes = [2, 128], strides = [1, 1]} : vector<2x512xf32> to vector<2x128xf32>
    %244 = arith.negf %243 : vector<2x128xf32>
    %245 = math.exp %244 : vector<2x128xf32>
    %cst_39 = arith.constant 1.000000e+00 : f32
    %246 = vector.broadcast %cst_39 : f32 to vector<2x128xf32>
    %247 = arith.addf %246, %245 : vector<2x128xf32>
    %248 = arith.divf %246, %247 : vector<2x128xf32>
    %249 = arith.mulf %240, %191 : vector<2x128xf32>
    %250 = arith.mulf %234, %242 : vector<2x128xf32>
    %251 = arith.addf %249, %250 : vector<2x128xf32>
    %252 = math.tanh %251 : vector<2x128xf32>
    %253 = arith.mulf %248, %252 : vector<2x128xf32>
    %254 = tpu.concatenate %48, %253 in 1 : vector<2x128xf32>, vector<2x128xf32> -> vector<2x256xf32>
    %255 = tpu.concatenate %108, %193 in 1 : vector<2x128xf32>, vector<2x128xf32> -> vector<2x256xf32>
    %256 = tpu.concatenate %168, %133 in 1 : vector<2x128xf32>, vector<2x128xf32> -> vector<2x256xf32>
    %257 = tpu.concatenate %228, %73 in 1 : vector<2x128xf32>, vector<2x128xf32> -> vector<2x256xf32>
    %258 = tpu.concatenate %254, %255, %256, %257 in 0 : vector<2x256xf32>, vector<2x256xf32>, vector<2x256xf32>, vector<2x256xf32> -> vector<8x256xf32>
    %259 = arith.truncf %258 : vector<8x256xf32> to vector<8x256xbf16>
    %c0_40 = arith.constant 0 : index
    %c0_41 = arith.constant 0 : index
    %260 = vector.load %arg8[%c0_40, %c0_41] : memref<256x256xbf16, #tpu.memory_space<vmem>>, vector<256x256xbf16>
    %cst_42 = arith.constant dense<0.000000e+00> : vector<8x256xf32>
    %261 = tpu.matmul %259, %260, %cst_42 {dimension_numbers = #tpu.dot_dimension_numbers<[1], [0], [0], [1], [0, 0, 1, 1], [], []>} : vector<8x256xbf16>, vector<256x256xbf16>, vector<8x256xf32> -> vector<8x256xf32>
    %c0_43 = arith.constant 0 : index
    %c0_44 = arith.constant 0 : index
    %262 = vector.load %arg9[%c0_43, %c0_44] : memref<1x256xf32, #tpu.memory_space<vmem>>, vector<1x256xf32>
    %263 = vector.broadcast %262 : vector<1x256xf32> to vector<8x256xf32>
    %264 = arith.addf %261, %263 : vector<8x256xf32>
    %265 = math.tanh %264 : vector<8x256xf32>
    %c0_45 = arith.constant 0 : index
    %c0_46 = arith.constant 0 : index
    %266 = vector.load %arg4[%c0_45, %c0_46] : memref<128x512xf32, #tpu.memory_space<vmem>>, vector<128x512xf32>
    %267 = arith.truncf %266 : vector<128x512xf32> to vector<128x512xbf16>
    %c0_47 = arith.constant 0 : index
    %c0_48 = arith.constant 0 : index
    %268 = vector.load %arg10[%c0_47, %c0_48] : memref<512x256xbf16, #tpu.memory_space<vmem>>, vector<512x256xbf16>
    %cst_49 = arith.constant dense<0.000000e+00> : vector<128x256xf32>
    %269 = tpu.matmul %267, %268, %cst_49 {dimension_numbers = #tpu.dot_dimension_numbers<[1], [0], [0], [1], [0, 0, 1, 1], [], []>} : vector<128x512xbf16>, vector<512x256xbf16>, vector<128x256xf32> -> vector<128x256xf32>
    %c0_50 = arith.constant 0 : index
    %c0_51 = arith.constant 0 : index
    %270 = vector.load %arg11[%c0_50, %c0_51] : memref<1x256xf32, #tpu.memory_space<vmem>>, vector<1x256xf32>
    %271 = vector.broadcast %270 : vector<1x256xf32> to vector<128x256xf32>
    %272 = arith.addf %269, %271 : vector<128x256xf32>
    %273 = arith.truncf %265 : vector<8x256xf32> to vector<8x256xbf16>
    %274 = arith.truncf %272 : vector<128x256xf32> to vector<128x256xbf16>
    %cst_52 = arith.constant dense<0.000000e+00> : vector<8x128xf32>
    %275 = tpu.matmul %273, %274, %cst_52 {dimension_numbers = #tpu.dot_dimension_numbers<[1], [1], [0], [0], [0, 0, 1, 0], [], []>} : vector<8x256xbf16>, vector<128x256xbf16>, vector<8x128xf32> -> vector<8x128xf32>
    %276 = vector.shape_cast %275 : vector<8x128xf32> to vector<4x2x128xf32>
    %c0_53 = arith.constant 0 : index
    %c0_54 = arith.constant 0 : index
    %c0_55 = arith.constant 0 : index
    %277 = vector.load %arg1[%c0_53, %c0_54, %c0_55] : memref<4x2x1xf32, #tpu.memory_space<vmem>>, vector<4x2x1xf32>
    %cst_56 = arith.constant 0.000000e+00 : f32
    %278 = vector.broadcast %cst_56 : f32 to vector<4x2x1xf32>
    %279 = arith.cmpf ogt, %277, %278 : vector<4x2x1xf32>
    %cst_57 = arith.constant -1.000000e-32 : f32
    %280 = vector.shape_cast %279 : vector<4x2x1xi1> to vector<4x2x1xi1>
    %281 = vector.broadcast %280 : vector<4x2x1xi1> to vector<4x2x128xi1>
    %282 = vector.broadcast %cst_57 : f32 to vector<4x2x128xf32>
    %283 = arith.select %281, %276, %282 : vector<4x2x128xi1>, vector<4x2x128xf32>
    %cst_58 = arith.constant dense<0xFF800000> : vector<2x128xf32>
    %284 = vector.multi_reduction <maximumf>, %283, %cst_58 [0] : vector<4x2x128xf32> to vector<2x128xf32>
    %285 = vector.shape_cast %284 : vector<2x128xf32> to vector<1x2x128xf32>
    %286 = vector.broadcast %285 : vector<1x2x128xf32> to vector<4x2x128xf32>
    %287 = arith.subf %283, %286 : vector<4x2x128xf32>
    %288 = math.exp %287 : vector<4x2x128xf32>
    %cst_59 = arith.constant dense<0.000000e+00> : vector<2x128xf32>
    %289 = vector.multi_reduction <add>, %288, %cst_59 [0] : vector<4x2x128xf32> to vector<2x128xf32>
    %290 = vector.shape_cast %289 : vector<2x128xf32> to vector<1x2x128xf32>
    %291 = vector.broadcast %290 : vector<1x2x128xf32> to vector<4x2x128xf32>
    %292 = arith.divf %288, %291 : vector<4x2x128xf32>
    %c0_60 = arith.constant 0 : index
    %c0_61 = arith.constant 0 : index
    %293 = vector.load %arg3[%c0_60, %c0_61] : memref<2x128xf32, #tpu.memory_space<vmem>>, vector<2x128xf32>
    %294 = vector.shape_cast %293 : vector<2x128xf32> to vector<1x2x128xf32>
    %295 = vector.broadcast %294 : vector<1x2x128xf32> to vector<4x2x128xf32>
    %296 = arith.mulf %295, %292 : vector<4x2x128xf32>
    %cst_62 = arith.constant dense<0.000000e+00> : vector<4x2xf32>
    %297 = vector.multi_reduction <add>, %296, %cst_62 [2] : vector<4x2x128xf32> to vector<4x2xf32>
    %298 = vector.shape_cast %297 : vector<4x2xf32> to vector<4x2x1xf32>
    %299 = vector.shape_cast %258 : vector<8x256xf32> to vector<4x2x256xf32>
    %300 = vector.broadcast %298 : vector<4x2x1xf32> to vector<4x2x256xf32>
    %301 = arith.mulf %299, %300 : vector<4x2x256xf32>
    %cst_63 = arith.constant dense<0.000000e+00> : vector<2x256xf32>
    %302 = vector.multi_reduction <add>, %301, %cst_63 [0] : vector<4x2x256xf32> to vector<2x256xf32>
    %c0_64 = arith.constant 0 : index
    %c0_65 = arith.constant 0 : index
    %303 = vector.load %arg2[%c0_64, %c0_65] : memref<2x256xf32, #tpu.memory_space<vmem>>, vector<2x256xf32>
    %304 = arith.addf %303, %302 : vector<2x256xf32>
    %305 = arith.truncf %304 : vector<2x256xf32> to vector<2x256xbf16>
    %c0_66 = arith.constant 0 : index
    %c0_67 = arith.constant 0 : index
    %306 = vector.load %arg12[%c0_66, %c0_67] : memref<256x128xbf16, #tpu.memory_space<vmem>>, vector<256x128xbf16>
    %cst_68 = arith.constant dense<0.000000e+00> : vector<2x128xf32>
    %307 = tpu.matmul %305, %306, %cst_68 {dimension_numbers = #tpu.dot_dimension_numbers<[1], [0], [0], [1], [0, 0, 1, 1], [], []>} : vector<2x256xbf16>, vector<256x128xbf16>, vector<2x128xf32> -> vector<2x128xf32>
    %c0_69 = arith.constant 0 : index
    %c0_70 = arith.constant 0 : index
    %308 = vector.load %arg13[%c0_69, %c0_70] : memref<1x128xf32, #tpu.memory_space<vmem>>, vector<1x128xf32>
    %309 = vector.broadcast %308 : vector<1x128xf32> to vector<2x128xf32>
    %310 = arith.addf %307, %309 : vector<2x128xf32>
    %c0_71 = arith.constant 0 : index
    %c0_72 = arith.constant 0 : index
    %311 = vector.load %arg14[%c0_71, %c0_72] : memref<2x128xf32, #tpu.memory_space<vmem>>, vector<2x128xf32>
    tpu.vector_store %arg14[%c0_71, %c0_72], %310 {strides = array<i32>} : memref<2x128xf32, #tpu.memory_space<vmem>>, vector<2x128xf32>,
    return
  }
}

</mosaic_0001>

<llo_original>
// kernel: ladan_forward.2
$region0: #{ladan_forward.2}
  #allocation0 [shape = 'u32[]', space=smem, size = 0x4, offset = 0x4, fixed_abs, tag = 'smem constant byte address 0x4 - core index']
  #allocation1 [shape = 'u32[72,128]{1,0:T(1,128)}', space=vmem, size = 0x9000, scoped, tag = 'internal scratch']
  %s0 = inlined_call_operand.vmem [shape: f32[40,8,256], index: 0, kind: input, shape index: {}]
  %s1 = inlined_call_operand.vmem [shape: f32[40,8,1], index: 1, kind: input, shape index: {}]
  %s2 = inlined_call_operand.vmem [shape: f32[10,40], index: 2, kind: input, shape index: {}]
  %s3 = inlined_call_operand.vmem [shape: f32[10,1], index: 3, kind: input, shape index: {}]
  %s4 = inlined_call_operand.vmem [shape: bf16[256,256], index: 4, kind: input, shape index: {}]
  %s5 = inlined_call_operand.vmem [shape: f32[1,256], index: 5, kind: input, shape index: {}]
  %s6 = inlined_call_operand.vmem [shape: bf16[256,128], index: 6, kind: input, shape index: {}]
  %s7 = inlined_call_operand.vmem [shape: f32[1,128], index: 7, kind: input, shape index: {}]
  %s8 = inlined_call_operand.vmem [shape: f32[40,256], index: 8, kind: output, shape index: {0}]
  %s9 = inlined_call_operand.vmem [shape: f32[10,256], index: 9, kind: output, shape index: {1}]
  %s10 = inlined_call_operand.vmem [shape: f32[10,128], index: 10, kind: output, shape index: {2}]
  %11 = xla_tuple %s8, %s9, %s10
  %s12 = sld [smem:[#allocation0]]
  $region58: #{ladan_forward.2} parent=0
    _
  %s14 = ssub.s32 1, %s12
  %s15 = scalar_select 0, %s14, %s12
  // Predicated region
  $region2: #{ladan_forward.2} parent=0 // pred_check
    _
  $region3: #{ladan_forward.2} parent=0 // pred_check_branch
    %17 = sbr.rel (0) target = $region5
  $region4: #{ladan_forward.2} parent=0 // pred_region
    _
  $region5: #{ladan_forward.2} parent=0 // pred_fallthru
    _
  // Predicated region
  $region6: #{ladan_forward.2} parent=0 // pred_check
    _
  $region7: #{ladan_forward.2} parent=0 // pred_check_branch
    %19 = sbr.rel (0) target = $region9
  $region8: #{ladan_forward.2} parent=0 // pred_region
    _
  $region9: #{ladan_forward.2} parent=0 // pred_fallthru
    _
  // Predicated region
  $region10: #{ladan_forward.2} parent=0 // pred_check
    _
  $region11: #{ladan_forward.2} parent=0 // pred_check_branch
    %21 = sbr.rel (0) target = $region13
  $region12: #{ladan_forward.2} parent=0 // pred_region
    _
  $region13: #{ladan_forward.2} parent=0 // pred_fallthru
    _
  // Predicated region
  $region14: #{ladan_forward.2} parent=0 // pred_check
    _
  $region15: #{ladan_forward.2} parent=0 // pred_check_branch
    %23 = sbr.rel (0) target = $region17
  $region16: #{ladan_forward.2} parent=0 // pred_region
    _
  $region17: #{ladan_forward.2} parent=0 // pred_fallthru
    _
  // Predicated region
  $region18: #{ladan_forward.2} parent=0 // pred_check
    _
  $region19: #{ladan_forward.2} parent=0 // pred_check_branch
    %25 = sbr.rel (0) target = $region21
  $region20: #{ladan_forward.2} parent=0 // pred_region
    _
  $region21: #{ladan_forward.2} parent=0 // pred_fallthru
    _
  // Predicated region
  $region22: #{ladan_forward.2} parent=0 // pred_check
    _
  $region23: #{ladan_forward.2} parent=0 // pred_check_branch
    %27 = sbr.rel (0) target = $region25
  $region24: #{ladan_forward.2} parent=0 // pred_region
    _
  $region25: #{ladan_forward.2} parent=0 // pred_fallthru
    _
  // Predicated region
  $region26: #{ladan_forward.2} parent=0 // pred_check
    _
  $region27: #{ladan_forward.2} parent=0 // pred_check_branch
    %29 = sbr.rel (0) target = $region29
  $region28: #{ladan_forward.2} parent=0 // pred_region
    _
  $region29: #{ladan_forward.2} parent=0 // pred_fallthru
    _
  // Predicated region
  $region30: #{ladan_forward.2} parent=0 // pred_check
    _
  $region31: #{ladan_forward.2} parent=0 // pred_check_branch
    %31 = sbr.rel (0) target = $region33
  $region32: #{ladan_forward.2} parent=0 // pred_region
    _
  $region33: #{ladan_forward.2} parent=0 // pred_fallthru
    _
  %v32 = vld [vmem:[%s0] sm:$0xff]
  %v33 = vld [vmem:[%s0 + $0x8] sm:$0xff]
  %v34 = vld [vmem:[%s0 + $0x10] sm:$0xff]
  %v35 = vld [vmem:[%s0 + $0x18] sm:$0xff]
  %v36 = vld [vmem:[%s0 + $0x20] sm:$0xff]
  %v37 = vld [vmem:[%s0 + $0x28] sm:$0xff]
  %v38 = vld [vmem:[%s0 + $0x30] sm:$0xff]
  %v39 = vld [vmem:[%s0 + $0x38] sm:$0xff]
  %v40 = vld [vmem:[%s0 + $0x40] sm:$0xff]
  %v41 = vld [vmem:[%s0 + $0x48] sm:$0xff]
  %v42 = vld [vmem:[%s0 + $0x50] sm:$0xff]
  %v43 = vld [vmem:[%s0 + $0x58] sm:$0xff]
  %v44 = vld [vmem:[%s0 + $0x60] sm:$0xff]
  %v45 = vld [vmem:[%s0 + $0x68] sm:$0xff]
  %v46 = vld [vmem:[%s0 + $0x70] sm:$0xff]
  %v47 = vld [vmem:[%s0 + $0x78] sm:$0xff]
  %v48 = vld [vmem:[%s0 + $0x80] sm:$0xff]
  %v49 = vld [vmem:[%s0 + $0x88] sm:$0xff]
  %v50 = vld [vmem:[%s0 + $0x90] sm:$0xff]
  %v51 = vld [vmem:[%s0 + $0x98] sm:$0xff]
  %v52 = vld [vmem:[%s0 + $0xa0] sm:$0xff]
  %v53 = vld [vmem:[%s0 + $0xa8] sm:$0xff]
  %v54 = vld [vmem:[%s0 + $0xb0] sm:$0xff]
  %v55 = vld [vmem:[%s0 + $0xb8] sm:$0xff]
  %v56 = vld [vmem:[%s0 + $0xc0] sm:$0xff]
  %v57 = vld [vmem:[%s0 + $0xc8] sm:$0xff]
  %v58 = vld [vmem:[%s0 + $0xd0] sm:$0xff]
  %v59 = vld [vmem:[%s0 + $0xd8] sm:$0xff]
  %v60 = vld [vmem:[%s0 + $0xe0] sm:$0xff]
  %v61 = vld [vmem:[%s0 + $0xe8] sm:$0xff]
  %v62 = vld [vmem:[%s0 + $0xf0] sm:$0xff]
  %v63 = vld [vmem:[%s0 + $0xf8] sm:$0xff]
  %v64 = vld [vmem:[%s0 + $0x100] sm:$0xff]
  %v65 = vld [vmem:[%s0 + $0x108] sm:$0xff]
  %v66 = vld [vmem:[%s0 + $0x110] sm:$0xff]
  %v67 = vld [vmem:[%s0 + $0x118] sm:$0xff]
  %v68 = vld [vmem:[%s0 + $0x120] sm:$0xff]
  %v69 = vld [vmem:[%s0 + $0x128] sm:$0xff]
  %v70 = vld [vmem:[%s0 + $0x130] sm:$0xff]
  %v71 = vld [vmem:[%s0 + $0x138] sm:$0xff]
  %v72 = vld [vmem:[%s0 + $0x140] sm:$0xff]
  %v73 = vld [vmem:[%s0 + $0x148] sm:$0xff]
  %v74 = vld [vmem:[%s0 + $0x150] sm:$0xff]
  %v75 = vld [vmem:[%s0 + $0x158] sm:$0xff]
  %v76 = vld [vmem:[%s0 + $0x160] sm:$0xff]
  %v77 = vld [vmem:[%s0 + $0x168] sm:$0xff]
  %v78 = vld [vmem:[%s0 + $0x170] sm:$0xff]
  %v79 = vld [vmem:[%s0 + $0x178] sm:$0xff]
  %v80 = vld [vmem:[%s0 + $0x180] sm:$0xff]
  %v81 = vld [vmem:[%s0 + $0x188] sm:$0xff]
  %v82 = vld [vmem:[%s0 + $0x190] sm:$0xff]
  %v83 = vld [vmem:[%s0 + $0x198] sm:$0xff]
  %v84 = vld [vmem:[%s0 + $0x1a0] sm:$0xff]
  %v85 = vld [vmem:[%s0 + $0x1a8] sm:$0xff]
  %v86 = vld [vmem:[%s0 + $0x1b0] sm:$0xff]
  %v87 = vld [vmem:[%s0 + $0x1b8] sm:$0xff]
  %v88 = vld [vmem:[%s0 + $0x1c0] sm:$0xff]
  %v89 = vld [vmem:[%s0 + $0x1c8] sm:$0xff]
  %v90 = vld [vmem:[%s0 + $0x1d0] sm:$0xff]
  %v91 = vld [vmem:[%s0 + $0x1d8] sm:$0xff]
  %v92 = vld [vmem:[%s0 + $0x1e0] sm:$0xff]
  %v93 = vld [vmem:[%s0 + $0x1e8] sm:$0xff]
  %v94 = vld [vmem:[%s0 + $0x1f0] sm:$0xff]
  %v95 = vld [vmem:[%s0 + $0x1f8] sm:$0xff]
  %v96 = vld [vmem:[%s0 + $0x200] sm:$0xff]
  %v97 = vld [vmem:[%s0 + $0x208] sm:$0xff]
  %v98 = vld [vmem:[%s0 + $0x210] sm:$0xff]
  %v99 = vld [vmem:[%s0 + $0x218] sm:$0xff]
  %v100 = vld [vmem:[%s0 + $0x220] sm:$0xff]
  %v101 = vld [vmem:[%s0 + $0x228] sm:$0xff]
  %v102 = vld [vmem:[%s0 + $0x230] sm:$0xff]
  %v103 = vld [vmem:[%s0 + $0x238] sm:$0xff]
  %v104 = vld [vmem:[%s0 + $0x240] sm:$0xff]
  %v105 = vld [vmem:[%s0 + $0x248] sm:$0xff]
  %v106 = vld [vmem:[%s0 + $0x250] sm:$0xff]
  %v107 = vld [vmem:[%s0 + $0x258] sm:$0xff]
  %v108 = vld [vmem:[%s0 + $0x260] sm:$0xff]
  %v109 = vld [vmem:[%s0 + $0x268] sm:$0xff]
  %v110 = vld [vmem:[%s0 + $0x270] sm:$0xff]
  %v111 = vld [vmem:[%s0 + $0x278] sm:$0xff]
  %v112 = vld [vmem:[%s1] sm:$0xff]
  %v113 = vld [vmem:[%s1 + $0x8] sm:$0xff]
  %v114 = vld [vmem:[%s1 + $0x10] sm:$0xff]
  %v115 = vld [vmem:[%s1 + $0x18] sm:$0xff]
  %v116 = vld [vmem:[%s1 + $0x20] sm:$0xff]
  %v117 = vld [vmem:[%s1 + $0x28] sm:$0xff]
  %v118 = vld [vmem:[%s1 + $0x30] sm:$0xff]
  %v119 = vld [vmem:[%s1 + $0x38] sm:$0xff]
  %v120 = vld [vmem:[%s1 + $0x40] sm:$0xff]
  %v121 = vld [vmem:[%s1 + $0x48] sm:$0xff]
  %v122 = vld [vmem:[%s1 + $0x50] sm:$0xff]
  %v123 = vld [vmem:[%s1 + $0x58] sm:$0xff]
  %v124 = vld [vmem:[%s1 + $0x60] sm:$0xff]
  %v125 = vld [vmem:[%s1 + $0x68] sm:$0xff]
  %v126 = vld [vmem:[%s1 + $0x70] sm:$0xff]
  %v127 = vld [vmem:[%s1 + $0x78] sm:$0xff]
  %v128 = vld [vmem:[%s1 + $0x80] sm:$0xff]
  %v129 = vld [vmem:[%s1 + $0x88] sm:$0xff]
  %v130 = vld [vmem:[%s1 + $0x90] sm:$0xff]
  %v131 = vld [vmem:[%s1 + $0x98] sm:$0xff]
  %v132 = vld [vmem:[%s1 + $0xa0] sm:$0xff]
  %v133 = vld [vmem:[%s1 + $0xa8] sm:$0xff]
  %v134 = vld [vmem:[%s1 + $0xb0] sm:$0xff]
  %v135 = vld [vmem:[%s1 + $0xb8] sm:$0xff]
  %v136 = vld [vmem:[%s1 + $0xc0] sm:$0xff]
  %v137 = vld [vmem:[%s1 + $0xc8] sm:$0xff]
  %v138 = vld [vmem:[%s1 + $0xd0] sm:$0xff]
  %v139 = vld [vmem:[%s1 + $0xd8] sm:$0xff]
  %v140 = vld [vmem:[%s1 + $0xe0] sm:$0xff]
  %v141 = vld [vmem:[%s1 + $0xe8] sm:$0xff]
  %v142 = vld [vmem:[%s1 + $0xf0] sm:$0xff]
  %v143 = vld [vmem:[%s1 + $0xf8] sm:$0xff]
  %v144 = vld [vmem:[%s1 + $0x100] sm:$0xff]
  %v145 = vld [vmem:[%s1 + $0x108] sm:$0xff]
  %v146 = vld [vmem:[%s1 + $0x110] sm:$0xff]
  %v147 = vld [vmem:[%s1 + $0x118] sm:$0xff]
  %v148 = vld [vmem:[%s1 + $0x120] sm:$0xff]
  %v149 = vld [vmem:[%s1 + $0x128] sm:$0xff]
  %v150 = vld [vmem:[%s1 + $0x130] sm:$0xff]
  %v151 = vld [vmem:[%s1 + $0x138] sm:$0xff]
  %153 = vset.pattern.permute.xlu0 0
  %154 = vperm.xlu0 %153, %v112
  %v155 = vpop.permute.xlu0 %154
  %158 = vset.pattern.permute.xlu0 0
  %159 = vperm.xlu0 %158, %v113
  %v160 = vpop.permute.xlu0 %159
  %163 = vset.pattern.permute.xlu0 0
  %164 = vperm.xlu0 %163, %v114
  %v165 = vpop.permute.xlu0 %164
  %168 = vset.pattern.permute.xlu0 0
  %169 = vperm.xlu0 %168, %v115
  %v170 = vpop.permute.xlu0 %169
  %173 = vset.pattern.permute.xlu0 0
  %174 = vperm.xlu0 %173, %v116
  %v175 = vpop.permute.xlu0 %174
  %178 = vset.pattern.permute.xlu0 0
  %179 = vperm.xlu0 %178, %v117
  %v180 = vpop.permute.xlu0 %179
  %183 = vset.pattern.permute.xlu0 0
  %184 = vperm.xlu0 %183, %v118
  %v185 = vpop.permute.xlu0 %184
  %188 = vset.pattern.permute.xlu0 0
  %189 = vperm.xlu0 %188, %v119
  %v190 = vpop.permute.xlu0 %189
  %193 = vset.pattern.permute.xlu0 0
  %194 = vperm.xlu0 %193, %v120
  %v195 = vpop.permute.xlu0 %194
  %198 = vset.pattern.permute.xlu0 0
  %199 = vperm.xlu0 %198, %v121
  %v200 = vpop.permute.xlu0 %199
  %203 = vset.pattern.permute.xlu0 0
  %204 = vperm.xlu0 %203, %v122
  %v205 = vpop.permute.xlu0 %204
  %208 = vset.pattern.permute.xlu0 0
  %209 = vperm.xlu0 %208, %v123
  %v210 = vpop.permute.xlu0 %209
  %213 = vset.pattern.permute.xlu0 0
  %214 = vperm.xlu0 %213, %v124
  %v215 = vpop.permute.xlu0 %214
  %218 = vset.pattern.permute.xlu0 0
  %219 = vperm.xlu0 %218, %v125
  %v220 = vpop.permute.xlu0 %219
  %223 = vset.pattern.permute.xlu0 0
  %224 = vperm.xlu0 %223, %v126
  %v225 = vpop.permute.xlu0 %224
  %228 = vset.pattern.permute.xlu0 0
  %229 = vperm.xlu0 %228, %v127
  %v230 = vpop.permute.xlu0 %229
  %233 = vset.pattern.permute.xlu0 0
  %234 = vperm.xlu0 %233, %v128
  %v235 = vpop.permute.xlu0 %234
  %238 = vset.pattern.permute.xlu0 0
  %239 = vperm.xlu0 %238, %v129
  %v240 = vpop.permute.xlu0 %239
  %243 = vset.pattern.permute.xlu0 0
  %244 = vperm.xlu0 %243, %v130
  %v245 = vpop.permute.xlu0 %244
  %248 = vset.pattern.permute.xlu0 0
  %249 = vperm.xlu0 %248, %v131
  %v250 = vpop.permute.xlu0 %249
  %253 = vset.pattern.permute.xlu0 0
  %254 = vperm.xlu0 %253, %v132
  %v255 = vpop.permute.xlu0 %254
  %258 = vset.pattern.permute.xlu0 0
  %259 = vperm.xlu0 %258, %v133
  %v260 = vpop.permute.xlu0 %259
  %263 = vset.pattern.permute.xlu0 0
  %264 = vperm.xlu0 %263, %v134
  %v265 = vpop.permute.xlu0 %264
  %268 = vset.pattern.permute.xlu0 0
  %269 = vperm.xlu0 %268, %v135
  %v270 = vpop.permute.xlu0 %269
  %273 = vset.pattern.permute.xlu0 0
  %274 = vperm.xlu0 %273, %v136
  %v275 = vpop.permute.xlu0 %274
  %278 = vset.pattern.permute.xlu0 0
  %279 = vperm.xlu0 %278, %v137
  %v280 = vpop.permute.xlu0 %279
  %283 = vset.pattern.permute.xlu0 0
  %284 = vperm.xlu0 %283, %v138
  %v285 = vpop.permute.xlu0 %284
  %288 = vset.pattern.permute.xlu0 0
  %289 = vperm.xlu0 %288, %v139
  %v290 = vpop.permute.xlu0 %289
  %293 = vset.pattern.permute.xlu0 0
  %294 = vperm.xlu0 %293, %v140
  %v295 = vpop.permute.xlu0 %294
  %298 = vset.pattern.permute.xlu0 0
  %299 = vperm.xlu0 %298, %v141
  %v300 = vpop.permute.xlu0 %299
  %303 = vset.pattern.permute.xlu0 0
  %304 = vperm.xlu0 %303, %v142
  %v305 = vpop.permute.xlu0 %304
  %308 = vset.pattern.permute.xlu0 0
  %309 = vperm.xlu0 %308, %v143
  %v310 = vpop.permute.xlu0 %309
  %313 = vset.pattern.permute.xlu0 0
  %314 = vperm.xlu0 %313, %v144
  %v315 = vpop.permute.xlu0 %314
  %318 = vset.pattern.permute.xlu0 0
  %319 = vperm.xlu0 %318, %v145
  %v320 = vpop.permute.xlu0 %319
  %323 = vset.pattern.permute.xlu0 0
  %324 = vperm.xlu0 %323, %v146
  %v325 = vpop.permute.xlu0 %324
  %328 = vset.pattern.permute.xlu0 0
  %329 = vperm.xlu0 %328, %v147
  %v330 = vpop.permute.xlu0 %329
  %333 = vset.pattern.permute.xlu0 0
  %334 = vperm.xlu0 %333, %v148
  %v335 = vpop.permute.xlu0 %334
  %338 = vset.pattern.permute.xlu0 0
  %339 = vperm.xlu0 %338, %v149
  %v340 = vpop.permute.xlu0 %339
  %343 = vset.pattern.permute.xlu0 0
  %344 = vperm.xlu0 %343, %v150
  %v345 = vpop.permute.xlu0 %344
  %348 = vset.pattern.permute.xlu0 0
  %349 = vperm.xlu0 %348, %v151
  %v350 = vpop.permute.xlu0 %349
  %v352 = vmul.f32 %v32, %v155
  %v353 = vmul.f32 %v33, %v155
  %v354 = vmul.f32 %v34, %v160
  %v355 = vmul.f32 %v35, %v160
  %v356 = vmul.f32 %v36, %v165
  %v357 = vmul.f32 %v37, %v165
  %v358 = vmul.f32 %v38, %v170
  %v359 = vmul.f32 %v39, %v170
  %v360 = vmul.f32 %v40, %v175
  %v361 = vmul.f32 %v41, %v175
  %v362 = vmul.f32 %v42, %v180
  %v363 = vmul.f32 %v43, %v180
  %v364 = vmul.f32 %v44, %v185
  %v365 = vmul.f32 %v45, %v185
  %v366 = vmul.f32 %v46, %v190
  %v367 = vmul.f32 %v47, %v190
  %v368 = vmul.f32 %v48, %v195
  %v369 = vmul.f32 %v49, %v195
  %v370 = vmul.f32 %v50, %v200
  %v371 = vmul.f32 %v51, %v200
  %v372 = vmul.f32 %v52, %v205
  %v373 = vmul.f32 %v53, %v205
  %v374 = vmul.f32 %v54, %v210
  %v375 = vmul.f32 %v55, %v210
  %v376 = vmul.f32 %v56, %v215
  %v377 = vmul.f32 %v57, %v215
  %v378 = vmul.f32 %v58, %v220
  %v379 = vmul.f32 %v59, %v220
  %v380 = vmul.f32 %v60, %v225
  %v381 = vmul.f32 %v61, %v225
  %v382 = vmul.f32 %v62, %v230
  %v383 = vmul.f32 %v63, %v230
  %v384 = vmul.f32 %v64, %v235
  %v385 = vmul.f32 %v65, %v235
  %v386 = vmul.f32 %v66, %v240
  %v387 = vmul.f32 %v67, %v240
  %v388 = vmul.f32 %v68, %v245
  %v389 = vmul.f32 %v69, %v245
  %v390 = vmul.f32 %v70, %v250
  %v391 = vmul.f32 %v71, %v250
  %v392 = vmul.f32 %v72, %v255
  %v393 = vmul.f32 %v73, %v255
  %v394 = vmul.f32 %v74, %v260
  %v395 = vmul.f32 %v75, %v260
  %v396 = vmul.f32 %v76, %v265
  %v397 = vmul.f32 %v77, %v265
  %v398 = vmul.f32 %v78, %v270
  %v399 = vmul.f32 %v79, %v270
  %v400 = vmul.f32 %v80, %v275
  %v401 = vmul.f32 %v81, %v275
  %v402 = vmul.f32 %v82, %v280
  %v403 = vmul.f32 %v83, %v280
  %v404 = vmul.f32 %v84, %v285
  %v405 = vmul.f32 %v85, %v285
  %v406 = vmul.f32 %v86, %v290
  %v407 = vmul.f32 %v87, %v290
  %v408 = vmul.f32 %v88, %v295
  %v409 = vmul.f32 %v89, %v295
  %v410 = vmul.f32 %v90, %v300
  %v411 = vmul.f32 %v91, %v300
  %v412 = vmul.f32 %v92, %v305
  %v413 = vmul.f32 %v93, %v305
  %v414 = vmul.f32 %v94, %v310
  %v415 = vmul.f32 %v95, %v310
  %v416 = vmul.f32 %v96, %v315
  %v417 = vmul.f32 %v97, %v315
  %v418 = vmul.f32 %v98, %v320
  %v419 = vmul.f32 %v99, %v320
  %v420 = vmul.f32 %v100, %v325
  %v421 = vmul.f32 %v101, %v325
  %v422 = vmul.f32 %v102, %v330
  %v423 = vmul.f32 %v103, %v330
  %v424 = vmul.f32 %v104, %v335
  %v425 = vmul.f32 %v105, %v335
  %v426 = vmul.f32 %v106, %v340
  %v427 = vmul.f32 %v107, %v340
  %v428 = vmul.f32 %v108, %v345
  %v429 = vmul.f32 %v109, %v345
  %v430 = vmul.f32 %v110, %v350
  %v431 = vmul.f32 %v111, %v350
  %v432 = vrot.slane %v352, 4
  %v433 = vadd.f32 %v352, %v432
  %v434 = vrot.slane %v433, 2
  %v435 = vadd.f32 %v433, %v434
  %v436 = vrot.slane %v435, 1
  %v437 = vadd.f32 %v435, %v436
  %v438 = vrot.slane %v353, 4
  %v439 = vadd.f32 %v353, %v438
  %v440 = vrot.slane %v439, 2
  %v441 = vadd.f32 %v439, %v440
  %v442 = vrot.slane %v441, 1
  %v443 = vadd.f32 %v441, %v442
  %v444 = vrot.slane %v354, 4
  %v445 = vadd.f32 %v354, %v444
  %v446 = vrot.slane %v445, 2
  %v447 = vadd.f32 %v445, %v446
  %v448 = vrot.slane %v447, 1
  %v449 = vadd.f32 %v447, %v448
  %v450 = vrot.slane %v355, 4
  %v451 = vadd.f32 %v355, %v450
  %v452 = vrot.slane %v451, 2
  %v453 = vadd.f32 %v451, %v452
  %v454 = vrot.slane %v453, 1
  %v455 = vadd.f32 %v453, %v454
  %v456 = vrot.slane %v356, 4
  %v457 = vadd.f32 %v356, %v456
  %v458 = vrot.slane %v457, 2
  %v459 = vadd.f32 %v457, %v458
  %v460 = vrot.slane %v459, 1
  %v461 = vadd.f32 %v459, %v460
  %v462 = vrot.slane %v357, 4
  %v463 = vadd.f32 %v357, %v462
  %v464 = vrot.slane %v463, 2
  %v465 = vadd.f32 %v463, %v464
  %v466 = vrot.slane %v465, 1
  %v467 = vadd.f32 %v465, %v466
  %v468 = vrot.slane %v358, 4
  %v469 = vadd.f32 %v358, %v468
  %v470 = vrot.slane %v469, 2
  %v471 = vadd.f32 %v469, %v470
  %v472 = vrot.slane %v471, 1
  %v473 = vadd.f32 %v471, %v472
  %v474 = vrot.slane %v359, 4
  %v475 = vadd.f32 %v359, %v474
  %v476 = vrot.slane %v475, 2
  %v477 = vadd.f32 %v475, %v476
  %v478 = vrot.slane %v477, 1
  %v479 = vadd.f32 %v477, %v478
  %v480 = vrot.slane %v360, 4
  %v481 = vadd.f32 %v360, %v480
  %v482 = vrot.slane %v481, 2
  %v483 = vadd.f32 %v481, %v482
  %v484 = vrot.slane %v483, 1
  %v485 = vadd.f32 %v483, %v484
  %v486 = vrot.slane %v361, 4
  %v487 = vadd.f32 %v361, %v486
  %v488 = vrot.slane %v487, 2
  %v489 = vadd.f32 %v487, %v488
  %v490 = vrot.slane %v489, 1
  %v491 = vadd.f32 %v489, %v490
  %v492 = vrot.slane %v362, 4
  %v493 = vadd.f32 %v362, %v492
  %v494 = vrot.slane %v493, 2
  %v495 = vadd.f32 %v493, %v494
  %v496 = vrot.slane %v495, 1
  %v497 = vadd.f32 %v495, %v496
  %v498 = vrot.slane %v363, 4
  %v499 = vadd.f32 %v363, %v498
  %v500 = vrot.slane %v499, 2
  %v501 = vadd.f32 %v499, %v500
  %v502 = vrot.slane %v501, 1
  %v503 = vadd.f32 %v501, %v502
  %v504 = vrot.slane %v364, 4
  %v505 = vadd.f32 %v364, %v504
  %v506 = vrot.slane %v505, 2
  %v507 = vadd.f32 %v505, %v506
  %v508 = vrot.slane %v507, 1
  %v509 = vadd.f32 %v507, %v508
  %v510 = vrot.slane %v365, 4
  %v511 = vadd.f32 %v365, %v510
  %v512 = vrot.slane %v511, 2
  %v513 = vadd.f32 %v511, %v512
  %v514 = vrot.slane %v513, 1
  %v515 = vadd.f32 %v513, %v514
  %v516 = vrot.slane %v366, 4
  %v517 = vadd.f32 %v366, %v516
  %v518 = vrot.slane %v517, 2
  %v519 = vadd.f32 %v517, %v518
  %v520 = vrot.slane %v519, 1
  %v521 = vadd.f32 %v519, %v520
  %v522 = vrot.slane %v367, 4
  %v523 = vadd.f32 %v367, %v522
  %v524 = vrot.slane %v523, 2
  %v525 = vadd.f32 %v523, %v524
  %v526 = vrot.slane %v525, 1
  %v527 = vadd.f32 %v525, %v526
  %v528 = vrot.slane %v368, 4
  %v529 = vadd.f32 %v368, %v528
  %v530 = vrot.slane %v529, 2
  %v531 = vadd.f32 %v529, %v530
  %v532 = vrot.slane %v531, 1
  %v533 = vadd.f32 %v531, %v532
  %v534 = vrot.slane %v369, 4
  %v535 = vadd.f32 %v369, %v534
  %v536 = vrot.slane %v535, 2
  %v537 = vadd.f32 %v535, %v536
  %v538 = vrot.slane %v537, 1
  %v539 = vadd.f32 %v537, %v538
  %v540 = vrot.slane %v370, 4
  %v541 = vadd.f32 %v370, %v540
  %v542 = vrot.slane %v541, 2
  %v543 = vadd.f32 %v541, %v542
  %v544 = vrot.slane %v543, 1
  %v545 = vadd.f32 %v543, %v544
  %v546 = vrot.slane %v371, 4
  %v547 = vadd.f32 %v371, %v546
  %v548 = vrot.slane %v547, 2
  %v549 = vadd.f32 %v547, %v548
  %v550 = vrot.slane %v549, 1
  %v551 = vadd.f32 %v549, %v550
  %v552 = vrot.slane %v372, 4
  %v553 = vadd.f32 %v372, %v552
  %v554 = vrot.slane %v553, 2
  %v555 = vadd.f32 %v553, %v554
  %v556 = vrot.slane %v555, 1
  %v557 = vadd.f32 %v555, %v556
  %v558 = vrot.slane %v373, 4
  %v559 = vadd.f32 %v373, %v558
  %v560 = vrot.slane %v559, 2
  %v561 = vadd.f32 %v559, %v560
  %v562 = vrot.slane %v561, 1
  %v563 = vadd.f32 %v561, %v562
  %v564 = vrot.slane %v374, 4
  %v565 = vadd.f32 %v374, %v564
  %v566 = vrot.slane %v565, 2
  %v567 = vadd.f32 %v565, %v566
  %v568 = vrot.slane %v567, 1
  %v569 = vadd.f32 %v567, %v568
  %v570 = vrot.slane %v375, 4
  %v571 = vadd.f32 %v375, %v570
  %v572 = vrot.slane %v571, 2
  %v573 = vadd.f32 %v571, %v572
  %v574 = vrot.slane %v573, 1
  %v575 = vadd.f32 %v573, %v574
  %v576 = vrot.slane %v376, 4
  %v577 = vadd.f32 %v376, %v576
  %v578 = vrot.slane %v577, 2
  %v579 = vadd.f32 %v577, %v578
  %v580 = vrot.slane %v579, 1
  %v581 = vadd.f32 %v579, %v580
  %v582 = vrot.slane %v377, 4
  %v583 = vadd.f32 %v377, %v582
  %v584 = vrot.slane %v583, 2
  %v585 = vadd.f32 %v583, %v584
  %v586 = vrot.slane %v585, 1
  %v587 = vadd.f32 %v585, %v586
  %v588 = vrot.slane %v378, 4
  %v589 = vadd.f32 %v378, %v588
  %v590 = vrot.slane %v589, 2
  %v591 = vadd.f32 %v589, %v590
  %v592 = vrot.slane %v591, 1
  %v593 = vadd.f32 %v591, %v592
  %v594 = vrot.slane %v379, 4
  %v595 = vadd.f32 %v379, %v594
  %v596 = vrot.slane %v595, 2
  %v597 = vadd.f32 %v595, %v596
  %v598 = vrot.slane %v597, 1
  %v599 = vadd.f32 %v597, %v598
  %v600 = vrot.slane %v380, 4
  %v601 = vadd.f32 %v380, %v600
  %v602 = vrot.slane %v601, 2
  %v603 = vadd.f32 %v601, %v602
  %v604 = vrot.slane %v603, 1
  %v605 = vadd.f32 %v603, %v604
  %v606 = vrot.slane %v381, 4
  %v607 = vadd.f32 %v381, %v606
  %v608 = vrot.slane %v607, 2
  %v609 = vadd.f32 %v607, %v608
  %v610 = vrot.slane %v609, 1
  %v611 = vadd.f32 %v609, %v610
  %v612 = vrot.slane %v382, 4
  %v613 = vadd.f32 %v382, %v612
  %v614 = vrot.slane %v613, 2
  %v615 = vadd.f32 %v613, %v614
  %v616 = vrot.slane %v615, 1
  %v617 = vadd.f32 %v615, %v616
  %v618 = vrot.slane %v383, 4
  %v619 = vadd.f32 %v383, %v618
  %v620 = vrot.slane %v619, 2
  %v621 = vadd.f32 %v619, %v620
  %v622 = vrot.slane %v621, 1
  %v623 = vadd.f32 %v621, %v622
  %v624 = vrot.slane %v384, 4
  %v625 = vadd.f32 %v384, %v624
  %v626 = vrot.slane %v625, 2
  %v627 = vadd.f32 %v625, %v626
  %v628 = vrot.slane %v627, 1
  %v629 = vadd.f32 %v627, %v628
  %v630 = vrot.slane %v385, 4
  %v631 = vadd.f32 %v385, %v630
  %v632 = vrot.slane %v631, 2
  %v633 = vadd.f32 %v631, %v632
  %v634 = vrot.slane %v633, 1
  %v635 = vadd.f32 %v633, %v634
  %v636 = vrot.slane %v386, 4
  %v637 = vadd.f32 %v386, %v636
  %v638 = vrot.slane %v637, 2
  %v639 = vadd.f32 %v637, %v638
  %v640 = vrot.slane %v639, 1
  %v641 = vadd.f32 %v639, %v640
  %v642 = vrot.slane %v387, 4
  %v643 = vadd.f32 %v387, %v642
  %v644 = vrot.slane %v643, 2
  %v645 = vadd.f32 %v643, %v644
  %v646 = vrot.slane %v645, 1
  %v647 = vadd.f32 %v645, %v646
  %v648 = vrot.slane %v388, 4
  %v649 = vadd.f32 %v388, %v648
  %v650 = vrot.slane %v649, 2
  %v651 = vadd.f32 %v649, %v650
  %v652 = vrot.slane %v651, 1
  %v653 = vadd.f32 %v651, %v652
  %v654 = vrot.slane %v389, 4
  %v655 = vadd.f32 %v389, %v654
  %v656 = vrot.slane %v655, 2
  %v657 = vadd.f32 %v655, %v656
  %v658 = vrot.slane %v657, 1
  %v659 = vadd.f32 %v657, %v658
  %v660 = vrot.slane %v390, 4
  %v661 = vadd.f32 %v390, %v660
  %v662 = vrot.slane %v661, 2
  %v663 = vadd.f32 %v661, %v662
  %v664 = vrot.slane %v663, 1
  %v665 = vadd.f32 %v663, %v664
  %v666 = vrot.slane %v391, 4
  %v667 = vadd.f32 %v391, %v666
  %v668 = vrot.slane %v667, 2
  %v669 = vadd.f32 %v667, %v668
  %v670 = vrot.slane %v669, 1
  %v671 = vadd.f32 %v669, %v670
  %v672 = vrot.slane %v392, 4
  %v673 = vadd.f32 %v392, %v672
  %v674 = vrot.slane %v673, 2
  %v675 = vadd.f32 %v673, %v674
  %v676 = vrot.slane %v675, 1
  %v677 = vadd.f32 %v675, %v676
  %v678 = vrot.slane %v393, 4
  %v679 = vadd.f32 %v393, %v678
  %v680 = vrot.slane %v679, 2
  %v681 = vadd.f32 %v679, %v680
  %v682 = vrot.slane %v681, 1
  %v683 = vadd.f32 %v681, %v682
  %v684 = vrot.slane %v394, 4
  %v685 = vadd.f32 %v394, %v684
  %v686 = vrot.slane %v685, 2
  %v687 = vadd.f32 %v685, %v686
  %v688 = vrot.slane %v687, 1
  %v689 = vadd.f32 %v687, %v688
  %v690 = vrot.slane %v395, 4
  %v691 = vadd.f32 %v395, %v690
  %v692 = vrot.slane %v691, 2
  %v693 = vadd.f32 %v691, %v692
  %v694 = vrot.slane %v693, 1
  %v695 = vadd.f32 %v693, %v694
  %v696 = vrot.slane %v396, 4
  %v697 = vadd.f32 %v396, %v696
  %v698 = vrot.slane %v697, 2
  %v699 = vadd.f32 %v697, %v698
  %v700 = vrot.slane %v699, 1
  %v701 = vadd.f32 %v699, %v700
  %v702 = vrot.slane %v397, 4
  %v703 = vadd.f32 %v397, %v702
  %v704 = vrot.slane %v703, 2
  %v705 = vadd.f32 %v703, %v704
  %v706 = vrot.slane %v705, 1
  %v707 = vadd.f32 %v705, %v706
  %v708 = vrot.slane %v398, 4
  %v709 = vadd.f32 %v398, %v708
  %v710 = vrot.slane %v709, 2
  %v711 = vadd.f32 %v709, %v710
  %v712 = vrot.slane %v711, 1
  %v713 = vadd.f32 %v711, %v712
  %v714 = vrot.slane %v399, 4
  %v715 = vadd.f32 %v399, %v714
  %v716 = vrot.slane %v715, 2
  %v717 = vadd.f32 %v715, %v716
  %v718 = vrot.slane %v717, 1
  %v719 = vadd.f32 %v717, %v718
  %v720 = vrot.slane %v400, 4
  %v721 = vadd.f32 %v400, %v720
  %v722 = vrot.slane %v721, 2
  %v723 = vadd.f32 %v721, %v722
  %v724 = vrot.slane %v723, 1
  %v725 = vadd.f32 %v723, %v724
  %v726 = vrot.slane %v401, 4
  %v727 = vadd.f32 %v401, %v726
  %v728 = vrot.slane %v727, 2
  %v729 = vadd.f32 %v727, %v728
  %v730 = vrot.slane %v729, 1
  %v731 = vadd.f32 %v729, %v730
  %v732 = vrot.slane %v402, 4
  %v733 = vadd.f32 %v402, %v732
  %v734 = vrot.slane %v733, 2
  %v735 = vadd.f32 %v733, %v734
  %v736 = vrot.slane %v735, 1
  %v737 = vadd.f32 %v735, %v736
  %v738 = vrot.slane %v403, 4
  %v739 = vadd.f32 %v403, %v738
  %v740 = vrot.slane %v739, 2
  %v741 = vadd.f32 %v739, %v740
  %v742 = vrot.slane %v741, 1
  %v743 = vadd.f32 %v741, %v742
  %v744 = vrot.slane %v404, 4
  %v745 = vadd.f32 %v404, %v744
  %v746 = vrot.slane %v745, 2
  %v747 = vadd.f32 %v745, %v746
  %v748 = vrot.slane %v747, 1
  %v749 = vadd.f32 %v747, %v748
  %v750 = vrot.slane %v405, 4
  %v751 = vadd.f32 %v405, %v750
  %v752 = vrot.slane %v751, 2
  %v753 = vadd.f32 %v751, %v752
  %v754 = vrot.slane %v753, 1
  %v755 = vadd.f32 %v753, %v754
  %v756 = vrot.slane %v406, 4
  %v757 = vadd.f32 %v406, %v756
  %v758 = vrot.slane %v757, 2
  %v759 = vadd.f32 %v757, %v758
  %v760 = vrot.slane %v759, 1
  %v761 = vadd.f32 %v759, %v760
  %v762 = vrot.slane %v407, 4
  %v763 = vadd.f32 %v407, %v762
  %v764 = vrot.slane %v763, 2
  %v765 = vadd.f32 %v763, %v764
  %v766 = vrot.slane %v765, 1
  %v767 = vadd.f32 %v765, %v766
  %v768 = vrot.slane %v408, 4
  %v769 = vadd.f32 %v408, %v768
  %v770 = vrot.slane %v769, 2
  %v771 = vadd.f32 %v769, %v770
  %v772 = vrot.slane %v771, 1
  %v773 = vadd.f32 %v771, %v772
  %v774 = vrot.slane %v409, 4
  %v775 = vadd.f32 %v409, %v774
  %v776 = vrot.slane %v775, 2
  %v777 = vadd.f32 %v775, %v776
  %v778 = vrot.slane %v777, 1
  %v779 = vadd.f32 %v777, %v778
  %v780 = vrot.slane %v410, 4
  %v781 = vadd.f32 %v410, %v780
  %v782 = vrot.slane %v781, 2
  %v783 = vadd.f32 %v781, %v782
  %v784 = vrot.slane %v783, 1
  %v785 = vadd.f32 %v783, %v784
  %v786 = vrot.slane %v411, 4
  %v787 = vadd.f32 %v411, %v786
  %v788 = vrot.slane %v787, 2
  %v789 = vadd.f32 %v787, %v788
  %v790 = vrot.slane %v789, 1
  %v791 = vadd.f32 %v789, %v790
  %v792 = vrot.slane %v412, 4
  %v793 = vadd.f32 %v412, %v792
  %v794 = vrot.slane %v793, 2
  %v795 = vadd.f32 %v793, %v794
  %v796 = vrot.slane %v795, 1
  %v797 = vadd.f32 %v795, %v796
  %v798 = vrot.slane %v413, 4
  %v799 = vadd.f32 %v413, %v798
  %v800 = vrot.slane %v799, 2
  %v801 = vadd.f32 %v799, %v800
  %v802 = vrot.slane %v801, 1
  %v803 = vadd.f32 %v801, %v802
  %v804 = vrot.slane %v414, 4
  %v805 = vadd.f32 %v414, %v804
  %v806 = vrot.slane %v805, 2
  %v807 = vadd.f32 %v805, %v806
  %v808 = vrot.slane %v807, 1
  %v809 = vadd.f32 %v807, %v808
  %v810 = vrot.slane %v415, 4
  %v811 = vadd.f32 %v415, %v810
  %v812 = vrot.slane %v811, 2
  %v813 = vadd.f32 %v811, %v812
  %v814 = vrot.slane %v813, 1
  %v815 = vadd.f32 %v813, %v814
  %v816 = vrot.slane %v416, 4
  %v817 = vadd.f32 %v416, %v816
  %v818 = vrot.slane %v817, 2
  %v819 = vadd.f32 %v817, %v818
  %v820 = vrot.slane %v819, 1
  %v821 = vadd.f32 %v819, %v820
  %v822 = vrot.slane %v417, 4
  %v823 = vadd.f32 %v417, %v822
  %v824 = vrot.slane %v823, 2
  %v825 = vadd.f32 %v823, %v824
  %v826 = vrot.slane %v825, 1
  %v827 = vadd.f32 %v825, %v826
  %v828 = vrot.slane %v418, 4
  %v829 = vadd.f32 %v418, %v828
  %v830 = vrot.slane %v829, 2
  %v831 = vadd.f32 %v829, %v830
  %v832 = vrot.slane %v831, 1
  %v833 = vadd.f32 %v831, %v832
  %v834 = vrot.slane %v419, 4
  %v835 = vadd.f32 %v419, %v834
  %v836 = vrot.slane %v835, 2
  %v837 = vadd.f32 %v835, %v836
  %v838 = vrot.slane %v837, 1
  %v839 = vadd.f32 %v837, %v838
  %v840 = vrot.slane %v420, 4
  %v841 = vadd.f32 %v420, %v840
  %v842 = vrot.slane %v841, 2
  %v843 = vadd.f32 %v841, %v842
  %v844 = vrot.slane %v843, 1
  %v845 = vadd.f32 %v843, %v844
  %v846 = vrot.slane %v421, 4
  %v847 = vadd.f32 %v421, %v846
  %v848 = vrot.slane %v847, 2
  %v849 = vadd.f32 %v847, %v848
  %v850 = vrot.slane %v849, 1
  %v851 = vadd.f32 %v849, %v850
  %v852 = vrot.slane %v422, 4
  %v853 = vadd.f32 %v422, %v852
  %v854 = vrot.slane %v853, 2
  %v855 = vadd.f32 %v853, %v854
  %v856 = vrot.slane %v855, 1
  %v857 = vadd.f32 %v855, %v856
  %v858 = vrot.slane %v423, 4
  %v859 = vadd.f32 %v423, %v858
  %v860 = vrot.slane %v859, 2
  %v861 = vadd.f32 %v859, %v860
  %v862 = vrot.slane %v861, 1
  %v863 = vadd.f32 %v861, %v862
  %v864 = vrot.slane %v424, 4
  %v865 = vadd.f32 %v424, %v864
  %v866 = vrot.slane %v865, 2
  %v867 = vadd.f32 %v865, %v866
  %v868 = vrot.slane %v867, 1
  %v869 = vadd.f32 %v867, %v868
  %v870 = vrot.slane %v425, 4
  %v871 = vadd.f32 %v425, %v870
  %v872 = vrot.slane %v871, 2
  %v873 = vadd.f32 %v871, %v872
  %v874 = vrot.slane %v873, 1
  %v875 = vadd.f32 %v873, %v874
  %v876 = vrot.slane %v426, 4
  %v877 = vadd.f32 %v426, %v876
  %v878 = vrot.slane %v877, 2
  %v879 = vadd.f32 %v877, %v878
  %v880 = vrot.slane %v879, 1
  %v881 = vadd.f32 %v879, %v880
  %v882 = vrot.slane %v427, 4
  %v883 = vadd.f32 %v427, %v882
  %v884 = vrot.slane %v883, 2
  %v885 = vadd.f32 %v883, %v884
  %v886 = vrot.slane %v885, 1
  %v887 = vadd.f32 %v885, %v886
  %v888 = vrot.slane %v428, 4
  %v889 = vadd.f32 %v428, %v888
  %v890 = vrot.slane %v889, 2
  %v891 = vadd.f32 %v889, %v890
  %v892 = vrot.slane %v891, 1
  %v893 = vadd.f32 %v891, %v892
  %v894 = vrot.slane %v429, 4
  %v895 = vadd.f32 %v429, %v894
  %v896 = vrot.slane %v895, 2
  %v897 = vadd.f32 %v895, %v896
  %v898 = vrot.slane %v897, 1
  %v899 = vadd.f32 %v897, %v898
  %v900 = vrot.slane %v430, 4
  %v901 = vadd.f32 %v430, %v900
  %v902 = vrot.slane %v901, 2
  %v903 = vadd.f32 %v901, %v902
  %v904 = vrot.slane %v903, 1
  %v905 = vadd.f32 %v903, %v904
  %v906 = vrot.slane %v431, 4
  %v907 = vadd.f32 %v431, %v906
  %v908 = vrot.slane %v907, 2
  %v909 = vadd.f32 %v907, %v908
  %v910 = vrot.slane %v909, 1
  %v911 = vadd.f32 %v909, %v910
  %vm912 = vcmask 7168
  %v913 = vsel %vm912, %v112, 0.0
  %v914 = vrot.slane %v913, 4
  %v915 = vadd.f32 %v913, %v914
  %v916 = vrot.slane %v915, 2
  %v917 = vadd.f32 %v915, %v916
  %v918 = vrot.slane %v917, 1
  %v919 = vadd.f32 %v917, %v918
  %v920 = vsel %vm912, %v113, 0.0
  %v921 = vrot.slane %v920, 4
  %v922 = vadd.f32 %v920, %v921
  %v923 = vrot.slane %v922, 2
  %v924 = vadd.f32 %v922, %v923
  %v925 = vrot.slane %v924, 1
  %v926 = vadd.f32 %v924, %v925
  %v927 = vsel %vm912, %v114, 0.0
  %v928 = vrot.slane %v927, 4
  %v929 = vadd.f32 %v927, %v928
  %v930 = vrot.slane %v929, 2
  %v931 = vadd.f32 %v929, %v930
  %v932 = vrot.slane %v931, 1
  %v933 = vadd.f32 %v931, %v932
  %v934 = vsel %vm912, %v115, 0.0
  %v935 = vrot.slane %v934, 4
  %v936 = vadd.f32 %v934, %v935
  %v937 = vrot.slane %v936, 2
  %v938 = vadd.f32 %v936, %v937
  %v939 = vrot.slane %v938, 1
  %v940 = vadd.f32 %v938, %v939
  %v941 = vsel %vm912, %v116, 0.0
  %v942 = vrot.slane %v941, 4
  %v943 = vadd.f32 %v941, %v942
  %v944 = vrot.slane %v943, 2
  %v945 = vadd.f32 %v943, %v944
  %v946 = vrot.slane %v945, 1
  %v947 = vadd.f32 %v945, %v946
  %v948 = vsel %vm912, %v117, 0.0
  %v949 = vrot.slane %v948, 4
  %v950 = vadd.f32 %v948, %v949
  %v951 = vrot.slane %v950, 2
  %v952 = vadd.f32 %v950, %v951
  %v953 = vrot.slane %v952, 1
  %v954 = vadd.f32 %v952, %v953
  %v955 = vsel %vm912, %v118, 0.0
  %v956 = vrot.slane %v955, 4
  %v957 = vadd.f32 %v955, %v956
  %v958 = vrot.slane %v957, 2
  %v959 = vadd.f32 %v957, %v958
  %v960 = vrot.slane %v959, 1
  %v961 = vadd.f32 %v959, %v960
  %v962 = vsel %vm912, %v119, 0.0
  %v963 = vrot.slane %v962, 4
  %v964 = vadd.f32 %v962, %v963
  %v965 = vrot.slane %v964, 2
  %v966 = vadd.f32 %v964, %v965
  %v967 = vrot.slane %v966, 1
  %v968 = vadd.f32 %v966, %v967
  %v969 = vsel %vm912, %v120, 0.0
  %v970 = vrot.slane %v969, 4
  %v971 = vadd.f32 %v969, %v970
  %v972 = vrot.slane %v971, 2
  %v973 = vadd.f32 %v971, %v972
  %v974 = vrot.slane %v973, 1
  %v975 = vadd.f32 %v973, %v974
  %v976 = vsel %vm912, %v121, 0.0
  %v977 = vrot.slane %v976, 4
  %v978 = vadd.f32 %v976, %v977
  %v979 = vrot.slane %v978, 2
  %v980 = vadd.f32 %v978, %v979
  %v981 = vrot.slane %v980, 1
  %v982 = vadd.f32 %v980, %v981
  %v983 = vsel %vm912, %v122, 0.0
  %v984 = vrot.slane %v983, 4
  %v985 = vadd.f32 %v983, %v984
  %v986 = vrot.slane %v985, 2
  %v987 = vadd.f32 %v985, %v986
  %v988 = vrot.slane %v987, 1
  %v989 = vadd.f32 %v987, %v988
  %v990 = vsel %vm912, %v123, 0.0
  %v991 = vrot.slane %v990, 4
  %v992 = vadd.f32 %v990, %v991
  %v993 = vrot.slane %v992, 2
  %v994 = vadd.f32 %v992, %v993
  %v995 = vrot.slane %v994, 1
  %v996 = vadd.f32 %v994, %v995
  %v997 = vsel %vm912, %v124, 0.0
  %v998 = vrot.slane %v997, 4
  %v999 = vadd.f32 %v997, %v998
  %v1000 = vrot.slane %v999, 2
  %v1001 = vadd.f32 %v999, %v1000
  %v1002 = vrot.slane %v1001, 1
  %v1003 = vadd.f32 %v1001, %v1002
  %v1004 = vsel %vm912, %v125, 0.0
  %v1005 = vrot.slane %v1004, 4
  %v1006 = vadd.f32 %v1004, %v1005
  %v1007 = vrot.slane %v1006, 2
  %v1008 = vadd.f32 %v1006, %v1007
  %v1009 = vrot.slane %v1008, 1
  %v1010 = vadd.f32 %v1008, %v1009
  %v1011 = vsel %vm912, %v126, 0.0
  %v1012 = vrot.slane %v1011, 4
  %v1013 = vadd.f32 %v1011, %v1012
  %v1014 = vrot.slane %v1013, 2
  %v1015 = vadd.f32 %v1013, %v1014
  %v1016 = vrot.slane %v1015, 1
  %v1017 = vadd.f32 %v1015, %v1016
  %v1018 = vsel %vm912, %v127, 0.0
  %v1019 = vrot.slane %v1018, 4
  %v1020 = vadd.f32 %v1018, %v1019
  %v1021 = vrot.slane %v1020, 2
  %v1022 = vadd.f32 %v1020, %v1021
  %v1023 = vrot.slane %v1022, 1
  %v1024 = vadd.f32 %v1022, %v1023
  %v1025 = vsel %vm912, %v128, 0.0
  %v1026 = vrot.slane %v1025, 4
  %v1027 = vadd.f32 %v1025, %v1026
  %v1028 = vrot.slane %v1027, 2
  %v1029 = vadd.f32 %v1027, %v1028
  %v1030 = vrot.slane %v1029, 1
  %v1031 = vadd.f32 %v1029, %v1030
  %v1032 = vsel %vm912, %v129, 0.0
  %v1033 = vrot.slane %v1032, 4
  %v1034 = vadd.f32 %v1032, %v1033
  %v1035 = vrot.slane %v1034, 2
  %v1036 = vadd.f32 %v1034, %v1035
  %v1037 = vrot.slane %v1036, 1
  %v1038 = vadd.f32 %v1036, %v1037
  %v1039 = vsel %vm912, %v130, 0.0
  %v1040 = vrot.slane %v1039, 4
  %v1041 = vadd.f32 %v1039, %v1040
  %v1042 = vrot.slane %v1041, 2
  %v1043 = vadd.f32 %v1041, %v1042
  %v1044 = vrot.slane %v1043, 1
  %v1045 = vadd.f32 %v1043, %v1044
  %v1046 = vsel %vm912, %v131, 0.0
  %v1047 = vrot.slane %v1046, 4
  %v1048 = vadd.f32 %v1046, %v1047
  %v1049 = vrot.slane %v1048, 2
  %v1050 = vadd.f32 %v1048, %v1049
  %v1051 = vrot.slane %v1050, 1
  %v1052 = vadd.f32 %v1050, %v1051
  %v1053 = vsel %vm912, %v132, 0.0
  %v1054 = vrot.slane %v1053, 4
  %v1055 = vadd.f32 %v1053, %v1054
  %v1056 = vrot.slane %v1055, 2
  %v1057 = vadd.f32 %v1055, %v1056
  %v1058 = vrot.slane %v1057, 1
  %v1059 = vadd.f32 %v1057, %v1058
  %v1060 = vsel %vm912, %v133, 0.0
  %v1061 = vrot.slane %v1060, 4
  %v1062 = vadd.f32 %v1060, %v1061
  %v1063 = vrot.slane %v1062, 2
  %v1064 = vadd.f32 %v1062, %v1063
  %v1065 = vrot.slane %v1064, 1
  %v1066 = vadd.f32 %v1064, %v1065
  %v1067 = vsel %vm912, %v134, 0.0
  %v1068 = vrot.slane %v1067, 4
  %v1069 = vadd.f32 %v1067, %v1068
  %v1070 = vrot.slane %v1069, 2
  %v1071 = vadd.f32 %v1069, %v1070
  %v1072 = vrot.slane %v1071, 1
  %v1073 = vadd.f32 %v1071, %v1072
  %v1074 = vsel %vm912, %v135, 0.0
  %v1075 = vrot.slane %v1074, 4
  %v1076 = vadd.f32 %v1074, %v1075
  %v1077 = vrot.slane %v1076, 2
  %v1078 = vadd.f32 %v1076, %v1077
  %v1079 = vrot.slane %v1078, 1
  %v1080 = vadd.f32 %v1078, %v1079
  %v1081 = vsel %vm912, %v136, 0.0
  %v1082 = vrot.slane %v1081, 4
  %v1083 = vadd.f32 %v1081, %v1082
  %v1084 = vrot.slane %v1083, 2
  %v1085 = vadd.f32 %v1083, %v1084
  %v1086 = vrot.slane %v1085, 1
  %v1087 = vadd.f32 %v1085, %v1086
  %v1088 = vsel %vm912, %v137, 0.0
  %v1089 = vrot.slane %v1088, 4
  %v1090 = vadd.f32 %v1088, %v1089
  %v1091 = vrot.slane %v1090, 2
  %v1092 = vadd.f32 %v1090, %v1091
  %v1093 = vrot.slane %v1092, 1
  %v1094 = vadd.f32 %v1092, %v1093
  %v1095 = vsel %vm912, %v138, 0.0
  %v1096 = vrot.slane %v1095, 4
  %v1097 = vadd.f32 %v1095, %v1096
  %v1098 = vrot.slane %v1097, 2
  %v1099 = vadd.f32 %v1097, %v1098
  %v1100 = vrot.slane %v1099, 1
  %v1101 = vadd.f32 %v1099, %v1100
  %v1102 = vsel %vm912, %v139, 0.0
  %v1103 = vrot.slane %v1102, 4
  %v1104 = vadd.f32 %v1102, %v1103
  %v1105 = vrot.slane %v1104, 2
  %v1106 = vadd.f32 %v1104, %v1105
  %v1107 = vrot.slane %v1106, 1
  %v1108 = vadd.f32 %v1106, %v1107
  %v1109 = vsel %vm912, %v140, 0.0
  %v1110 = vrot.slane %v1109, 4
  %v1111 = vadd.f32 %v1109, %v1110
  %v1112 = vrot.slane %v1111, 2
  %v1113 = vadd.f32 %v1111, %v1112
  %v1114 = vrot.slane %v1113, 1
  %v1115 = vadd.f32 %v1113, %v1114
  %v1116 = vsel %vm912, %v141, 0.0
  %v1117 = vrot.slane %v1116, 4
  %v1118 = vadd.f32 %v1116, %v1117
  %v1119 = vrot.slane %v1118, 2
  %v1120 = vadd.f32 %v1118, %v1119
  %v1121 = vrot.slane %v1120, 1
  %v1122 = vadd.f32 %v1120, %v1121
  %v1123 = vsel %vm912, %v142, 0.0
  %v1124 = vrot.slane %v1123, 4
  %v1125 = vadd.f32 %v1123, %v1124
  %v1126 = vrot.slane %v1125, 2
  %v1127 = vadd.f32 %v1125, %v1126
  %v1128 = vrot.slane %v1127, 1
  %v1129 = vadd.f32 %v1127, %v1128
  %v1130 = vsel %vm912, %v143, 0.0
  %v1131 = vrot.slane %v1130, 4
  %v1132 = vadd.f32 %v1130, %v1131
  %v1133 = vrot.slane %v1132, 2
  %v1134 = vadd.f32 %v1132, %v1133
  %v1135 = vrot.slane %v1134, 1
  %v1136 = vadd.f32 %v1134, %v1135
  %v1137 = vsel %vm912, %v144, 0.0
  %v1138 = vrot.slane %v1137, 4
  %v1139 = vadd.f32 %v1137, %v1138
  %v1140 = vrot.slane %v1139, 2
  %v1141 = vadd.f32 %v1139, %v1140
  %v1142 = vrot.slane %v1141, 1
  %v1143 = vadd.f32 %v1141, %v1142
  %v1144 = vsel %vm912, %v145, 0.0
  %v1145 = vrot.slane %v1144, 4
  %v1146 = vadd.f32 %v1144, %v1145
  %v1147 = vrot.slane %v1146, 2
  %v1148 = vadd.f32 %v1146, %v1147
  %v1149 = vrot.slane %v1148, 1
  %v1150 = vadd.f32 %v1148, %v1149
  %v1151 = vsel %vm912, %v146, 0.0
  %v1152 = vrot.slane %v1151, 4
  %v1153 = vadd.f32 %v1151, %v1152
  %v1154 = vrot.slane %v1153, 2
  %v1155 = vadd.f32 %v1153, %v1154
  %v1156 = vrot.slane %v1155, 1
  %v1157 = vadd.f32 %v1155, %v1156
  %v1158 = vsel %vm912, %v147, 0.0
  %v1159 = vrot.slane %v1158, 4
  %v1160 = vadd.f32 %v1158, %v1159
  %v1161 = vrot.slane %v1160, 2
  %v1162 = vadd.f32 %v1160, %v1161
  %v1163 = vrot.slane %v1162, 1
  %v1164 = vadd.f32 %v1162, %v1163
  %v1165 = vsel %vm912, %v148, 0.0
  %v1166 = vrot.slane %v1165, 4
  %v1167 = vadd.f32 %v1165, %v1166
  %v1168 = vrot.slane %v1167, 2
  %v1169 = vadd.f32 %v1167, %v1168
  %v1170 = vrot.slane %v1169, 1
  %v1171 = vadd.f32 %v1169, %v1170
  %v1172 = vsel %vm912, %v149, 0.0
  %v1173 = vrot.slane %v1172, 4
  %v1174 = vadd.f32 %v1172, %v1173
  %v1175 = vrot.slane %v1174, 2
  %v1176 = vadd.f32 %v1174, %v1175
  %v1177 = vrot.slane %v1176, 1
  %v1178 = vadd.f32 %v1176, %v1177
  %v1179 = vsel %vm912, %v150, 0.0
  %v1180 = vrot.slane %v1179, 4
  %v1181 = vadd.f32 %v1179, %v1180
  %v1182 = vrot.slane %v1181, 2
  %v1183 = vadd.f32 %v1181, %v1182
  %v1184 = vrot.slane %v1183, 1
  %v1185 = vadd.f32 %v1183, %v1184
  %v1186 = vsel %vm912, %v151, 0.0
  %v1187 = vrot.slane %v1186, 4
  %v1188 = vadd.f32 %v1186, %v1187
  %v1189 = vrot.slane %v1188, 2
  %v1190 = vadd.f32 %v1188, %v1189
  %v1191 = vrot.slane %v1190, 1
  %v1192 = vadd.f32 %v1190, %v1191
  %v1193 = vmax.f32 %v919, 1.0
  %v1194 = vmax.f32 %v926, 1.0
  %v1195 = vmax.f32 %v933, 1.0
  %v1196 = vmax.f32 %v940, 1.0
  %v1197 = vmax.f32 %v947, 1.0
  %v1198 = vmax.f32 %v954, 1.0
  %v1199 = vmax.f32 %v961, 1.0
  %v1200 = vmax.f32 %v968, 1.0
  %v1201 = vmax.f32 %v975, 1.0
  %v1202 = vmax.f32 %v982, 1.0
  %v1203 = vmax.f32 %v989, 1.0
  %v1204 = vmax.f32 %v996, 1.0
  %v1205 = vmax.f32 %v1003, 1.0
  %v1206 = vmax.f32 %v1010, 1.0
  %v1207 = vmax.f32 %v1017, 1.0
  %v1208 = vmax.f32 %v1024, 1.0
  %v1209 = vmax.f32 %v1031, 1.0
  %v1210 = vmax.f32 %v1038, 1.0
  %v1211 = vmax.f32 %v1045, 1.0
  %v1212 = vmax.f32 %v1052, 1.0
  %v1213 = vmax.f32 %v1059, 1.0
  %v1214 = vmax.f32 %v1066, 1.0
  %v1215 = vmax.f32 %v1073, 1.0
  %v1216 = vmax.f32 %v1080, 1.0
  %v1217 = vmax.f32 %v1087, 1.0
  %v1218 = vmax.f32 %v1094, 1.0
  %v1219 = vmax.f32 %v1101, 1.0
  %v1220 = vmax.f32 %v1108, 1.0
  %v1221 = vmax.f32 %v1115, 1.0
  %v1222 = vmax.f32 %v1122, 1.0
  %v1223 = vmax.f32 %v1129, 1.0
  %v1224 = vmax.f32 %v1136, 1.0
  %v1225 = vmax.f32 %v1143, 1.0
  %v1226 = vmax.f32 %v1150, 1.0
  %v1227 = vmax.f32 %v1157, 1.0
  %v1228 = vmax.f32 %v1164, 1.0
  %v1229 = vmax.f32 %v1171, 1.0
  %v1230 = vmax.f32 %v1178, 1.0
  %v1231 = vmax.f32 %v1185, 1.0
  %v1232 = vmax.f32 %v1192, 1.0
  %1234 = vset.pattern.permute.xlu0 0
  %1235 = vperm.xlu0 %1234, %v1193
  %v1236 = vpop.permute.xlu0 %1235
  %1239 = vset.pattern.permute.xlu0 0
  %1240 = vperm.xlu0 %1239, %v1194
  %v1241 = vpop.permute.xlu0 %1240
  %1244 = vset.pattern.permute.xlu0 0
  %1245 = vperm.xlu0 %1244, %v1195
  %v1246 = vpop.permute.xlu0 %1245
  %1249 = vset.pattern.permute.xlu0 0
  %1250 = vperm.xlu0 %1249, %v1196
  %v1251 = vpop.permute.xlu0 %1250
  %1254 = vset.pattern.permute.xlu0 0
  %1255 = vperm.xlu0 %1254, %v1197
  %v1256 = vpop.permute.xlu0 %1255
  %1259 = vset.pattern.permute.xlu0 0
  %1260 = vperm.xlu0 %1259, %v1198
  %v1261 = vpop.permute.xlu0 %1260
  %1264 = vset.pattern.permute.xlu0 0
  %1265 = vperm.xlu0 %1264, %v1199
  %v1266 = vpop.permute.xlu0 %1265
  %1269 = vset.pattern.permute.xlu0 0
  %1270 = vperm.xlu0 %1269, %v1200
  %v1271 = vpop.permute.xlu0 %1270
  %1274 = vset.pattern.permute.xlu0 0
  %1275 = vperm.xlu0 %1274, %v1201
  %v1276 = vpop.permute.xlu0 %1275
  %1279 = vset.pattern.permute.xlu0 0
  %1280 = vperm.xlu0 %1279, %v1202
  %v1281 = vpop.permute.xlu0 %1280
  %1284 = vset.pattern.permute.xlu0 0
  %1285 = vperm.xlu0 %1284, %v1203
  %v1286 = vpop.permute.xlu0 %1285
  %1289 = vset.pattern.permute.xlu0 0
  %1290 = vperm.xlu0 %1289, %v1204
  %v1291 = vpop.permute.xlu0 %1290
  %1294 = vset.pattern.permute.xlu0 0
  %1295 = vperm.xlu0 %1294, %v1205
  %v1296 = vpop.permute.xlu0 %1295
  %1299 = vset.pattern.permute.xlu0 0
  %1300 = vperm.xlu0 %1299, %v1206
  %v1301 = vpop.permute.xlu0 %1300
  %1304 = vset.pattern.permute.xlu0 0
  %1305 = vperm.xlu0 %1304, %v1207
  %v1306 = vpop.permute.xlu0 %1305
  %1309 = vset.pattern.permute.xlu0 0
  %1310 = vperm.xlu0 %1309, %v1208
  %v1311 = vpop.permute.xlu0 %1310
  %1314 = vset.pattern.permute.xlu0 0
  %1315 = vperm.xlu0 %1314, %v1209
  %v1316 = vpop.permute.xlu0 %1315
  %1319 = vset.pattern.permute.xlu0 0
  %1320 = vperm.xlu0 %1319, %v1210
  %v1321 = vpop.permute.xlu0 %1320
  %1324 = vset.pattern.permute.xlu0 0
  %1325 = vperm.xlu0 %1324, %v1211
  %v1326 = vpop.permute.xlu0 %1325
  %1329 = vset.pattern.permute.xlu0 0
  %1330 = vperm.xlu0 %1329, %v1212
  %v1331 = vpop.permute.xlu0 %1330
  %1334 = vset.pattern.permute.xlu0 0
  %1335 = vperm.xlu0 %1334, %v1213
  %v1336 = vpop.permute.xlu0 %1335
  %1339 = vset.pattern.permute.xlu0 0
  %1340 = vperm.xlu0 %1339, %v1214
  %v1341 = vpop.permute.xlu0 %1340
  %1344 = vset.pattern.permute.xlu0 0
  %1345 = vperm.xlu0 %1344, %v1215
  %v1346 = vpop.permute.xlu0 %1345
  %1349 = vset.pattern.permute.xlu0 0
  %1350 = vperm.xlu0 %1349, %v1216
  %v1351 = vpop.permute.xlu0 %1350
  %1354 = vset.pattern.permute.xlu0 0
  %1355 = vperm.xlu0 %1354, %v1217
  %v1356 = vpop.permute.xlu0 %1355
  %1359 = vset.pattern.permute.xlu0 0
  %1360 = vperm.xlu0 %1359, %v1218
  %v1361 = vpop.permute.xlu0 %1360
  %1364 = vset.pattern.permute.xlu0 0
  %1365 = vperm.xlu0 %1364, %v1219
  %v1366 = vpop.permute.xlu0 %1365
  %1369 = vset.pattern.permute.xlu0 0
  %1370 = vperm.xlu0 %1369, %v1220
  %v1371 = vpop.permute.xlu0 %1370
  %1374 = vset.pattern.permute.xlu0 0
  %1375 = vperm.xlu0 %1374, %v1221
  %v1376 = vpop.permute.xlu0 %1375
  %1379 = vset.pattern.permute.xlu0 0
  %1380 = vperm.xlu0 %1379, %v1222
  %v1381 = vpop.permute.xlu0 %1380
  %1384 = vset.pattern.permute.xlu0 0
  %1385 = vperm.xlu0 %1384, %v1223
  %v1386 = vpop.permute.xlu0 %1385
  %1389 = vset.pattern.permute.xlu0 0
  %1390 = vperm.xlu0 %1389, %v1224
  %v1391 = vpop.permute.xlu0 %1390
  %1394 = vset.pattern.permute.xlu0 0
  %1395 = vperm.xlu0 %1394, %v1225
  %v1396 = vpop.permute.xlu0 %1395
  %1399 = vset.pattern.permute.xlu0 0
  %1400 = vperm.xlu0 %1399, %v1226
  %v1401 = vpop.permute.xlu0 %1400
  %1404 = vset.pattern.permute.xlu0 0
  %1405 = vperm.xlu0 %1404, %v1227
  %v1406 = vpop.permute.xlu0 %1405
  %1409 = vset.pattern.permute.xlu0 0
  %1410 = vperm.xlu0 %1409, %v1228
  %v1411 = vpop.permute.xlu0 %1410
  %1414 = vset.pattern.permute.xlu0 0
  %1415 = vperm.xlu0 %1414, %v1229
  %v1416 = vpop.permute.xlu0 %1415
  %1419 = vset.pattern.permute.xlu0 0
  %1420 = vperm.xlu0 %1419, %v1230
  %v1421 = vpop.permute.xlu0 %1420
  %1424 = vset.pattern.permute.xlu0 0
  %1425 = vperm.xlu0 %1424, %v1231
  %v1426 = vpop.permute.xlu0 %1425
  %1429 = vset.pattern.permute.xlu0 0
  %1430 = vperm.xlu0 %1429, %v1232
  %v1431 = vpop.permute.xlu0 %1430
  %v1433 = vrcp.pop %v1236
  %v1434 = vmul.f32 %v1236, %v1433
  %v1435 = vsub.f32 1.0, %v1434
  %v1436 = vmul.f32 %v1433, %v1435
  %v1437 = vadd.f32 %v1433, %v1436
  %vm1438 = vweird.f32 %v1236
  %vm1439 = vweird.f32 %v1433
  %vm1440 = vmor %vm1438, %vm1439
  %v1441 = vsel %vm1440, %v1433, %v1437
  %v1442 = vand.u32 2147483647, %v1236
  %vm1443 = vcmp.eq.f32.partialorder %v1442, 8.507059e+37
  %v1444 = vand.u32 %v1236, 2147483648
  %v1445 = vor.u32 1.1754944e-38, %v1444
  %v1446 = vsel %vm1443, %v1445, %v1441
  %v1447 = vmul.f32 %v437, %v1446
  %v1448 = vmul.f32 %v443, %v1446
  %v1449 = vrcp.pop %v1241
  %v1450 = vmul.f32 %v1241, %v1449
  %v1451 = vsub.f32 1.0, %v1450
  %v1452 = vmul.f32 %v1449, %v1451
  %v1453 = vadd.f32 %v1449, %v1452
  %vm1454 = vweird.f32 %v1241
  %vm1455 = vweird.f32 %v1449
  %vm1456 = vmor %vm1454, %vm1455
  %v1457 = vsel %vm1456, %v1449, %v1453
  %v1458 = vand.u32 2147483647, %v1241
  %vm1459 = vcmp.eq.f32.partialorder %v1458, 8.507059e+37
  %v1460 = vand.u32 %v1241, 2147483648
  %v1461 = vor.u32 1.1754944e-38, %v1460
  %v1462 = vsel %vm1459, %v1461, %v1457
  %v1463 = vmul.f32 %v449, %v1462
  %v1464 = vmul.f32 %v455, %v1462
  %v1465 = vrcp.pop %v1246
  %v1466 = vmul.f32 %v1246, %v1465
  %v1467 = vsub.f32 1.0, %v1466
  %v1468 = vmul.f32 %v1465, %v1467
  %v1469 = vadd.f32 %v1465, %v1468
  %vm1470 = vweird.f32 %v1246
  %vm1471 = vweird.f32 %v1465
  %vm1472 = vmor %vm1470, %vm1471
  %v1473 = vsel %vm1472, %v1465, %v1469
  %v1474 = vand.u32 2147483647, %v1246
  %vm1475 = vcmp.eq.f32.partialorder %v1474, 8.507059e+37
  %v1476 = vand.u32 %v1246, 2147483648
  %v1477 = vor.u32 1.1754944e-38, %v1476
  %v1478 = vsel %vm1475, %v1477, %v1473
  %v1479 = vmul.f32 %v461, %v1478
  %v1480 = vmul.f32 %v467, %v1478
  %v1481 = vrcp.pop %v1251
  %v1482 = vmul.f32 %v1251, %v1481
  %v1483 = vsub.f32 1.0, %v1482
  %v1484 = vmul.f32 %v1481, %v1483
  %v1485 = vadd.f32 %v1481, %v1484
  %vm1486 = vweird.f32 %v1251
  %vm1487 = vweird.f32 %v1481
  %vm1488 = vmor %vm1486, %vm1487
  %v1489 = vsel %vm1488, %v1481, %v1485
  %v1490 = vand.u32 2147483647, %v1251
  %vm1491 = vcmp.eq.f32.partialorder %v1490, 8.507059e+37
  %v1492 = vand.u32 %v1251, 2147483648
  %v1493 = vor.u32 1.1754944e-38, %v1492
  %v1494 = vsel %vm1491, %v1493, %v1489
  %v1495 = vmul.f32 %v473, %v1494
  %v1496 = vmul.f32 %v479, %v1494
  %v1497 = vrcp.pop %v1256
  %v1498 = vmul.f32 %v1256, %v1497
  %v1499 = vsub.f32 1.0, %v1498
  %v1500 = vmul.f32 %v1497, %v1499
  %v1501 = vadd.f32 %v1497, %v1500
  %vm1502 = vweird.f32 %v1256
  %vm1503 = vweird.f32 %v1497
  %vm1504 = vmor %vm1502, %vm1503
  %v1505 = vsel %vm1504, %v1497, %v1501
  %v1506 = vand.u32 2147483647, %v1256
  %vm1507 = vcmp.eq.f32.partialorder %v1506, 8.507059e+37
  %v1508 = vand.u32 %v1256, 2147483648
  %v1509 = vor.u32 1.1754944e-38, %v1508
  %v1510 = vsel %vm1507, %v1509, %v1505
  %v1511 = vmul.f32 %v485, %v1510
  %v1512 = vmul.f32 %v491, %v1510
  %v1513 = vrcp.pop %v1261
  %v1514 = vmul.f32 %v1261, %v1513
  %v1515 = vsub.f32 1.0, %v1514
  %v1516 = vmul.f32 %v1513, %v1515
  %v1517 = vadd.f32 %v1513, %v1516
  %vm1518 = vweird.f32 %v1261
  %vm1519 = vweird.f32 %v1513
  %vm1520 = vmor %vm1518, %vm1519
  %v1521 = vsel %vm1520, %v1513, %v1517
  %v1522 = vand.u32 2147483647, %v1261
  %vm1523 = vcmp.eq.f32.partialorder %v1522, 8.507059e+37
  %v1524 = vand.u32 %v1261, 2147483648
  %v1525 = vor.u32 1.1754944e-38, %v1524
  %v1526 = vsel %vm1523, %v1525, %v1521
  %v1527 = vmul.f32 %v497, %v1526
  %v1528 = vmul.f32 %v503, %v1526
  %v1529 = vrcp.pop %v1266
  %v1530 = vmul.f32 %v1266, %v1529
  %v1531 = vsub.f32 1.0, %v1530
  %v1532 = vmul.f32 %v1529, %v1531
  %v1533 = vadd.f32 %v1529, %v1532
  %vm1534 = vweird.f32 %v1266
  %vm1535 = vweird.f32 %v1529
  %vm1536 = vmor %vm1534, %vm1535
  %v1537 = vsel %vm1536, %v1529, %v1533
  %v1538 = vand.u32 2147483647, %v1266
  %vm1539 = vcmp.eq.f32.partialorder %v1538, 8.507059e+37
  %v1540 = vand.u32 %v1266, 2147483648
  %v1541 = vor.u32 1.1754944e-38, %v1540
  %v1542 = vsel %vm1539, %v1541, %v1537
  %v1543 = vmul.f32 %v509, %v1542
  %v1544 = vmul.f32 %v515, %v1542
  %v1545 = vrcp.pop %v1271
  %v1546 = vmul.f32 %v1271, %v1545
  %v1547 = vsub.f32 1.0, %v1546
  %v1548 = vmul.f32 %v1545, %v1547
  %v1549 = vadd.f32 %v1545, %v1548
  %vm1550 = vweird.f32 %v1271
  %vm1551 = vweird.f32 %v1545
  %vm1552 = vmor %vm1550, %vm1551
  %v1553 = vsel %vm1552, %v1545, %v1549
  %v1554 = vand.u32 2147483647, %v1271
  %vm1555 = vcmp.eq.f32.partialorder %v1554, 8.507059e+37
  %v1556 = vand.u32 %v1271, 2147483648
  %v1557 = vor.u32 1.1754944e-38, %v1556
  %v1558 = vsel %vm1555, %v1557, %v1553
  %v1559 = vmul.f32 %v521, %v1558
  %v1560 = vmul.f32 %v527, %v1558
  %v1561 = vrcp.pop %v1276
  %v1562 = vmul.f32 %v1276, %v1561
  %v1563 = vsub.f32 1.0, %v1562
  %v1564 = vmul.f32 %v1561, %v1563
  %v1565 = vadd.f32 %v1561, %v1564
  %vm1566 = vweird.f32 %v1276
  %vm1567 = vweird.f32 %v1561
  %vm1568 = vmor %vm1566, %vm1567
  %v1569 = vsel %vm1568, %v1561, %v1565
  %v1570 = vand.u32 2147483647, %v1276
  %vm1571 = vcmp.eq.f32.partialorder %v1570, 8.507059e+37
  %v1572 = vand.u32 %v1276, 2147483648
  %v1573 = vor.u32 1.1754944e-38, %v1572
  %v1574 = vsel %vm1571, %v1573, %v1569
  %v1575 = vmul.f32 %v533, %v1574
  %v1576 = vmul.f32 %v539, %v1574
  %v1577 = vrcp.pop %v1281
  %v1578 = vmul.f32 %v1281, %v1577
  %v1579 = vsub.f32 1.0, %v1578
  %v1580 = vmul.f32 %v1577, %v1579
  %v1581 = vadd.f32 %v1577, %v1580
  %vm1582 = vweird.f32 %v1281
  %vm1583 = vweird.f32 %v1577
  %vm1584 = vmor %vm1582, %vm1583
  %v1585 = vsel %vm1584, %v1577, %v1581
  %v1586 = vand.u32 2147483647, %v1281
  %vm1587 = vcmp.eq.f32.partialorder %v1586, 8.507059e+37
  %v1588 = vand.u32 %v1281, 2147483648
  %v1589 = vor.u32 1.1754944e-38, %v1588
  %v1590 = vsel %vm1587, %v1589, %v1585
  %v1591 = vmul.f32 %v545, %v1590
  %v1592 = vmul.f32 %v551, %v1590
  %v1593 = vrcp.pop %v1286
  %v1594 = vmul.f32 %v1286, %v1593
  %v1595 = vsub.f32 1.0, %v1594
  %v1596 = vmul.f32 %v1593, %v1595
  %v1597 = vadd.f32 %v1593, %v1596
  %vm1598 = vweird.f32 %v1286
  %vm1599 = vweird.f32 %v1593
  %vm1600 = vmor %vm1598, %vm1599
  %v1601 = vsel %vm1600, %v1593, %v1597
  %v1602 = vand.u32 2147483647, %v1286
  %vm1603 = vcmp.eq.f32.partialorder %v1602, 8.507059e+37
  %v1604 = vand.u32 %v1286, 2147483648
  %v1605 = vor.u32 1.1754944e-38, %v1604
  %v1606 = vsel %vm1603, %v1605, %v1601
  %v1607 = vmul.f32 %v557, %v1606
  %v1608 = vmul.f32 %v563, %v1606
  %v1609 = vrcp.pop %v1291
  %v1610 = vmul.f32 %v1291, %v1609
  %v1611 = vsub.f32 1.0, %v1610
  %v1612 = vmul.f32 %v1609, %v1611
  %v1613 = vadd.f32 %v1609, %v1612
  %vm1614 = vweird.f32 %v1291
  %vm1615 = vweird.f32 %v1609
  %vm1616 = vmor %vm1614, %vm1615
  %v1617 = vsel %vm1616, %v1609, %v1613
  %v1618 = vand.u32 2147483647, %v1291
  %vm1619 = vcmp.eq.f32.partialorder %v1618, 8.507059e+37
  %v1620 = vand.u32 %v1291, 2147483648
  %v1621 = vor.u32 1.1754944e-38, %v1620
  %v1622 = vsel %vm1619, %v1621, %v1617
  %v1623 = vmul.f32 %v569, %v1622
  %v1624 = vmul.f32 %v575, %v1622
  %v1625 = vrcp.pop %v1296
  %v1626 = vmul.f32 %v1296, %v1625
  %v1627 = vsub.f32 1.0, %v1626
  %v1628 = vmul.f32 %v1625, %v1627
  %v1629 = vadd.f32 %v1625, %v1628
  %vm1630 = vweird.f32 %v1296
  %vm1631 = vweird.f32 %v1625
  %vm1632 = vmor %vm1630, %vm1631
  %v1633 = vsel %vm1632, %v1625, %v1629
  %v1634 = vand.u32 2147483647, %v1296
  %vm1635 = vcmp.eq.f32.partialorder %v1634, 8.507059e+37
  %v1636 = vand.u32 %v1296, 2147483648
  %v1637 = vor.u32 1.1754944e-38, %v1636
  %v1638 = vsel %vm1635, %v1637, %v1633
  %v1639 = vmul.f32 %v581, %v1638
  %v1640 = vmul.f32 %v587, %v1638
  %v1641 = vrcp.pop %v1301
  %v1642 = vmul.f32 %v1301, %v1641
  %v1643 = vsub.f32 1.0, %v1642
  %v1644 = vmul.f32 %v1641, %v1643
  %v1645 = vadd.f32 %v1641, %v1644
  %vm1646 = vweird.f32 %v1301
  %vm1647 = vweird.f32 %v1641
  %vm1648 = vmor %vm1646, %vm1647
  %v1649 = vsel %vm1648, %v1641, %v1645
  %v1650 = vand.u32 2147483647, %v1301
  %vm1651 = vcmp.eq.f32.partialorder %v1650, 8.507059e+37
  %v1652 = vand.u32 %v1301, 2147483648
  %v1653 = vor.u32 1.1754944e-38, %v1652
  %v1654 = vsel %vm1651, %v1653, %v1649
  %v1655 = vmul.f32 %v593, %v1654
  %v1656 = vmul.f32 %v599, %v1654
  %v1657 = vrcp.pop %v1306
  %v1658 = vmul.f32 %v1306, %v1657
  %v1659 = vsub.f32 1.0, %v1658
  %v1660 = vmul.f32 %v1657, %v1659
  %v1661 = vadd.f32 %v1657, %v1660
  %vm1662 = vweird.f32 %v1306
  %vm1663 = vweird.f32 %v1657
  %vm1664 = vmor %vm1662, %vm1663
  %v1665 = vsel %vm1664, %v1657, %v1661
  %v1666 = vand.u32 2147483647, %v1306
  %vm1667 = vcmp.eq.f32.partialorder %v1666, 8.507059e+37
  %v1668 = vand.u32 %v1306, 2147483648
  %v1669 = vor.u32 1.1754944e-38, %v1668
  %v1670 = vsel %vm1667, %v1669, %v1665
  %v1671 = vmul.f32 %v605, %v1670
  %v1672 = vmul.f32 %v611, %v1670
  %v1673 = vrcp.pop %v1311
  %v1674 = vmul.f32 %v1311, %v1673
  %v1675 = vsub.f32 1.0, %v1674
  %v1676 = vmul.f32 %v1673, %v1675
  %v1677 = vadd.f32 %v1673, %v1676
  %vm1678 = vweird.f32 %v1311
  %vm1679 = vweird.f32 %v1673
  %vm1680 = vmor %vm1678, %vm1679
  %v1681 = vsel %vm1680, %v1673, %v1677
  %v1682 = vand.u32 2147483647, %v1311
  %vm1683 = vcmp.eq.f32.partialorder %v1682, 8.507059e+37
  %v1684 = vand.u32 %v1311, 2147483648
  %v1685 = vor.u32 1.1754944e-38, %v1684
  %v1686 = vsel %vm1683, %v1685, %v1681
  %v1687 = vmul.f32 %v617, %v1686
  %v1688 = vmul.f32 %v623, %v1686
  %v1689 = vrcp.pop %v1316
  %v1690 = vmul.f32 %v1316, %v1689
  %v1691 = vsub.f32 1.0, %v1690
  %v1692 = vmul.f32 %v1689, %v1691
  %v1693 = vadd.f32 %v1689, %v1692
  %vm1694 = vweird.f32 %v1316
  %vm1695 = vweird.f32 %v1689
  %vm1696 = vmor %vm1694, %vm1695
  %v1697 = vsel %vm1696, %v1689, %v1693
  %v1698 = vand.u32 2147483647, %v1316
  %vm1699 = vcmp.eq.f32.partialorder %v1698, 8.507059e+37
  %v1700 = vand.u32 %v1316, 2147483648
  %v1701 = vor.u32 1.1754944e-38, %v1700
  %v1702 = vsel %vm1699, %v1701, %v1697
  %v1703 = vmul.f32 %v629, %v1702
  %v1704 = vmul.f32 %v635, %v1702
  %v1705 = vrcp.pop %v1321
  %v1706 = vmul.f32 %v1321, %v1705
  %v1707 = vsub.f32 1.0, %v1706
  %v1708 = vmul.f32 %v1705, %v1707
  %v1709 = vadd.f32 %v1705, %v1708
  %vm1710 = vweird.f32 %v1321
  %vm1711 = vweird.f32 %v1705
  %vm1712 = vmor %vm1710, %vm1711
  %v1713 = vsel %vm1712, %v1705, %v1709
  %v1714 = vand.u32 2147483647, %v1321
  %vm1715 = vcmp.eq.f32.partialorder %v1714, 8.507059e+37
  %v1716 = vand.u32 %v1321, 2147483648
  %v1717 = vor.u32 1.1754944e-38, %v1716
  %v1718 = vsel %vm1715, %v1717, %v1713
  %v1719 = vmul.f32 %v641, %v1718
  %v1720 = vmul.f32 %v647, %v1718
  %v1721 = vrcp.pop %v1326
  %v1722 = vmul.f32 %v1326, %v1721
  %v1723 = vsub.f32 1.0, %v1722
  %v1724 = vmul.f32 %v1721, %v1723
  %v1725 = vadd.f32 %v1721, %v1724
  %vm1726 = vweird.f32 %v1326
  %vm1727 = vweird.f32 %v1721
  %vm1728 = vmor %vm1726, %vm1727
  %v1729 = vsel %vm1728, %v1721, %v1725
  %v1730 = vand.u32 2147483647, %v1326
  %vm1731 = vcmp.eq.f32.partialorder %v1730, 8.507059e+37
  %v1732 = vand.u32 %v1326, 2147483648
  %v1733 = vor.u32 1.1754944e-38, %v1732
  %v1734 = vsel %vm1731, %v1733, %v1729
  %v1735 = vmul.f32 %v653, %v1734
  %v1736 = vmul.f32 %v659, %v1734
  %v1737 = vrcp.pop %v1331
  %v1738 = vmul.f32 %v1331, %v1737
  %v1739 = vsub.f32 1.0, %v1738
  %v1740 = vmul.f32 %v1737, %v1739
  %v1741 = vadd.f32 %v1737, %v1740
  %vm1742 = vweird.f32 %v1331
  %vm1743 = vweird.f32 %v1737
  %vm1744 = vmor %vm1742, %vm1743
  %v1745 = vsel %vm1744, %v1737, %v1741
  %v1746 = vand.u32 2147483647, %v1331
  %vm1747 = vcmp.eq.f32.partialorder %v1746, 8.507059e+37
  %v1748 = vand.u32 %v1331, 2147483648
  %v1749 = vor.u32 1.1754944e-38, %v1748
  %v1750 = vsel %vm1747, %v1749, %v1745
  %v1751 = vmul.f32 %v665, %v1750
  %v1752 = vmul.f32 %v671, %v1750
  %v1753 = vrcp.pop %v1336
  %v1754 = vmul.f32 %v1336, %v1753
  %v1755 = vsub.f32 1.0, %v1754
  %v1756 = vmul.f32 %v1753, %v1755
  %v1757 = vadd.f32 %v1753, %v1756
  %vm1758 = vweird.f32 %v1336
  %vm1759 = vweird.f32 %v1753
  %vm1760 = vmor %vm1758, %vm1759
  %v1761 = vsel %vm1760, %v1753, %v1757
  %v1762 = vand.u32 2147483647, %v1336
  %vm1763 = vcmp.eq.f32.partialorder %v1762, 8.507059e+37
  %v1764 = vand.u32 %v1336, 2147483648
  %v1765 = vor.u32 1.1754944e-38, %v1764
  %v1766 = vsel %vm1763, %v1765, %v1761
  %v1767 = vmul.f32 %v677, %v1766
  %v1768 = vmul.f32 %v683, %v1766
  %v1769 = vrcp.pop %v1341
  %v1770 = vmul.f32 %v1341, %v1769
  %v1771 = vsub.f32 1.0, %v1770
  %v1772 = vmul.f32 %v1769, %v1771
  %v1773 = vadd.f32 %v1769, %v1772
  %vm1774 = vweird.f32 %v1341
  %vm1775 = vweird.f32 %v1769
  %vm1776 = vmor %vm1774, %vm1775
  %v1777 = vsel %vm1776, %v1769, %v1773
  %v1778 = vand.u32 2147483647, %v1341
  %vm1779 = vcmp.eq.f32.partialorder %v1778, 8.507059e+37
  %v1780 = vand.u32 %v1341, 2147483648
  %v1781 = vor.u32 1.1754944e-38, %v1780
  %v1782 = vsel %vm1779, %v1781, %v1777
  %v1783 = vmul.f32 %v689, %v1782
  %v1784 = vmul.f32 %v695, %v1782
  %v1785 = vrcp.pop %v1346
  %v1786 = vmul.f32 %v1346, %v1785
  %v1787 = vsub.f32 1.0, %v1786
  %v1788 = vmul.f32 %v1785, %v1787
  %v1789 = vadd.f32 %v1785, %v1788
  %vm1790 = vweird.f32 %v1346
  %vm1791 = vweird.f32 %v1785
  %vm1792 = vmor %vm1790, %vm1791
  %v1793 = vsel %vm1792, %v1785, %v1789
  %v1794 = vand.u32 2147483647, %v1346
  %vm1795 = vcmp.eq.f32.partialorder %v1794, 8.507059e+37
  %v1796 = vand.u32 %v1346, 2147483648
  %v1797 = vor.u32 1.1754944e-38, %v1796
  %v1798 = vsel %vm1795, %v1797, %v1793
  %v1799 = vmul.f32 %v701, %v1798
  %v1800 = vmul.f32 %v707, %v1798
  %v1801 = vrcp.pop %v1351
  %v1802 = vmul.f32 %v1351, %v1801
  %v1803 = vsub.f32 1.0, %v1802
  %v1804 = vmul.f32 %v1801, %v1803
  %v1805 = vadd.f32 %v1801, %v1804
  %vm1806 = vweird.f32 %v1351
  %vm1807 = vweird.f32 %v1801
  %vm1808 = vmor %vm1806, %vm1807
  %v1809 = vsel %vm1808, %v1801, %v1805
  %v1810 = vand.u32 2147483647, %v1351
  %vm1811 = vcmp.eq.f32.partialorder %v1810, 8.507059e+37
  %v1812 = vand.u32 %v1351, 2147483648
  %v1813 = vor.u32 1.1754944e-38, %v1812
  %v1814 = vsel %vm1811, %v1813, %v1809
  %v1815 = vmul.f32 %v713, %v1814
  %v1816 = vmul.f32 %v719, %v1814
  %v1817 = vrcp.pop %v1356
  %v1818 = vmul.f32 %v1356, %v1817
  %v1819 = vsub.f32 1.0, %v1818
  %v1820 = vmul.f32 %v1817, %v1819
  %v1821 = vadd.f32 %v1817, %v1820
  %vm1822 = vweird.f32 %v1356
  %vm1823 = vweird.f32 %v1817
  %vm1824 = vmor %vm1822, %vm1823
  %v1825 = vsel %vm1824, %v1817, %v1821
  %v1826 = vand.u32 2147483647, %v1356
  %vm1827 = vcmp.eq.f32.partialorder %v1826, 8.507059e+37
  %v1828 = vand.u32 %v1356, 2147483648
  %v1829 = vor.u32 1.1754944e-38, %v1828
  %v1830 = vsel %vm1827, %v1829, %v1825
  %v1831 = vmul.f32 %v725, %v1830
  %v1832 = vmul.f32 %v731, %v1830
  %v1833 = vrcp.pop %v1361
  %v1834 = vmul.f32 %v1361, %v1833
  %v1835 = vsub.f32 1.0, %v1834
  %v1836 = vmul.f32 %v1833, %v1835
  %v1837 = vadd.f32 %v1833, %v1836
  %vm1838 = vweird.f32 %v1361
  %vm1839 = vweird.f32 %v1833
  %vm1840 = vmor %vm1838, %vm1839
  %v1841 = vsel %vm1840, %v1833, %v1837
  %v1842 = vand.u32 2147483647, %v1361
  %vm1843 = vcmp.eq.f32.partialorder %v1842, 8.507059e+37
  %v1844 = vand.u32 %v1361, 2147483648
  %v1845 = vor.u32 1.1754944e-38, %v1844
  %v1846 = vsel %vm1843, %v1845, %v1841
  %v1847 = vmul.f32 %v737, %v1846
  %v1848 = vmul.f32 %v743, %v1846
  %v1849 = vrcp.pop %v1366
  %v1850 = vmul.f32 %v1366, %v1849
  %v1851 = vsub.f32 1.0, %v1850
  %v1852 = vmul.f32 %v1849, %v1851
  %v1853 = vadd.f32 %v1849, %v1852
  %vm1854 = vweird.f32 %v1366
  %vm1855 = vweird.f32 %v1849
  %vm1856 = vmor %vm1854, %vm1855
  %v1857 = vsel %vm1856, %v1849, %v1853
  %v1858 = vand.u32 2147483647, %v1366
  %vm1859 = vcmp.eq.f32.partialorder %v1858, 8.507059e+37
  %v1860 = vand.u32 %v1366, 2147483648
  %v1861 = vor.u32 1.1754944e-38, %v1860
  %v1862 = vsel %vm1859, %v1861, %v1857
  %v1863 = vmul.f32 %v749, %v1862
  %v1864 = vmul.f32 %v755, %v1862
  %v1865 = vrcp.pop %v1371
  %v1866 = vmul.f32 %v1371, %v1865
  %v1867 = vsub.f32 1.0, %v1866
  %v1868 = vmul.f32 %v1865, %v1867
  %v1869 = vadd.f32 %v1865, %v1868
  %vm1870 = vweird.f32 %v1371
  %vm1871 = vweird.f32 %v1865
  %vm1872 = vmor %vm1870, %vm1871
  %v1873 = vsel %vm1872, %v1865, %v1869
  %v1874 = vand.u32 2147483647, %v1371
  %vm1875 = vcmp.eq.f32.partialorder %v1874, 8.507059e+37
  %v1876 = vand.u32 %v1371, 2147483648
  %v1877 = vor.u32 1.1754944e-38, %v1876
  %v1878 = vsel %vm1875, %v1877, %v1873
  %v1879 = vmul.f32 %v761, %v1878
  %v1880 = vmul.f32 %v767, %v1878
  %v1881 = vrcp.pop %v1376
  %v1882 = vmul.f32 %v1376, %v1881
  %v1883 = vsub.f32 1.0, %v1882
  %v1884 = vmul.f32 %v1881, %v1883
  %v1885 = vadd.f32 %v1881, %v1884
  %vm1886 = vweird.f32 %v1376
  %vm1887 = vweird.f32 %v1881
  %vm1888 = vmor %vm1886, %vm1887
  %v1889 = vsel %vm1888, %v1881, %v1885
  %v1890 = vand.u32 2147483647, %v1376
  %vm1891 = vcmp.eq.f32.partialorder %v1890, 8.507059e+37
  %v1892 = vand.u32 %v1376, 2147483648
  %v1893 = vor.u32 1.1754944e-38, %v1892
  %v1894 = vsel %vm1891, %v1893, %v1889
  %v1895 = vmul.f32 %v773, %v1894
  %v1896 = vmul.f32 %v779, %v1894
  %v1897 = vrcp.pop %v1381
  %v1898 = vmul.f32 %v1381, %v1897
  %v1899 = vsub.f32 1.0, %v1898
  %v1900 = vmul.f32 %v1897, %v1899
  %v1901 = vadd.f32 %v1897, %v1900
  %vm1902 = vweird.f32 %v1381
  %vm1903 = vweird.f32 %v1897
  %vm1904 = vmor %vm1902, %vm1903
  %v1905 = vsel %vm1904, %v1897, %v1901
  %v1906 = vand.u32 2147483647, %v1381
  %vm1907 = vcmp.eq.f32.partialorder %v1906, 8.507059e+37
  %v1908 = vand.u32 %v1381, 2147483648
  %v1909 = vor.u32 1.1754944e-38, %v1908
  %v1910 = vsel %vm1907, %v1909, %v1905
  %v1911 = vmul.f32 %v785, %v1910
  %v1912 = vmul.f32 %v791, %v1910
  %v1913 = vrcp.pop %v1386
  %v1914 = vmul.f32 %v1386, %v1913
  %v1915 = vsub.f32 1.0, %v1914
  %v1916 = vmul.f32 %v1913, %v1915
  %v1917 = vadd.f32 %v1913, %v1916
  %vm1918 = vweird.f32 %v1386
  %vm1919 = vweird.f32 %v1913
  %vm1920 = vmor %vm1918, %vm1919
  %v1921 = vsel %vm1920, %v1913, %v1917
  %v1922 = vand.u32 2147483647, %v1386
  %vm1923 = vcmp.eq.f32.partialorder %v1922, 8.507059e+37
  %v1924 = vand.u32 %v1386, 2147483648
  %v1925 = vor.u32 1.1754944e-38, %v1924
  %v1926 = vsel %vm1923, %v1925, %v1921
  %v1927 = vmul.f32 %v797, %v1926
  %v1928 = vmul.f32 %v803, %v1926
  %v1929 = vrcp.pop %v1391
  %v1930 = vmul.f32 %v1391, %v1929
  %v1931 = vsub.f32 1.0, %v1930
  %v1932 = vmul.f32 %v1929, %v1931
  %v1933 = vadd.f32 %v1929, %v1932
  %vm1934 = vweird.f32 %v1391
  %vm1935 = vweird.f32 %v1929
  %vm1936 = vmor %vm1934, %vm1935
  %v1937 = vsel %vm1936, %v1929, %v1933
  %v1938 = vand.u32 2147483647, %v1391
  %vm1939 = vcmp.eq.f32.partialorder %v1938, 8.507059e+37
  %v1940 = vand.u32 %v1391, 2147483648
  %v1941 = vor.u32 1.1754944e-38, %v1940
  %v1942 = vsel %vm1939, %v1941, %v1937
  %v1943 = vmul.f32 %v809, %v1942
  %v1944 = vmul.f32 %v815, %v1942
  %v1945 = vrcp.pop %v1396
  %v1946 = vmul.f32 %v1396, %v1945
  %v1947 = vsub.f32 1.0, %v1946
  %v1948 = vmul.f32 %v1945, %v1947
  %v1949 = vadd.f32 %v1945, %v1948
  %vm1950 = vweird.f32 %v1396
  %vm1951 = vweird.f32 %v1945
  %vm1952 = vmor %vm1950, %vm1951
  %v1953 = vsel %vm1952, %v1945, %v1949
  %v1954 = vand.u32 2147483647, %v1396
  %vm1955 = vcmp.eq.f32.partialorder %v1954, 8.507059e+37
  %v1956 = vand.u32 %v1396, 2147483648
  %v1957 = vor.u32 1.1754944e-38, %v1956
  %v1958 = vsel %vm1955, %v1957, %v1953
  %v1959 = vmul.f32 %v821, %v1958
  %v1960 = vmul.f32 %v827, %v1958
  %v1961 = vrcp.pop %v1401
  %v1962 = vmul.f32 %v1401, %v1961
  %v1963 = vsub.f32 1.0, %v1962
  %v1964 = vmul.f32 %v1961, %v1963
  %v1965 = vadd.f32 %v1961, %v1964
  %vm1966 = vweird.f32 %v1401
  %vm1967 = vweird.f32 %v1961
  %vm1968 = vmor %vm1966, %vm1967
  %v1969 = vsel %vm1968, %v1961, %v1965
  %v1970 = vand.u32 2147483647, %v1401
  %vm1971 = vcmp.eq.f32.partialorder %v1970, 8.507059e+37
  %v1972 = vand.u32 %v1401, 2147483648
  %v1973 = vor.u32 1.1754944e-38, %v1972
  %v1974 = vsel %vm1971, %v1973, %v1969
  %v1975 = vmul.f32 %v833, %v1974
  %v1976 = vmul.f32 %v839, %v1974
  %v1977 = vrcp.pop %v1406
  %v1978 = vmul.f32 %v1406, %v1977
  %v1979 = vsub.f32 1.0, %v1978
  %v1980 = vmul.f32 %v1977, %v1979
  %v1981 = vadd.f32 %v1977, %v1980
  %vm1982 = vweird.f32 %v1406
  %vm1983 = vweird.f32 %v1977
  %vm1984 = vmor %vm1982, %vm1983
  %v1985 = vsel %vm1984, %v1977, %v1981
  %v1986 = vand.u32 2147483647, %v1406
  %vm1987 = vcmp.eq.f32.partialorder %v1986, 8.507059e+37
  %v1988 = vand.u32 %v1406, 2147483648
  %v1989 = vor.u32 1.1754944e-38, %v1988
  %v1990 = vsel %vm1987, %v1989, %v1985
  %v1991 = vmul.f32 %v845, %v1990
  %v1992 = vmul.f32 %v851, %v1990
  %v1993 = vrcp.pop %v1411
  %v1994 = vmul.f32 %v1411, %v1993
  %v1995 = vsub.f32 1.0, %v1994
  %v1996 = vmul.f32 %v1993, %v1995
  %v1997 = vadd.f32 %v1993, %v1996
  %vm1998 = vweird.f32 %v1411
  %vm1999 = vweird.f32 %v1993
  %vm2000 = vmor %vm1998, %vm1999
  %v2001 = vsel %vm2000, %v1993, %v1997
  %v2002 = vand.u32 2147483647, %v1411
  %vm2003 = vcmp.eq.f32.partialorder %v2002, 8.507059e+37
  %v2004 = vand.u32 %v1411, 2147483648
  %v2005 = vor.u32 1.1754944e-38, %v2004
  %v2006 = vsel %vm2003, %v2005, %v2001
  %v2007 = vmul.f32 %v857, %v2006
  %v2008 = vmul.f32 %v863, %v2006
  %v2009 = vrcp.pop %v1416
  %v2010 = vmul.f32 %v1416, %v2009
  %v2011 = vsub.f32 1.0, %v2010
  %v2012 = vmul.f32 %v2009, %v2011
  %v2013 = vadd.f32 %v2009, %v2012
  %vm2014 = vweird.f32 %v1416
  %vm2015 = vweird.f32 %v2009
  %vm2016 = vmor %vm2014, %vm2015
  %v2017 = vsel %vm2016, %v2009, %v2013
  %v2018 = vand.u32 2147483647, %v1416
  %vm2019 = vcmp.eq.f32.partialorder %v2018, 8.507059e+37
  %v2020 = vand.u32 %v1416, 2147483648
  %v2021 = vor.u32 1.1754944e-38, %v2020
  %v2022 = vsel %vm2019, %v2021, %v2017
  %v2023 = vmul.f32 %v869, %v2022
  %v2024 = vmul.f32 %v875, %v2022
  %v2025 = vrcp.pop %v1421
  %v2026 = vmul.f32 %v1421, %v2025
  %v2027 = vsub.f32 1.0, %v2026
  %v2028 = vmul.f32 %v2025, %v2027
  %v2029 = vadd.f32 %v2025, %v2028
  %vm2030 = vweird.f32 %v1421
  %vm2031 = vweird.f32 %v2025
  %vm2032 = vmor %vm2030, %vm2031
  %v2033 = vsel %vm2032, %v2025, %v2029
  %v2034 = vand.u32 2147483647, %v1421
  %vm2035 = vcmp.eq.f32.partialorder %v2034, 8.507059e+37
  %v2036 = vand.u32 %v1421, 2147483648
  %v2037 = vor.u32 1.1754944e-38, %v2036
  %v2038 = vsel %vm2035, %v2037, %v2033
  %v2039 = vmul.f32 %v881, %v2038
  %v2040 = vmul.f32 %v887, %v2038
  %v2041 = vrcp.pop %v1426
  %v2042 = vmul.f32 %v1426, %v2041
  %v2043 = vsub.f32 1.0, %v2042
  %v2044 = vmul.f32 %v2041, %v2043
  %v2045 = vadd.f32 %v2041, %v2044
  %vm2046 = vweird.f32 %v1426
  %vm2047 = vweird.f32 %v2041
  %vm2048 = vmor %vm2046, %vm2047
  %v2049 = vsel %vm2048, %v2041, %v2045
  %v2050 = vand.u32 2147483647, %v1426
  %vm2051 = vcmp.eq.f32.partialorder %v2050, 8.507059e+37
  %v2052 = vand.u32 %v1426, 2147483648
  %v2053 = vor.u32 1.1754944e-38, %v2052
  %v2054 = vsel %vm2051, %v2053, %v2049
  %v2055 = vmul.f32 %v893, %v2054
  %v2056 = vmul.f32 %v899, %v2054
  %v2057 = vrcp.pop %v1431
  %v2058 = vmul.f32 %v1431, %v2057
  %v2059 = vsub.f32 1.0, %v2058
  %v2060 = vmul.f32 %v2057, %v2059
  %v2061 = vadd.f32 %v2057, %v2060
  %vm2062 = vweird.f32 %v1431
  %vm2063 = vweird.f32 %v2057
  %vm2064 = vmor %vm2062, %vm2063
  %v2065 = vsel %vm2064, %v2057, %v2061
  %v2066 = vand.u32 2147483647, %v1431
  %vm2067 = vcmp.eq.f32.partialorder %v2066, 8.507059e+37
  %v2068 = vand.u32 %v1431, 2147483648
  %v2069 = vor.u32 1.1754944e-38, %v2068
  %v2070 = vsel %vm2067, %v2069, %v2065
  %v2071 = vmul.f32 %v905, %v2070
  %v2072 = vmul.f32 %v911, %v2070
  %v2073 = vpack.c.bf16 %v1447, %v1447
  %v2074 = vpack.c.bf16 %v1448, %v1448
  %v2075 = vpack.c.bf16 %v1463, %v1463
  %v2076 = vpack.c.bf16 %v1464, %v1464
  %v2077 = vpack.c.bf16 %v1479, %v1479
  %v2078 = vpack.c.bf16 %v1480, %v1480
  %v2079 = vpack.c.bf16 %v1495, %v1495
  %v2080 = vpack.c.bf16 %v1496, %v1496
  %v2081 = vpack.c.bf16 %v1511, %v1511
  %v2082 = vpack.c.bf16 %v1512, %v1512
  %v2083 = vpack.c.bf16 %v1527, %v1527
  %v2084 = vpack.c.bf16 %v1528, %v1528
  %v2085 = vpack.c.bf16 %v1543, %v1543
  %v2086 = vpack.c.bf16 %v1544, %v1544
  %v2087 = vpack.c.bf16 %v1559, %v1559
  %v2088 = vpack.c.bf16 %v1560, %v1560
  %v2089 = vpack.c.bf16 %v1575, %v1575
  %v2090 = vpack.c.bf16 %v1576, %v1576
  %v2091 = vpack.c.bf16 %v1591, %v1591
  %v2092 = vpack.c.bf16 %v1592, %v1592
  %v2093 = vpack.c.bf16 %v1607, %v1607
  %v2094 = vpack.c.bf16 %v1608, %v1608
  %v2095 = vpack.c.bf16 %v1623, %v1623
  %v2096 = vpack.c.bf16 %v1624, %v1624
  %v2097 = vpack.c.bf16 %v1639, %v1639
  %v2098 = vpack.c.bf16 %v1640, %v1640
  %v2099 = vpack.c.bf16 %v1655, %v1655
  %v2100 = vpack.c.bf16 %v1656, %v1656
  %v2101 = vpack.c.bf16 %v1671, %v1671
  %v2102 = vpack.c.bf16 %v1672, %v1672
  %v2103 = vpack.c.bf16 %v1687, %v1687
  %v2104 = vpack.c.bf16 %v1688, %v1688
  %v2105 = vpack.c.bf16 %v1703, %v1703
  %v2106 = vpack.c.bf16 %v1704, %v1704
  %v2107 = vpack.c.bf16 %v1719, %v1719
  %v2108 = vpack.c.bf16 %v1720, %v1720
  %v2109 = vpack.c.bf16 %v1735, %v1735
  %v2110 = vpack.c.bf16 %v1736, %v1736
  %v2111 = vpack.c.bf16 %v1751, %v1751
  %v2112 = vpack.c.bf16 %v1752, %v1752
  %v2113 = vpack.c.bf16 %v1767, %v1767
  %v2114 = vpack.c.bf16 %v1768, %v1768
  %v2115 = vpack.c.bf16 %v1783, %v1783
  %v2116 = vpack.c.bf16 %v1784, %v1784
  %v2117 = vpack.c.bf16 %v1799, %v1799
  %v2118 = vpack.c.bf16 %v1800, %v1800
  %v2119 = vpack.c.bf16 %v1815, %v1815
  %v2120 = vpack.c.bf16 %v1816, %v1816
  %v2121 = vpack.c.bf16 %v1831, %v1831
  %v2122 = vpack.c.bf16 %v1832, %v1832
  %v2123 = vpack.c.bf16 %v1847, %v1847
  %v2124 = vpack.c.bf16 %v1848, %v1848
  %v2125 = vpack.c.bf16 %v1863, %v1863
  %v2126 = vpack.c.bf16 %v1864, %v1864
  %v2127 = vpack.c.bf16 %v1879, %v1879
  %v2128 = vpack.c.bf16 %v1880, %v1880
  %v2129 = vpack.c.bf16 %v1895, %v1895
  %v2130 = vpack.c.bf16 %v1896, %v1896
  %v2131 = vpack.c.bf16 %v1911, %v1911
  %v2132 = vpack.c.bf16 %v1912, %v1912
  %v2133 = vpack.c.bf16 %v1927, %v1927
  %v2134 = vpack.c.bf16 %v1928, %v1928
  %v2135 = vpack.c.bf16 %v1943, %v1943
  %v2136 = vpack.c.bf16 %v1944, %v1944
  %v2137 = vpack.c.bf16 %v1959, %v1959
  %v2138 = vpack.c.bf16 %v1960, %v1960
  %v2139 = vpack.c.bf16 %v1975, %v1975
  %v2140 = vpack.c.bf16 %v1976, %v1976
  %v2141 = vpack.c.bf16 %v1991, %v1991
  %v2142 = vpack.c.bf16 %v1992, %v1992
  %v2143 = vpack.c.bf16 %v2007, %v2007
  %v2144 = vpack.c.bf16 %v2008, %v2008
  %v2145 = vpack.c.bf16 %v2023, %v2023
  %v2146 = vpack.c.bf16 %v2024, %v2024
  %v2147 = vpack.c.bf16 %v2039, %v2039
  %v2148 = vpack.c.bf16 %v2040, %v2040
  %v2149 = vpack.c.bf16 %v2055, %v2055
  %v2150 = vpack.c.bf16 %v2056, %v2056
  %v2151 = vpack.c.bf16 %v2071, %v2071
  %v2152 = vpack.c.bf16 %v2072, %v2072
  %v2153 = vld [vmem:[%s4] sm:$0xff]
  %v2154 = vld [vmem:[%s4 + $0x8] sm:$0xff]
  %v2155 = vld [vmem:[%s4 + $0x10] sm:$0xff]
  %v2156 = vld [vmem:[%s4 + $0x18] sm:$0xff]
  %v2157 = vld [vmem:[%s4 + $0x20] sm:$0xff]
  %v2158 = vld [vmem:[%s4 + $0x28] sm:$0xff]
  %v2159 = vld [vmem:[%s4 + $0x30] sm:$0xff]
  %v2160 = vld [vmem:[%s4 + $0x38] sm:$0xff]
  %v2161 = vld [vmem:[%s4 + $0x40] sm:$0xff]
  %v2162 = vld [vmem:[%s4 + $0x48] sm:$0xff]
  %v2163 = vld [vmem:[%s4 + $0x50] sm:$0xff]
  %v2164 = vld [vmem:[%s4 + $0x58] sm:$0xff]
  %v2165 = vld [vmem:[%s4 + $0x60] sm:$0xff]
  %v2166 = vld [vmem:[%s4 + $0x68] sm:$0xff]
  %v2167 = vld [vmem:[%s4 + $0x70] sm:$0xff]
  %v2168 = vld [vmem:[%s4 + $0x78] sm:$0xff]
  %v2169 = vld [vmem:[%s4 + $0x80] sm:$0xff]
  %v2170 = vld [vmem:[%s4 + $0x88] sm:$0xff]
  %v2171 = vld [vmem:[%s4 + $0x90] sm:$0xff]
  %v2172 = vld [vmem:[%s4 + $0x98] sm:$0xff]
  %v2173 = vld [vmem:[%s4 + $0xa0] sm:$0xff]
  %v2174 = vld [vmem:[%s4 + $0xa8] sm:$0xff]
  %v2175 = vld [vmem:[%s4 + $0xb0] sm:$0xff]
  %v2176 = vld [vmem:[%s4 + $0xb8] sm:$0xff]
  %v2177 = vld [vmem:[%s4 + $0xc0] sm:$0xff]
  %v2178 = vld [vmem:[%s4 + $0xc8] sm:$0xff]
  %v2179 = vld [vmem:[%s4 + $0xd0] sm:$0xff]
  %v2180 = vld [vmem:[%s4 + $0xd8] sm:$0xff]
  %v2181 = vld [vmem:[%s4 + $0xe0] sm:$0xff]
  %v2182 = vld [vmem:[%s4 + $0xe8] sm:$0xff]
  %v2183 = vld [vmem:[%s4 + $0xf0] sm:$0xff]
  %v2184 = vld [vmem:[%s4 + $0xf8] sm:$0xff]
  %v2185 = vld [vmem:[%s5] sm:$0x3]
  %v2187 = vperm.slane %v2185, 0
  %v2188 = vperm.slane %v2185, 1
  %v2271 = vunpack.c.l.b16 %v2073
  %v2272 = vunpack.c.l.b16 %v2074
  %v2273 = vunpack.c.l.b16 %v2075
  %v2274 = vunpack.c.l.b16 %v2076
  %v2275 = vunpack.c.l.b16 %v2077
  %v2276 = vunpack.c.l.b16 %v2078
  %v2277 = vunpack.c.l.b16 %v2079
  %v2278 = vunpack.c.l.b16 %v2080
  %v2279 = vunpack.c.l.b16 %v2081
  %v2280 = vunpack.c.l.b16 %v2082
  %v2281 = vunpack.c.l.b16 %v2083
  %v2282 = vunpack.c.l.b16 %v2084
  %v2283 = vunpack.c.l.b16 %v2085
  %v2284 = vunpack.c.l.b16 %v2086
  %v2285 = vunpack.c.l.b16 %v2087
  %v2286 = vunpack.c.l.b16 %v2088
  %v2287 = vunpack.c.l.b16 %v2089
  %v2288 = vunpack.c.l.b16 %v2090
  %v2289 = vunpack.c.l.b16 %v2091
  %v2290 = vunpack.c.l.b16 %v2092
  %v2291 = vunpack.c.l.b16 %v2093
  %v2292 = vunpack.c.l.b16 %v2094
  %v2293 = vunpack.c.l.b16 %v2095
  %v2294 = vunpack.c.l.b16 %v2096
  %v2295 = vunpack.c.l.b16 %v2097
  %v2296 = vunpack.c.l.b16 %v2098
  %v2297 = vunpack.c.l.b16 %v2099
  %v2298 = vunpack.c.l.b16 %v2100
  %v2299 = vunpack.c.l.b16 %v2101
  %v2300 = vunpack.c.l.b16 %v2102
  %v2301 = vunpack.c.l.b16 %v2103
  %v2302 = vunpack.c.l.b16 %v2104
  %v2303 = vunpack.c.l.b16 %v2105
  %v2304 = vunpack.c.l.b16 %v2106
  %v2305 = vunpack.c.l.b16 %v2107
  %v2306 = vunpack.c.l.b16 %v2108
  %v2307 = vunpack.c.l.b16 %v2109
  %v2308 = vunpack.c.l.b16 %v2110
  %v2309 = vunpack.c.l.b16 %v2111
  %v2310 = vunpack.c.l.b16 %v2112
  %v2311 = vunpack.c.l.b16 %v2113
  %v2312 = vunpack.c.l.b16 %v2114
  %v2313 = vunpack.c.l.b16 %v2115
  %v2314 = vunpack.c.l.b16 %v2116
  %v2315 = vunpack.c.l.b16 %v2117
  %v2316 = vunpack.c.l.b16 %v2118
  %v2317 = vunpack.c.l.b16 %v2119
  %v2318 = vunpack.c.l.b16 %v2120
  %v2319 = vunpack.c.l.b16 %v2121
  %v2320 = vunpack.c.l.b16 %v2122
  %v2321 = vunpack.c.l.b16 %v2123
  %v2322 = vunpack.c.l.b16 %v2124
  %v2323 = vunpack.c.l.b16 %v2125
  %v2324 = vunpack.c.l.b16 %v2126
  %v2325 = vunpack.c.l.b16 %v2127
  %v2326 = vunpack.c.l.b16 %v2128
  %v2327 = vunpack.c.l.b16 %v2129
  %v2328 = vunpack.c.l.b16 %v2130
  %v2329 = vunpack.c.l.b16 %v2131
  %v2330 = vunpack.c.l.b16 %v2132
  %v2331 = vunpack.c.l.b16 %v2133
  %v2332 = vunpack.c.l.b16 %v2134
  %v2333 = vunpack.c.l.b16 %v2135
  %v2334 = vunpack.c.l.b16 %v2136
  %v2335 = vunpack.c.l.b16 %v2137
  %v2336 = vunpack.c.l.b16 %v2138
  %v2337 = vunpack.c.l.b16 %v2139
  %v2338 = vunpack.c.l.b16 %v2140
  %v2339 = vunpack.c.l.b16 %v2141
  %v2340 = vunpack.c.l.b16 %v2142
  %v2341 = vunpack.c.l.b16 %v2143
  %v2342 = vunpack.c.l.b16 %v2144
  %v2343 = vunpack.c.l.b16 %v2145
  %v2344 = vunpack.c.l.b16 %v2146
  %v2345 = vunpack.c.l.b16 %v2147
  %v2346 = vunpack.c.l.b16 %v2148
  %v2347 = vunpack.c.l.b16 %v2149
  %v2348 = vunpack.c.l.b16 %v2150
  %v2349 = vunpack.c.l.b16 %v2151
  %v2350 = vunpack.c.l.b16 %v2152
  %vm2351 = vcmask 1041409
  %v2352 = vsel %vm2351, %v2273, %v2271
  %vm2353 = vcmask 1042434
  %v2354 = vsel %vm2353, %v2275, %v2352
  %vm2355 = vcmask 1043459
  %v2356 = vsel %vm2355, %v2277, %v2354
  %vm2357 = vcmask 1044484
  %v2358 = vsel %vm2357, %v2279, %v2356
  %vm2359 = vcmask 1045509
  %v2360 = vsel %vm2359, %v2281, %v2358
  %vm2361 = vcmask 1046534
  %v2362 = vsel %vm2361, %v2283, %v2360
  %vm2363 = vcmask 1047559
  %v2364 = vsel %vm2363, %v2285, %v2362
  %v2365 = vsel %vm2351, %v2274, %v2272
  %v2366 = vsel %vm2353, %v2276, %v2365
  %v2367 = vsel %vm2355, %v2278, %v2366
  %v2368 = vsel %vm2357, %v2280, %v2367
  %v2369 = vsel %vm2359, %v2282, %v2368
  %v2370 = vsel %vm2361, %v2284, %v2369
  %v2371 = vsel %vm2363, %v2286, %v2370
  %v2372 = vsel %vm2351, %v2289, %v2287
  %v2373 = vsel %vm2353, %v2291, %v2372
  %v2374 = vsel %vm2355, %v2293, %v2373
  %v2375 = vsel %vm2357, %v2295, %v2374
  %v2376 = vsel %vm2359, %v2297, %v2375
  %v2377 = vsel %vm2361, %v2299, %v2376
  %v2378 = vsel %vm2363, %v2301, %v2377
  %v2379 = vsel %vm2351, %v2290, %v2288
  %v2380 = vsel %vm2353, %v2292, %v2379
  %v2381 = vsel %vm2355, %v2294, %v2380
  %v2382 = vsel %vm2357, %v2296, %v2381
  %v2383 = vsel %vm2359, %v2298, %v2382
  %v2384 = vsel %vm2361, %v2300, %v2383
  %v2385 = vsel %vm2363, %v2302, %v2384
  %v2386 = vsel %vm2351, %v2305, %v2303
  %v2387 = vsel %vm2353, %v2307, %v2386
  %v2388 = vsel %vm2355, %v2309, %v2387
  %v2389 = vsel %vm2357, %v2311, %v2388
  %v2390 = vsel %vm2359, %v2313, %v2389
  %v2391 = vsel %vm2361, %v2315, %v2390
  %v2392 = vsel %vm2363, %v2317, %v2391
  %v2393 = vsel %vm2351, %v2306, %v2304
  %v2394 = vsel %vm2353, %v2308, %v2393
  %v2395 = vsel %vm2355, %v2310, %v2394
  %v2396 = vsel %vm2357, %v2312, %v2395
  %v2397 = vsel %vm2359, %v2314, %v2396
  %v2398 = vsel %vm2361, %v2316, %v2397
  %v2399 = vsel %vm2363, %v2318, %v2398
  %v2400 = vsel %vm2351, %v2321, %v2319
  %v2401 = vsel %vm2353, %v2323, %v2400
  %v2402 = vsel %vm2355, %v2325, %v2401
  %v2403 = vsel %vm2357, %v2327, %v2402
  %v2404 = vsel %vm2359, %v2329, %v2403
  %v2405 = vsel %vm2361, %v2331, %v2404
  %v2406 = vsel %vm2363, %v2333, %v2405
  %v2407 = vsel %vm2351, %v2322, %v2320
  %v2408 = vsel %vm2353, %v2324, %v2407
  %v2409 = vsel %vm2355, %v2326, %v2408
  %v2410 = vsel %vm2357, %v2328, %v2409
  %v2411 = vsel %vm2359, %v2330, %v2410
  %v2412 = vsel %vm2361, %v2332, %v2411
  %v2413 = vsel %vm2363, %v2334, %v2412
  %v2414 = vsel %vm2351, %v2337, %v2335
  %v2415 = vsel %vm2353, %v2339, %v2414
  %v2416 = vsel %vm2355, %v2341, %v2415
  %v2417 = vsel %vm2357, %v2343, %v2416
  %v2418 = vsel %vm2359, %v2345, %v2417
  %v2419 = vsel %vm2361, %v2347, %v2418
  %v2420 = vsel %vm2363, %v2349, %v2419
  %v2421 = vsel %vm2351, %v2338, %v2336
  %v2422 = vsel %vm2353, %v2340, %v2421
  %v2423 = vsel %vm2355, %v2342, %v2422
  %v2424 = vsel %vm2357, %v2344, %v2423
  %v2425 = vsel %vm2359, %v2346, %v2424
  %v2426 = vsel %vm2361, %v2348, %v2425
  %v2427 = vsel %vm2363, %v2350, %v2426
  %v2428 = vpack.c.b16 %v2378, %v2364
  %v2429 = vpack.c.b16 %v2385, %v2371
  %v2430 = vpack.c.b16 %v2406, %v2392
  %v2431 = vpack.c.b16 %v2413, %v2399
  %v2432 = vpack.c.b16 %v2420, %v2420
  %v2433 = vpack.c.b16 %v2427, %v2427
  %v2472 = vunpack.c.l.b16 %v2153
  %v2473 = vunpack.c.h.b16 %v2153
  %v2474 = vunpack.c.l.b16 %v2154
  %v2475 = vunpack.c.h.b16 %v2154
  %v2476 = vunpack.c.l.b16 %v2155
  %v2477 = vunpack.c.h.b16 %v2155
  %v2478 = vunpack.c.l.b16 %v2156
  %v2479 = vunpack.c.h.b16 %v2156
  %v2480 = vunpack.c.l.b16 %v2157
  %v2481 = vunpack.c.h.b16 %v2157
  %v2482 = vunpack.c.l.b16 %v2158
  %v2483 = vunpack.c.h.b16 %v2158
  %v2484 = vunpack.c.l.b16 %v2159
  %v2485 = vunpack.c.h.b16 %v2159
  %v2486 = vunpack.c.l.b16 %v2160
  %v2487 = vunpack.c.h.b16 %v2160
  %v2488 = vunpack.c.l.b16 %v2161
  %v2489 = vunpack.c.h.b16 %v2161
  %v2490 = vunpack.c.l.b16 %v2162
  %v2491 = vunpack.c.h.b16 %v2162
  %v2492 = vunpack.c.l.b16 %v2163
  %v2493 = vunpack.c.h.b16 %v2163
  %v2494 = vunpack.c.l.b16 %v2164
  %v2495 = vunpack.c.h.b16 %v2164
  %v2496 = vunpack.c.l.b16 %v2165
  %v2497 = vunpack.c.h.b16 %v2165
  %v2498 = vunpack.c.l.b16 %v2166
  %v2499 = vunpack.c.h.b16 %v2166
  %v2500 = vunpack.c.l.b16 %v2167
  %v2501 = vunpack.c.h.b16 %v2167
  %v2502 = vunpack.c.l.b16 %v2168
  %v2503 = vunpack.c.h.b16 %v2168
  %v2504 = vunpack.c.l.b16 %v2169
  %v2505 = vunpack.c.h.b16 %v2169
  %v2506 = vunpack.c.l.b16 %v2170
  %v2507 = vunpack.c.h.b16 %v2170
  %v2508 = vunpack.c.l.b16 %v2171
  %v2509 = vunpack.c.h.b16 %v2171
  %v2510 = vunpack.c.l.b16 %v2172
  %v2511 = vunpack.c.h.b16 %v2172
  %v2512 = vunpack.c.l.b16 %v2173
  %v2513 = vunpack.c.h.b16 %v2173
  %v2514 = vunpack.c.l.b16 %v2174
  %v2515 = vunpack.c.h.b16 %v2174
  %v2516 = vunpack.c.l.b16 %v2175
  %v2517 = vunpack.c.h.b16 %v2175
  %v2518 = vunpack.c.l.b16 %v2176
  %v2519 = vunpack.c.h.b16 %v2176
  %v2520 = vunpack.c.l.b16 %v2177
  %v2521 = vunpack.c.h.b16 %v2177
  %v2522 = vunpack.c.l.b16 %v2178
  %v2523 = vunpack.c.h.b16 %v2178
  %v2524 = vunpack.c.l.b16 %v2179
  %v2525 = vunpack.c.h.b16 %v2179
  %v2526 = vunpack.c.l.b16 %v2180
  %v2527 = vunpack.c.h.b16 %v2180
  %v2528 = vunpack.c.l.b16 %v2181
  %v2529 = vunpack.c.h.b16 %v2181
  %v2530 = vunpack.c.l.b16 %v2182
  %v2531 = vunpack.c.h.b16 %v2182
  %v2532 = vunpack.c.l.b16 %v2183
  %v2533 = vunpack.c.h.b16 %v2183
  %v2534 = vunpack.c.l.b16 %v2184
  %v2535 = vunpack.c.h.b16 %v2184
  %v2536 = vpack.c.b16 %v2474, %v2472
  %v2537 = vpack.c.b16 %v2475, %v2473
  %v2538 = vpack.c.b16 %v2478, %v2476
  %v2539 = vpack.c.b16 %v2479, %v2477
  %v2540 = vpack.c.b16 %v2482, %v2480
  %v2541 = vpack.c.b16 %v2483, %v2481
  %v2542 = vpack.c.b16 %v2486, %v2484
  %v2543 = vpack.c.b16 %v2487, %v2485
  %v2544 = vpack.c.b16 %v2490, %v2488
  %v2545 = vpack.c.b16 %v2491, %v2489
  %v2546 = vpack.c.b16 %v2494, %v2492
  %v2547 = vpack.c.b16 %v2495, %v2493
  %v2548 = vpack.c.b16 %v2498, %v2496
  %v2549 = vpack.c.b16 %v2499, %v2497
  %v2550 = vpack.c.b16 %v2502, %v2500
  %v2551 = vpack.c.b16 %v2503, %v2501
  %v2552 = vpack.c.b16 %v2506, %v2504
  %v2553 = vpack.c.b16 %v2507, %v2505
  %v2554 = vpack.c.b16 %v2510, %v2508
  %v2555 = vpack.c.b16 %v2511, %v2509
  %v2556 = vpack.c.b16 %v2514, %v2512
  %v2557 = vpack.c.b16 %v2515, %v2513
  %v2558 = vpack.c.b16 %v2518, %v2516
  %v2559 = vpack.c.b16 %v2519, %v2517
  %v2560 = vpack.c.b16 %v2522, %v2520
  %v2561 = vpack.c.b16 %v2523, %v2521
  %v2562 = vpack.c.b16 %v2526, %v2524
  %v2563 = vpack.c.b16 %v2527, %v2525
  %v2564 = vpack.c.b16 %v2530, %v2528
  %v2565 = vpack.c.b16 %v2531, %v2529
  %v2566 = vpack.c.b16 %v2534, %v2532
  %v2567 = vpack.c.b16 %v2535, %v2533
  %2600 = vmatpush.bf16.msra.mxu0 %v2550
  %2601 = vmatpush.bf16.msra.mxu0 %v2548
  %2602 = vmatpush.bf16.msra.mxu0 %v2546
  %2603 = vmatpush.bf16.msra.mxu0 %v2544
  %2604 = vmatpush.bf16.msra.mxu0 %v2542
  %2605 = vmatpush.bf16.msra.mxu0 %v2540
  %2606 = vmatpush.bf16.msra.mxu0 %v2538
  %2607 = vmatpush.bf16.msra.mxu0 %v2536
  %2608 = vmatmul.bf16.gmra.mxu0 %v2428
  %v2609 = vpop.f32.mrf.mxu0
  %v2610 = vadd.f32 %v2187, %v2609
  %v2611 = vpop.f32.mrf.mxu0
  %v2612 = vadd.f32 %v2187, %v2611
  %2613 = vmatmul.bf16.gmra.mxu0 %v2430
  %v2614 = vpop.f32.mrf.mxu0
  %v2615 = vadd.f32 %v2187, %v2614
  %v2616 = vpop.f32.mrf.mxu0
  %v2617 = vadd.f32 %v2187, %v2616
  %2618 = vmatmul.bf16.gmra.mxu0 %v2432
  %v2619 = vpop.f32.mrf.mxu0
  %v2620 = vadd.f32 %v2187, %v2619
  %v2621 = vpop.f32.mrf.mxu0
  %2622 = vdwg.mxu0
  %2623 = vmatpush.bf16.msra.mxu0 %v2566
  %2624 = vmatpush.bf16.msra.mxu0 %v2564
  %2625 = vmatpush.bf16.msra.mxu0 %v2562
  %2626 = vmatpush.bf16.msra.mxu0 %v2560
  %2627 = vmatpush.bf16.msra.mxu0 %v2558
  %2628 = vmatpush.bf16.msra.mxu0 %v2556
  %2629 = vmatpush.bf16.msra.mxu0 %v2554
  %2630 = vmatpush.bf16.msra.mxu0 %v2552
  %2631 = vmatmul.bf16.gmra.mxu0 %v2429
  %v2632 = vpop.f32.mrf.mxu0
  %v2633 = vadd.f32 %v2610, %v2632
  %v2634 = vpop.f32.mrf.mxu0
  %v2635 = vadd.f32 %v2612, %v2634
  %2636 = vmatmul.bf16.gmra.mxu0 %v2431
  %v2637 = vpop.f32.mrf.mxu0
  %v2638 = vadd.f32 %v2615, %v2637
  %v2639 = vpop.f32.mrf.mxu0
  %v2640 = vadd.f32 %v2617, %v2639
  %2641 = vmatmul.bf16.gmra.mxu0 %v2433
  %v2642 = vpop.f32.mrf.mxu0
  %v2643 = vadd.f32 %v2620, %v2642
  %v2644 = vpop.f32.mrf.mxu0
  %2645 = vdwg.mxu0
  %2646 = vmatpush.bf16.msra.mxu0 %v2551
  %2647 = vmatpush.bf16.msra.mxu0 %v2549
  %2648 = vmatpush.bf16.msra.mxu0 %v2547
  %2649 = vmatpush.bf16.msra.mxu0 %v2545
  %2650 = vmatpush.bf16.msra.mxu0 %v2543
  %2651 = vmatpush.bf16.msra.mxu0 %v2541
  %2652 = vmatpush.bf16.msra.mxu0 %v2539
  %2653 = vmatpush.bf16.msra.mxu0 %v2537
  %2654 = vmatmul.bf16.gmra.mxu0 %v2428
  %v2655 = vpop.f32.mrf.mxu0
  %v2656 = vadd.f32 %v2188, %v2655
  %v2657 = vpop.f32.mrf.mxu0
  %v2658 = vadd.f32 %v2188, %v2657
  %2659 = vmatmul.bf16.gmra.mxu0 %v2430
  %v2660 = vpop.f32.mrf.mxu0
  %v2661 = vadd.f32 %v2188, %v2660
  %v2662 = vpop.f32.mrf.mxu0
  %v2663 = vadd.f32 %v2188, %v2662
  %2664 = vmatmul.bf16.gmra.mxu0 %v2432
  %v2665 = vpop.f32.mrf.mxu0
  %v2666 = vadd.f32 %v2188, %v2665
  %v2667 = vpop.f32.mrf.mxu0
  %2668 = vdwg.mxu0
  %2669 = vmatpush.bf16.msra.mxu0 %v2567
  %2670 = vmatpush.bf16.msra.mxu0 %v2565
  %2671 = vmatpush.bf16.msra.mxu0 %v2563
  %2672 = vmatpush.bf16.msra.mxu0 %v2561
  %2673 = vmatpush.bf16.msra.mxu0 %v2559
  %2674 = vmatpush.bf16.msra.mxu0 %v2557
  %2675 = vmatpush.bf16.msra.mxu0 %v2555
  %2676 = vmatpush.bf16.msra.mxu0 %v2553
  %2677 = vmatmul.bf16.gmra.mxu0 %v2429
  %v2678 = vpop.f32.mrf.mxu0
  %v2679 = vadd.f32 %v2656, %v2678
  %v2680 = vpop.f32.mrf.mxu0
  %v2681 = vadd.f32 %v2658, %v2680
  %2682 = vmatmul.bf16.gmra.mxu0 %v2431
  %v2683 = vpop.f32.mrf.mxu0
  %v2684 = vadd.f32 %v2661, %v2683
  %v2685 = vpop.f32.mrf.mxu0
  %v2686 = vadd.f32 %v2663, %v2685
  %2687 = vmatmul.bf16.gmra.mxu0 %v2433
  %v2688 = vpop.f32.mrf.mxu0
  %v2689 = vadd.f32 %v2666, %v2688
  %v2690 = vpop.f32.mrf.mxu0
  %2691 = vdwg.mxu0
  %v2692 = vtanh.pop %v2633
  %v2693 = vtanh.pop %v2679
  %v2694 = vtanh.pop %v2635
  %v2695 = vtanh.pop %v2681
  %v2696 = vtanh.pop %v2638
  %v2697 = vtanh.pop %v2684
  %v2698 = vtanh.pop %v2640
  %v2699 = vtanh.pop %v2686
  %v2700 = vtanh.pop %v2643
  %v2701 = vtanh.pop %v2689
  %2702 = vst [vmem:[%s8] sm:$0xff] %v2692
  %2703 = vst [vmem:[%s8 + $0x8] sm:$0xff] %v2693
  %2704 = vst [vmem:[%s8 + $0x10] sm:$0xff] %v2694
  %2705 = vst [vmem:[%s8 + $0x18] sm:$0xff] %v2695
  %2706 = vst [vmem:[%s8 + $0x20] sm:$0xff] %v2696
  %2707 = vst [vmem:[%s8 + $0x28] sm:$0xff] %v2697
  %2708 = vst [vmem:[%s8 + $0x30] sm:$0xff] %v2698
  %2709 = vst [vmem:[%s8 + $0x38] sm:$0xff] %v2699
  %2710 = vst [vmem:[%s8 + $0x40] sm:$0xff] %v2700
  %2711 = vst [vmem:[%s8 + $0x48] sm:$0xff] %v2701
  %vm2712 = vcmp.gt.f32.partialorder %v919, 0.0
  %vm2713 = vcmp.gt.f32.partialorder %v926, 0.0
  %vm2714 = vcmp.gt.f32.partialorder %v933, 0.0
  %vm2715 = vcmp.gt.f32.partialorder %v940, 0.0
  %vm2716 = vcmp.gt.f32.partialorder %v947, 0.0
  %vm2717 = vcmp.gt.f32.partialorder %v954, 0.0
  %vm2718 = vcmp.gt.f32.partialorder %v961, 0.0
  %vm2719 = vcmp.gt.f32.partialorder %v968, 0.0
  %vm2720 = vcmp.gt.f32.partialorder %v975, 0.0
  %vm2721 = vcmp.gt.f32.partialorder %v982, 0.0
  %vm2722 = vcmp.gt.f32.partialorder %v989, 0.0
  %vm2723 = vcmp.gt.f32.partialorder %v996, 0.0
  %vm2724 = vcmp.gt.f32.partialorder %v1003, 0.0
  %vm2725 = vcmp.gt.f32.partialorder %v1010, 0.0
  %vm2726 = vcmp.gt.f32.partialorder %v1017, 0.0
  %vm2727 = vcmp.gt.f32.partialorder %v1024, 0.0
  %vm2728 = vcmp.gt.f32.partialorder %v1031, 0.0
  %vm2729 = vcmp.gt.f32.partialorder %v1038, 0.0
  %vm2730 = vcmp.gt.f32.partialorder %v1045, 0.0
  %vm2731 = vcmp.gt.f32.partialorder %v1052, 0.0
  %vm2732 = vcmp.gt.f32.partialorder %v1059, 0.0
  %vm2733 = vcmp.gt.f32.partialorder %v1066, 0.0
  %vm2734 = vcmp.gt.f32.partialorder %v1073, 0.0
  %vm2735 = vcmp.gt.f32.partialorder %v1080, 0.0
  %vm2736 = vcmp.gt.f32.partialorder %v1087, 0.0
  %vm2737 = vcmp.gt.f32.partialorder %v1094, 0.0
  %vm2738 = vcmp.gt.f32.partialorder %v1101, 0.0
  %vm2739 = vcmp.gt.f32.partialorder %v1108, 0.0
  %vm2740 = vcmp.gt.f32.partialorder %v1115, 0.0
  %vm2741 = vcmp.gt.f32.partialorder %v1122, 0.0
  %vm2742 = vcmp.gt.f32.partialorder %v1129, 0.0
  %vm2743 = vcmp.gt.f32.partialorder %v1136, 0.0
  %vm2744 = vcmp.gt.f32.partialorder %v1143, 0.0
  %vm2745 = vcmp.gt.f32.partialorder %v1150, 0.0
  %vm2746 = vcmp.gt.f32.partialorder %v1157, 0.0
  %vm2747 = vcmp.gt.f32.partialorder %v1164, 0.0
  %vm2748 = vcmp.gt.f32.partialorder %v1171, 0.0
  %vm2749 = vcmp.gt.f32.partialorder %v1178, 0.0
  %vm2750 = vcmp.gt.f32.partialorder %v1185, 0.0
  %vm2751 = vcmp.gt.f32.partialorder %v1192, 0.0
  %v2752 = vsel %vm2712, 1, 0
  %v2753 = vsel %vm2713, 1, 0
  %v2754 = vsel %vm2714, 1, 0
  %v2755 = vsel %vm2715, 1, 0
  %v2756 = vsel %vm2716, 1, 0
  %v2757 = vsel %vm2717, 1, 0
  %v2758 = vsel %vm2718, 1, 0
  %v2759 = vsel %vm2719, 1, 0
  %v2760 = vsel %vm2720, 1, 0
  %v2761 = vsel %vm2721, 1, 0
  %v2762 = vsel %vm2722, 1, 0
  %v2763 = vsel %vm2723, 1, 0
  %v2764 = vsel %vm2724, 1, 0
  %v2765 = vsel %vm2725, 1, 0
  %v2766 = vsel %vm2726, 1, 0
  %v2767 = vsel %vm2727, 1, 0
  %v2768 = vsel %vm2728, 1, 0
  %v2769 = vsel %vm2729, 1, 0
  %v2770 = vsel %vm2730, 1, 0
  %v2771 = vsel %vm2731, 1, 0
  %v2772 = vsel %vm2732, 1, 0
  %v2773 = vsel %vm2733, 1, 0
  %v2774 = vsel %vm2734, 1, 0
  %v2775 = vsel %vm2735, 1, 0
  %v2776 = vsel %vm2736, 1, 0
  %v2777 = vsel %vm2737, 1, 0
  %v2778 = vsel %vm2738, 1, 0
  %v2779 = vsel %vm2739, 1, 0
  %v2780 = vsel %vm2740, 1, 0
  %v2781 = vsel %vm2741, 1, 0
  %v2782 = vsel %vm2742, 1, 0
  %v2783 = vsel %vm2743, 1, 0
  %v2784 = vsel %vm2744, 1, 0
  %v2785 = vsel %vm2745, 1, 0
  %v2786 = vsel %vm2746, 1, 0
  %v2787 = vsel %vm2747, 1, 0
  %v2788 = vsel %vm2748, 1, 0
  %v2789 = vsel %vm2749, 1, 0
  %v2790 = vsel %vm2750, 1, 0
  %v2791 = vsel %vm2751, 1, 0
  %v2792 = vcvt.s32.f32 %v2752
  %v2793 = vcvt.s32.f32 %v2753
  %v2794 = vcvt.s32.f32 %v2754
  %v2795 = vcvt.s32.f32 %v2755
  %v2796 = vcvt.s32.f32 %v2756
  %v2797 = vcvt.s32.f32 %v2757
  %v2798 = vcvt.s32.f32 %v2758
  %v2799 = vcvt.s32.f32 %v2759
  %v2800 = vcvt.s32.f32 %v2760
  %v2801 = vcvt.s32.f32 %v2761
  %v2802 = vcvt.s32.f32 %v2762
  %v2803 = vcvt.s32.f32 %v2763
  %v2804 = vcvt.s32.f32 %v2764
  %v2805 = vcvt.s32.f32 %v2765
  %v2806 = vcvt.s32.f32 %v2766
  %v2807 = vcvt.s32.f32 %v2767
  %v2808 = vcvt.s32.f32 %v2768
  %v2809 = vcvt.s32.f32 %v2769
  %v2810 = vcvt.s32.f32 %v2770
  %v2811 = vcvt.s32.f32 %v2771
  %v2812 = vcvt.s32.f32 %v2772
  %v2813 = vcvt.s32.f32 %v2773
  %v2814 = vcvt.s32.f32 %v2774
  %v2815 = vcvt.s32.f32 %v2775
  %v2816 = vcvt.s32.f32 %v2776
  %v2817 = vcvt.s32.f32 %v2777
  %v2818 = vcvt.s32.f32 %v2778
  %v2819 = vcvt.s32.f32 %v2779
  %v2820 = vcvt.s32.f32 %v2780
  %v2821 = vcvt.s32.f32 %v2781
  %v2822 = vcvt.s32.f32 %v2782
  %v2823 = vcvt.s32.f32 %v2783
  %v2824 = vcvt.s32.f32 %v2784
  %v2825 = vcvt.s32.f32 %v2785
  %v2826 = vcvt.s32.f32 %v2786
  %v2827 = vcvt.s32.f32 %v2787
  %v2828 = vcvt.s32.f32 %v2788
  %v2829 = vcvt.s32.f32 %v2789
  %v2830 = vcvt.s32.f32 %v2790
  %v2831 = vcvt.s32.f32 %v2791
  %v2832 = vld [vmem:[%s2] sm:$0xff]
  %v2833 = vld [vmem:[%s2 + $0x8] sm:$0x3]
  %2835 = vset.pattern.permute.xlu0 0
  %2836 = vperm.xlu0 %2835, %v2792
  %v2837 = vpop.permute.xlu0 %2836
  %2839 = vset.pattern.permute.xlu0 0
  %2840 = vperm.xlu0 %2839, %v2793
  %v2841 = vpop.permute.xlu0 %2840
  %2843 = vset.pattern.permute.xlu0 0
  %2844 = vperm.xlu0 %2843, %v2794
  %v2845 = vpop.permute.xlu0 %2844
  %2847 = vset.pattern.permute.xlu0 0
  %2848 = vperm.xlu0 %2847, %v2795
  %v2849 = vpop.permute.xlu0 %2848
  %2851 = vset.pattern.permute.xlu0 0
  %2852 = vperm.xlu0 %2851, %v2796
  %v2853 = vpop.permute.xlu0 %2852
  %2855 = vset.pattern.permute.xlu0 0
  %2856 = vperm.xlu0 %2855, %v2797
  %v2857 = vpop.permute.xlu0 %2856
  %2859 = vset.pattern.permute.xlu0 0
  %2860 = vperm.xlu0 %2859, %v2798
  %v2861 = vpop.permute.xlu0 %2860
  %2863 = vset.pattern.permute.xlu0 0
  %2864 = vperm.xlu0 %2863, %v2799
  %v2865 = vpop.permute.xlu0 %2864
  %2867 = vset.pattern.permute.xlu0 0
  %2868 = vperm.xlu0 %2867, %v2800
  %v2869 = vpop.permute.xlu0 %2868
  %2871 = vset.pattern.permute.xlu0 0
  %2872 = vperm.xlu0 %2871, %v2801
  %v2873 = vpop.permute.xlu0 %2872
  %2875 = vset.pattern.permute.xlu0 0
  %2876 = vperm.xlu0 %2875, %v2802
  %v2877 = vpop.permute.xlu0 %2876
  %2879 = vset.pattern.permute.xlu0 0
  %2880 = vperm.xlu0 %2879, %v2803
  %v2881 = vpop.permute.xlu0 %2880
  %2883 = vset.pattern.permute.xlu0 0
  %2884 = vperm.xlu0 %2883, %v2804
  %v2885 = vpop.permute.xlu0 %2884
  %2887 = vset.pattern.permute.xlu0 0
  %2888 = vperm.xlu0 %2887, %v2805
  %v2889 = vpop.permute.xlu0 %2888
  %2891 = vset.pattern.permute.xlu0 0
  %2892 = vperm.xlu0 %2891, %v2806
  %v2893 = vpop.permute.xlu0 %2892
  %2895 = vset.pattern.permute.xlu0 0
  %2896 = vperm.xlu0 %2895, %v2807
  %v2897 = vpop.permute.xlu0 %2896
  %2899 = vset.pattern.permute.xlu0 0
  %2900 = vperm.xlu0 %2899, %v2808
  %v2901 = vpop.permute.xlu0 %2900
  %2903 = vset.pattern.permute.xlu0 0
  %2904 = vperm.xlu0 %2903, %v2809
  %v2905 = vpop.permute.xlu0 %2904
  %2907 = vset.pattern.permute.xlu0 0
  %2908 = vperm.xlu0 %2907, %v2810
  %v2909 = vpop.permute.xlu0 %2908
  %2911 = vset.pattern.permute.xlu0 0
  %2912 = vperm.xlu0 %2911, %v2811
  %v2913 = vpop.permute.xlu0 %2912
  %2915 = vset.pattern.permute.xlu0 0
  %2916 = vperm.xlu0 %2915, %v2812
  %v2917 = vpop.permute.xlu0 %2916
  %2919 = vset.pattern.permute.xlu0 0
  %2920 = vperm.xlu0 %2919, %v2813
  %v2921 = vpop.permute.xlu0 %2920
  %2923 = vset.pattern.permute.xlu0 0
  %2924 = vperm.xlu0 %2923, %v2814
  %v2925 = vpop.permute.xlu0 %2924
  %2927 = vset.pattern.permute.xlu0 0
  %2928 = vperm.xlu0 %2927, %v2815
  %v2929 = vpop.permute.xlu0 %2928
  %2931 = vset.pattern.permute.xlu0 0
  %2932 = vperm.xlu0 %2931, %v2816
  %v2933 = vpop.permute.xlu0 %2932
  %2935 = vset.pattern.permute.xlu0 0
  %2936 = vperm.xlu0 %2935, %v2817
  %v2937 = vpop.permute.xlu0 %2936
  %2939 = vset.pattern.permute.xlu0 0
  %2940 = vperm.xlu0 %2939, %v2818
  %v2941 = vpop.permute.xlu0 %2940
  %2943 = vset.pattern.permute.xlu0 0
  %2944 = vperm.xlu0 %2943, %v2819
  %v2945 = vpop.permute.xlu0 %2944
  %2947 = vset.pattern.permute.xlu0 0
  %2948 = vperm.xlu0 %2947, %v2820
  %v2949 = vpop.permute.xlu0 %2948
  %2951 = vset.pattern.permute.xlu0 0
  %2952 = vperm.xlu0 %2951, %v2821
  %v2953 = vpop.permute.xlu0 %2952
  %2955 = vset.pattern.permute.xlu0 0
  %2956 = vperm.xlu0 %2955, %v2822
  %v2957 = vpop.permute.xlu0 %2956
  %2959 = vset.pattern.permute.xlu0 0
  %2960 = vperm.xlu0 %2959, %v2823
  %v2961 = vpop.permute.xlu0 %2960
  %2963 = vset.pattern.permute.xlu0 0
  %2964 = vperm.xlu0 %2963, %v2824
  %v2965 = vpop.permute.xlu0 %2964
  %2967 = vset.pattern.permute.xlu0 0
  %2968 = vperm.xlu0 %2967, %v2825
  %v2969 = vpop.permute.xlu0 %2968
  %2971 = vset.pattern.permute.xlu0 0
  %2972 = vperm.xlu0 %2971, %v2826
  %v2973 = vpop.permute.xlu0 %2972
  %2975 = vset.pattern.permute.xlu0 0
  %2976 = vperm.xlu0 %2975, %v2827
  %v2977 = vpop.permute.xlu0 %2976
  %2979 = vset.pattern.permute.xlu0 0
  %2980 = vperm.xlu0 %2979, %v2828
  %v2981 = vpop.permute.xlu0 %2980
  %2983 = vset.pattern.permute.xlu0 0
  %2984 = vperm.xlu0 %2983, %v2829
  %v2985 = vpop.permute.xlu0 %2984
  %2987 = vset.pattern.permute.xlu0 0
  %2988 = vperm.xlu0 %2987, %v2830
  %v2989 = vpop.permute.xlu0 %2988
  %2991 = vset.pattern.permute.xlu0 0
  %2992 = vperm.xlu0 %2991, %v2831
  %v2993 = vpop.permute.xlu0 %2992
  %v2994 = vsel %vm2351, %v2841, %v2837
  %v2995 = vsel %vm2353, %v2845, %v2994
  %v2996 = vsel %vm2355, %v2849, %v2995
  %v2997 = vsel %vm2357, %v2853, %v2996
  %v2998 = vsel %vm2359, %v2857, %v2997
  %v2999 = vsel %vm2361, %v2861, %v2998
  %v3000 = vsel %vm2363, %v2865, %v2999
  %v3001 = vsel %vm2351, %v2873, %v2869
  %v3002 = vsel %vm2353, %v2877, %v3001
  %v3003 = vsel %vm2355, %v2881, %v3002
  %v3004 = vsel %vm2357, %v2885, %v3003
  %v3005 = vsel %vm2359, %v2889, %v3004
  %v3006 = vsel %vm2361, %v2893, %v3005
  %v3007 = vsel %vm2363, %v2897, %v3006
  %v3008 = vsel %vm2351, %v2905, %v2901
  %v3009 = vsel %vm2353, %v2909, %v3008
  %v3010 = vsel %vm2355, %v2913, %v3009
  %v3011 = vsel %vm2357, %v2917, %v3010
  %v3012 = vsel %vm2359, %v2921, %v3011
  %v3013 = vsel %vm2361, %v2925, %v3012
  %v3014 = vsel %vm2363, %v2929, %v3013
  %v3015 = vsel %vm2351, %v2937, %v2933
  %v3016 = vsel %vm2353, %v2941, %v3015
  %v3017 = vsel %vm2355, %v2945, %v3016
  %v3018 = vsel %vm2357, %v2949, %v3017
  %v3019 = vsel %vm2359, %v2953, %v3018
  %v3020 = vsel %vm2361, %v2957, %v3019
  %v3021 = vsel %vm2363, %v2961, %v3020
  %v3022 = vsel %vm2351, %v2969, %v2965
  %v3023 = vsel %vm2353, %v2973, %v3022
  %v3024 = vsel %vm2355, %v2977, %v3023
  %v3025 = vsel %vm2357, %v2981, %v3024
  %v3026 = vsel %vm2359, %v2985, %v3025
  %v3027 = vsel %vm2361, %v2989, %v3026
  %v3028 = vsel %vm2363, %v2993, %v3027
  %v3034 = vmul.f32 %v2692, %v3000
  %v3035 = vmul.f32 %v2693, %v3000
  %v3036 = vmul.f32 %v2694, %v3007
  %v3037 = vmul.f32 %v2695, %v3007
  %v3038 = vmul.f32 %v2696, %v3014
  %v3039 = vmul.f32 %v2697, %v3014
  %v3040 = vmul.f32 %v2698, %v3021
  %v3041 = vmul.f32 %v2699, %v3021
  %v3042 = vmul.f32 %v2700, %v3028
  %v3043 = vmul.f32 %v2701, %v3028
  %vm3044 = vcmask 326656
  %v3046 = vsel %vm3044, %v2832, 0
  %v3049 = vsel %vm3044, %v2833, 0
  %3051 = vmatpush.msra.mxu0 0.0
  %3052 = vmatpush.msra.mxu0 0.0
  %3053 = vmatpush.msra.mxu0 0.0
  %3054 = vmatpush.msra.mxu0 0.0
  %3055 = vmatpush.msra.mxu0 0.0
  %3056 = vmatpush.msra.mxu0 0.0
  %3057 = vmatpush.msra.mxu0 0.0
  %3058 = vmatpush.msra.mxu0 0.0
  %3059 = vmatpush.msra.mxu0 0.0
  %3060 = vmatpush.msra.mxu0 0.0
  %3061 = vmatpush.msra.mxu0 0.0
  %3062 = vmatpush.msra.mxu0 %v3042
  %3063 = vmatpush.msra.mxu0 %v3040
  %3064 = vmatpush.msra.mxu0 %v3038
  %3065 = vmatpush.msra.mxu0 %v3036
  %3066 = vmatpush.msra.mxu0 %v3034
  %3067 = vmatmul.f32.gmra.mxu0 %v3046
  %v3068 = vpop.f32.mrf.mxu0
  %v3069 = vadd.f32 0.0, %v3068
  %3070 = vmatmul.f32.gmra.mxu0 %v3049
  %v3071 = vpop.f32.mrf.mxu0
  %v3072 = vadd.f32 0.0, %v3071
  %3073 = vdwg.mxu0
  %3074 = vmatpush.msra.mxu0 0.0
  %3075 = vmatpush.msra.mxu0 0.0
  %3076 = vmatpush.msra.mxu0 0.0
  %3077 = vmatpush.msra.mxu0 0.0
  %3078 = vmatpush.msra.mxu0 0.0
  %3079 = vmatpush.msra.mxu0 0.0
  %3080 = vmatpush.msra.mxu0 0.0
  %3081 = vmatpush.msra.mxu0 0.0
  %3082 = vmatpush.msra.mxu0 0.0
  %3083 = vmatpush.msra.mxu0 0.0
  %3084 = vmatpush.msra.mxu0 0.0
  %3085 = vmatpush.msra.mxu0 %v3043
  %3086 = vmatpush.msra.mxu0 %v3041
  %3087 = vmatpush.msra.mxu0 %v3039
  %3088 = vmatpush.msra.mxu0 %v3037
  %3089 = vmatpush.msra.mxu0 %v3035
  %3090 = vmatmul.f32.gmra.mxu0 %v3046
  %v3091 = vpop.f32.mrf.mxu0
  %v3092 = vadd.f32 0.0, %v3091
  %3093 = vmatmul.f32.gmra.mxu0 %v3049
  %v3094 = vpop.f32.mrf.mxu0
  %v3095 = vadd.f32 0.0, %v3094
  %3096 = vdwg.mxu0
  %v3097 = vld [vmem:[%s3] sm:$0xff]
  %v3098 = vld [vmem:[%s3 + $0x8] sm:$0x3]
  %3100 = vset.pattern.permute.xlu0 0
  %3101 = vperm.xlu0 %3100, %v3097
  %v3102 = vpop.permute.xlu0 %3101
  %3105 = vset.pattern.permute.xlu0 0
  %3106 = vperm.xlu0 %3105, %v3098
  %v3107 = vpop.permute.xlu0 %3106
  %v3109 = vmul.f32 %v3069, %v3102
  %v3110 = vmul.f32 %v3092, %v3102
  %v3111 = vmul.f32 %v3072, %v3107
  %v3112 = vmul.f32 %v3095, %v3107
  %3113 = vst [vmem:[%s9] sm:$0xff] %v3109
  %3114 = vst [vmem:[%s9 + $0x8] sm:$0xff] %v3110
  %3115 = vst [vmem:[%s9 + $0x10] sm:$0x3] %v3111
  %3116 = vst [vmem:[%s9 + $0x18] sm:$0x3] %v3112
  %v3117 = vpack.c.bf16 %v3111, %v3109
  %v3118 = vpack.c.bf16 %v3112, %v3110
  %v3119 = vld [vmem:[%s6] sm:$0xf]
  %v3120 = vld [vmem:[%s6 + $0x4] sm:$0xf]
  %v3121 = vld [vmem:[%s6 + $0x8] sm:$0xf]
  %v3122 = vld [vmem:[%s6 + $0xc] sm:$0xf]
  %v3123 = vld [vmem:[%s6 + $0x10] sm:$0xf]
  %v3124 = vld [vmem:[%s6 + $0x14] sm:$0xf]
  %v3125 = vld [vmem:[%s6 + $0x18] sm:$0xf]
  %v3126 = vld [vmem:[%s6 + $0x1c] sm:$0xf]
  %v3127 = vld [vmem:[%s6 + $0x20] sm:$0xf]
  %v3128 = vld [vmem:[%s6 + $0x24] sm:$0xf]
  %v3129 = vld [vmem:[%s6 + $0x28] sm:$0xf]
  %v3130 = vld [vmem:[%s6 + $0x2c] sm:$0xf]
  %v3131 = vld [vmem:[%s6 + $0x30] sm:$0xf]
  %v3132 = vld [vmem:[%s6 + $0x34] sm:$0xf]
  %v3133 = vld [vmem:[%s6 + $0x38] sm:$0xf]
  %v3134 = vld [vmem:[%s6 + $0x3c] sm:$0xf]
  %v3135 = vld [vmem:[%s6 + $0x40] sm:$0xf]
  %v3136 = vld [vmem:[%s6 + $0x44] sm:$0xf]
  %v3137 = vld [vmem:[%s6 + $0x48] sm:$0xf]
  %v3138 = vld [vmem:[%s6 + $0x4c] sm:$0xf]
  %v3139 = vld [vmem:[%s6 + $0x50] sm:$0xf]
  %v3140 = vld [vmem:[%s6 + $0x54] sm:$0xf]
  %v3141 = vld [vmem:[%s6 + $0x58] sm:$0xf]
  %v3142 = vld [vmem:[%s6 + $0x5c] sm:$0xf]
  %v3143 = vld [vmem:[%s6 + $0x60] sm:$0xf]
  %v3144 = vld [vmem:[%s6 + $0x64] sm:$0xf]
  %v3145 = vld [vmem:[%s6 + $0x68] sm:$0xf]
  %v3146 = vld [vmem:[%s6 + $0x6c] sm:$0xf]
  %v3147 = vld [vmem:[%s6 + $0x70] sm:$0xf]
  %v3148 = vld [vmem:[%s6 + $0x74] sm:$0xf]
  %v3149 = vld [vmem:[%s6 + $0x78] sm:$0xf]
  %v3150 = vld [vmem:[%s6 + $0x7c] sm:$0xf]
  %v3151 = vld [vmem:[%s7] sm:$0x1]
  %v3153 = vperm.slane %v3151, 0
  %v3187 = vunpack.c.l.b16 %v3119
  %v3188 = vunpack.c.l.b16 %v3120
  %v3189 = vunpack.c.l.b16 %v3121
  %v3190 = vunpack.c.l.b16 %v3122
  %v3191 = vunpack.c.l.b16 %v3123
  %v3192 = vunpack.c.l.b16 %v3124
  %v3193 = vunpack.c.l.b16 %v3125
  %v3194 = vunpack.c.l.b16 %v3126
  %v3195 = vunpack.c.l.b16 %v3127
  %v3196 = vunpack.c.l.b16 %v3128
  %v3197 = vunpack.c.l.b16 %v3129
  %v3198 = vunpack.c.l.b16 %v3130
  %v3199 = vunpack.c.l.b16 %v3131
  %v3200 = vunpack.c.l.b16 %v3132
  %v3201 = vunpack.c.l.b16 %v3133
  %v3202 = vunpack.c.l.b16 %v3134
  %v3203 = vunpack.c.l.b16 %v3135
  %v3204 = vunpack.c.l.b16 %v3136
  %v3205 = vunpack.c.l.b16 %v3137
  %v3206 = vunpack.c.l.b16 %v3138
  %v3207 = vunpack.c.l.b16 %v3139
  %v3208 = vunpack.c.l.b16 %v3140
  %v3209 = vunpack.c.l.b16 %v3141
  %v3210 = vunpack.c.l.b16 %v3142
  %v3211 = vunpack.c.l.b16 %v3143
  %v3212 = vunpack.c.l.b16 %v3144
  %v3213 = vunpack.c.l.b16 %v3145
  %v3214 = vunpack.c.l.b16 %v3146
  %v3215 = vunpack.c.l.b16 %v3147
  %v3216 = vunpack.c.l.b16 %v3148
  %v3217 = vunpack.c.l.b16 %v3149
  %v3218 = vunpack.c.l.b16 %v3150
  %v3219 = vpack.c.b16 %v3188, %v3187
  %v3220 = vpack.c.b16 %v3190, %v3189
  %v3221 = vpack.c.b16 %v3192, %v3191
  %v3222 = vpack.c.b16 %v3194, %v3193
  %v3223 = vpack.c.b16 %v3196, %v3195
  %v3224 = vpack.c.b16 %v3198, %v3197
  %v3225 = vpack.c.b16 %v3200, %v3199
  %v3226 = vpack.c.b16 %v3202, %v3201
  %v3227 = vpack.c.b16 %v3204, %v3203
  %v3228 = vpack.c.b16 %v3206, %v3205
  %v3229 = vpack.c.b16 %v3208, %v3207
  %v3230 = vpack.c.b16 %v3210, %v3209
  %v3231 = vpack.c.b16 %v3212, %v3211
  %v3232 = vpack.c.b16 %v3214, %v3213
  %v3233 = vpack.c.b16 %v3216, %v3215
  %v3234 = vpack.c.b16 %v3218, %v3217
  %3251 = vmatpush.bf16.msra.mxu0 %v3226
  %3252 = vmatpush.bf16.msra.mxu0 %v3225
  %3253 = vmatpush.bf16.msra.mxu0 %v3224
  %3254 = vmatpush.bf16.msra.mxu0 %v3223
  %3255 = vmatpush.bf16.msra.mxu0 %v3222
  %3256 = vmatpush.bf16.msra.mxu0 %v3221
  %3257 = vmatpush.bf16.msra.mxu0 %v3220
  %3258 = vmatpush.bf16.msra.mxu0 %v3219
  %3259 = vmatmul.bf16.gmra.mxu0 %v3117
  %v3260 = vpop.f32.mrf.mxu0
  %v3261 = vadd.f32 %v3153, %v3260
  %v3262 = vpop.f32.mrf.mxu0
  %v3263 = vadd.f32 %v3153, %v3262
  %3264 = vdwg.mxu0
  %3265 = vmatpush.bf16.msra.mxu0 %v3234
  %3266 = vmatpush.bf16.msra.mxu0 %v3233
  %3267 = vmatpush.bf16.msra.mxu0 %v3232
  %3268 = vmatpush.bf16.msra.mxu0 %v3231
  %3269 = vmatpush.bf16.msra.mxu0 %v3230
  %3270 = vmatpush.bf16.msra.mxu0 %v3229
  %3271 = vmatpush.bf16.msra.mxu0 %v3228
  %3272 = vmatpush.bf16.msra.mxu0 %v3227
  %3273 = vmatmul.bf16.gmra.mxu0 %v3118
  %v3274 = vpop.f32.mrf.mxu0
  %v3275 = vadd.f32 %v3261, %v3274
  %v3276 = vpop.f32.mrf.mxu0
  %v3277 = vadd.f32 %v3263, %v3276
  %3278 = vdwg.mxu0
  %3279 = vst [vmem:[%s10] sm:$0xff] %v3275
  %3280 = vst [vmem:[%s10 + $0x8] sm:$0x3] %v3277
  // Predicated region
  $region34: #{ladan_forward.2} parent=0 // pred_check
    _
  $region35: #{ladan_forward.2} parent=0 // pred_check_branch
    %3282 = sbr.rel (0) target = $region37
  $region36: #{ladan_forward.2} parent=0 // pred_region
    _
  $region37: #{ladan_forward.2} parent=0 // pred_fallthru
    _
  // Predicated region
  $region38: #{ladan_forward.2} parent=0 // pred_check
    _
  $region39: #{ladan_forward.2} parent=0 // pred_check_branch
    %3284 = sbr.rel (0) target = $region41
  $region40: #{ladan_forward.2} parent=0 // pred_region
    _
  $region41: #{ladan_forward.2} parent=0 // pred_fallthru
    _
  // Predicated region
  $region42: #{ladan_forward.2} parent=0 // pred_check
    _
  $region43: #{ladan_forward.2} parent=0 // pred_check_branch
    %3286 = sbr.rel (0) target = $region45
  $region44: #{ladan_forward.2} parent=0 // pred_region
    _
  $region45: #{ladan_forward.2} parent=0 // pred_fallthru
    _
  // Predicated region
  $region46: #{ladan_forward.2} parent=0 // pred_check
    _
  $region47: #{ladan_forward.2} parent=0 // pred_check_branch
    %3288 = sbr.rel (0) target = $region49
  $region48: #{ladan_forward.2} parent=0 // pred_region
    _
  $region49: #{ladan_forward.2} parent=0 // pred_fallthru
    _
  // Predicated region
  $region50: #{ladan_forward.2} parent=0 // pred_check
    _
  $region51: #{ladan_forward.2} parent=0 // pred_check_branch
    %3290 = sbr.rel (0) target = $region53
  $region52: #{ladan_forward.2} parent=0 // pred_region
    _
  $region53: #{ladan_forward.2} parent=0 // pred_fallthru
    _
  // Predicated region
  $region54: #{ladan_forward.2} parent=0 // pred_check
    _
  $region55: #{ladan_forward.2} parent=0 // pred_check_branch
    %3292 = sbr.rel (0) target = $region57
  $region56: #{ladan_forward.2} parent=0 // pred_region
    _
  $region57: #{ladan_forward.2} parent=0 // pred_fallthru
    _

// kernel: ladan_forward.3
$region0: #{ladan_forward.3}
  #allocation0 [shape = 'u32[]', space=smem, size = 0x4, offset = 0x4, fixed_abs, tag = 'smem constant byte address 0x4 - core index']
  #allocation1 [shape = 'u32[72,128]{1,0:T(1,128)}', space=vmem, size = 0x9000, scoped, tag = 'internal scratch']
  %s0 = inlined_call_operand.vmem [shape: f32[2,4,256], index: 0, kind: input, shape index: {}]
  %s1 = inlined_call_operand.vmem [shape: f32[4,2,1], index: 1, kind: input, shape index: {}]
  %s2 = inlined_call_operand.vmem [shape: f32[2,256], index: 2, kind: input, shape index: {}]
  %s3 = inlined_call_operand.vmem [shape: f32[2,128], index: 3, kind: input, shape index: {}]
  %s4 = inlined_call_operand.vmem [shape: f32[128,512], index: 4, kind: input, shape index: {}]
  %s5 = inlined_call_operand.vmem [shape: bf16[256,1024], index: 5, kind: input, shape index: {}]
  %s6 = inlined_call_operand.vmem [shape: f32[1,1024], index: 6, kind: input, shape index: {}]
  %s7 = inlined_call_operand.vmem [shape: f32[256,1024], index: 7, kind: input, shape index: {}]
  %s8 = inlined_call_operand.vmem [shape: bf16[256,256], index: 8, kind: input, shape index: {}]
  %s9 = inlined_call_operand.vmem [shape: f32[1,256], index: 9, kind: input, shape index: {}]
  %s10 = inlined_call_operand.vmem [shape: bf16[512,256], index: 10, kind: input, shape index: {}]
  %s11 = inlined_call_operand.vmem [shape: f32[1,256], index: 11, kind: input, shape index: {}]
  %s12 = inlined_call_operand.vmem [shape: bf16[256,128], index: 12, kind: input, shape index: {}]
  %s13 = inlined_call_operand.vmem [shape: f32[1,128], index: 13, kind: input, shape index: {}]
  %s14 = inlined_call_operand.vmem [shape: f32[2,128], index: 14, kind: output, shape index: {}]
  %s15 = sld [smem:[#allocation0]]
  $region66: #{ladan_forward.3} parent=0
    _
  %s17 = ssub.s32 1, %s15
  %s18 = scalar_select 0, %s17, %s15
  // Predicated region
  $region2: #{ladan_forward.3} parent=0 // pred_check
    _
  $region3: #{ladan_forward.3} parent=0 // pred_check_branch
    %20 = sbr.rel (0) target = $region5
  $region4: #{ladan_forward.3} parent=0 // pred_region
    _
  $region5: #{ladan_forward.3} parent=0 // pred_fallthru
    _
  // Predicated region
  $region6: #{ladan_forward.3} parent=0 // pred_check
    _
  $region7: #{ladan_forward.3} parent=0 // pred_check_branch
    %22 = sbr.rel (0) target = $region9
  $region8: #{ladan_forward.3} parent=0 // pred_region
    _
  $region9: #{ladan_forward.3} parent=0 // pred_fallthru
    _
  // Predicated region
  $region10: #{ladan_forward.3} parent=0 // pred_check
    _
  $region11: #{ladan_forward.3} parent=0 // pred_check_branch
    %24 = sbr.rel (0) target = $region13
  $region12: #{ladan_forward.3} parent=0 // pred_region
    _
  $region13: #{ladan_forward.3} parent=0 // pred_fallthru
    _
  // Predicated region
  $region14: #{ladan_forward.3} parent=0 // pred_check
    _
  $region15: #{ladan_forward.3} parent=0 // pred_check_branch
    %26 = sbr.rel (0) target = $region17
  $region16: #{ladan_forward.3} parent=0 // pred_region
    _
  $region17: #{ladan_forward.3} parent=0 // pred_fallthru
    _
  // Predicated region
  $region18: #{ladan_forward.3} parent=0 // pred_check
    _
  $region19: #{ladan_forward.3} parent=0 // pred_check_branch
    %28 = sbr.rel (0) target = $region21
  $region20: #{ladan_forward.3} parent=0 // pred_region
    _
  $region21: #{ladan_forward.3} parent=0 // pred_fallthru
    _
  // Predicated region
  $region22: #{ladan_forward.3} parent=0 // pred_check
    _
  $region23: #{ladan_forward.3} parent=0 // pred_check_branch
    %30 = sbr.rel (0) target = $region25
  $region24: #{ladan_forward.3} parent=0 // pred_region
    _
  $region25: #{ladan_forward.3} parent=0 // pred_fallthru
    _
  // Predicated region
  $region26: #{ladan_forward.3} parent=0 // pred_check
    _
  $region27: #{ladan_forward.3} parent=0 // pred_check_branch
    %32 = sbr.rel (0) target = $region29
  $region28: #{ladan_forward.3} parent=0 // pred_region
    _
  $region29: #{ladan_forward.3} parent=0 // pred_fallthru
    _
  // Predicated region
  $region30: #{ladan_forward.3} parent=0 // pred_check
    _
  $region31: #{ladan_forward.3} parent=0 // pred_check_branch
    %34 = sbr.rel (0) target = $region33
  $region32: #{ladan_forward.3} parent=0 // pred_region
    _
  $region33: #{ladan_forward.3} parent=0 // pred_fallthru
    _
  // Predicated region
  $region34: #{ladan_forward.3} parent=0 // pred_check
    _
  $region35: #{ladan_forward.3} parent=0 // pred_check_branch
    %36 = sbr.rel (0) target = $region37
  $region36: #{ladan_forward.3} parent=0 // pred_region
    _
  $region37: #{ladan_forward.3} parent=0 // pred_fallthru
    _
  // Predicated region
  $region38: #{ladan_forward.3} parent=0 // pred_check
    _
  $region39: #{ladan_forward.3} parent=0 // pred_check_branch
    %38 = sbr.rel (0) target = $region41
  $region40: #{ladan_forward.3} parent=0 // pred_region
    _
  $region41: #{ladan_forward.3} parent=0 // pred_fallthru
    _
  // Predicated region
  $region42: #{ladan_forward.3} parent=0 // pred_check
    _
  $region43: #{ladan_forward.3} parent=0 // pred_check_branch
    %40 = sbr.rel (0) target = $region45
  $region44: #{ladan_forward.3} parent=0 // pred_region
    _
  $region45: #{ladan_forward.3} parent=0 // pred_fallthru
    _
  // Predicated region
  $region46: #{ladan_forward.3} parent=0 // pred_check
    _
  $region47: #{ladan_forward.3} parent=0 // pred_check_branch
    %42 = sbr.rel (0) target = $region49
  $region48: #{ladan_forward.3} parent=0 // pred_region
    _
  $region49: #{ladan_forward.3} parent=0 // pred_fallthru
    _
  // Predicated region
  $region50: #{ladan_forward.3} parent=0 // pred_check
    _
  $region51: #{ladan_forward.3} parent=0 // pred_check_branch
    %44 = sbr.rel (0) target = $region53
  $region52: #{ladan_forward.3} parent=0 // pred_region
    _
  $region53: #{ladan_forward.3} parent=0 // pred_fallthru
    _
  // Predicated region
  $region54: #{ladan_forward.3} parent=0 // pred_check
    _
  $region55: #{ladan_forward.3} parent=0 // pred_check_branch
    %46 = sbr.rel (0) target = $region57
  $region56: #{ladan_forward.3} parent=0 // pred_region
    _
  $region57: #{ladan_forward.3} parent=0 // pred_fallthru
    _
  %v47 = vld [vmem:[%s0] sm:$0xff]
  %v48 = vld [vmem:[%s0 + $0x8] sm:$0xff]
  %51 = vst [vmem:[#allocation1] ss:$2 sm:$0xff] %v47
  %s52 = scalar_lea.vmem [#allocation1], 1
  %53 = vst [vmem:[%s52] ss:$2 sm:$0xff] %v48
  %v54 = vld.sshfl [vmem:[#allocation1] sm:$0xff pattern:$0x75316420]
  %v55 = vld.sshfl [vmem:[#allocation1 + $0x8] sm:$0xff pattern:$0x75316420]
  %v58 = vpack.c.bf16 %v54, %v54
  %v59 = vpack.c.bf16 %v55, %v55
  %v60 = vld [vmem:[%s5] sm:$0xff]
  %v61 = vld [vmem:[%s5 + $0x8] sm:$0xff]
  %v62 = vld [vmem:[%s5 + $0x10] sm:$0xff]
  %v63 = vld [vmem:[%s5 + $0x18] sm:$0xff]
  %v64 = vld [vmem:[%s5 + $0x20] sm:$0xff]
  %v65 = vld [vmem:[%s5 + $0x28] sm:$0xff]
  %v66 = vld [vmem:[%s5 + $0x30] sm:$0xff]
  %v67 = vld [vmem:[%s5 + $0x38] sm:$0xff]
  %v68 = vld [vmem:[%s5 + $0x40] sm:$0xff]
  %v69 = vld [vmem:[%s5 + $0x48] sm:$0xff]
  %v70 = vld [vmem:[%s5 + $0x50] sm:$0xff]
  %v71 = vld [vmem:[%s5 + $0x58] sm:$0xff]
  %v72 = vld [vmem:[%s5 + $0x60] sm:$0xff]
  %v73 = vld [vmem:[%s5 + $0x68] sm:$0xff]
  %v74 = vld [vmem:[%s5 + $0x70] sm:$0xff]
  %v75 = vld [vmem:[%s5 + $0x78] sm:$0xff]
  %v76 = vld [vmem:[%s5 + $0x80] sm:$0xff]
  %v77 = vld [vmem:[%s5 + $0x88] sm:$0xff]
  %v78 = vld [vmem:[%s5 + $0x90] sm:$0xff]
  %v79 = vld [vmem:[%s5 + $0x98] sm:$0xff]
  %v80 = vld [vmem:[%s5 + $0xa0] sm:$0xff]
  %v81 = vld [vmem:[%s5 + $0xa8] sm:$0xff]
  %v82 = vld [vmem:[%s5 + $0xb0] sm:$0xff]
  %v83 = vld [vmem:[%s5 + $0xb8] sm:$0xff]
  %v84 = vld [vmem:[%s5 + $0xc0] sm:$0xff]
  %v85 = vld [vmem:[%s5 + $0xc8] sm:$0xff]
  %v86 = vld [vmem:[%s5 + $0xd0] sm:$0xff]
  %v87 = vld [vmem:[%s5 + $0xd8] sm:$0xff]
  %v88 = vld [vmem:[%s5 + $0xe0] sm:$0xff]
  %v89 = vld [vmem:[%s5 + $0xe8] sm:$0xff]
  %v90 = vld [vmem:[%s5 + $0xf0] sm:$0xff]
  %v91 = vld [vmem:[%s5 + $0xf8] sm:$0xff]
  %v92 = vld [vmem:[%s5 + $0x100] sm:$0xff]
  %v93 = vld [vmem:[%s5 + $0x108] sm:$0xff]
  %v94 = vld [vmem:[%s5 + $0x110] sm:$0xff]
  %v95 = vld [vmem:[%s5 + $0x118] sm:$0xff]
  %v96 = vld [vmem:[%s5 + $0x120] sm:$0xff]
  %v97 = vld [vmem:[%s5 + $0x128] sm:$0xff]
  %v98 = vld [vmem:[%s5 + $0x130] sm:$0xff]
  %v99 = vld [vmem:[%s5 + $0x138] sm:$0xff]
  %v100 = vld [vmem:[%s5 + $0x140] sm:$0xff]
  %v101 = vld [vmem:[%s5 + $0x148] sm:$0xff]
  %v102 = vld [vmem:[%s5 + $0x150] sm:$0xff]
  %v103 = vld [vmem:[%s5 + $0x158] sm:$0xff]
  %v104 = vld [vmem:[%s5 + $0x160] sm:$0xff]
  %v105 = vld [vmem:[%s5 + $0x168] sm:$0xff]
  %v106 = vld [vmem:[%s5 + $0x170] sm:$0xff]
  %v107 = vld [vmem:[%s5 + $0x178] sm:$0xff]
  %v108 = vld [vmem:[%s5 + $0x180] sm:$0xff]
  %v109 = vld [vmem:[%s5 + $0x188] sm:$0xff]
  %v110 = vld [vmem:[%s5 + $0x190] sm:$0xff]
  %v111 = vld [vmem:[%s5 + $0x198] sm:$0xff]
  %v112 = vld [vmem:[%s5 + $0x1a0] sm:$0xff]
  %v113 = vld [vmem:[%s5 + $0x1a8] sm:$0xff]
  %v114 = vld [vmem:[%s5 + $0x1b0] sm:$0xff]
  %v115 = vld [vmem:[%s5 + $0x1b8] sm:$0xff]
  %v116 = vld [vmem:[%s5 + $0x1c0] sm:$0xff]
  %v117 = vld [vmem:[%s5 + $0x1c8] sm:$0xff]
  %v118 = vld [vmem:[%s5 + $0x1d0] sm:$0xff]
  %v119 = vld [vmem:[%s5 + $0x1d8] sm:$0xff]
  %v120 = vld [vmem:[%s5 + $0x1e0] sm:$0xff]
  %v121 = vld [vmem:[%s5 + $0x1e8] sm:$0xff]
  %v122 = vld [vmem:[%s5 + $0x1f0] sm:$0xff]
  %v123 = vld [vmem:[%s5 + $0x1f8] sm:$0xff]
  %v124 = vld [vmem:[%s5 + $0x200] sm:$0xff]
  %v125 = vld [vmem:[%s5 + $0x208] sm:$0xff]
  %v126 = vld [vmem:[%s5 + $0x210] sm:$0xff]
  %v127 = vld [vmem:[%s5 + $0x218] sm:$0xff]
  %v128 = vld [vmem:[%s5 + $0x220] sm:$0xff]
  %v129 = vld [vmem:[%s5 + $0x228] sm:$0xff]
  %v130 = vld [vmem:[%s5 + $0x230] sm:$0xff]
  %v131 = vld [vmem:[%s5 + $0x238] sm:$0xff]
  %v132 = vld [vmem:[%s5 + $0x240] sm:$0xff]
  %v133 = vld [vmem:[%s5 + $0x248] sm:$0xff]
  %v134 = vld [vmem:[%s5 + $0x250] sm:$0xff]
  %v135 = vld [vmem:[%s5 + $0x258] sm:$0xff]
  %v136 = vld [vmem:[%s5 + $0x260] sm:$0xff]
  %v137 = vld [vmem:[%s5 + $0x268] sm:$0xff]
  %v138 = vld [vmem:[%s5 + $0x270] sm:$0xff]
  %v139 = vld [vmem:[%s5 + $0x278] sm:$0xff]
  %v140 = vld [vmem:[%s5 + $0x280] sm:$0xff]
  %v141 = vld [vmem:[%s5 + $0x288] sm:$0xff]
  %v142 = vld [vmem:[%s5 + $0x290] sm:$0xff]
  %v143 = vld [vmem:[%s5 + $0x298] sm:$0xff]
  %v144 = vld [vmem:[%s5 + $0x2a0] sm:$0xff]
  %v145 = vld [vmem:[%s5 + $0x2a8] sm:$0xff]
  %v146 = vld [vmem:[%s5 + $0x2b0] sm:$0xff]
  %v147 = vld [vmem:[%s5 + $0x2b8] sm:$0xff]
  %v148 = vld [vmem:[%s5 + $0x2c0] sm:$0xff]
  %v149 = vld [vmem:[%s5 + $0x2c8] sm:$0xff]
  %v150 = vld [vmem:[%s5 + $0x2d0] sm:$0xff]
  %v151 = vld [vmem:[%s5 + $0x2d8] sm:$0xff]
  %v152 = vld [vmem:[%s5 + $0x2e0] sm:$0xff]
  %v153 = vld [vmem:[%s5 + $0x2e8] sm:$0xff]
  %v154 = vld [vmem:[%s5 + $0x2f0] sm:$0xff]
  %v155 = vld [vmem:[%s5 + $0x2f8] sm:$0xff]
  %v156 = vld [vmem:[%s5 + $0x300] sm:$0xff]
  %v157 = vld [vmem:[%s5 + $0x308] sm:$0xff]
  %v158 = vld [vmem:[%s5 + $0x310] sm:$0xff]
  %v159 = vld [vmem:[%s5 + $0x318] sm:$0xff]
  %v160 = vld [vmem:[%s5 + $0x320] sm:$0xff]
  %v161 = vld [vmem:[%s5 + $0x328] sm:$0xff]
  %v162 = vld [vmem:[%s5 + $0x330] sm:$0xff]
  %v163 = vld [vmem:[%s5 + $0x338] sm:$0xff]
  %v164 = vld [vmem:[%s5 + $0x340] sm:$0xff]
  %v165 = vld [vmem:[%s5 + $0x348] sm:$0xff]
  %v166 = vld [vmem:[%s5 + $0x350] sm:$0xff]
  %v167 = vld [vmem:[%s5 + $0x358] sm:$0xff]
  %v168 = vld [vmem:[%s5 + $0x360] sm:$0xff]
  %v169 = vld [vmem:[%s5 + $0x368] sm:$0xff]
  %v170 = vld [vmem:[%s5 + $0x370] sm:$0xff]
  %v171 = vld [vmem:[%s5 + $0x378] sm:$0xff]
  %v172 = vld [vmem:[%s5 + $0x380] sm:$0xff]
  %v173 = vld [vmem:[%s5 + $0x388] sm:$0xff]
  %v174 = vld [vmem:[%s5 + $0x390] sm:$0xff]
  %v175 = vld [vmem:[%s5 + $0x398] sm:$0xff]
  %v176 = vld [vmem:[%s5 + $0x3a0] sm:$0xff]
  %v177 = vld [vmem:[%s5 + $0x3a8] sm:$0xff]
  %v178 = vld [vmem:[%s5 + $0x3b0] sm:$0xff]
  %v179 = vld [vmem:[%s5 + $0x3b8] sm:$0xff]
  %v180 = vld [vmem:[%s5 + $0x3c0] sm:$0xff]
  %v181 = vld [vmem:[%s5 + $0x3c8] sm:$0xff]
  %v182 = vld [vmem:[%s5 + $0x3d0] sm:$0xff]
  %v183 = vld [vmem:[%s5 + $0x3d8] sm:$0xff]
  %v184 = vld [vmem:[%s5 + $0x3e0] sm:$0xff]
  %v185 = vld [vmem:[%s5 + $0x3e8] sm:$0xff]
  %v186 = vld [vmem:[%s5 + $0x3f0] sm:$0xff]
  %v187 = vld [vmem:[%s5 + $0x3f8] sm:$0xff]
  %v188 = vld [vmem:[%s6] sm:$0xff]
  %v190 = vperm.slane %v188, 0
  %v191 = vperm.slane %v188, 1
  %v192 = vperm.slane %v188, 2
  %v193 = vperm.slane %v188, 3
  %v194 = vperm.slane %v188, 4
  %v195 = vperm.slane %v188, 5
  %v196 = vperm.slane %v188, 6
  %v197 = vperm.slane %v188, 7
  %v334 = vunpack.c.l.b16 %v60
  %v335 = vunpack.c.h.b16 %v60
  %v336 = vunpack.c.l.b16 %v61
  %v337 = vunpack.c.h.b16 %v61
  %v338 = vunpack.c.l.b16 %v62
  %v339 = vunpack.c.h.b16 %v62
  %v340 = vunpack.c.l.b16 %v63
  %v341 = vunpack.c.h.b16 %v63
  %v342 = vunpack.c.l.b16 %v64
  %v343 = vunpack.c.h.b16 %v64
  %v344 = vunpack.c.l.b16 %v65
  %v345 = vunpack.c.h.b16 %v65
  %v346 = vunpack.c.l.b16 %v66
  %v347 = vunpack.c.h.b16 %v66
  %v348 = vunpack.c.l.b16 %v67
  %v349 = vunpack.c.h.b16 %v67
  %v350 = vunpack.c.l.b16 %v68
  %v351 = vunpack.c.h.b16 %v68
  %v352 = vunpack.c.l.b16 %v69
  %v353 = vunpack.c.h.b16 %v69
  %v354 = vunpack.c.l.b16 %v70
  %v355 = vunpack.c.h.b16 %v70
  %v356 = vunpack.c.l.b16 %v71
  %v357 = vunpack.c.h.b16 %v71
  %v358 = vunpack.c.l.b16 %v72
  %v359 = vunpack.c.h.b16 %v72
  %v360 = vunpack.c.l.b16 %v73
  %v361 = vunpack.c.h.b16 %v73
  %v362 = vunpack.c.l.b16 %v74
  %v363 = vunpack.c.h.b16 %v74
  %v364 = vunpack.c.l.b16 %v75
  %v365 = vunpack.c.h.b16 %v75
  %v366 = vunpack.c.l.b16 %v76
  %v367 = vunpack.c.h.b16 %v76
  %v368 = vunpack.c.l.b16 %v77
  %v369 = vunpack.c.h.b16 %v77
  %v370 = vunpack.c.l.b16 %v78
  %v371 = vunpack.c.h.b16 %v78
  %v372 = vunpack.c.l.b16 %v79
  %v373 = vunpack.c.h.b16 %v79
  %v374 = vunpack.c.l.b16 %v80
  %v375 = vunpack.c.h.b16 %v80
  %v376 = vunpack.c.l.b16 %v81
  %v377 = vunpack.c.h.b16 %v81
  %v378 = vunpack.c.l.b16 %v82
  %v379 = vunpack.c.h.b16 %v82
  %v380 = vunpack.c.l.b16 %v83
  %v381 = vunpack.c.h.b16 %v83
  %v382 = vunpack.c.l.b16 %v84
  %v383 = vunpack.c.h.b16 %v84
  %v384 = vunpack.c.l.b16 %v85
  %v385 = vunpack.c.h.b16 %v85
  %v386 = vunpack.c.l.b16 %v86
  %v387 = vunpack.c.h.b16 %v86
  %v388 = vunpack.c.l.b16 %v87
  %v389 = vunpack.c.h.b16 %v87
  %v390 = vunpack.c.l.b16 %v88
  %v391 = vunpack.c.h.b16 %v88
  %v392 = vunpack.c.l.b16 %v89
  %v393 = vunpack.c.h.b16 %v89
  %v394 = vunpack.c.l.b16 %v90
  %v395 = vunpack.c.h.b16 %v90
  %v396 = vunpack.c.l.b16 %v91
  %v397 = vunpack.c.h.b16 %v91
  %v398 = vunpack.c.l.b16 %v92
  %v399 = vunpack.c.h.b16 %v92
  %v400 = vunpack.c.l.b16 %v93
  %v401 = vunpack.c.h.b16 %v93
  %v402 = vunpack.c.l.b16 %v94
  %v403 = vunpack.c.h.b16 %v94
  %v404 = vunpack.c.l.b16 %v95
  %v405 = vunpack.c.h.b16 %v95
  %v406 = vunpack.c.l.b16 %v96
  %v407 = vunpack.c.h.b16 %v96
  %v408 = vunpack.c.l.b16 %v97
  %v409 = vunpack.c.h.b16 %v97
  %v410 = vunpack.c.l.b16 %v98
  %v411 = vunpack.c.h.b16 %v98
  %v412 = vunpack.c.l.b16 %v99
  %v413 = vunpack.c.h.b16 %v99
  %v414 = vunpack.c.l.b16 %v100
  %v415 = vunpack.c.h.b16 %v100
  %v416 = vunpack.c.l.b16 %v101
  %v417 = vunpack.c.h.b16 %v101
  %v418 = vunpack.c.l.b16 %v102
  %v419 = vunpack.c.h.b16 %v102
  %v420 = vunpack.c.l.b16 %v103
  %v421 = vunpack.c.h.b16 %v103
  %v422 = vunpack.c.l.b16 %v104
  %v423 = vunpack.c.h.b16 %v104
  %v424 = vunpack.c.l.b16 %v105
  %v425 = vunpack.c.h.b16 %v105
  %v426 = vunpack.c.l.b16 %v106
  %v427 = vunpack.c.h.b16 %v106
  %v428 = vunpack.c.l.b16 %v107
  %v429 = vunpack.c.h.b16 %v107
  %v430 = vunpack.c.l.b16 %v108
  %v431 = vunpack.c.h.b16 %v108
  %v432 = vunpack.c.l.b16 %v109
  %v433 = vunpack.c.h.b16 %v109
  %v434 = vunpack.c.l.b16 %v110
  %v435 = vunpack.c.h.b16 %v110
  %v436 = vunpack.c.l.b16 %v111
  %v437 = vunpack.c.h.b16 %v111
  %v438 = vunpack.c.l.b16 %v112
  %v439 = vunpack.c.h.b16 %v112
  %v440 = vunpack.c.l.b16 %v113
  %v441 = vunpack.c.h.b16 %v113
  %v442 = vunpack.c.l.b16 %v114
  %v443 = vunpack.c.h.b16 %v114
  %v444 = vunpack.c.l.b16 %v115
  %v445 = vunpack.c.h.b16 %v115
  %v446 = vunpack.c.l.b16 %v116
  %v447 = vunpack.c.h.b16 %v116
  %v448 = vunpack.c.l.b16 %v117
  %v449 = vunpack.c.h.b16 %v117
  %v450 = vunpack.c.l.b16 %v118
  %v451 = vunpack.c.h.b16 %v118
  %v452 = vunpack.c.l.b16 %v119
  %v453 = vunpack.c.h.b16 %v119
  %v454 = vunpack.c.l.b16 %v120
  %v455 = vunpack.c.h.b16 %v120
  %v456 = vunpack.c.l.b16 %v121
  %v457 = vunpack.c.h.b16 %v121
  %v458 = vunpack.c.l.b16 %v122
  %v459 = vunpack.c.h.b16 %v122
  %v460 = vunpack.c.l.b16 %v123
  %v461 = vunpack.c.h.b16 %v123
  %v462 = vunpack.c.l.b16 %v124
  %v463 = vunpack.c.h.b16 %v124
  %v464 = vunpack.c.l.b16 %v125
  %v465 = vunpack.c.h.b16 %v125
  %v466 = vunpack.c.l.b16 %v126
  %v467 = vunpack.c.h.b16 %v126
  %v468 = vunpack.c.l.b16 %v127
  %v469 = vunpack.c.h.b16 %v127
  %v470 = vunpack.c.l.b16 %v128
  %v471 = vunpack.c.h.b16 %v128
  %v472 = vunpack.c.l.b16 %v129
  %v473 = vunpack.c.h.b16 %v129
  %v474 = vunpack.c.l.b16 %v130
  %v475 = vunpack.c.h.b16 %v130
  %v476 = vunpack.c.l.b16 %v131
  %v477 = vunpack.c.h.b16 %v131
  %v478 = vunpack.c.l.b16 %v132
  %v479 = vunpack.c.h.b16 %v132
  %v480 = vunpack.c.l.b16 %v133
  %v481 = vunpack.c.h.b16 %v133
  %v482 = vunpack.c.l.b16 %v134
  %v483 = vunpack.c.h.b16 %v134
  %v484 = vunpack.c.l.b16 %v135
  %v485 = vunpack.c.h.b16 %v135
  %v486 = vunpack.c.l.b16 %v136
  %v487 = vunpack.c.h.b16 %v136
  %v488 = vunpack.c.l.b16 %v137
  %v489 = vunpack.c.h.b16 %v137
  %v490 = vunpack.c.l.b16 %v138
  %v491 = vunpack.c.h.b16 %v138
  %v492 = vunpack.c.l.b16 %v139
  %v493 = vunpack.c.h.b16 %v139
  %v494 = vunpack.c.l.b16 %v140
  %v495 = vunpack.c.h.b16 %v140
  %v496 = vunpack.c.l.b16 %v141
  %v497 = vunpack.c.h.b16 %v141
  %v498 = vunpack.c.l.b16 %v142
  %v499 = vunpack.c.h.b16 %v142
  %v500 = vunpack.c.l.b16 %v143
  %v501 = vunpack.c.h.b16 %v143
  %v502 = vunpack.c.l.b16 %v144
  %v503 = vunpack.c.h.b16 %v144
  %v504 = vunpack.c.l.b16 %v145
  %v505 = vunpack.c.h.b16 %v145
  %v506 = vunpack.c.l.b16 %v146
  %v507 = vunpack.c.h.b16 %v146
  %v508 = vunpack.c.l.b16 %v147
  %v509 = vunpack.c.h.b16 %v147
  %v510 = vunpack.c.l.b16 %v148
  %v511 = vunpack.c.h.b16 %v148
  %v512 = vunpack.c.l.b16 %v149
  %v513 = vunpack.c.h.b16 %v149
  %v514 = vunpack.c.l.b16 %v150
  %v515 = vunpack.c.h.b16 %v150
  %v516 = vunpack.c.l.b16 %v151
  %v517 = vunpack.c.h.b16 %v151
  %v518 = vunpack.c.l.b16 %v152
  %v519 = vunpack.c.h.b16 %v152
  %v520 = vunpack.c.l.b16 %v153
  %v521 = vunpack.c.h.b16 %v153
  %v522 = vunpack.c.l.b16 %v154
  %v523 = vunpack.c.h.b16 %v154
  %v524 = vunpack.c.l.b16 %v155
  %v525 = vunpack.c.h.b16 %v155
  %v526 = vunpack.c.l.b16 %v156
  %v527 = vunpack.c.h.b16 %v156
  %v528 = vunpack.c.l.b16 %v157
  %v529 = vunpack.c.h.b16 %v157
  %v530 = vunpack.c.l.b16 %v158
  %v531 = vunpack.c.h.b16 %v158
  %v532 = vunpack.c.l.b16 %v159
  %v533 = vunpack.c.h.b16 %v159
  %v534 = vunpack.c.l.b16 %v160
  %v535 = vunpack.c.h.b16 %v160
  %v536 = vunpack.c.l.b16 %v161
  %v537 = vunpack.c.h.b16 %v161
  %v538 = vunpack.c.l.b16 %v162
  %v539 = vunpack.c.h.b16 %v162
  %v540 = vunpack.c.l.b16 %v163
  %v541 = vunpack.c.h.b16 %v163
  %v542 = vunpack.c.l.b16 %v164
  %v543 = vunpack.c.h.b16 %v164
  %v544 = vunpack.c.l.b16 %v165
  %v545 = vunpack.c.h.b16 %v165
  %v546 = vunpack.c.l.b16 %v166
  %v547 = vunpack.c.h.b16 %v166
  %v548 = vunpack.c.l.b16 %v167
  %v549 = vunpack.c.h.b16 %v167
  %v550 = vunpack.c.l.b16 %v168
  %v551 = vunpack.c.h.b16 %v168
  %v552 = vunpack.c.l.b16 %v169
  %v553 = vunpack.c.h.b16 %v169
  %v554 = vunpack.c.l.b16 %v170
  %v555 = vunpack.c.h.b16 %v170
  %v556 = vunpack.c.l.b16 %v171
  %v557 = vunpack.c.h.b16 %v171
  %v558 = vunpack.c.l.b16 %v172
  %v559 = vunpack.c.h.b16 %v172
  %v560 = vunpack.c.l.b16 %v173
  %v561 = vunpack.c.h.b16 %v173
  %v562 = vunpack.c.l.b16 %v174
  %v563 = vunpack.c.h.b16 %v174
  %v564 = vunpack.c.l.b16 %v175
  %v565 = vunpack.c.h.b16 %v175
  %v566 = vunpack.c.l.b16 %v176
  %v567 = vunpack.c.h.b16 %v176
  %v568 = vunpack.c.l.b16 %v177
  %v569 = vunpack.c.h.b16 %v177
  %v570 = vunpack.c.l.b16 %v178
  %v571 = vunpack.c.h.b16 %v178
  %v572 = vunpack.c.l.b16 %v179
  %v573 = vunpack.c.h.b16 %v179
  %v574 = vunpack.c.l.b16 %v180
  %v575 = vunpack.c.h.b16 %v180
  %v576 = vunpack.c.l.b16 %v181
  %v577 = vunpack.c.h.b16 %v181
  %v578 = vunpack.c.l.b16 %v182
  %v579 = vunpack.c.h.b16 %v182
  %v580 = vunpack.c.l.b16 %v183
  %v581 = vunpack.c.h.b16 %v183
  %v582 = vunpack.c.l.b16 %v184
  %v583 = vunpack.c.h.b16 %v184
  %v584 = vunpack.c.l.b16 %v185
  %v585 = vunpack.c.h.b16 %v185
  %v586 = vunpack.c.l.b16 %v186
  %v587 = vunpack.c.h.b16 %v186
  %v588 = vunpack.c.l.b16 %v187
  %v589 = vunpack.c.h.b16 %v187
  %v590 = vpack.c.b16 %v342, %v334
  %v591 = vpack.c.b16 %v343, %v335
  %v592 = vpack.c.b16 %v344, %v336
  %v593 = vpack.c.b16 %v345, %v337
  %v594 = vpack.c.b16 %v346, %v338
  %v595 = vpack.c.b16 %v347, %v339
  %v596 = vpack.c.b16 %v348, %v340
  %v597 = vpack.c.b16 %v349, %v341
  %v598 = vpack.c.b16 %v358, %v350
  %v599 = vpack.c.b16 %v359, %v351
  %v600 = vpack.c.b16 %v360, %v352
  %v601 = vpack.c.b16 %v361, %v353
  %v602 = vpack.c.b16 %v362, %v354
  %v603 = vpack.c.b16 %v363, %v355
  %v604 = vpack.c.b16 %v364, %v356
  %v605 = vpack.c.b16 %v365, %v357
  %v606 = vpack.c.b16 %v374, %v366
  %v607 = vpack.c.b16 %v375, %v367
  %v608 = vpack.c.b16 %v376, %v368
  %v609 = vpack.c.b16 %v377, %v369
  %v610 = vpack.c.b16 %v378, %v370
  %v611 = vpack.c.b16 %v379, %v371
  %v612 = vpack.c.b16 %v380, %v372
  %v613 = vpack.c.b16 %v381, %v373
  %v614 = vpack.c.b16 %v390, %v382
  %v615 = vpack.c.b16 %v391, %v383
  %v616 = vpack.c.b16 %v392, %v384
  %v617 = vpack.c.b16 %v393, %v385
  %v618 = vpack.c.b16 %v394, %v386
  %v619 = vpack.c.b16 %v395, %v387
  %v620 = vpack.c.b16 %v396, %v388
  %v621 = vpack.c.b16 %v397, %v389
  %v622 = vpack.c.b16 %v406, %v398
  %v623 = vpack.c.b16 %v407, %v399
  %v624 = vpack.c.b16 %v408, %v400
  %v625 = vpack.c.b16 %v409, %v401
  %v626 = vpack.c.b16 %v410, %v402
  %v627 = vpack.c.b16 %v411, %v403
  %v628 = vpack.c.b16 %v412, %v404
  %v629 = vpack.c.b16 %v413, %v405
  %v630 = vpack.c.b16 %v422, %v414
  %v631 = vpack.c.b16 %v423, %v415
  %v632 = vpack.c.b16 %v424, %v416
  %v633 = vpack.c.b16 %v425, %v417
  %v634 = vpack.c.b16 %v426, %v418
  %v635 = vpack.c.b16 %v427, %v419
  %v636 = vpack.c.b16 %v428, %v420
  %v637 = vpack.c.b16 %v429, %v421
  %v638 = vpack.c.b16 %v438, %v430
  %v639 = vpack.c.b16 %v439, %v431
  %v640 = vpack.c.b16 %v440, %v432
  %v641 = vpack.c.b16 %v441, %v433
  %v642 = vpack.c.b16 %v442, %v434
  %v643 = vpack.c.b16 %v443, %v435
  %v644 = vpack.c.b16 %v444, %v436
  %v645 = vpack.c.b16 %v445, %v437
  %v646 = vpack.c.b16 %v454, %v446
  %v647 = vpack.c.b16 %v455, %v447
  %v648 = vpack.c.b16 %v456, %v448
  %v649 = vpack.c.b16 %v457, %v449
  %v650 = vpack.c.b16 %v458, %v450
  %v651 = vpack.c.b16 %v459, %v451
  %v652 = vpack.c.b16 %v460, %v452
  %v653 = vpack.c.b16 %v461, %v453
  %v654 = vpack.c.b16 %v470, %v462
  %v655 = vpack.c.b16 %v471, %v463
  %v656 = vpack.c.b16 %v472, %v464
  %v657 = vpack.c.b16 %v473, %v465
  %v658 = vpack.c.b16 %v474, %v466
  %v659 = vpack.c.b16 %v475, %v467
  %v660 = vpack.c.b16 %v476, %v468
  %v661 = vpack.c.b16 %v477, %v469
  %v662 = vpack.c.b16 %v486, %v478
  %v663 = vpack.c.b16 %v487, %v479
  %v664 = vpack.c.b16 %v488, %v480
  %v665 = vpack.c.b16 %v489, %v481
  %v666 = vpack.c.b16 %v490, %v482
  %v667 = vpack.c.b16 %v491, %v483
  %v668 = vpack.c.b16 %v492, %v484
  %v669 = vpack.c.b16 %v493, %v485
  %v670 = vpack.c.b16 %v502, %v494
  %v671 = vpack.c.b16 %v503, %v495
  %v672 = vpack.c.b16 %v504, %v496
  %v673 = vpack.c.b16 %v505, %v497
  %v674 = vpack.c.b16 %v506, %v498
  %v675 = vpack.c.b16 %v507, %v499
  %v676 = vpack.c.b16 %v508, %v500
  %v677 = vpack.c.b16 %v509, %v501
  %v678 = vpack.c.b16 %v518, %v510
  %v679 = vpack.c.b16 %v519, %v511
  %v680 = vpack.c.b16 %v520, %v512
  %v681 = vpack.c.b16 %v521, %v513
  %v682 = vpack.c.b16 %v522, %v514
  %v683 = vpack.c.b16 %v523, %v515
  %v684 = vpack.c.b16 %v524, %v516
  %v685 = vpack.c.b16 %v525, %v517
  %v686 = vpack.c.b16 %v534, %v526
  %v687 = vpack.c.b16 %v535, %v527
  %v688 = vpack.c.b16 %v536, %v528
  %v689 = vpack.c.b16 %v537, %v529
  %v690 = vpack.c.b16 %v538, %v530
  %v691 = vpack.c.b16 %v539, %v531
  %v692 = vpack.c.b16 %v540, %v532
  %v693 = vpack.c.b16 %v541, %v533
  %v694 = vpack.c.b16 %v550, %v542
  %v695 = vpack.c.b16 %v551, %v543
  %v696 = vpack.c.b16 %v552, %v544
  %v697 = vpack.c.b16 %v553, %v545
  %v698 = vpack.c.b16 %v554, %v546
  %v699 = vpack.c.b16 %v555, %v547
  %v700 = vpack.c.b16 %v556, %v548
  %v701 = vpack.c.b16 %v557, %v549
  %v702 = vpack.c.b16 %v566, %v558
  %v703 = vpack.c.b16 %v567, %v559
  %v704 = vpack.c.b16 %v568, %v560
  %v705 = vpack.c.b16 %v569, %v561
  %v706 = vpack.c.b16 %v570, %v562
  %v707 = vpack.c.b16 %v571, %v563
  %v708 = vpack.c.b16 %v572, %v564
  %v709 = vpack.c.b16 %v573, %v565
  %v710 = vpack.c.b16 %v582, %v574
  %v711 = vpack.c.b16 %v583, %v575
  %v712 = vpack.c.b16 %v584, %v576
  %v713 = vpack.c.b16 %v585, %v577
  %v714 = vpack.c.b16 %v586, %v578
  %v715 = vpack.c.b16 %v587, %v579
  %v716 = vpack.c.b16 %v588, %v580
  %v717 = vpack.c.b16 %v589, %v581
  %846 = vmatpush.bf16.msra.mxu0 %v646
  %847 = vmatpush.bf16.msra.mxu0 %v638
  %848 = vmatpush.bf16.msra.mxu0 %v630
  %849 = vmatpush.bf16.msra.mxu0 %v622
  %850 = vmatpush.bf16.msra.mxu0 %v614
  %851 = vmatpush.bf16.msra.mxu0 %v606
  %852 = vmatpush.bf16.msra.mxu0 %v598
  %853 = vmatpush.bf16.msra.mxu0 %v590
  %854 = vmatmul.bf16.gmra.mxu0 %v58
  %v855 = vpop.f32.mrf.mxu0
  %v856 = vadd.f32 %v190, %v855
  %v857 = vpop.f32.mrf.mxu0
  %858 = vdwg.mxu0
  %859 = vmatpush.bf16.msra.mxu0 %v710
  %860 = vmatpush.bf16.msra.mxu0 %v702
  %861 = vmatpush.bf16.msra.mxu0 %v694
  %862 = vmatpush.bf16.msra.mxu0 %v686
  %863 = vmatpush.bf16.msra.mxu0 %v678
  %864 = vmatpush.bf16.msra.mxu0 %v670
  %865 = vmatpush.bf16.msra.mxu0 %v662
  %866 = vmatpush.bf16.msra.mxu0 %v654
  %867 = vmatmul.bf16.gmra.mxu0 %v59
  %v868 = vpop.f32.mrf.mxu0
  %v869 = vadd.f32 %v856, %v868
  %v870 = vpop.f32.mrf.mxu0
  %871 = vdwg.mxu0
  %872 = vmatpush.bf16.msra.mxu0 %v647
  %873 = vmatpush.bf16.msra.mxu0 %v639
  %874 = vmatpush.bf16.msra.mxu0 %v631
  %875 = vmatpush.bf16.msra.mxu0 %v623
  %876 = vmatpush.bf16.msra.mxu0 %v615
  %877 = vmatpush.bf16.msra.mxu0 %v607
  %878 = vmatpush.bf16.msra.mxu0 %v599
  %879 = vmatpush.bf16.msra.mxu0 %v591
  %880 = vmatmul.bf16.gmra.mxu0 %v58
  %v881 = vpop.f32.mrf.mxu0
  %v882 = vadd.f32 %v191, %v881
  %v883 = vpop.f32.mrf.mxu0
  %884 = vdwg.mxu0
  %885 = vmatpush.bf16.msra.mxu0 %v711
  %886 = vmatpush.bf16.msra.mxu0 %v703
  %887 = vmatpush.bf16.msra.mxu0 %v695
  %888 = vmatpush.bf16.msra.mxu0 %v687
  %889 = vmatpush.bf16.msra.mxu0 %v679
  %890 = vmatpush.bf16.msra.mxu0 %v671
  %891 = vmatpush.bf16.msra.mxu0 %v663
  %892 = vmatpush.bf16.msra.mxu0 %v655
  %893 = vmatmul.bf16.gmra.mxu0 %v59
  %v894 = vpop.f32.mrf.mxu0
  %v895 = vadd.f32 %v882, %v894
  %v896 = vpop.f32.mrf.mxu0
  %897 = vdwg.mxu0
  %898 = vmatpush.bf16.msra.mxu0 %v648
  %899 = vmatpush.bf16.msra.mxu0 %v640
  %900 = vmatpush.bf16.msra.mxu0 %v632
  %901 = vmatpush.bf16.msra.mxu0 %v624
  %902 = vmatpush.bf16.msra.mxu0 %v616
  %903 = vmatpush.bf16.msra.mxu0 %v608
  %904 = vmatpush.bf16.msra.mxu0 %v600
  %905 = vmatpush.bf16.msra.mxu0 %v592
  %906 = vmatmul.bf16.gmra.mxu0 %v58
  %v907 = vpop.f32.mrf.mxu0
  %v908 = vadd.f32 %v192, %v907
  %v909 = vpop.f32.mrf.mxu0
  %910 = vdwg.mxu0
  %911 = vmatpush.bf16.msra.mxu0 %v712
  %912 = vmatpush.bf16.msra.mxu0 %v704
  %913 = vmatpush.bf16.msra.mxu0 %v696
  %914 = vmatpush.bf16.msra.mxu0 %v688
  %915 = vmatpush.bf16.msra.mxu0 %v680
  %916 = vmatpush.bf16.msra.mxu0 %v672
  %917 = vmatpush.bf16.msra.mxu0 %v664
  %918 = vmatpush.bf16.msra.mxu0 %v656
  %919 = vmatmul.bf16.gmra.mxu0 %v59
  %v920 = vpop.f32.mrf.mxu0
  %v921 = vadd.f32 %v908, %v920
  %v922 = vpop.f32.mrf.mxu0
  %923 = vdwg.mxu0
  %924 = vmatpush.bf16.msra.mxu0 %v649
  %925 = vmatpush.bf16.msra.mxu0 %v641
  %926 = vmatpush.bf16.msra.mxu0 %v633
  %927 = vmatpush.bf16.msra.mxu0 %v625
  %928 = vmatpush.bf16.msra.mxu0 %v617
  %929 = vmatpush.bf16.msra.mxu0 %v609
  %930 = vmatpush.bf16.msra.mxu0 %v601
  %931 = vmatpush.bf16.msra.mxu0 %v593
  %932 = vmatmul.bf16.gmra.mxu0 %v58
  %v933 = vpop.f32.mrf.mxu0
  %v934 = vadd.f32 %v193, %v933
  %v935 = vpop.f32.mrf.mxu0
  %936 = vdwg.mxu0
  %937 = vmatpush.bf16.msra.mxu0 %v713
  %938 = vmatpush.bf16.msra.mxu0 %v705
  %939 = vmatpush.bf16.msra.mxu0 %v697
  %940 = vmatpush.bf16.msra.mxu0 %v689
  %941 = vmatpush.bf16.msra.mxu0 %v681
  %942 = vmatpush.bf16.msra.mxu0 %v673
  %943 = vmatpush.bf16.msra.mxu0 %v665
  %944 = vmatpush.bf16.msra.mxu0 %v657
  %945 = vmatmul.bf16.gmra.mxu0 %v59
  %v946 = vpop.f32.mrf.mxu0
  %v947 = vadd.f32 %v934, %v946
  %v948 = vpop.f32.mrf.mxu0
  %949 = vdwg.mxu0
  %950 = vmatpush.bf16.msra.mxu0 %v650
  %951 = vmatpush.bf16.msra.mxu0 %v642
  %952 = vmatpush.bf16.msra.mxu0 %v634
  %953 = vmatpush.bf16.msra.mxu0 %v626
  %954 = vmatpush.bf16.msra.mxu0 %v618
  %955 = vmatpush.bf16.msra.mxu0 %v610
  %956 = vmatpush.bf16.msra.mxu0 %v602
  %957 = vmatpush.bf16.msra.mxu0 %v594
  %958 = vmatmul.bf16.gmra.mxu0 %v58
  %v959 = vpop.f32.mrf.mxu0
  %v960 = vadd.f32 %v194, %v959
  %v961 = vpop.f32.mrf.mxu0
  %962 = vdwg.mxu0
  %963 = vmatpush.bf16.msra.mxu0 %v714
  %964 = vmatpush.bf16.msra.mxu0 %v706
  %965 = vmatpush.bf16.msra.mxu0 %v698
  %966 = vmatpush.bf16.msra.mxu0 %v690
  %967 = vmatpush.bf16.msra.mxu0 %v682
  %968 = vmatpush.bf16.msra.mxu0 %v674
  %969 = vmatpush.bf16.msra.mxu0 %v666
  %970 = vmatpush.bf16.msra.mxu0 %v658
  %971 = vmatmul.bf16.gmra.mxu0 %v59
  %v972 = vpop.f32.mrf.mxu0
  %v973 = vadd.f32 %v960, %v972
  %v974 = vpop.f32.mrf.mxu0
  %975 = vdwg.mxu0
  %976 = vmatpush.bf16.msra.mxu0 %v651
  %977 = vmatpush.bf16.msra.mxu0 %v643
  %978 = vmatpush.bf16.msra.mxu0 %v635
  %979 = vmatpush.bf16.msra.mxu0 %v627
  %980 = vmatpush.bf16.msra.mxu0 %v619
  %981 = vmatpush.bf16.msra.mxu0 %v611
  %982 = vmatpush.bf16.msra.mxu0 %v603
  %983 = vmatpush.bf16.msra.mxu0 %v595
  %984 = vmatmul.bf16.gmra.mxu0 %v58
  %v985 = vpop.f32.mrf.mxu0
  %v986 = vadd.f32 %v195, %v985
  %v987 = vpop.f32.mrf.mxu0
  %988 = vdwg.mxu0
  %989 = vmatpush.bf16.msra.mxu0 %v715
  %990 = vmatpush.bf16.msra.mxu0 %v707
  %991 = vmatpush.bf16.msra.mxu0 %v699
  %992 = vmatpush.bf16.msra.mxu0 %v691
  %993 = vmatpush.bf16.msra.mxu0 %v683
  %994 = vmatpush.bf16.msra.mxu0 %v675
  %995 = vmatpush.bf16.msra.mxu0 %v667
  %996 = vmatpush.bf16.msra.mxu0 %v659
  %997 = vmatmul.bf16.gmra.mxu0 %v59
  %v998 = vpop.f32.mrf.mxu0
  %v999 = vadd.f32 %v986, %v998
  %v1000 = vpop.f32.mrf.mxu0
  %1001 = vdwg.mxu0
  %1002 = vmatpush.bf16.msra.mxu0 %v652
  %1003 = vmatpush.bf16.msra.mxu0 %v644
  %1004 = vmatpush.bf16.msra.mxu0 %v636
  %1005 = vmatpush.bf16.msra.mxu0 %v628
  %1006 = vmatpush.bf16.msra.mxu0 %v620
  %1007 = vmatpush.bf16.msra.mxu0 %v612
  %1008 = vmatpush.bf16.msra.mxu0 %v604
  %1009 = vmatpush.bf16.msra.mxu0 %v596
  %1010 = vmatmul.bf16.gmra.mxu0 %v58
  %v1011 = vpop.f32.mrf.mxu0
  %v1012 = vadd.f32 %v196, %v1011
  %v1013 = vpop.f32.mrf.mxu0
  %1014 = vdwg.mxu0
  %1015 = vmatpush.bf16.msra.mxu0 %v716
  %1016 = vmatpush.bf16.msra.mxu0 %v708
  %1017 = vmatpush.bf16.msra.mxu0 %v700
  %1018 = vmatpush.bf16.msra.mxu0 %v692
  %1019 = vmatpush.bf16.msra.mxu0 %v684
  %1020 = vmatpush.bf16.msra.mxu0 %v676
  %1021 = vmatpush.bf16.msra.mxu0 %v668
  %1022 = vmatpush.bf16.msra.mxu0 %v660
  %1023 = vmatmul.bf16.gmra.mxu0 %v59
  %v1024 = vpop.f32.mrf.mxu0
  %v1025 = vadd.f32 %v1012, %v1024
  %v1026 = vpop.f32.mrf.mxu0
  %1027 = vdwg.mxu0
  %1028 = vmatpush.bf16.msra.mxu0 %v653
  %1029 = vmatpush.bf16.msra.mxu0 %v645
  %1030 = vmatpush.bf16.msra.mxu0 %v637
  %1031 = vmatpush.bf16.msra.mxu0 %v629
  %1032 = vmatpush.bf16.msra.mxu0 %v621
  %1033 = vmatpush.bf16.msra.mxu0 %v613
  %1034 = vmatpush.bf16.msra.mxu0 %v605
  %1035 = vmatpush.bf16.msra.mxu0 %v597
  %1036 = vmatmul.bf16.gmra.mxu0 %v58
  %v1037 = vpop.f32.mrf.mxu0
  %v1038 = vadd.f32 %v197, %v1037
  %v1039 = vpop.f32.mrf.mxu0
  %1040 = vdwg.mxu0
  %1041 = vmatpush.bf16.msra.mxu0 %v717
  %1042 = vmatpush.bf16.msra.mxu0 %v709
  %1043 = vmatpush.bf16.msra.mxu0 %v701
  %1044 = vmatpush.bf16.msra.mxu0 %v693
  %1045 = vmatpush.bf16.msra.mxu0 %v685
  %1046 = vmatpush.bf16.msra.mxu0 %v677
  %1047 = vmatpush.bf16.msra.mxu0 %v669
  %1048 = vmatpush.bf16.msra.mxu0 %v661
  %1049 = vmatmul.bf16.gmra.mxu0 %v59
  %v1050 = vpop.f32.mrf.mxu0
  %v1051 = vadd.f32 %v1038, %v1050
  %v1052 = vpop.f32.mrf.mxu0
  %1053 = vdwg.mxu0
  %v1062 = vrot.slane %v895, 4
  %v1063 = vrot.slane %v947, 4
  %v1064 = vrot.slane %v999, 4
  %v1065 = vrot.slane %v1051, 4
  %vm1066 = vcmask 1043456
  %v1067 = vsel %vm1066, %v869, %v1062
  %v1068 = vsel %vm1066, %v921, %v1063
  %v1069 = vsel %vm1066, %v973, %v1064
  %v1070 = vsel %vm1066, %v1025, %v1065
  %v1071 = vsel %vm1066, %v1062, %v869
  %v1072 = vrot.slane %v1071, 4
  %v1073 = vsel %vm1066, %v1063, %v921
  %v1074 = vrot.slane %v1073, 4
  %v1075 = vsel %vm1066, %v1064, %v973
  %v1076 = vrot.slane %v1075, 4
  %v1077 = vsel %vm1066, %v1065, %v1025
  %v1078 = vrot.slane %v1077, 4
  %v1087 = vld [vmem:[%s7] sm:$0xff]
  %v1088 = vld [vmem:[%s7 + $0x8] sm:$0xff]
  %v1089 = vld [vmem:[%s7 + $0x10] sm:$0xff]
  %v1090 = vld [vmem:[%s7 + $0x18] sm:$0xff]
  %v1091 = vld [vmem:[%s7 + $0x20] sm:$0xff]
  %v1092 = vld [vmem:[%s7 + $0x28] sm:$0xff]
  %v1093 = vld [vmem:[%s7 + $0x30] sm:$0xff]
  %v1094 = vld [vmem:[%s7 + $0x38] sm:$0xff]
  %v1095 = vld [vmem:[%s7 + $0x40] sm:$0xff]
  %v1096 = vld [vmem:[%s7 + $0x48] sm:$0xff]
  %v1097 = vld [vmem:[%s7 + $0x50] sm:$0xff]
  %v1098 = vld [vmem:[%s7 + $0x58] sm:$0xff]
  %v1099 = vld [vmem:[%s7 + $0x60] sm:$0xff]
  %v1100 = vld [vmem:[%s7 + $0x68] sm:$0xff]
  %v1101 = vld [vmem:[%s7 + $0x70] sm:$0xff]
  %v1102 = vld [vmem:[%s7 + $0x78] sm:$0xff]
  %v1103 = vld [vmem:[%s7 + $0x80] sm:$0xff]
  %v1104 = vld [vmem:[%s7 + $0x88] sm:$0xff]
  %v1105 = vld [vmem:[%s7 + $0x90] sm:$0xff]
  %v1106 = vld [vmem:[%s7 + $0x98] sm:$0xff]
  %v1107 = vld [vmem:[%s7 + $0xa0] sm:$0xff]
  %v1108 = vld [vmem:[%s7 + $0xa8] sm:$0xff]
  %v1109 = vld [vmem:[%s7 + $0xb0] sm:$0xff]
  %v1110 = vld [vmem:[%s7 + $0xb8] sm:$0xff]
  %v1111 = vld [vmem:[%s7 + $0xc0] sm:$0xff]
  %v1112 = vld [vmem:[%s7 + $0xc8] sm:$0xff]
  %v1113 = vld [vmem:[%s7 + $0xd0] sm:$0xff]
  %v1114 = vld [vmem:[%s7 + $0xd8] sm:$0xff]
  %v1115 = vld [vmem:[%s7 + $0xe0] sm:$0xff]
  %v1116 = vld [vmem:[%s7 + $0xe8] sm:$0xff]
  %v1117 = vld [vmem:[%s7 + $0xf0] sm:$0xff]
  %v1118 = vld [vmem:[%s7 + $0xf8] sm:$0xff]
  %v1119 = vld [vmem:[%s7 + $0x100] sm:$0xff]
  %v1120 = vld [vmem:[%s7 + $0x108] sm:$0xff]
  %v1121 = vld [vmem:[%s7 + $0x110] sm:$0xff]
  %v1122 = vld [vmem:[%s7 + $0x118] sm:$0xff]
  %v1123 = vld [vmem:[%s7 + $0x120] sm:$0xff]
  %v1124 = vld [vmem:[%s7 + $0x128] sm:$0xff]
  %v1125 = vld [vmem:[%s7 + $0x130] sm:$0xff]
  %v1126 = vld [vmem:[%s7 + $0x138] sm:$0xff]
  %v1127 = vld [vmem:[%s7 + $0x140] sm:$0xff]
  %v1128 = vld [vmem:[%s7 + $0x148] sm:$0xff]
  %v1129 = vld [vmem:[%s7 + $0x150] sm:$0xff]
  %v1130 = vld [vmem:[%s7 + $0x158] sm:$0xff]
  %v1131 = vld [vmem:[%s7 + $0x160] sm:$0xff]
  %v1132 = vld [vmem:[%s7 + $0x168] sm:$0xff]
  %v1133 = vld [vmem:[%s7 + $0x170] sm:$0xff]
  %v1134 = vld [vmem:[%s7 + $0x178] sm:$0xff]
  %v1135 = vld [vmem:[%s7 + $0x180] sm:$0xff]
  %v1136 = vld [vmem:[%s7 + $0x188] sm:$0xff]
  %v1137 = vld [vmem:[%s7 + $0x190] sm:$0xff]
  %v1138 = vld [vmem:[%s7 + $0x198] sm:$0xff]
  %v1139 = vld [vmem:[%s7 + $0x1a0] sm:$0xff]
  %v1140 = vld [vmem:[%s7 + $0x1a8] sm:$0xff]
  %v1141 = vld [vmem:[%s7 + $0x1b0] sm:$0xff]
  %v1142 = vld [vmem:[%s7 + $0x1b8] sm:$0xff]
  %v1143 = vld [vmem:[%s7 + $0x1c0] sm:$0xff]
  %v1144 = vld [vmem:[%s7 + $0x1c8] sm:$0xff]
  %v1145 = vld [vmem:[%s7 + $0x1d0] sm:$0xff]
  %v1146 = vld [vmem:[%s7 + $0x1d8] sm:$0xff]
  %v1147 = vld [vmem:[%s7 + $0x1e0] sm:$0xff]
  %v1148 = vld [vmem:[%s7 + $0x1e8] sm:$0xff]
  %v1149 = vld [vmem:[%s7 + $0x1f0] sm:$0xff]
  %v1150 = vld [vmem:[%s7 + $0x1f8] sm:$0xff]
  %v1151 = vld [vmem:[%s7 + $0x200] sm:$0xff]
  %v1152 = vld [vmem:[%s7 + $0x208] sm:$0xff]
  %v1153 = vld [vmem:[%s7 + $0x210] sm:$0xff]
  %v1154 = vld [vmem:[%s7 + $0x218] sm:$0xff]
  %v1155 = vld [vmem:[%s7 + $0x220] sm:$0xff]
  %v1156 = vld [vmem:[%s7 + $0x228] sm:$0xff]
  %v1157 = vld [vmem:[%s7 + $0x230] sm:$0xff]
  %v1158 = vld [vmem:[%s7 + $0x238] sm:$0xff]
  %v1159 = vld [vmem:[%s7 + $0x240] sm:$0xff]
  %v1160 = vld [vmem:[%s7 + $0x248] sm:$0xff]
  %v1161 = vld [vmem:[%s7 + $0x250] sm:$0xff]
  %v1162 = vld [vmem:[%s7 + $0x258] sm:$0xff]
  %v1163 = vld [vmem:[%s7 + $0x260] sm:$0xff]
  %v1164 = vld [vmem:[%s7 + $0x268] sm:$0xff]
  %v1165 = vld [vmem:[%s7 + $0x270] sm:$0xff]
  %v1166 = vld [vmem:[%s7 + $0x278] sm:$0xff]
  %v1167 = vld [vmem:[%s7 + $0x280] sm:$0xff]
  %v1168 = vld [vmem:[%s7 + $0x288] sm:$0xff]
  %v1169 = vld [vmem:[%s7 + $0x290] sm:$0xff]
  %v1170 = vld [vmem:[%s7 + $0x298] sm:$0xff]
  %v1171 = vld [vmem:[%s7 + $0x2a0] sm:$0xff]
  %v1172 = vld [vmem:[%s7 + $0x2a8] sm:$0xff]
  %v1173 = vld [vmem:[%s7 + $0x2b0] sm:$0xff]
  %v1174 = vld [vmem:[%s7 + $0x2b8] sm:$0xff]
  %v1175 = vld [vmem:[%s7 + $0x2c0] sm:$0xff]
  %v1176 = vld [vmem:[%s7 + $0x2c8] sm:$0xff]
  %v1177 = vld [vmem:[%s7 + $0x2d0] sm:$0xff]
  %v1178 = vld [vmem:[%s7 + $0x2d8] sm:$0xff]
  %v1179 = vld [vmem:[%s7 + $0x2e0] sm:$0xff]
  %v1180 = vld [vmem:[%s7 + $0x2e8] sm:$0xff]
  %v1181 = vld [vmem:[%s7 + $0x2f0] sm:$0xff]
  %v1182 = vld [vmem:[%s7 + $0x2f8] sm:$0xff]
  %v1183 = vld [vmem:[%s7 + $0x300] sm:$0xff]
  %v1184 = vld [vmem:[%s7 + $0x308] sm:$0xff]
  %v1185 = vld [vmem:[%s7 + $0x310] sm:$0xff]
  %v1186 = vld [vmem:[%s7 + $0x318] sm:$0xff]
  %v1187 = vld [vmem:[%s7 + $0x320] sm:$0xff]
  %v1188 = vld [vmem:[%s7 + $0x328] sm:$0xff]
  %v1189 = vld [vmem:[%s7 + $0x330] sm:$0xff]
  %v1190 = vld [vmem:[%s7 + $0x338] sm:$0xff]
  %v1191 = vld [vmem:[%s7 + $0x340] sm:$0xff]
  %v1192 = vld [vmem:[%s7 + $0x348] sm:$0xff]
  %v1193 = vld [vmem:[%s7 + $0x350] sm:$0xff]
  %v1194 = vld [vmem:[%s7 + $0x358] sm:$0xff]
  %v1195 = vld [vmem:[%s7 + $0x360] sm:$0xff]
  %v1196 = vld [vmem:[%s7 + $0x368] sm:$0xff]
  %v1197 = vld [vmem:[%s7 + $0x370] sm:$0xff]
  %v1198 = vld [vmem:[%s7 + $0x378] sm:$0xff]
  %v1199 = vld [vmem:[%s7 + $0x380] sm:$0xff]
  %v1200 = vld [vmem:[%s7 + $0x388] sm:$0xff]
  %v1201 = vld [vmem:[%s7 + $0x390] sm:$0xff]
  %v1202 = vld [vmem:[%s7 + $0x398] sm:$0xff]
  %v1203 = vld [vmem:[%s7 + $0x3a0] sm:$0xff]
  %v1204 = vld [vmem:[%s7 + $0x3a8] sm:$0xff]
  %v1205 = vld [vmem:[%s7 + $0x3b0] sm:$0xff]
  %v1206 = vld [vmem:[%s7 + $0x3b8] sm:$0xff]
  %v1207 = vld [vmem:[%s7 + $0x3c0] sm:$0xff]
  %v1208 = vld [vmem:[%s7 + $0x3c8] sm:$0xff]
  %v1209 = vld [vmem:[%s7 + $0x3d0] sm:$0xff]
  %v1210 = vld [vmem:[%s7 + $0x3d8] sm:$0xff]
  %v1211 = vld [vmem:[%s7 + $0x3e0] sm:$0xff]
  %v1212 = vld [vmem:[%s7 + $0x3e8] sm:$0xff]
  %v1213 = vld [vmem:[%s7 + $0x3f0] sm:$0xff]
  %v1214 = vld [vmem:[%s7 + $0x3f8] sm:$0xff]
  %v1215 = vld [vmem:[%s7 + $0x400] sm:$0xff]
  %v1216 = vld [vmem:[%s7 + $0x408] sm:$0xff]
  %v1217 = vld [vmem:[%s7 + $0x410] sm:$0xff]
  %v1218 = vld [vmem:[%s7 + $0x418] sm:$0xff]
  %v1219 = vld [vmem:[%s7 + $0x420] sm:$0xff]
  %v1220 = vld [vmem:[%s7 + $0x428] sm:$0xff]
  %v1221 = vld [vmem:[%s7 + $0x430] sm:$0xff]
  %v1222 = vld [vmem:[%s7 + $0x438] sm:$0xff]
  %v1223 = vld [vmem:[%s7 + $0x440] sm:$0xff]
  %v1224 = vld [vmem:[%s7 + $0x448] sm:$0xff]
  %v1225 = vld [vmem:[%s7 + $0x450] sm:$0xff]
  %v1226 = vld [vmem:[%s7 + $0x458] sm:$0xff]
  %v1227 = vld [vmem:[%s7 + $0x460] sm:$0xff]
  %v1228 = vld [vmem:[%s7 + $0x468] sm:$0xff]
  %v1229 = vld [vmem:[%s7 + $0x470] sm:$0xff]
  %v1230 = vld [vmem:[%s7 + $0x478] sm:$0xff]
  %v1231 = vld [vmem:[%s7 + $0x480] sm:$0xff]
  %v1232 = vld [vmem:[%s7 + $0x488] sm:$0xff]
  %v1233 = vld [vmem:[%s7 + $0x490] sm:$0xff]
  %v1234 = vld [vmem:[%s7 + $0x498] sm:$0xff]
  %v1235 = vld [vmem:[%s7 + $0x4a0] sm:$0xff]
  %v1236 = vld [vmem:[%s7 + $0x4a8] sm:$0xff]
  %v1237 = vld [vmem:[%s7 + $0x4b0] sm:$0xff]
  %v1238 = vld [vmem:[%s7 + $0x4b8] sm:$0xff]
  %v1239 = vld [vmem:[%s7 + $0x4c0] sm:$0xff]
  %v1240 = vld [vmem:[%s7 + $0x4c8] sm:$0xff]
  %v1241 = vld [vmem:[%s7 + $0x4d0] sm:$0xff]
  %v1242 = vld [vmem:[%s7 + $0x4d8] sm:$0xff]
  %v1243 = vld [vmem:[%s7 + $0x4e0] sm:$0xff]
  %v1244 = vld [vmem:[%s7 + $0x4e8] sm:$0xff]
  %v1245 = vld [vmem:[%s7 + $0x4f0] sm:$0xff]
  %v1246 = vld [vmem:[%s7 + $0x4f8] sm:$0xff]
  %v1247 = vld [vmem:[%s7 + $0x500] sm:$0xff]
  %v1248 = vld [vmem:[%s7 + $0x508] sm:$0xff]
  %v1249 = vld [vmem:[%s7 + $0x510] sm:$0xff]
  %v1250 = vld [vmem:[%s7 + $0x518] sm:$0xff]
  %v1251 = vld [vmem:[%s7 + $0x520] sm:$0xff]
  %v1252 = vld [vmem:[%s7 + $0x528] sm:$0xff]
  %v1253 = vld [vmem:[%s7 + $0x530] sm:$0xff]
  %v1254 = vld [vmem:[%s7 + $0x538] sm:$0xff]
  %v1255 = vld [vmem:[%s7 + $0x540] sm:$0xff]
  %v1256 = vld [vmem:[%s7 + $0x548] sm:$0xff]
  %v1257 = vld [vmem:[%s7 + $0x550] sm:$0xff]
  %v1258 = vld [vmem:[%s7 + $0x558] sm:$0xff]
  %v1259 = vld [vmem:[%s7 + $0x560] sm:$0xff]
  %v1260 = vld [vmem:[%s7 + $0x568] sm:$0xff]
  %v1261 = vld [vmem:[%s7 + $0x570] sm:$0xff]
  %v1262 = vld [vmem:[%s7 + $0x578] sm:$0xff]
  %v1263 = vld [vmem:[%s7 + $0x580] sm:$0xff]
  %v1264 = vld [vmem:[%s7 + $0x588] sm:$0xff]
  %v1265 = vld [vmem:[%s7 + $0x590] sm:$0xff]
  %v1266 = vld [vmem:[%s7 + $0x598] sm:$0xff]
  %v1267 = vld [vmem:[%s7 + $0x5a0] sm:$0xff]
  %v1268 = vld [vmem:[%s7 + $0x5a8] sm:$0xff]
  %v1269 = vld [vmem:[%s7 + $0x5b0] sm:$0xff]
  %v1270 = vld [vmem:[%s7 + $0x5b8] sm:$0xff]
  %v1271 = vld [vmem:[%s7 + $0x5c0] sm:$0xff]
  %v1272 = vld [vmem:[%s7 + $0x5c8] sm:$0xff]
  %v1273 = vld [vmem:[%s7 + $0x5d0] sm:$0xff]
  %v1274 = vld [vmem:[%s7 + $0x5d8] sm:$0xff]
  %v1275 = vld [vmem:[%s7 + $0x5e0] sm:$0xff]
  %v1276 = vld [vmem:[%s7 + $0x5e8] sm:$0xff]
  %v1277 = vld [vmem:[%s7 + $0x5f0] sm:$0xff]
  %v1278 = vld [vmem:[%s7 + $0x5f8] sm:$0xff]
  %v1279 = vld [vmem:[%s7 + $0x600] sm:$0xff]
  %v1280 = vld [vmem:[%s7 + $0x608] sm:$0xff]
  %v1281 = vld [vmem:[%s7 + $0x610] sm:$0xff]
  %v1282 = vld [vmem:[%s7 + $0x618] sm:$0xff]
  %v1283 = vld [vmem:[%s7 + $0x620] sm:$0xff]
  %v1284 = vld [vmem:[%s7 + $0x628] sm:$0xff]
  %v1285 = vld [vmem:[%s7 + $0x630] sm:$0xff]
  %v1286 = vld [vmem:[%s7 + $0x638] sm:$0xff]
  %v1287 = vld [vmem:[%s7 + $0x640] sm:$0xff]
  %v1288 = vld [vmem:[%s7 + $0x648] sm:$0xff]
  %v1289 = vld [vmem:[%s7 + $0x650] sm:$0xff]
  %v1290 = vld [vmem:[%s7 + $0x658] sm:$0xff]
  %v1291 = vld [vmem:[%s7 + $0x660] sm:$0xff]
  %v1292 = vld [vmem:[%s7 + $0x668] sm:$0xff]
  %v1293 = vld [vmem:[%s7 + $0x670] sm:$0xff]
  %v1294 = vld [vmem:[%s7 + $0x678] sm:$0xff]
  %v1295 = vld [vmem:[%s7 + $0x680] sm:$0xff]
  %v1296 = vld [vmem:[%s7 + $0x688] sm:$0xff]
  %v1297 = vld [vmem:[%s7 + $0x690] sm:$0xff]
  %v1298 = vld [vmem:[%s7 + $0x698] sm:$0xff]
  %v1299 = vld [vmem:[%s7 + $0x6a0] sm:$0xff]
  %v1300 = vld [vmem:[%s7 + $0x6a8] sm:$0xff]
  %v1301 = vld [vmem:[%s7 + $0x6b0] sm:$0xff]
  %v1302 = vld [vmem:[%s7 + $0x6b8] sm:$0xff]
  %v1303 = vld [vmem:[%s7 + $0x6c0] sm:$0xff]
  %v1304 = vld [vmem:[%s7 + $0x6c8] sm:$0xff]
  %v1305 = vld [vmem:[%s7 + $0x6d0] sm:$0xff]
  %v1306 = vld [vmem:[%s7 + $0x6d8] sm:$0xff]
  %v1307 = vld [vmem:[%s7 + $0x6e0] sm:$0xff]
  %v1308 = vld [vmem:[%s7 + $0x6e8] sm:$0xff]
  %v1309 = vld [vmem:[%s7 + $0x6f0] sm:$0xff]
  %v1310 = vld [vmem:[%s7 + $0x6f8] sm:$0xff]
  %v1311 = vld [vmem:[%s7 + $0x700] sm:$0xff]
  %v1312 = vld [vmem:[%s7 + $0x708] sm:$0xff]
  %v1313 = vld [vmem:[%s7 + $0x710] sm:$0xff]
  %v1314 = vld [vmem:[%s7 + $0x718] sm:$0xff]
  %v1315 = vld [vmem:[%s7 + $0x720] sm:$0xff]
  %v1316 = vld [vmem:[%s7 + $0x728] sm:$0xff]
  %v1317 = vld [vmem:[%s7 + $0x730] sm:$0xff]
  %v1318 = vld [vmem:[%s7 + $0x738] sm:$0xff]
  %v1319 = vld [vmem:[%s7 + $0x740] sm:$0xff]
  %v1320 = vld [vmem:[%s7 + $0x748] sm:$0xff]
  %v1321 = vld [vmem:[%s7 + $0x750] sm:$0xff]
  %v1322 = vld [vmem:[%s7 + $0x758] sm:$0xff]
  %v1323 = vld [vmem:[%s7 + $0x760] sm:$0xff]
  %v1324 = vld [vmem:[%s7 + $0x768] sm:$0xff]
  %v1325 = vld [vmem:[%s7 + $0x770] sm:$0xff]
  %v1326 = vld [vmem:[%s7 + $0x778] sm:$0xff]
  %v1327 = vld [vmem:[%s7 + $0x780] sm:$0xff]
  %v1328 = vld [vmem:[%s7 + $0x788] sm:$0xff]
  %v1329 = vld [vmem:[%s7 + $0x790] sm:$0xff]
  %v1330 = vld [vmem:[%s7 + $0x798] sm:$0xff]
  %v1331 = vld [vmem:[%s7 + $0x7a0] sm:$0xff]
  %v1332 = vld [vmem:[%s7 + $0x7a8] sm:$0xff]
  %v1333 = vld [vmem:[%s7 + $0x7b0] sm:$0xff]
  %v1334 = vld [vmem:[%s7 + $0x7b8] sm:$0xff]
  %v1335 = vld [vmem:[%s7 + $0x7c0] sm:$0xff]
  %v1336 = vld [vmem:[%s7 + $0x7c8] sm:$0xff]
  %v1337 = vld [vmem:[%s7 + $0x7d0] sm:$0xff]
  %v1338 = vld [vmem:[%s7 + $0x7d8] sm:$0xff]
  %v1339 = vld [vmem:[%s7 + $0x7e0] sm:$0xff]
  %v1340 = vld [vmem:[%s7 + $0x7e8] sm:$0xff]
  %v1341 = vld [vmem:[%s7 + $0x7f0] sm:$0xff]
  %v1342 = vld [vmem:[%s7 + $0x7f8] sm:$0xff]
  %1343 = vmatpush.msra.mxu0 %v1207
  %1344 = vmatpush.msra.mxu0 %v1199
  %1345 = vmatpush.msra.mxu0 %v1191
  %1346 = vmatpush.msra.mxu0 %v1183
  %1347 = vmatpush.msra.mxu0 %v1175
  %1348 = vmatpush.msra.mxu0 %v1167
  %1349 = vmatpush.msra.mxu0 %v1159
  %1350 = vmatpush.msra.mxu0 %v1151
  %1351 = vmatpush.msra.mxu0 %v1143
  %1352 = vmatpush.msra.mxu0 %v1135
  %1353 = vmatpush.msra.mxu0 %v1127
  %1354 = vmatpush.msra.mxu0 %v1119
  %1355 = vmatpush.msra.mxu0 %v1111
  %1356 = vmatpush.msra.mxu0 %v1103
  %1357 = vmatpush.msra.mxu0 %v1095
  %1358 = vmatpush.msra.mxu0 %v1087
  %1359 = vmatmul.f32.gmra.mxu0 0.0
  %v1360 = vpop.f32.mrf.mxu0
  %v1361 = vadd.f32 0.0, %v1360
  %1362 = vdwg.mxu0
  %1363 = vmatpush.msra.mxu0 %v1335
  %1364 = vmatpush.msra.mxu0 %v1327
  %1365 = vmatpush.msra.mxu0 %v1319
  %1366 = vmatpush.msra.mxu0 %v1311
  %1367 = vmatpush.msra.mxu0 %v1303
  %1368 = vmatpush.msra.mxu0 %v1295
  %1369 = vmatpush.msra.mxu0 %v1287
  %1370 = vmatpush.msra.mxu0 %v1279
  %1371 = vmatpush.msra.mxu0 %v1271
  %1372 = vmatpush.msra.mxu0 %v1263
  %1373 = vmatpush.msra.mxu0 %v1255
  %1374 = vmatpush.msra.mxu0 %v1247
  %1375 = vmatpush.msra.mxu0 %v1239
  %1376 = vmatpush.msra.mxu0 %v1231
  %1377 = vmatpush.msra.mxu0 %v1223
  %1378 = vmatpush.msra.mxu0 %v1215
  %1379 = vmatmul.f32.gmra.mxu0 0.0
  %v1380 = vpop.f32.mrf.mxu0
  %v1381 = vadd.f32 %v1361, %v1380
  %1382 = vdwg.mxu0
  %1383 = vmatpush.msra.mxu0 %v1208
  %1384 = vmatpush.msra.mxu0 %v1200
  %1385 = vmatpush.msra.mxu0 %v1192
  %1386 = vmatpush.msra.mxu0 %v1184
  %1387 = vmatpush.msra.mxu0 %v1176
  %1388 = vmatpush.msra.mxu0 %v1168
  %1389 = vmatpush.msra.mxu0 %v1160
  %1390 = vmatpush.msra.mxu0 %v1152
  %1391 = vmatpush.msra.mxu0 %v1144
  %1392 = vmatpush.msra.mxu0 %v1136
  %1393 = vmatpush.msra.mxu0 %v1128
  %1394 = vmatpush.msra.mxu0 %v1120
  %1395 = vmatpush.msra.mxu0 %v1112
  %1396 = vmatpush.msra.mxu0 %v1104
  %1397 = vmatpush.msra.mxu0 %v1096
  %1398 = vmatpush.msra.mxu0 %v1088
  %1399 = vmatmul.f32.gmra.mxu0 0.0
  %v1400 = vpop.f32.mrf.mxu0
  %v1401 = vadd.f32 0.0, %v1400
  %1402 = vdwg.mxu0
  %1403 = vmatpush.msra.mxu0 %v1336
  %1404 = vmatpush.msra.mxu0 %v1328
  %1405 = vmatpush.msra.mxu0 %v1320
  %1406 = vmatpush.msra.mxu0 %v1312
  %1407 = vmatpush.msra.mxu0 %v1304
  %1408 = vmatpush.msra.mxu0 %v1296
  %1409 = vmatpush.msra.mxu0 %v1288
  %1410 = vmatpush.msra.mxu0 %v1280
  %1411 = vmatpush.msra.mxu0 %v1272
  %1412 = vmatpush.msra.mxu0 %v1264
  %1413 = vmatpush.msra.mxu0 %v1256
  %1414 = vmatpush.msra.mxu0 %v1248
  %1415 = vmatpush.msra.mxu0 %v1240
  %1416 = vmatpush.msra.mxu0 %v1232
  %1417 = vmatpush.msra.mxu0 %v1224
  %1418 = vmatpush.msra.mxu0 %v1216
  %1419 = vmatmul.f32.gmra.mxu0 0.0
  %v1420 = vpop.f32.mrf.mxu0
  %v1421 = vadd.f32 %v1401, %v1420
  %1422 = vdwg.mxu0
  %1423 = vmatpush.msra.mxu0 %v1209
  %1424 = vmatpush.msra.mxu0 %v1201
  %1425 = vmatpush.msra.mxu0 %v1193
  %1426 = vmatpush.msra.mxu0 %v1185
  %1427 = vmatpush.msra.mxu0 %v1177
  %1428 = vmatpush.msra.mxu0 %v1169
  %1429 = vmatpush.msra.mxu0 %v1161
  %1430 = vmatpush.msra.mxu0 %v1153
  %1431 = vmatpush.msra.mxu0 %v1145
  %1432 = vmatpush.msra.mxu0 %v1137
  %1433 = vmatpush.msra.mxu0 %v1129
  %1434 = vmatpush.msra.mxu0 %v1121
  %1435 = vmatpush.msra.mxu0 %v1113
  %1436 = vmatpush.msra.mxu0 %v1105
  %1437 = vmatpush.msra.mxu0 %v1097
  %1438 = vmatpush.msra.mxu0 %v1089
  %1439 = vmatmul.f32.gmra.mxu0 0.0
  %v1440 = vpop.f32.mrf.mxu0
  %v1441 = vadd.f32 0.0, %v1440
  %1442 = vdwg.mxu0
  %1443 = vmatpush.msra.mxu0 %v1337
  %1444 = vmatpush.msra.mxu0 %v1329
  %1445 = vmatpush.msra.mxu0 %v1321
  %1446 = vmatpush.msra.mxu0 %v1313
  %1447 = vmatpush.msra.mxu0 %v1305
  %1448 = vmatpush.msra.mxu0 %v1297
  %1449 = vmatpush.msra.mxu0 %v1289
  %1450 = vmatpush.msra.mxu0 %v1281
  %1451 = vmatpush.msra.mxu0 %v1273
  %1452 = vmatpush.msra.mxu0 %v1265
  %1453 = vmatpush.msra.mxu0 %v1257
  %1454 = vmatpush.msra.mxu0 %v1249
  %1455 = vmatpush.msra.mxu0 %v1241
  %1456 = vmatpush.msra.mxu0 %v1233
  %1457 = vmatpush.msra.mxu0 %v1225
  %1458 = vmatpush.msra.mxu0 %v1217
  %1459 = vmatmul.f32.gmra.mxu0 0.0
  %v1460 = vpop.f32.mrf.mxu0
  %v1461 = vadd.f32 %v1441, %v1460
  %1462 = vdwg.mxu0
  %1463 = vmatpush.msra.mxu0 %v1210
  %1464 = vmatpush.msra.mxu0 %v1202
  %1465 = vmatpush.msra.mxu0 %v1194
  %1466 = vmatpush.msra.mxu0 %v1186
  %1467 = vmatpush.msra.mxu0 %v1178
  %1468 = vmatpush.msra.mxu0 %v1170
  %1469 = vmatpush.msra.mxu0 %v1162
  %1470 = vmatpush.msra.mxu0 %v1154
  %1471 = vmatpush.msra.mxu0 %v1146
  %1472 = vmatpush.msra.mxu0 %v1138
  %1473 = vmatpush.msra.mxu0 %v1130
  %1474 = vmatpush.msra.mxu0 %v1122
  %1475 = vmatpush.msra.mxu0 %v1114
  %1476 = vmatpush.msra.mxu0 %v1106
  %1477 = vmatpush.msra.mxu0 %v1098
  %1478 = vmatpush.msra.mxu0 %v1090
  %1479 = vmatmul.f32.gmra.mxu0 0.0
  %v1480 = vpop.f32.mrf.mxu0
  %v1481 = vadd.f32 0.0, %v1480
  %1482 = vdwg.mxu0
  %1483 = vmatpush.msra.mxu0 %v1338
  %1484 = vmatpush.msra.mxu0 %v1330
  %1485 = vmatpush.msra.mxu0 %v1322
  %1486 = vmatpush.msra.mxu0 %v1314
  %1487 = vmatpush.msra.mxu0 %v1306
  %1488 = vmatpush.msra.mxu0 %v1298
  %1489 = vmatpush.msra.mxu0 %v1290
  %1490 = vmatpush.msra.mxu0 %v1282
  %1491 = vmatpush.msra.mxu0 %v1274
  %1492 = vmatpush.msra.mxu0 %v1266
  %1493 = vmatpush.msra.mxu0 %v1258
  %1494 = vmatpush.msra.mxu0 %v1250
  %1495 = vmatpush.msra.mxu0 %v1242
  %1496 = vmatpush.msra.mxu0 %v1234
  %1497 = vmatpush.msra.mxu0 %v1226
  %1498 = vmatpush.msra.mxu0 %v1218
  %1499 = vmatmul.f32.gmra.mxu0 0.0
  %v1500 = vpop.f32.mrf.mxu0
  %v1501 = vadd.f32 %v1481, %v1500
  %1502 = vdwg.mxu0
  %1503 = vmatpush.msra.mxu0 %v1211
  %1504 = vmatpush.msra.mxu0 %v1203
  %1505 = vmatpush.msra.mxu0 %v1195
  %1506 = vmatpush.msra.mxu0 %v1187
  %1507 = vmatpush.msra.mxu0 %v1179
  %1508 = vmatpush.msra.mxu0 %v1171
  %1509 = vmatpush.msra.mxu0 %v1163
  %1510 = vmatpush.msra.mxu0 %v1155
  %1511 = vmatpush.msra.mxu0 %v1147
  %1512 = vmatpush.msra.mxu0 %v1139
  %1513 = vmatpush.msra.mxu0 %v1131
  %1514 = vmatpush.msra.mxu0 %v1123
  %1515 = vmatpush.msra.mxu0 %v1115
  %1516 = vmatpush.msra.mxu0 %v1107
  %1517 = vmatpush.msra.mxu0 %v1099
  %1518 = vmatpush.msra.mxu0 %v1091
  %1519 = vmatmul.f32.gmra.mxu0 0.0
  %v1520 = vpop.f32.mrf.mxu0
  %v1521 = vadd.f32 0.0, %v1520
  %1522 = vdwg.mxu0
  %1523 = vmatpush.msra.mxu0 %v1339
  %1524 = vmatpush.msra.mxu0 %v1331
  %1525 = vmatpush.msra.mxu0 %v1323
  %1526 = vmatpush.msra.mxu0 %v1315
  %1527 = vmatpush.msra.mxu0 %v1307
  %1528 = vmatpush.msra.mxu0 %v1299
  %1529 = vmatpush.msra.mxu0 %v1291
  %1530 = vmatpush.msra.mxu0 %v1283
  %1531 = vmatpush.msra.mxu0 %v1275
  %1532 = vmatpush.msra.mxu0 %v1267
  %1533 = vmatpush.msra.mxu0 %v1259
  %1534 = vmatpush.msra.mxu0 %v1251
  %1535 = vmatpush.msra.mxu0 %v1243
  %1536 = vmatpush.msra.mxu0 %v1235
  %1537 = vmatpush.msra.mxu0 %v1227
  %1538 = vmatpush.msra.mxu0 %v1219
  %1539 = vmatmul.f32.gmra.mxu0 0.0
  %v1540 = vpop.f32.mrf.mxu0
  %v1541 = vadd.f32 %v1521, %v1540
  %1542 = vdwg.mxu0
  %1543 = vmatpush.msra.mxu0 %v1212
  %1544 = vmatpush.msra.mxu0 %v1204
  %1545 = vmatpush.msra.mxu0 %v1196
  %1546 = vmatpush.msra.mxu0 %v1188
  %1547 = vmatpush.msra.mxu0 %v1180
  %1548 = vmatpush.msra.mxu0 %v1172
  %1549 = vmatpush.msra.mxu0 %v1164
  %1550 = vmatpush.msra.mxu0 %v1156
  %1551 = vmatpush.msra.mxu0 %v1148
  %1552 = vmatpush.msra.mxu0 %v1140
  %1553 = vmatpush.msra.mxu0 %v1132
  %1554 = vmatpush.msra.mxu0 %v1124
  %1555 = vmatpush.msra.mxu0 %v1116
  %1556 = vmatpush.msra.mxu0 %v1108
  %1557 = vmatpush.msra.mxu0 %v1100
  %1558 = vmatpush.msra.mxu0 %v1092
  %1559 = vmatmul.f32.gmra.mxu0 0.0
  %v1560 = vpop.f32.mrf.mxu0
  %v1561 = vadd.f32 0.0, %v1560
  %1562 = vdwg.mxu0
  %1563 = vmatpush.msra.mxu0 %v1340
  %1564 = vmatpush.msra.mxu0 %v1332
  %1565 = vmatpush.msra.mxu0 %v1324
  %1566 = vmatpush.msra.mxu0 %v1316
  %1567 = vmatpush.msra.mxu0 %v1308
  %1568 = vmatpush.msra.mxu0 %v1300
  %1569 = vmatpush.msra.mxu0 %v1292
  %1570 = vmatpush.msra.mxu0 %v1284
  %1571 = vmatpush.msra.mxu0 %v1276
  %1572 = vmatpush.msra.mxu0 %v1268
  %1573 = vmatpush.msra.mxu0 %v1260
  %1574 = vmatpush.msra.mxu0 %v1252
  %1575 = vmatpush.msra.mxu0 %v1244
  %1576 = vmatpush.msra.mxu0 %v1236
  %1577 = vmatpush.msra.mxu0 %v1228
  %1578 = vmatpush.msra.mxu0 %v1220
  %1579 = vmatmul.f32.gmra.mxu0 0.0
  %v1580 = vpop.f32.mrf.mxu0
  %v1581 = vadd.f32 %v1561, %v1580
  %1582 = vdwg.mxu0
  %1583 = vmatpush.msra.mxu0 %v1213
  %1584 = vmatpush.msra.mxu0 %v1205
  %1585 = vmatpush.msra.mxu0 %v1197
  %1586 = vmatpush.msra.mxu0 %v1189
  %1587 = vmatpush.msra.mxu0 %v1181
  %1588 = vmatpush.msra.mxu0 %v1173
  %1589 = vmatpush.msra.mxu0 %v1165
  %1590 = vmatpush.msra.mxu0 %v1157
  %1591 = vmatpush.msra.mxu0 %v1149
  %1592 = vmatpush.msra.mxu0 %v1141
  %1593 = vmatpush.msra.mxu0 %v1133
  %1594 = vmatpush.msra.mxu0 %v1125
  %1595 = vmatpush.msra.mxu0 %v1117
  %1596 = vmatpush.msra.mxu0 %v1109
  %1597 = vmatpush.msra.mxu0 %v1101
  %1598 = vmatpush.msra.mxu0 %v1093
  %1599 = vmatmul.f32.gmra.mxu0 0.0
  %v1600 = vpop.f32.mrf.mxu0
  %v1601 = vadd.f32 0.0, %v1600
  %1602 = vdwg.mxu0
  %1603 = vmatpush.msra.mxu0 %v1341
  %1604 = vmatpush.msra.mxu0 %v1333
  %1605 = vmatpush.msra.mxu0 %v1325
  %1606 = vmatpush.msra.mxu0 %v1317
  %1607 = vmatpush.msra.mxu0 %v1309
  %1608 = vmatpush.msra.mxu0 %v1301
  %1609 = vmatpush.msra.mxu0 %v1293
  %1610 = vmatpush.msra.mxu0 %v1285
  %1611 = vmatpush.msra.mxu0 %v1277
  %1612 = vmatpush.msra.mxu0 %v1269
  %1613 = vmatpush.msra.mxu0 %v1261
  %1614 = vmatpush.msra.mxu0 %v1253
  %1615 = vmatpush.msra.mxu0 %v1245
  %1616 = vmatpush.msra.mxu0 %v1237
  %1617 = vmatpush.msra.mxu0 %v1229
  %1618 = vmatpush.msra.mxu0 %v1221
  %1619 = vmatmul.f32.gmra.mxu0 0.0
  %v1620 = vpop.f32.mrf.mxu0
  %v1621 = vadd.f32 %v1601, %v1620
  %1622 = vdwg.mxu0
  %1623 = vmatpush.msra.mxu0 %v1214
  %1624 = vmatpush.msra.mxu0 %v1206
  %1625 = vmatpush.msra.mxu0 %v1198
  %1626 = vmatpush.msra.mxu0 %v1190
  %1627 = vmatpush.msra.mxu0 %v1182
  %1628 = vmatpush.msra.mxu0 %v1174
  %1629 = vmatpush.msra.mxu0 %v1166
  %1630 = vmatpush.msra.mxu0 %v1158
  %1631 = vmatpush.msra.mxu0 %v1150
  %1632 = vmatpush.msra.mxu0 %v1142
  %1633 = vmatpush.msra.mxu0 %v1134
  %1634 = vmatpush.msra.mxu0 %v1126
  %1635 = vmatpush.msra.mxu0 %v1118
  %1636 = vmatpush.msra.mxu0 %v1110
  %1637 = vmatpush.msra.mxu0 %v1102
  %1638 = vmatpush.msra.mxu0 %v1094
  %1639 = vmatmul.f32.gmra.mxu0 0.0
  %v1640 = vpop.f32.mrf.mxu0
  %v1641 = vadd.f32 0.0, %v1640
  %1642 = vdwg.mxu0
  %1643 = vmatpush.msra.mxu0 %v1342
  %1644 = vmatpush.msra.mxu0 %v1334
  %1645 = vmatpush.msra.mxu0 %v1326
  %1646 = vmatpush.msra.mxu0 %v1318
  %1647 = vmatpush.msra.mxu0 %v1310
  %1648 = vmatpush.msra.mxu0 %v1302
  %1649 = vmatpush.msra.mxu0 %v1294
  %1650 = vmatpush.msra.mxu0 %v1286
  %1651 = vmatpush.msra.mxu0 %v1278
  %1652 = vmatpush.msra.mxu0 %v1270
  %1653 = vmatpush.msra.mxu0 %v1262
  %1654 = vmatpush.msra.mxu0 %v1254
  %1655 = vmatpush.msra.mxu0 %v1246
  %1656 = vmatpush.msra.mxu0 %v1238
  %1657 = vmatpush.msra.mxu0 %v1230
  %1658 = vmatpush.msra.mxu0 %v1222
  %1659 = vmatmul.f32.gmra.mxu0 0.0
  %v1660 = vpop.f32.mrf.mxu0
  %v1661 = vadd.f32 %v1641, %v1660
  %1662 = vdwg.mxu0
  %v1667 = vrot.slane %v1421, 4
  %v1668 = vrot.slane %v1501, 4
  %v1669 = vsel %vm1066, %v1381, %v1667
  %v1670 = vsel %vm1066, %v1461, %v1668
  %v1671 = vrot.slane %v1669, 1
  %v1672 = vrot.slane %v1670, 1
  %v1677 = vadd.f32 %v1067, %v1669
  %v1678 = vadd.f32 %v1068, %v1670
  %v1679 = vadd.f32 %v1072, %v1671
  %v1680 = vadd.f32 %v1074, %v1672
  %v1685 = vrot.slane %v1581, 4
  %v1686 = vrot.slane %v1661, 4
  %v1687 = vsel %vm1066, %v1541, %v1685
  %v1688 = vsel %vm1066, %v1621, %v1686
  %v1689 = vrot.slane %v1687, 5
  %v1690 = vrot.slane %v1688, 5
  %v1691 = vrot.slane %v1687, 6
  %v1692 = vrot.slane %v1688, 6
  %v1697 = vadd.f32 %v1069, %v1689
  %v1698 = vadd.f32 %v1070, %v1690
  %v1699 = vadd.f32 %v1076, %v1691
  %v1700 = vadd.f32 %v1078, %v1692
  %v1701 = vxor.u32 %v1677, 2147483648
  %v1702 = vxor.u32 %v1679, 2147483648
  %v1703 = vmul.f32 %v1701, 1.442695
  %v1704 = vpow.pop %v1703
  %v1705 = vmul.f32 %v1702, 1.442695
  %v1706 = vpow.pop %v1705
  %v1707 = vadd.f32 %v1704, 1.0
  %v1708 = vadd.f32 %v1706, 1.0
  %v1709 = vrcp.pop %v1707
  %v1710 = vmul.f32 %v1707, %v1709
  %v1711 = vsub.f32 1.0, %v1710
  %v1712 = vmul.f32 %v1709, %v1711
  %v1713 = vadd.f32 %v1709, %v1712
  %vm1714 = vweird.f32 %v1707
  %vm1715 = vweird.f32 %v1709
  %vm1716 = vmor %vm1714, %vm1715
  %v1717 = vsel %vm1716, %v1709, %v1713
  %v1718 = vand.u32 2147483647, %v1707
  %vm1719 = vcmp.eq.f32.partialorder %v1718, 8.507059e+37
  %v1720 = vand.u32 %v1707, 2147483648
  %v1721 = vor.u32 1.1754944e-38, %v1720
  %v1722 = vsel %vm1719, %v1721, %v1717
  %v1723 = vmul.f32 1.0, %v1722
  %v1724 = vrcp.pop %v1708
  %v1725 = vmul.f32 %v1708, %v1724
  %v1726 = vsub.f32 1.0, %v1725
  %v1727 = vmul.f32 %v1724, %v1726
  %v1728 = vadd.f32 %v1724, %v1727
  %vm1729 = vweird.f32 %v1708
  %vm1730 = vweird.f32 %v1724
  %vm1731 = vmor %vm1729, %vm1730
  %v1732 = vsel %vm1731, %v1724, %v1728
  %v1733 = vand.u32 2147483647, %v1708
  %vm1734 = vcmp.eq.f32.partialorder %v1733, 8.507059e+37
  %v1735 = vand.u32 %v1708, 2147483648
  %v1736 = vor.u32 1.1754944e-38, %v1735
  %v1737 = vsel %vm1734, %v1736, %v1732
  %v1738 = vmul.f32 1.0, %v1737
  %v1741 = vrot.slane %v1677, 4
  %v1742 = vrot.slane %v1679, 4
  %v1745 = vxor.u32 %v1741, 2147483648
  %v1746 = vxor.u32 %v1742, 2147483648
  %v1747 = vmul.f32 %v1745, 1.442695
  %v1748 = vpow.pop %v1747
  %v1749 = vmul.f32 %v1746, 1.442695
  %v1750 = vpow.pop %v1749
  %v1751 = vadd.f32 %v1748, 1.0
  %v1752 = vadd.f32 %v1750, 1.0
  %v1753 = vrcp.pop %v1751
  %v1754 = vmul.f32 %v1751, %v1753
  %v1755 = vsub.f32 1.0, %v1754
  %v1756 = vmul.f32 %v1753, %v1755
  %v1757 = vadd.f32 %v1753, %v1756
  %vm1758 = vweird.f32 %v1751
  %vm1759 = vweird.f32 %v1753
  %vm1760 = vmor %vm1758, %vm1759
  %v1761 = vsel %vm1760, %v1753, %v1757
  %v1762 = vand.u32 2147483647, %v1751
  %vm1763 = vcmp.eq.f32.partialorder %v1762, 8.507059e+37
  %v1764 = vand.u32 %v1751, 2147483648
  %v1765 = vor.u32 1.1754944e-38, %v1764
  %v1766 = vsel %vm1763, %v1765, %v1761
  %v1767 = vmul.f32 1.0, %v1766
  %v1768 = vrcp.pop %v1752
  %v1769 = vmul.f32 %v1752, %v1768
  %v1770 = vsub.f32 1.0, %v1769
  %v1771 = vmul.f32 %v1768, %v1770
  %v1772 = vadd.f32 %v1768, %v1771
  %vm1773 = vweird.f32 %v1752
  %vm1774 = vweird.f32 %v1768
  %vm1775 = vmor %vm1773, %vm1774
  %v1776 = vsel %vm1775, %v1768, %v1772
  %v1777 = vand.u32 2147483647, %v1752
  %vm1778 = vcmp.eq.f32.partialorder %v1777, 8.507059e+37
  %v1779 = vand.u32 %v1752, 2147483648
  %v1780 = vor.u32 1.1754944e-38, %v1779
  %v1781 = vsel %vm1778, %v1780, %v1776
  %v1782 = vmul.f32 1.0, %v1781
  %v1783 = vtanh.pop %v1678
  %v1784 = vtanh.pop %v1680
  %v1787 = vrot.slane %v1678, 4
  %v1788 = vrot.slane %v1680, 4
  %v1791 = vxor.u32 %v1787, 2147483648
  %v1792 = vxor.u32 %v1788, 2147483648
  %v1793 = vmul.f32 %v1791, 1.442695
  %v1794 = vpow.pop %v1793
  %v1795 = vmul.f32 %v1792, 1.442695
  %v1796 = vpow.pop %v1795
  %v1797 = vadd.f32 %v1794, 1.0
  %v1798 = vadd.f32 %v1796, 1.0
  %v1799 = vrcp.pop %v1797
  %v1800 = vmul.f32 %v1797, %v1799
  %v1801 = vsub.f32 1.0, %v1800
  %v1802 = vmul.f32 %v1799, %v1801
  %v1803 = vadd.f32 %v1799, %v1802
  %vm1804 = vweird.f32 %v1797
  %vm1805 = vweird.f32 %v1799
  %vm1806 = vmor %vm1804, %vm1805
  %v1807 = vsel %vm1806, %v1799, %v1803
  %v1808 = vand.u32 2147483647, %v1797
  %vm1809 = vcmp.eq.f32.partialorder %v1808, 8.507059e+37
  %v1810 = vand.u32 %v1797, 2147483648
  %v1811 = vor.u32 1.1754944e-38, %v1810
  %v1812 = vsel %vm1809, %v1811, %v1807
  %v1813 = vmul.f32 1.0, %v1812
  %v1814 = vrcp.pop %v1798
  %v1815 = vmul.f32 %v1798, %v1814
  %v1816 = vsub.f32 1.0, %v1815
  %v1817 = vmul.f32 %v1814, %v1816
  %v1818 = vadd.f32 %v1814, %v1817
  %vm1819 = vweird.f32 %v1798
  %vm1820 = vweird.f32 %v1814
  %vm1821 = vmor %vm1819, %vm1820
  %v1822 = vsel %vm1821, %v1814, %v1818
  %v1823 = vand.u32 2147483647, %v1798
  %vm1824 = vcmp.eq.f32.partialorder %v1823, 8.507059e+37
  %v1825 = vand.u32 %v1798, 2147483648
  %v1826 = vor.u32 1.1754944e-38, %v1825
  %v1827 = vsel %vm1824, %v1826, %v1822
  %v1828 = vmul.f32 1.0, %v1827
  %v1829 = vmul.f32 %v1767, 0.0
  %v1830 = vmul.f32 %v1782, 0.0
  %v1831 = vmul.f32 %v1723, %v1783
  %v1832 = vmul.f32 %v1738, %v1784
  %v1833 = vadd.f32 %v1829, %v1831
  %v1834 = vadd.f32 %v1830, %v1832
  %v1835 = vtanh.pop %v1833
  %v1836 = vtanh.pop %v1834
  %v1837 = vmul.f32 %v1813, %v1835
  %v1838 = vmul.f32 %v1828, %v1836
  %v1839 = vxor.u32 %v1697, 2147483648
  %v1840 = vxor.u32 %v1699, 2147483648
  %v1841 = vmul.f32 %v1839, 1.442695
  %v1842 = vpow.pop %v1841
  %v1843 = vmul.f32 %v1840, 1.442695
  %v1844 = vpow.pop %v1843
  %v1845 = vadd.f32 %v1842, 1.0
  %v1846 = vadd.f32 %v1844, 1.0
  %v1847 = vrcp.pop %v1845
  %v1848 = vmul.f32 %v1845, %v1847
  %v1849 = vsub.f32 1.0, %v1848
  %v1850 = vmul.f32 %v1847, %v1849
  %v1851 = vadd.f32 %v1847, %v1850
  %vm1852 = vweird.f32 %v1845
  %vm1853 = vweird.f32 %v1847
  %vm1854 = vmor %vm1852, %vm1853
  %v1855 = vsel %vm1854, %v1847, %v1851
  %v1856 = vand.u32 2147483647, %v1845
  %vm1857 = vcmp.eq.f32.partialorder %v1856, 8.507059e+37
  %v1858 = vand.u32 %v1845, 2147483648
  %v1859 = vor.u32 1.1754944e-38, %v1858
  %v1860 = vsel %vm1857, %v1859, %v1855
  %v1861 = vmul.f32 1.0, %v1860
  %v1862 = vrcp.pop %v1846
  %v1863 = vmul.f32 %v1846, %v1862
  %v1864 = vsub.f32 1.0, %v1863
  %v1865 = vmul.f32 %v1862, %v1864
  %v1866 = vadd.f32 %v1862, %v1865
  %vm1867 = vweird.f32 %v1846
  %vm1868 = vweird.f32 %v1862
  %vm1869 = vmor %vm1867, %vm1868
  %v1870 = vsel %vm1869, %v1862, %v1866
  %v1871 = vand.u32 2147483647, %v1846
  %vm1872 = vcmp.eq.f32.partialorder %v1871, 8.507059e+37
  %v1873 = vand.u32 %v1846, 2147483648
  %v1874 = vor.u32 1.1754944e-38, %v1873
  %v1875 = vsel %vm1872, %v1874, %v1870
  %v1876 = vmul.f32 1.0, %v1875
  %v1879 = vrot.slane %v1697, 4
  %v1880 = vrot.slane %v1699, 4
  %v1883 = vxor.u32 %v1879, 2147483648
  %v1884 = vxor.u32 %v1880, 2147483648
  %v1885 = vmul.f32 %v1883, 1.442695
  %v1886 = vpow.pop %v1885
  %v1887 = vmul.f32 %v1884, 1.442695
  %v1888 = vpow.pop %v1887
  %v1889 = vadd.f32 %v1886, 1.0
  %v1890 = vadd.f32 %v1888, 1.0
  %v1891 = vrcp.pop %v1889
  %v1892 = vmul.f32 %v1889, %v1891
  %v1893 = vsub.f32 1.0, %v1892
  %v1894 = vmul.f32 %v1891, %v1893
  %v1895 = vadd.f32 %v1891, %v1894
  %vm1896 = vweird.f32 %v1889
  %vm1897 = vweird.f32 %v1891
  %vm1898 = vmor %vm1896, %vm1897
  %v1899 = vsel %vm1898, %v1891, %v1895
  %v1900 = vand.u32 2147483647, %v1889
  %vm1901 = vcmp.eq.f32.partialorder %v1900, 8.507059e+37
  %v1902 = vand.u32 %v1889, 2147483648
  %v1903 = vor.u32 1.1754944e-38, %v1902
  %v1904 = vsel %vm1901, %v1903, %v1899
  %v1905 = vmul.f32 1.0, %v1904
  %v1906 = vrcp.pop %v1890
  %v1907 = vmul.f32 %v1890, %v1906
  %v1908 = vsub.f32 1.0, %v1907
  %v1909 = vmul.f32 %v1906, %v1908
  %v1910 = vadd.f32 %v1906, %v1909
  %vm1911 = vweird.f32 %v1890
  %vm1912 = vweird.f32 %v1906
  %vm1913 = vmor %vm1911, %vm1912
  %v1914 = vsel %vm1913, %v1906, %v1910
  %v1915 = vand.u32 2147483647, %v1890
  %vm1916 = vcmp.eq.f32.partialorder %v1915, 8.507059e+37
  %v1917 = vand.u32 %v1890, 2147483648
  %v1918 = vor.u32 1.1754944e-38, %v1917
  %v1919 = vsel %vm1916, %v1918, %v1914
  %v1920 = vmul.f32 1.0, %v1919
  %v1921 = vtanh.pop %v1698
  %v1922 = vtanh.pop %v1700
  %v1925 = vrot.slane %v1698, 4
  %v1926 = vrot.slane %v1700, 4
  %v1929 = vxor.u32 %v1925, 2147483648
  %v1930 = vxor.u32 %v1926, 2147483648
  %v1931 = vmul.f32 %v1929, 1.442695
  %v1932 = vpow.pop %v1931
  %v1933 = vmul.f32 %v1930, 1.442695
  %v1934 = vpow.pop %v1933
  %v1935 = vadd.f32 %v1932, 1.0
  %v1936 = vadd.f32 %v1934, 1.0
  %v1937 = vrcp.pop %v1935
  %v1938 = vmul.f32 %v1935, %v1937
  %v1939 = vsub.f32 1.0, %v1938
  %v1940 = vmul.f32 %v1937, %v1939
  %v1941 = vadd.f32 %v1937, %v1940
  %vm1942 = vweird.f32 %v1935
  %vm1943 = vweird.f32 %v1937
  %vm1944 = vmor %vm1942, %vm1943
  %v1945 = vsel %vm1944, %v1937, %v1941
  %v1946 = vand.u32 2147483647, %v1935
  %vm1947 = vcmp.eq.f32.partialorder %v1946, 8.507059e+37
  %v1948 = vand.u32 %v1935, 2147483648
  %v1949 = vor.u32 1.1754944e-38, %v1948
  %v1950 = vsel %vm1947, %v1949, %v1945
  %v1951 = vmul.f32 1.0, %v1950
  %v1952 = vrcp.pop %v1936
  %v1953 = vmul.f32 %v1936, %v1952
  %v1954 = vsub.f32 1.0, %v1953
  %v1955 = vmul.f32 %v1952, %v1954
  %v1956 = vadd.f32 %v1952, %v1955
  %vm1957 = vweird.f32 %v1936
  %vm1958 = vweird.f32 %v1952
  %vm1959 = vmor %vm1957, %vm1958
  %v1960 = vsel %vm1959, %v1952, %v1956
  %v1961 = vand.u32 2147483647, %v1936
  %vm1962 = vcmp.eq.f32.partialorder %v1961, 8.507059e+37
  %v1963 = vand.u32 %v1936, 2147483648
  %v1964 = vor.u32 1.1754944e-38, %v1963
  %v1965 = vsel %vm1962, %v1964, %v1960
  %v1966 = vmul.f32 1.0, %v1965
  %v1967 = vmul.f32 %v1905, 0.0
  %v1968 = vmul.f32 %v1920, 0.0
  %v1969 = vmul.f32 %v1861, %v1921
  %v1970 = vmul.f32 %v1876, %v1922
  %v1971 = vadd.f32 %v1967, %v1969
  %v1972 = vadd.f32 %v1968, %v1970
  %v1973 = vtanh.pop %v1971
  %v1974 = vtanh.pop %v1972
  %v1975 = vmul.f32 %v1951, %v1973
  %v1976 = vmul.f32 %v1966, %v1974
  %v1979 = vperm.slane %v1837, 0
  %v1980 = vperm.slane %v1838, 0
  %vm1981 = vcmask 1041409
  %v1982 = vsel %vm1981, %v1980, %v1979
  %v1986 = vperm.slane %v1975, 3
  %v1987 = vperm.slane %v1976, 3
  %v1988 = vsel %vm1981, %v1987, %v1986
  %1990 = vmatpush.msra.mxu0 %v1207
  %1991 = vmatpush.msra.mxu0 %v1199
  %1992 = vmatpush.msra.mxu0 %v1191
  %1993 = vmatpush.msra.mxu0 %v1183
  %1994 = vmatpush.msra.mxu0 %v1175
  %1995 = vmatpush.msra.mxu0 %v1167
  %1996 = vmatpush.msra.mxu0 %v1159
  %1997 = vmatpush.msra.mxu0 %v1151
  %1998 = vmatpush.msra.mxu0 %v1143
  %1999 = vmatpush.msra.mxu0 %v1135
  %2000 = vmatpush.msra.mxu0 %v1127
  %2001 = vmatpush.msra.mxu0 %v1119
  %2002 = vmatpush.msra.mxu0 %v1111
  %2003 = vmatpush.msra.mxu0 %v1103
  %2004 = vmatpush.msra.mxu0 %v1095
  %2005 = vmatpush.msra.mxu0 %v1087
  %2006 = vmatmul.f32.gmra.mxu0 %v1982
  %v2007 = vpop.f32.mrf.mxu0
  %v2008 = vadd.f32 0.0, %v2007
  %2009 = vdwg.mxu0
  %2010 = vmatpush.msra.mxu0 %v1335
  %2011 = vmatpush.msra.mxu0 %v1327
  %2012 = vmatpush.msra.mxu0 %v1319
  %2013 = vmatpush.msra.mxu0 %v1311
  %2014 = vmatpush.msra.mxu0 %v1303
  %2015 = vmatpush.msra.mxu0 %v1295
  %2016 = vmatpush.msra.mxu0 %v1287
  %2017 = vmatpush.msra.mxu0 %v1279
  %2018 = vmatpush.msra.mxu0 %v1271
  %2019 = vmatpush.msra.mxu0 %v1263
  %2020 = vmatpush.msra.mxu0 %v1255
  %2021 = vmatpush.msra.mxu0 %v1247
  %2022 = vmatpush.msra.mxu0 %v1239
  %2023 = vmatpush.msra.mxu0 %v1231
  %2024 = vmatpush.msra.mxu0 %v1223
  %2025 = vmatpush.msra.mxu0 %v1215
  %2026 = vmatmul.f32.gmra.mxu0 %v1988
  %v2027 = vpop.f32.mrf.mxu0
  %v2028 = vadd.f32 %v2008, %v2027
  %2029 = vdwg.mxu0
  %2030 = vmatpush.msra.mxu0 %v1208
  %2031 = vmatpush.msra.mxu0 %v1200
  %2032 = vmatpush.msra.mxu0 %v1192
  %2033 = vmatpush.msra.mxu0 %v1184
  %2034 = vmatpush.msra.mxu0 %v1176
  %2035 = vmatpush.msra.mxu0 %v1168
  %2036 = vmatpush.msra.mxu0 %v1160
  %2037 = vmatpush.msra.mxu0 %v1152
  %2038 = vmatpush.msra.mxu0 %v1144
  %2039 = vmatpush.msra.mxu0 %v1136
  %2040 = vmatpush.msra.mxu0 %v1128
  %2041 = vmatpush.msra.mxu0 %v1120
  %2042 = vmatpush.msra.mxu0 %v1112
  %2043 = vmatpush.msra.mxu0 %v1104
  %2044 = vmatpush.msra.mxu0 %v1096
  %2045 = vmatpush.msra.mxu0 %v1088
  %2046 = vmatmul.f32.gmra.mxu0 %v1982
  %v2047 = vpop.f32.mrf.mxu0
  %v2048 = vadd.f32 0.0, %v2047
  %2049 = vdwg.mxu0
  %2050 = vmatpush.msra.mxu0 %v1336
  %2051 = vmatpush.msra.mxu0 %v1328
  %2052 = vmatpush.msra.mxu0 %v1320
  %2053 = vmatpush.msra.mxu0 %v1312
  %2054 = vmatpush.msra.mxu0 %v1304
  %2055 = vmatpush.msra.mxu0 %v1296
  %2056 = vmatpush.msra.mxu0 %v1288
  %2057 = vmatpush.msra.mxu0 %v1280
  %2058 = vmatpush.msra.mxu0 %v1272
  %2059 = vmatpush.msra.mxu0 %v1264
  %2060 = vmatpush.msra.mxu0 %v1256
  %2061 = vmatpush.msra.mxu0 %v1248
  %2062 = vmatpush.msra.mxu0 %v1240
  %2063 = vmatpush.msra.mxu0 %v1232
  %2064 = vmatpush.msra.mxu0 %v1224
  %2065 = vmatpush.msra.mxu0 %v1216
  %2066 = vmatmul.f32.gmra.mxu0 %v1988
  %v2067 = vpop.f32.mrf.mxu0
  %v2068 = vadd.f32 %v2048, %v2067
  %2069 = vdwg.mxu0
  %2070 = vmatpush.msra.mxu0 %v1209
  %2071 = vmatpush.msra.mxu0 %v1201
  %2072 = vmatpush.msra.mxu0 %v1193
  %2073 = vmatpush.msra.mxu0 %v1185
  %2074 = vmatpush.msra.mxu0 %v1177
  %2075 = vmatpush.msra.mxu0 %v1169
  %2076 = vmatpush.msra.mxu0 %v1161
  %2077 = vmatpush.msra.mxu0 %v1153
  %2078 = vmatpush.msra.mxu0 %v1145
  %2079 = vmatpush.msra.mxu0 %v1137
  %2080 = vmatpush.msra.mxu0 %v1129
  %2081 = vmatpush.msra.mxu0 %v1121
  %2082 = vmatpush.msra.mxu0 %v1113
  %2083 = vmatpush.msra.mxu0 %v1105
  %2084 = vmatpush.msra.mxu0 %v1097
  %2085 = vmatpush.msra.mxu0 %v1089
  %2086 = vmatmul.f32.gmra.mxu0 %v1982
  %v2087 = vpop.f32.mrf.mxu0
  %v2088 = vadd.f32 0.0, %v2087
  %2089 = vdwg.mxu0
  %2090 = vmatpush.msra.mxu0 %v1337
  %2091 = vmatpush.msra.mxu0 %v1329
  %2092 = vmatpush.msra.mxu0 %v1321
  %2093 = vmatpush.msra.mxu0 %v1313
  %2094 = vmatpush.msra.mxu0 %v1305
  %2095 = vmatpush.msra.mxu0 %v1297
  %2096 = vmatpush.msra.mxu0 %v1289
  %2097 = vmatpush.msra.mxu0 %v1281
  %2098 = vmatpush.msra.mxu0 %v1273
  %2099 = vmatpush.msra.mxu0 %v1265
  %2100 = vmatpush.msra.mxu0 %v1257
  %2101 = vmatpush.msra.mxu0 %v1249
  %2102 = vmatpush.msra.mxu0 %v1241
  %2103 = vmatpush.msra.mxu0 %v1233
  %2104 = vmatpush.msra.mxu0 %v1225
  %2105 = vmatpush.msra.mxu0 %v1217
  %2106 = vmatmul.f32.gmra.mxu0 %v1988
  %v2107 = vpop.f32.mrf.mxu0
  %v2108 = vadd.f32 %v2088, %v2107
  %2109 = vdwg.mxu0
  %2110 = vmatpush.msra.mxu0 %v1210
  %2111 = vmatpush.msra.mxu0 %v1202
  %2112 = vmatpush.msra.mxu0 %v1194
  %2113 = vmatpush.msra.mxu0 %v1186
  %2114 = vmatpush.msra.mxu0 %v1178
  %2115 = vmatpush.msra.mxu0 %v1170
  %2116 = vmatpush.msra.mxu0 %v1162
  %2117 = vmatpush.msra.mxu0 %v1154
  %2118 = vmatpush.msra.mxu0 %v1146
  %2119 = vmatpush.msra.mxu0 %v1138
  %2120 = vmatpush.msra.mxu0 %v1130
  %2121 = vmatpush.msra.mxu0 %v1122
  %2122 = vmatpush.msra.mxu0 %v1114
  %2123 = vmatpush.msra.mxu0 %v1106
  %2124 = vmatpush.msra.mxu0 %v1098
  %2125 = vmatpush.msra.mxu0 %v1090
  %2126 = vmatmul.f32.gmra.mxu0 %v1982
  %v2127 = vpop.f32.mrf.mxu0
  %v2128 = vadd.f32 0.0, %v2127
  %2129 = vdwg.mxu0
  %2130 = vmatpush.msra.mxu0 %v1338
  %2131 = vmatpush.msra.mxu0 %v1330
  %2132 = vmatpush.msra.mxu0 %v1322
  %2133 = vmatpush.msra.mxu0 %v1314
  %2134 = vmatpush.msra.mxu0 %v1306
  %2135 = vmatpush.msra.mxu0 %v1298
  %2136 = vmatpush.msra.mxu0 %v1290
  %2137 = vmatpush.msra.mxu0 %v1282
  %2138 = vmatpush.msra.mxu0 %v1274
  %2139 = vmatpush.msra.mxu0 %v1266
  %2140 = vmatpush.msra.mxu0 %v1258
  %2141 = vmatpush.msra.mxu0 %v1250
  %2142 = vmatpush.msra.mxu0 %v1242
  %2143 = vmatpush.msra.mxu0 %v1234
  %2144 = vmatpush.msra.mxu0 %v1226
  %2145 = vmatpush.msra.mxu0 %v1218
  %2146 = vmatmul.f32.gmra.mxu0 %v1988
  %v2147 = vpop.f32.mrf.mxu0
  %v2148 = vadd.f32 %v2128, %v2147
  %2149 = vdwg.mxu0
  %2150 = vmatpush.msra.mxu0 %v1211
  %2151 = vmatpush.msra.mxu0 %v1203
  %2152 = vmatpush.msra.mxu0 %v1195
  %2153 = vmatpush.msra.mxu0 %v1187
  %2154 = vmatpush.msra.mxu0 %v1179
  %2155 = vmatpush.msra.mxu0 %v1171
  %2156 = vmatpush.msra.mxu0 %v1163
  %2157 = vmatpush.msra.mxu0 %v1155
  %2158 = vmatpush.msra.mxu0 %v1147
  %2159 = vmatpush.msra.mxu0 %v1139
  %2160 = vmatpush.msra.mxu0 %v1131
  %2161 = vmatpush.msra.mxu0 %v1123
  %2162 = vmatpush.msra.mxu0 %v1115
  %2163 = vmatpush.msra.mxu0 %v1107
  %2164 = vmatpush.msra.mxu0 %v1099
  %2165 = vmatpush.msra.mxu0 %v1091
  %2166 = vmatmul.f32.gmra.mxu0 %v1982
  %v2167 = vpop.f32.mrf.mxu0
  %v2168 = vadd.f32 0.0, %v2167
  %2169 = vdwg.mxu0
  %2170 = vmatpush.msra.mxu0 %v1339
  %2171 = vmatpush.msra.mxu0 %v1331
  %2172 = vmatpush.msra.mxu0 %v1323
  %2173 = vmatpush.msra.mxu0 %v1315
  %2174 = vmatpush.msra.mxu0 %v1307
  %2175 = vmatpush.msra.mxu0 %v1299
  %2176 = vmatpush.msra.mxu0 %v1291
  %2177 = vmatpush.msra.mxu0 %v1283
  %2178 = vmatpush.msra.mxu0 %v1275
  %2179 = vmatpush.msra.mxu0 %v1267
  %2180 = vmatpush.msra.mxu0 %v1259
  %2181 = vmatpush.msra.mxu0 %v1251
  %2182 = vmatpush.msra.mxu0 %v1243
  %2183 = vmatpush.msra.mxu0 %v1235
  %2184 = vmatpush.msra.mxu0 %v1227
  %2185 = vmatpush.msra.mxu0 %v1219
  %2186 = vmatmul.f32.gmra.mxu0 %v1988
  %v2187 = vpop.f32.mrf.mxu0
  %v2188 = vadd.f32 %v2168, %v2187
  %2189 = vdwg.mxu0
  %2190 = vmatpush.msra.mxu0 %v1212
  %2191 = vmatpush.msra.mxu0 %v1204
  %2192 = vmatpush.msra.mxu0 %v1196
  %2193 = vmatpush.msra.mxu0 %v1188
  %2194 = vmatpush.msra.mxu0 %v1180
  %2195 = vmatpush.msra.mxu0 %v1172
  %2196 = vmatpush.msra.mxu0 %v1164
  %2197 = vmatpush.msra.mxu0 %v1156
  %2198 = vmatpush.msra.mxu0 %v1148
  %2199 = vmatpush.msra.mxu0 %v1140
  %2200 = vmatpush.msra.mxu0 %v1132
  %2201 = vmatpush.msra.mxu0 %v1124
  %2202 = vmatpush.msra.mxu0 %v1116
  %2203 = vmatpush.msra.mxu0 %v1108
  %2204 = vmatpush.msra.mxu0 %v1100
  %2205 = vmatpush.msra.mxu0 %v1092
  %2206 = vmatmul.f32.gmra.mxu0 %v1982
  %v2207 = vpop.f32.mrf.mxu0
  %v2208 = vadd.f32 0.0, %v2207
  %2209 = vdwg.mxu0
  %2210 = vmatpush.msra.mxu0 %v1340
  %2211 = vmatpush.msra.mxu0 %v1332
  %2212 = vmatpush.msra.mxu0 %v1324
  %2213 = vmatpush.msra.mxu0 %v1316
  %2214 = vmatpush.msra.mxu0 %v1308
  %2215 = vmatpush.msra.mxu0 %v1300
  %2216 = vmatpush.msra.mxu0 %v1292
  %2217 = vmatpush.msra.mxu0 %v1284
  %2218 = vmatpush.msra.mxu0 %v1276
  %2219 = vmatpush.msra.mxu0 %v1268
  %2220 = vmatpush.msra.mxu0 %v1260
  %2221 = vmatpush.msra.mxu0 %v1252
  %2222 = vmatpush.msra.mxu0 %v1244
  %2223 = vmatpush.msra.mxu0 %v1236
  %2224 = vmatpush.msra.mxu0 %v1228
  %2225 = vmatpush.msra.mxu0 %v1220
  %2226 = vmatmul.f32.gmra.mxu0 %v1988
  %v2227 = vpop.f32.mrf.mxu0
  %v2228 = vadd.f32 %v2208, %v2227
  %2229 = vdwg.mxu0
  %2230 = vmatpush.msra.mxu0 %v1213
  %2231 = vmatpush.msra.mxu0 %v1205
  %2232 = vmatpush.msra.mxu0 %v1197
  %2233 = vmatpush.msra.mxu0 %v1189
  %2234 = vmatpush.msra.mxu0 %v1181
  %2235 = vmatpush.msra.mxu0 %v1173
  %2236 = vmatpush.msra.mxu0 %v1165
  %2237 = vmatpush.msra.mxu0 %v1157
  %2238 = vmatpush.msra.mxu0 %v1149
  %2239 = vmatpush.msra.mxu0 %v1141
  %2240 = vmatpush.msra.mxu0 %v1133
  %2241 = vmatpush.msra.mxu0 %v1125
  %2242 = vmatpush.msra.mxu0 %v1117
  %2243 = vmatpush.msra.mxu0 %v1109
  %2244 = vmatpush.msra.mxu0 %v1101
  %2245 = vmatpush.msra.mxu0 %v1093
  %2246 = vmatmul.f32.gmra.mxu0 %v1982
  %v2247 = vpop.f32.mrf.mxu0
  %v2248 = vadd.f32 0.0, %v2247
  %2249 = vdwg.mxu0
  %2250 = vmatpush.msra.mxu0 %v1341
  %2251 = vmatpush.msra.mxu0 %v1333
  %2252 = vmatpush.msra.mxu0 %v1325
  %2253 = vmatpush.msra.mxu0 %v1317
  %2254 = vmatpush.msra.mxu0 %v1309
  %2255 = vmatpush.msra.mxu0 %v1301
  %2256 = vmatpush.msra.mxu0 %v1293
  %2257 = vmatpush.msra.mxu0 %v1285
  %2258 = vmatpush.msra.mxu0 %v1277
  %2259 = vmatpush.msra.mxu0 %v1269
  %2260 = vmatpush.msra.mxu0 %v1261
  %2261 = vmatpush.msra.mxu0 %v1253
  %2262 = vmatpush.msra.mxu0 %v1245
  %2263 = vmatpush.msra.mxu0 %v1237
  %2264 = vmatpush.msra.mxu0 %v1229
  %2265 = vmatpush.msra.mxu0 %v1221
  %2266 = vmatmul.f32.gmra.mxu0 %v1988
  %v2267 = vpop.f32.mrf.mxu0
  %v2268 = vadd.f32 %v2248, %v2267
  %2269 = vdwg.mxu0
  %2270 = vmatpush.msra.mxu0 %v1214
  %2271 = vmatpush.msra.mxu0 %v1206
  %2272 = vmatpush.msra.mxu0 %v1198
  %2273 = vmatpush.msra.mxu0 %v1190
  %2274 = vmatpush.msra.mxu0 %v1182
  %2275 = vmatpush.msra.mxu0 %v1174
  %2276 = vmatpush.msra.mxu0 %v1166
  %2277 = vmatpush.msra.mxu0 %v1158
  %2278 = vmatpush.msra.mxu0 %v1150
  %2279 = vmatpush.msra.mxu0 %v1142
  %2280 = vmatpush.msra.mxu0 %v1134
  %2281 = vmatpush.msra.mxu0 %v1126
  %2282 = vmatpush.msra.mxu0 %v1118
  %2283 = vmatpush.msra.mxu0 %v1110
  %2284 = vmatpush.msra.mxu0 %v1102
  %2285 = vmatpush.msra.mxu0 %v1094
  %2286 = vmatmul.f32.gmra.mxu0 %v1982
  %v2287 = vpop.f32.mrf.mxu0
  %v2288 = vadd.f32 0.0, %v2287
  %2289 = vdwg.mxu0
  %2290 = vmatpush.msra.mxu0 %v1342
  %2291 = vmatpush.msra.mxu0 %v1334
  %2292 = vmatpush.msra.mxu0 %v1326
  %2293 = vmatpush.msra.mxu0 %v1318
  %2294 = vmatpush.msra.mxu0 %v1310
  %2295 = vmatpush.msra.mxu0 %v1302
  %2296 = vmatpush.msra.mxu0 %v1294
  %2297 = vmatpush.msra.mxu0 %v1286
  %2298 = vmatpush.msra.mxu0 %v1278
  %2299 = vmatpush.msra.mxu0 %v1270
  %2300 = vmatpush.msra.mxu0 %v1262
  %2301 = vmatpush.msra.mxu0 %v1254
  %2302 = vmatpush.msra.mxu0 %v1246
  %2303 = vmatpush.msra.mxu0 %v1238
  %2304 = vmatpush.msra.mxu0 %v1230
  %2305 = vmatpush.msra.mxu0 %v1222
  %2306 = vmatmul.f32.gmra.mxu0 %v1988
  %v2307 = vpop.f32.mrf.mxu0
  %v2308 = vadd.f32 %v2288, %v2307
  %2309 = vdwg.mxu0
  %v2314 = vrot.slane %v2068, 4
  %v2315 = vrot.slane %v2148, 4
  %v2316 = vsel %vm1066, %v2028, %v2314
  %v2317 = vsel %vm1066, %v2108, %v2315
  %v2318 = vrot.slane %v2316, 7
  %v2319 = vrot.slane %v2317, 7
  %v2324 = vadd.f32 %v1067, %v2318
  %v2325 = vadd.f32 %v1068, %v2319
  %v2326 = vadd.f32 %v1072, %v2316
  %v2327 = vadd.f32 %v1074, %v2317
  %v2332 = vrot.slane %v2228, 4
  %v2333 = vrot.slane %v2308, 4
  %v2334 = vsel %vm1066, %v2188, %v2332
  %v2335 = vsel %vm1066, %v2268, %v2333
  %v2336 = vrot.slane %v2334, 6
  %v2337 = vrot.slane %v2335, 6
  %v2338 = vrot.slane %v2334, 7
  %v2339 = vrot.slane %v2335, 7
  %v2344 = vadd.f32 %v1069, %v2336
  %v2345 = vadd.f32 %v1070, %v2337
  %v2346 = vadd.f32 %v1076, %v2338
  %v2347 = vadd.f32 %v1078, %v2339
  %v2348 = vxor.u32 %v2324, 2147483648
  %v2349 = vxor.u32 %v2326, 2147483648
  %v2350 = vmul.f32 %v2348, 1.442695
  %v2351 = vpow.pop %v2350
  %v2352 = vmul.f32 %v2349, 1.442695
  %v2353 = vpow.pop %v2352
  %v2354 = vadd.f32 %v2351, 1.0
  %v2355 = vadd.f32 %v2353, 1.0
  %v2356 = vrcp.pop %v2354
  %v2357 = vmul.f32 %v2354, %v2356
  %v2358 = vsub.f32 1.0, %v2357
  %v2359 = vmul.f32 %v2356, %v2358
  %v2360 = vadd.f32 %v2356, %v2359
  %vm2361 = vweird.f32 %v2354
  %vm2362 = vweird.f32 %v2356
  %vm2363 = vmor %vm2361, %vm2362
  %v2364 = vsel %vm2363, %v2356, %v2360
  %v2365 = vand.u32 2147483647, %v2354
  %vm2366 = vcmp.eq.f32.partialorder %v2365, 8.507059e+37
  %v2367 = vand.u32 %v2354, 2147483648
  %v2368 = vor.u32 1.1754944e-38, %v2367
  %v2369 = vsel %vm2366, %v2368, %v2364
  %v2370 = vmul.f32 1.0, %v2369
  %v2371 = vrcp.pop %v2355
  %v2372 = vmul.f32 %v2355, %v2371
  %v2373 = vsub.f32 1.0, %v2372
  %v2374 = vmul.f32 %v2371, %v2373
  %v2375 = vadd.f32 %v2371, %v2374
  %vm2376 = vweird.f32 %v2355
  %vm2377 = vweird.f32 %v2371
  %vm2378 = vmor %vm2376, %vm2377
  %v2379 = vsel %vm2378, %v2371, %v2375
  %v2380 = vand.u32 2147483647, %v2355
  %vm2381 = vcmp.eq.f32.partialorder %v2380, 8.507059e+37
  %v2382 = vand.u32 %v2355, 2147483648
  %v2383 = vor.u32 1.1754944e-38, %v2382
  %v2384 = vsel %vm2381, %v2383, %v2379
  %v2385 = vmul.f32 1.0, %v2384
  %v2388 = vrot.slane %v2324, 4
  %v2389 = vrot.slane %v2326, 4
  %v2392 = vxor.u32 %v2388, 2147483648
  %v2393 = vxor.u32 %v2389, 2147483648
  %v2394 = vmul.f32 %v2392, 1.442695
  %v2395 = vpow.pop %v2394
  %v2396 = vmul.f32 %v2393, 1.442695
  %v2397 = vpow.pop %v2396
  %v2398 = vadd.f32 %v2395, 1.0
  %v2399 = vadd.f32 %v2397, 1.0
  %v2400 = vrcp.pop %v2398
  %v2401 = vmul.f32 %v2398, %v2400
  %v2402 = vsub.f32 1.0, %v2401
  %v2403 = vmul.f32 %v2400, %v2402
  %v2404 = vadd.f32 %v2400, %v2403
  %vm2405 = vweird.f32 %v2398
  %vm2406 = vweird.f32 %v2400
  %vm2407 = vmor %vm2405, %vm2406
  %v2408 = vsel %vm2407, %v2400, %v2404
  %v2409 = vand.u32 2147483647, %v2398
  %vm2410 = vcmp.eq.f32.partialorder %v2409, 8.507059e+37
  %v2411 = vand.u32 %v2398, 2147483648
  %v2412 = vor.u32 1.1754944e-38, %v2411
  %v2413 = vsel %vm2410, %v2412, %v2408
  %v2414 = vmul.f32 1.0, %v2413
  %v2415 = vrcp.pop %v2399
  %v2416 = vmul.f32 %v2399, %v2415
  %v2417 = vsub.f32 1.0, %v2416
  %v2418 = vmul.f32 %v2415, %v2417
  %v2419 = vadd.f32 %v2415, %v2418
  %vm2420 = vweird.f32 %v2399
  %vm2421 = vweird.f32 %v2415
  %vm2422 = vmor %vm2420, %vm2421
  %v2423 = vsel %vm2422, %v2415, %v2419
  %v2424 = vand.u32 2147483647, %v2399
  %vm2425 = vcmp.eq.f32.partialorder %v2424, 8.507059e+37
  %v2426 = vand.u32 %v2399, 2147483648
  %v2427 = vor.u32 1.1754944e-38, %v2426
  %v2428 = vsel %vm2425, %v2427, %v2423
  %v2429 = vmul.f32 1.0, %v2428
  %v2430 = vtanh.pop %v2325
  %v2431 = vtanh.pop %v2327
  %v2434 = vrot.slane %v2325, 4
  %v2435 = vrot.slane %v2327, 4
  %v2438 = vxor.u32 %v2434, 2147483648
  %v2439 = vxor.u32 %v2435, 2147483648
  %v2440 = vmul.f32 %v2438, 1.442695
  %v2441 = vpow.pop %v2440
  %v2442 = vmul.f32 %v2439, 1.442695
  %v2443 = vpow.pop %v2442
  %v2444 = vadd.f32 %v2441, 1.0
  %v2445 = vadd.f32 %v2443, 1.0
  %v2446 = vrcp.pop %v2444
  %v2447 = vmul.f32 %v2444, %v2446
  %v2448 = vsub.f32 1.0, %v2447
  %v2449 = vmul.f32 %v2446, %v2448
  %v2450 = vadd.f32 %v2446, %v2449
  %vm2451 = vweird.f32 %v2444
  %vm2452 = vweird.f32 %v2446
  %vm2453 = vmor %vm2451, %vm2452
  %v2454 = vsel %vm2453, %v2446, %v2450
  %v2455 = vand.u32 2147483647, %v2444
  %vm2456 = vcmp.eq.f32.partialorder %v2455, 8.507059e+37
  %v2457 = vand.u32 %v2444, 2147483648
  %v2458 = vor.u32 1.1754944e-38, %v2457
  %v2459 = vsel %vm2456, %v2458, %v2454
  %v2460 = vmul.f32 1.0, %v2459
  %v2461 = vrcp.pop %v2445
  %v2462 = vmul.f32 %v2445, %v2461
  %v2463 = vsub.f32 1.0, %v2462
  %v2464 = vmul.f32 %v2461, %v2463
  %v2465 = vadd.f32 %v2461, %v2464
  %vm2466 = vweird.f32 %v2445
  %vm2467 = vweird.f32 %v2461
  %vm2468 = vmor %vm2466, %vm2467
  %v2469 = vsel %vm2468, %v2461, %v2465
  %v2470 = vand.u32 2147483647, %v2445
  %vm2471 = vcmp.eq.f32.partialorder %v2470, 8.507059e+37
  %v2472 = vand.u32 %v2445, 2147483648
  %v2473 = vor.u32 1.1754944e-38, %v2472
  %v2474 = vsel %vm2471, %v2473, %v2469
  %v2475 = vmul.f32 1.0, %v2474
  %v2478 = vrot.slane %v1833, 7
  %v2479 = vrot.slane %v1834, 7
  %v2482 = vmul.f32 %v2414, %v2478
  %v2483 = vmul.f32 %v2429, %v2479
  %v2484 = vmul.f32 %v2370, %v2430
  %v2485 = vmul.f32 %v2385, %v2431
  %v2486 = vadd.f32 %v2482, %v2484
  %v2487 = vadd.f32 %v2483, %v2485
  %v2488 = vtanh.pop %v2486
  %v2489 = vtanh.pop %v2487
  %v2490 = vmul.f32 %v2460, %v2488
  %v2491 = vmul.f32 %v2475, %v2489
  %v2492 = vxor.u32 %v2344, 2147483648
  %v2493 = vxor.u32 %v2346, 2147483648
  %v2494 = vmul.f32 %v2492, 1.442695
  %v2495 = vpow.pop %v2494
  %v2496 = vmul.f32 %v2493, 1.442695
  %v2497 = vpow.pop %v2496
  %v2498 = vadd.f32 %v2495, 1.0
  %v2499 = vadd.f32 %v2497, 1.0
  %v2500 = vrcp.pop %v2498
  %v2501 = vmul.f32 %v2498, %v2500
  %v2502 = vsub.f32 1.0, %v2501
  %v2503 = vmul.f32 %v2500, %v2502
  %v2504 = vadd.f32 %v2500, %v2503
  %vm2505 = vweird.f32 %v2498
  %vm2506 = vweird.f32 %v2500
  %vm2507 = vmor %vm2505, %vm2506
  %v2508 = vsel %vm2507, %v2500, %v2504
  %v2509 = vand.u32 2147483647, %v2498
  %vm2510 = vcmp.eq.f32.partialorder %v2509, 8.507059e+37
  %v2511 = vand.u32 %v2498, 2147483648
  %v2512 = vor.u32 1.1754944e-38, %v2511
  %v2513 = vsel %vm2510, %v2512, %v2508
  %v2514 = vmul.f32 1.0, %v2513
  %v2515 = vrcp.pop %v2499
  %v2516 = vmul.f32 %v2499, %v2515
  %v2517 = vsub.f32 1.0, %v2516
  %v2518 = vmul.f32 %v2515, %v2517
  %v2519 = vadd.f32 %v2515, %v2518
  %vm2520 = vweird.f32 %v2499
  %vm2521 = vweird.f32 %v2515
  %vm2522 = vmor %vm2520, %vm2521
  %v2523 = vsel %vm2522, %v2515, %v2519
  %v2524 = vand.u32 2147483647, %v2499
  %vm2525 = vcmp.eq.f32.partialorder %v2524, 8.507059e+37
  %v2526 = vand.u32 %v2499, 2147483648
  %v2527 = vor.u32 1.1754944e-38, %v2526
  %v2528 = vsel %vm2525, %v2527, %v2523
  %v2529 = vmul.f32 1.0, %v2528
  %v2532 = vrot.slane %v2344, 4
  %v2533 = vrot.slane %v2346, 4
  %v2536 = vxor.u32 %v2532, 2147483648
  %v2537 = vxor.u32 %v2533, 2147483648
  %v2538 = vmul.f32 %v2536, 1.442695
  %v2539 = vpow.pop %v2538
  %v2540 = vmul.f32 %v2537, 1.442695
  %v2541 = vpow.pop %v2540
  %v2542 = vadd.f32 %v2539, 1.0
  %v2543 = vadd.f32 %v2541, 1.0
  %v2544 = vrcp.pop %v2542
  %v2545 = vmul.f32 %v2542, %v2544
  %v2546 = vsub.f32 1.0, %v2545
  %v2547 = vmul.f32 %v2544, %v2546
  %v2548 = vadd.f32 %v2544, %v2547
  %vm2549 = vweird.f32 %v2542
  %vm2550 = vweird.f32 %v2544
  %vm2551 = vmor %vm2549, %vm2550
  %v2552 = vsel %vm2551, %v2544, %v2548
  %v2553 = vand.u32 2147483647, %v2542
  %vm2554 = vcmp.eq.f32.partialorder %v2553, 8.507059e+37
  %v2555 = vand.u32 %v2542, 2147483648
  %v2556 = vor.u32 1.1754944e-38, %v2555
  %v2557 = vsel %vm2554, %v2556, %v2552
  %v2558 = vmul.f32 1.0, %v2557
  %v2559 = vrcp.pop %v2543
  %v2560 = vmul.f32 %v2543, %v2559
  %v2561 = vsub.f32 1.0, %v2560
  %v2562 = vmul.f32 %v2559, %v2561
  %v2563 = vadd.f32 %v2559, %v2562
  %vm2564 = vweird.f32 %v2543
  %vm2565 = vweird.f32 %v2559
  %vm2566 = vmor %vm2564, %vm2565
  %v2567 = vsel %vm2566, %v2559, %v2563
  %v2568 = vand.u32 2147483647, %v2543
  %vm2569 = vcmp.eq.f32.partialorder %v2568, 8.507059e+37
  %v2570 = vand.u32 %v2543, 2147483648
  %v2571 = vor.u32 1.1754944e-38, %v2570
  %v2572 = vsel %vm2569, %v2571, %v2567
  %v2573 = vmul.f32 1.0, %v2572
  %v2574 = vtanh.pop %v2345
  %v2575 = vtanh.pop %v2347
  %v2578 = vrot.slane %v2345, 4
  %v2579 = vrot.slane %v2347, 4
  %v2582 = vxor.u32 %v2578, 2147483648
  %v2583 = vxor.u32 %v2579, 2147483648
  %v2584 = vmul.f32 %v2582, 1.442695
  %v2585 = vpow.pop %v2584
  %v2586 = vmul.f32 %v2583, 1.442695
  %v2587 = vpow.pop %v2586
  %v2588 = vadd.f32 %v2585, 1.0
  %v2589 = vadd.f32 %v2587, 1.0
  %v2590 = vrcp.pop %v2588
  %v2591 = vmul.f32 %v2588, %v2590
  %v2592 = vsub.f32 1.0, %v2591
  %v2593 = vmul.f32 %v2590, %v2592
  %v2594 = vadd.f32 %v2590, %v2593
  %vm2595 = vweird.f32 %v2588
  %vm2596 = vweird.f32 %v2590
  %vm2597 = vmor %vm2595, %vm2596
  %v2598 = vsel %vm2597, %v2590, %v2594
  %v2599 = vand.u32 2147483647, %v2588
  %vm2600 = vcmp.eq.f32.partialorder %v2599, 8.507059e+37
  %v2601 = vand.u32 %v2588, 2147483648
  %v2602 = vor.u32 1.1754944e-38, %v2601
  %v2603 = vsel %vm2600, %v2602, %v2598
  %v2604 = vmul.f32 1.0, %v2603
  %v2605 = vrcp.pop %v2589
  %v2606 = vmul.f32 %v2589, %v2605
  %v2607 = vsub.f32 1.0, %v2606
  %v2608 = vmul.f32 %v2605, %v2607
  %v2609 = vadd.f32 %v2605, %v2608
  %vm2610 = vweird.f32 %v2589
  %vm2611 = vweird.f32 %v2605
  %vm2612 = vmor %vm2610, %vm2611
  %v2613 = vsel %vm2612, %v2605, %v2609
  %v2614 = vand.u32 2147483647, %v2589
  %vm2615 = vcmp.eq.f32.partialorder %v2614, 8.507059e+37
  %v2616 = vand.u32 %v2589, 2147483648
  %v2617 = vor.u32 1.1754944e-38, %v2616
  %v2618 = vsel %vm2615, %v2617, %v2613
  %v2619 = vmul.f32 1.0, %v2618
  %v2622 = vrot.slane %v1971, 5
  %v2623 = vrot.slane %v2622, 4
  %v2624 = vrot.slane %v1972, 5
  %v2625 = vrot.slane %v2624, 4
  %v2628 = vmul.f32 %v2558, %v2623
  %v2629 = vmul.f32 %v2573, %v2625
  %v2630 = vmul.f32 %v2514, %v2574
  %v2631 = vmul.f32 %v2529, %v2575
  %v2632 = vadd.f32 %v2628, %v2630
  %v2633 = vadd.f32 %v2629, %v2631
  %v2634 = vtanh.pop %v2632
  %v2635 = vtanh.pop %v2633
  %v2636 = vmul.f32 %v2604, %v2634
  %v2637 = vmul.f32 %v2619, %v2635
  %v2640 = vperm.slane %v2490, 1
  %v2641 = vperm.slane %v2491, 1
  %vm2642 = vcmask 1042434
  %v2643 = vsel %vm2642, %v2641, %v2640
  %v2646 = vperm.slane %v2636, 2
  %v2647 = vperm.slane %v2637, 2
  %v2648 = vsel %vm2642, %v2647, %v2646
  %v2649 = vrot.slane %v2643, 1
  %v2650 = vrot.slane %v2648, 1
  %2653 = vmatpush.msra.mxu0 %v1207
  %2654 = vmatpush.msra.mxu0 %v1199
  %2655 = vmatpush.msra.mxu0 %v1191
  %2656 = vmatpush.msra.mxu0 %v1183
  %2657 = vmatpush.msra.mxu0 %v1175
  %2658 = vmatpush.msra.mxu0 %v1167
  %2659 = vmatpush.msra.mxu0 %v1159
  %2660 = vmatpush.msra.mxu0 %v1151
  %2661 = vmatpush.msra.mxu0 %v1143
  %2662 = vmatpush.msra.mxu0 %v1135
  %2663 = vmatpush.msra.mxu0 %v1127
  %2664 = vmatpush.msra.mxu0 %v1119
  %2665 = vmatpush.msra.mxu0 %v1111
  %2666 = vmatpush.msra.mxu0 %v1103
  %2667 = vmatpush.msra.mxu0 %v1095
  %2668 = vmatpush.msra.mxu0 %v1087
  %2669 = vmatmul.f32.gmra.mxu0 %v2649
  %v2670 = vpop.f32.mrf.mxu0
  %v2671 = vadd.f32 0.0, %v2670
  %2672 = vdwg.mxu0
  %2673 = vmatpush.msra.mxu0 %v1335
  %2674 = vmatpush.msra.mxu0 %v1327
  %2675 = vmatpush.msra.mxu0 %v1319
  %2676 = vmatpush.msra.mxu0 %v1311
  %2677 = vmatpush.msra.mxu0 %v1303
  %2678 = vmatpush.msra.mxu0 %v1295
  %2679 = vmatpush.msra.mxu0 %v1287
  %2680 = vmatpush.msra.mxu0 %v1279
  %2681 = vmatpush.msra.mxu0 %v1271
  %2682 = vmatpush.msra.mxu0 %v1263
  %2683 = vmatpush.msra.mxu0 %v1255
  %2684 = vmatpush.msra.mxu0 %v1247
  %2685 = vmatpush.msra.mxu0 %v1239
  %2686 = vmatpush.msra.mxu0 %v1231
  %2687 = vmatpush.msra.mxu0 %v1223
  %2688 = vmatpush.msra.mxu0 %v1215
  %2689 = vmatmul.f32.gmra.mxu0 %v2650
  %v2690 = vpop.f32.mrf.mxu0
  %v2691 = vadd.f32 %v2671, %v2690
  %2692 = vdwg.mxu0
  %2693 = vmatpush.msra.mxu0 %v1208
  %2694 = vmatpush.msra.mxu0 %v1200
  %2695 = vmatpush.msra.mxu0 %v1192
  %2696 = vmatpush.msra.mxu0 %v1184
  %2697 = vmatpush.msra.mxu0 %v1176
  %2698 = vmatpush.msra.mxu0 %v1168
  %2699 = vmatpush.msra.mxu0 %v1160
  %2700 = vmatpush.msra.mxu0 %v1152
  %2701 = vmatpush.msra.mxu0 %v1144
  %2702 = vmatpush.msra.mxu0 %v1136
  %2703 = vmatpush.msra.mxu0 %v1128
  %2704 = vmatpush.msra.mxu0 %v1120
  %2705 = vmatpush.msra.mxu0 %v1112
  %2706 = vmatpush.msra.mxu0 %v1104
  %2707 = vmatpush.msra.mxu0 %v1096
  %2708 = vmatpush.msra.mxu0 %v1088
  %2709 = vmatmul.f32.gmra.mxu0 %v2649
  %v2710 = vpop.f32.mrf.mxu0
  %v2711 = vadd.f32 0.0, %v2710
  %2712 = vdwg.mxu0
  %2713 = vmatpush.msra.mxu0 %v1336
  %2714 = vmatpush.msra.mxu0 %v1328
  %2715 = vmatpush.msra.mxu0 %v1320
  %2716 = vmatpush.msra.mxu0 %v1312
  %2717 = vmatpush.msra.mxu0 %v1304
  %2718 = vmatpush.msra.mxu0 %v1296
  %2719 = vmatpush.msra.mxu0 %v1288
  %2720 = vmatpush.msra.mxu0 %v1280
  %2721 = vmatpush.msra.mxu0 %v1272
  %2722 = vmatpush.msra.mxu0 %v1264
  %2723 = vmatpush.msra.mxu0 %v1256
  %2724 = vmatpush.msra.mxu0 %v1248
  %2725 = vmatpush.msra.mxu0 %v1240
  %2726 = vmatpush.msra.mxu0 %v1232
  %2727 = vmatpush.msra.mxu0 %v1224
  %2728 = vmatpush.msra.mxu0 %v1216
  %2729 = vmatmul.f32.gmra.mxu0 %v2650
  %v2730 = vpop.f32.mrf.mxu0
  %v2731 = vadd.f32 %v2711, %v2730
  %2732 = vdwg.mxu0
  %2733 = vmatpush.msra.mxu0 %v1209
  %2734 = vmatpush.msra.mxu0 %v1201
  %2735 = vmatpush.msra.mxu0 %v1193
  %2736 = vmatpush.msra.mxu0 %v1185
  %2737 = vmatpush.msra.mxu0 %v1177
  %2738 = vmatpush.msra.mxu0 %v1169
  %2739 = vmatpush.msra.mxu0 %v1161
  %2740 = vmatpush.msra.mxu0 %v1153
  %2741 = vmatpush.msra.mxu0 %v1145
  %2742 = vmatpush.msra.mxu0 %v1137
  %2743 = vmatpush.msra.mxu0 %v1129
  %2744 = vmatpush.msra.mxu0 %v1121
  %2745 = vmatpush.msra.mxu0 %v1113
  %2746 = vmatpush.msra.mxu0 %v1105
  %2747 = vmatpush.msra.mxu0 %v1097
  %2748 = vmatpush.msra.mxu0 %v1089
  %2749 = vmatmul.f32.gmra.mxu0 %v2649
  %v2750 = vpop.f32.mrf.mxu0
  %v2751 = vadd.f32 0.0, %v2750
  %2752 = vdwg.mxu0
  %2753 = vmatpush.msra.mxu0 %v1337
  %2754 = vmatpush.msra.mxu0 %v1329
  %2755 = vmatpush.msra.mxu0 %v1321
  %2756 = vmatpush.msra.mxu0 %v1313
  %2757 = vmatpush.msra.mxu0 %v1305
  %2758 = vmatpush.msra.mxu0 %v1297
  %2759 = vmatpush.msra.mxu0 %v1289
  %2760 = vmatpush.msra.mxu0 %v1281
  %2761 = vmatpush.msra.mxu0 %v1273
  %2762 = vmatpush.msra.mxu0 %v1265
  %2763 = vmatpush.msra.mxu0 %v1257
  %2764 = vmatpush.msra.mxu0 %v1249
  %2765 = vmatpush.msra.mxu0 %v1241
  %2766 = vmatpush.msra.mxu0 %v1233
  %2767 = vmatpush.msra.mxu0 %v1225
  %2768 = vmatpush.msra.mxu0 %v1217
  %2769 = vmatmul.f32.gmra.mxu0 %v2650
  %v2770 = vpop.f32.mrf.mxu0
  %v2771 = vadd.f32 %v2751, %v2770
  %2772 = vdwg.mxu0
  %2773 = vmatpush.msra.mxu0 %v1210
  %2774 = vmatpush.msra.mxu0 %v1202
  %2775 = vmatpush.msra.mxu0 %v1194
  %2776 = vmatpush.msra.mxu0 %v1186
  %2777 = vmatpush.msra.mxu0 %v1178
  %2778 = vmatpush.msra.mxu0 %v1170
  %2779 = vmatpush.msra.mxu0 %v1162
  %2780 = vmatpush.msra.mxu0 %v1154
  %2781 = vmatpush.msra.mxu0 %v1146
  %2782 = vmatpush.msra.mxu0 %v1138
  %2783 = vmatpush.msra.mxu0 %v1130
  %2784 = vmatpush.msra.mxu0 %v1122
  %2785 = vmatpush.msra.mxu0 %v1114
  %2786 = vmatpush.msra.mxu0 %v1106
  %2787 = vmatpush.msra.mxu0 %v1098
  %2788 = vmatpush.msra.mxu0 %v1090
  %2789 = vmatmul.f32.gmra.mxu0 %v2649
  %v2790 = vpop.f32.mrf.mxu0
  %v2791 = vadd.f32 0.0, %v2790
  %2792 = vdwg.mxu0
  %2793 = vmatpush.msra.mxu0 %v1338
  %2794 = vmatpush.msra.mxu0 %v1330
  %2795 = vmatpush.msra.mxu0 %v1322
  %2796 = vmatpush.msra.mxu0 %v1314
  %2797 = vmatpush.msra.mxu0 %v1306
  %2798 = vmatpush.msra.mxu0 %v1298
  %2799 = vmatpush.msra.mxu0 %v1290
  %2800 = vmatpush.msra.mxu0 %v1282
  %2801 = vmatpush.msra.mxu0 %v1274
  %2802 = vmatpush.msra.mxu0 %v1266
  %2803 = vmatpush.msra.mxu0 %v1258
  %2804 = vmatpush.msra.mxu0 %v1250
  %2805 = vmatpush.msra.mxu0 %v1242
  %2806 = vmatpush.msra.mxu0 %v1234
  %2807 = vmatpush.msra.mxu0 %v1226
  %2808 = vmatpush.msra.mxu0 %v1218
  %2809 = vmatmul.f32.gmra.mxu0 %v2650
  %v2810 = vpop.f32.mrf.mxu0
  %v2811 = vadd.f32 %v2791, %v2810
  %2812 = vdwg.mxu0
  %2813 = vmatpush.msra.mxu0 %v1211
  %2814 = vmatpush.msra.mxu0 %v1203
  %2815 = vmatpush.msra.mxu0 %v1195
  %2816 = vmatpush.msra.mxu0 %v1187
  %2817 = vmatpush.msra.mxu0 %v1179
  %2818 = vmatpush.msra.mxu0 %v1171
  %2819 = vmatpush.msra.mxu0 %v1163
  %2820 = vmatpush.msra.mxu0 %v1155
  %2821 = vmatpush.msra.mxu0 %v1147
  %2822 = vmatpush.msra.mxu0 %v1139
  %2823 = vmatpush.msra.mxu0 %v1131
  %2824 = vmatpush.msra.mxu0 %v1123
  %2825 = vmatpush.msra.mxu0 %v1115
  %2826 = vmatpush.msra.mxu0 %v1107
  %2827 = vmatpush.msra.mxu0 %v1099
  %2828 = vmatpush.msra.mxu0 %v1091
  %2829 = vmatmul.f32.gmra.mxu0 %v2649
  %v2830 = vpop.f32.mrf.mxu0
  %v2831 = vadd.f32 0.0, %v2830
  %2832 = vdwg.mxu0
  %2833 = vmatpush.msra.mxu0 %v1339
  %2834 = vmatpush.msra.mxu0 %v1331
  %2835 = vmatpush.msra.mxu0 %v1323
  %2836 = vmatpush.msra.mxu0 %v1315
  %2837 = vmatpush.msra.mxu0 %v1307
  %2838 = vmatpush.msra.mxu0 %v1299
  %2839 = vmatpush.msra.mxu0 %v1291
  %2840 = vmatpush.msra.mxu0 %v1283
  %2841 = vmatpush.msra.mxu0 %v1275
  %2842 = vmatpush.msra.mxu0 %v1267
  %2843 = vmatpush.msra.mxu0 %v1259
  %2844 = vmatpush.msra.mxu0 %v1251
  %2845 = vmatpush.msra.mxu0 %v1243
  %2846 = vmatpush.msra.mxu0 %v1235
  %2847 = vmatpush.msra.mxu0 %v1227
  %2848 = vmatpush.msra.mxu0 %v1219
  %2849 = vmatmul.f32.gmra.mxu0 %v2650
  %v2850 = vpop.f32.mrf.mxu0
  %v2851 = vadd.f32 %v2831, %v2850
  %2852 = vdwg.mxu0
  %2853 = vmatpush.msra.mxu0 %v1212
  %2854 = vmatpush.msra.mxu0 %v1204
  %2855 = vmatpush.msra.mxu0 %v1196
  %2856 = vmatpush.msra.mxu0 %v1188
  %2857 = vmatpush.msra.mxu0 %v1180
  %2858 = vmatpush.msra.mxu0 %v1172
  %2859 = vmatpush.msra.mxu0 %v1164
  %2860 = vmatpush.msra.mxu0 %v1156
  %2861 = vmatpush.msra.mxu0 %v1148
  %2862 = vmatpush.msra.mxu0 %v1140
  %2863 = vmatpush.msra.mxu0 %v1132
  %2864 = vmatpush.msra.mxu0 %v1124
  %2865 = vmatpush.msra.mxu0 %v1116
  %2866 = vmatpush.msra.mxu0 %v1108
  %2867 = vmatpush.msra.mxu0 %v1100
  %2868 = vmatpush.msra.mxu0 %v1092
  %2869 = vmatmul.f32.gmra.mxu0 %v2649
  %v2870 = vpop.f32.mrf.mxu0
  %v2871 = vadd.f32 0.0, %v2870
  %2872 = vdwg.mxu0
  %2873 = vmatpush.msra.mxu0 %v1340
  %2874 = vmatpush.msra.mxu0 %v1332
  %2875 = vmatpush.msra.mxu0 %v1324
  %2876 = vmatpush.msra.mxu0 %v1316
  %2877 = vmatpush.msra.mxu0 %v1308
  %2878 = vmatpush.msra.mxu0 %v1300
  %2879 = vmatpush.msra.mxu0 %v1292
  %2880 = vmatpush.msra.mxu0 %v1284
  %2881 = vmatpush.msra.mxu0 %v1276
  %2882 = vmatpush.msra.mxu0 %v1268
  %2883 = vmatpush.msra.mxu0 %v1260
  %2884 = vmatpush.msra.mxu0 %v1252
  %2885 = vmatpush.msra.mxu0 %v1244
  %2886 = vmatpush.msra.mxu0 %v1236
  %2887 = vmatpush.msra.mxu0 %v1228
  %2888 = vmatpush.msra.mxu0 %v1220
  %2889 = vmatmul.f32.gmra.mxu0 %v2650
  %v2890 = vpop.f32.mrf.mxu0
  %v2891 = vadd.f32 %v2871, %v2890
  %2892 = vdwg.mxu0
  %2893 = vmatpush.msra.mxu0 %v1213
  %2894 = vmatpush.msra.mxu0 %v1205
  %2895 = vmatpush.msra.mxu0 %v1197
  %2896 = vmatpush.msra.mxu0 %v1189
  %2897 = vmatpush.msra.mxu0 %v1181
  %2898 = vmatpush.msra.mxu0 %v1173
  %2899 = vmatpush.msra.mxu0 %v1165
  %2900 = vmatpush.msra.mxu0 %v1157
  %2901 = vmatpush.msra.mxu0 %v1149
  %2902 = vmatpush.msra.mxu0 %v1141
  %2903 = vmatpush.msra.mxu0 %v1133
  %2904 = vmatpush.msra.mxu0 %v1125
  %2905 = vmatpush.msra.mxu0 %v1117
  %2906 = vmatpush.msra.mxu0 %v1109
  %2907 = vmatpush.msra.mxu0 %v1101
  %2908 = vmatpush.msra.mxu0 %v1093
  %2909 = vmatmul.f32.gmra.mxu0 %v2649
  %v2910 = vpop.f32.mrf.mxu0
  %v2911 = vadd.f32 0.0, %v2910
  %2912 = vdwg.mxu0
  %2913 = vmatpush.msra.mxu0 %v1341
  %2914 = vmatpush.msra.mxu0 %v1333
  %2915 = vmatpush.msra.mxu0 %v1325
  %2916 = vmatpush.msra.mxu0 %v1317
  %2917 = vmatpush.msra.mxu0 %v1309
  %2918 = vmatpush.msra.mxu0 %v1301
  %2919 = vmatpush.msra.mxu0 %v1293
  %2920 = vmatpush.msra.mxu0 %v1285
  %2921 = vmatpush.msra.mxu0 %v1277
  %2922 = vmatpush.msra.mxu0 %v1269
  %2923 = vmatpush.msra.mxu0 %v1261
  %2924 = vmatpush.msra.mxu0 %v1253
  %2925 = vmatpush.msra.mxu0 %v1245
  %2926 = vmatpush.msra.mxu0 %v1237
  %2927 = vmatpush.msra.mxu0 %v1229
  %2928 = vmatpush.msra.mxu0 %v1221
  %2929 = vmatmul.f32.gmra.mxu0 %v2650
  %v2930 = vpop.f32.mrf.mxu0
  %v2931 = vadd.f32 %v2911, %v2930
  %2932 = vdwg.mxu0
  %2933 = vmatpush.msra.mxu0 %v1214
  %2934 = vmatpush.msra.mxu0 %v1206
  %2935 = vmatpush.msra.mxu0 %v1198
  %2936 = vmatpush.msra.mxu0 %v1190
  %2937 = vmatpush.msra.mxu0 %v1182
  %2938 = vmatpush.msra.mxu0 %v1174
  %2939 = vmatpush.msra.mxu0 %v1166
  %2940 = vmatpush.msra.mxu0 %v1158
  %2941 = vmatpush.msra.mxu0 %v1150
  %2942 = vmatpush.msra.mxu0 %v1142
  %2943 = vmatpush.msra.mxu0 %v1134
  %2944 = vmatpush.msra.mxu0 %v1126
  %2945 = vmatpush.msra.mxu0 %v1118
  %2946 = vmatpush.msra.mxu0 %v1110
  %2947 = vmatpush.msra.mxu0 %v1102
  %2948 = vmatpush.msra.mxu0 %v1094
  %2949 = vmatmul.f32.gmra.mxu0 %v2649
  %v2950 = vpop.f32.mrf.mxu0
  %v2951 = vadd.f32 0.0, %v2950
  %2952 = vdwg.mxu0
  %2953 = vmatpush.msra.mxu0 %v1342
  %2954 = vmatpush.msra.mxu0 %v1334
  %2955 = vmatpush.msra.mxu0 %v1326
  %2956 = vmatpush.msra.mxu0 %v1318
  %2957 = vmatpush.msra.mxu0 %v1310
  %2958 = vmatpush.msra.mxu0 %v1302
  %2959 = vmatpush.msra.mxu0 %v1294
  %2960 = vmatpush.msra.mxu0 %v1286
  %2961 = vmatpush.msra.mxu0 %v1278
  %2962 = vmatpush.msra.mxu0 %v1270
  %2963 = vmatpush.msra.mxu0 %v1262
  %2964 = vmatpush.msra.mxu0 %v1254
  %2965 = vmatpush.msra.mxu0 %v1246
  %2966 = vmatpush.msra.mxu0 %v1238
  %2967 = vmatpush.msra.mxu0 %v1230
  %2968 = vmatpush.msra.mxu0 %v1222
  %2969 = vmatmul.f32.gmra.mxu0 %v2650
  %v2970 = vpop.f32.mrf.mxu0
  %v2971 = vadd.f32 %v2951, %v2970
  %2972 = vdwg.mxu0
  %v2977 = vrot.slane %v2731, 4
  %v2978 = vrot.slane %v2811, 4
  %v2979 = vsel %vm1066, %v2691, %v2977
  %v2980 = vsel %vm1066, %v2771, %v2978
  %v2981 = vrot.slane %v2979, 6
  %v2982 = vrot.slane %v2980, 6
  %v2983 = vrot.slane %v2979, 7
  %v2984 = vrot.slane %v2980, 7
  %v2989 = vadd.f32 %v1067, %v2981
  %v2990 = vadd.f32 %v1068, %v2982
  %v2991 = vadd.f32 %v1072, %v2983
  %v2992 = vadd.f32 %v1074, %v2984
  %v2997 = vrot.slane %v2891, 4
  %v2998 = vrot.slane %v2971, 4
  %v2999 = vsel %vm1066, %v2851, %v2997
  %v3000 = vsel %vm1066, %v2931, %v2998
  %v3001 = vrot.slane %v2999, 7
  %v3002 = vrot.slane %v3000, 7
  %v3007 = vadd.f32 %v1069, %v3001
  %v3008 = vadd.f32 %v1070, %v3002
  %v3009 = vadd.f32 %v1076, %v2999
  %v3010 = vadd.f32 %v1078, %v3000
  %v3011 = vxor.u32 %v2989, 2147483648
  %v3012 = vxor.u32 %v2991, 2147483648
  %v3013 = vmul.f32 %v3011, 1.442695
  %v3014 = vpow.pop %v3013
  %v3015 = vmul.f32 %v3012, 1.442695
  %v3016 = vpow.pop %v3015
  %v3017 = vadd.f32 %v3014, 1.0
  %v3018 = vadd.f32 %v3016, 1.0
  %v3019 = vrcp.pop %v3017
  %v3020 = vmul.f32 %v3017, %v3019
  %v3021 = vsub.f32 1.0, %v3020
  %v3022 = vmul.f32 %v3019, %v3021
  %v3023 = vadd.f32 %v3019, %v3022
  %vm3024 = vweird.f32 %v3017
  %vm3025 = vweird.f32 %v3019
  %vm3026 = vmor %vm3024, %vm3025
  %v3027 = vsel %vm3026, %v3019, %v3023
  %v3028 = vand.u32 2147483647, %v3017
  %vm3029 = vcmp.eq.f32.partialorder %v3028, 8.507059e+37
  %v3030 = vand.u32 %v3017, 2147483648
  %v3031 = vor.u32 1.1754944e-38, %v3030
  %v3032 = vsel %vm3029, %v3031, %v3027
  %v3033 = vmul.f32 1.0, %v3032
  %v3034 = vrcp.pop %v3018
  %v3035 = vmul.f32 %v3018, %v3034
  %v3036 = vsub.f32 1.0, %v3035
  %v3037 = vmul.f32 %v3034, %v3036
  %v3038 = vadd.f32 %v3034, %v3037
  %vm3039 = vweird.f32 %v3018
  %vm3040 = vweird.f32 %v3034
  %vm3041 = vmor %vm3039, %vm3040
  %v3042 = vsel %vm3041, %v3034, %v3038
  %v3043 = vand.u32 2147483647, %v3018
  %vm3044 = vcmp.eq.f32.partialorder %v3043, 8.507059e+37
  %v3045 = vand.u32 %v3018, 2147483648
  %v3046 = vor.u32 1.1754944e-38, %v3045
  %v3047 = vsel %vm3044, %v3046, %v3042
  %v3048 = vmul.f32 1.0, %v3047
  %v3051 = vrot.slane %v2989, 4
  %v3052 = vrot.slane %v2991, 4
  %v3055 = vxor.u32 %v3051, 2147483648
  %v3056 = vxor.u32 %v3052, 2147483648
  %v3057 = vmul.f32 %v3055, 1.442695
  %v3058 = vpow.pop %v3057
  %v3059 = vmul.f32 %v3056, 1.442695
  %v3060 = vpow.pop %v3059
  %v3061 = vadd.f32 %v3058, 1.0
  %v3062 = vadd.f32 %v3060, 1.0
  %v3063 = vrcp.pop %v3061
  %v3064 = vmul.f32 %v3061, %v3063
  %v3065 = vsub.f32 1.0, %v3064
  %v3066 = vmul.f32 %v3063, %v3065
  %v3067 = vadd.f32 %v3063, %v3066
  %vm3068 = vweird.f32 %v3061
  %vm3069 = vweird.f32 %v3063
  %vm3070 = vmor %vm3068, %vm3069
  %v3071 = vsel %vm3070, %v3063, %v3067
  %v3072 = vand.u32 2147483647, %v3061
  %vm3073 = vcmp.eq.f32.partialorder %v3072, 8.507059e+37
  %v3074 = vand.u32 %v3061, 2147483648
  %v3075 = vor.u32 1.1754944e-38, %v3074
  %v3076 = vsel %vm3073, %v3075, %v3071
  %v3077 = vmul.f32 1.0, %v3076
  %v3078 = vrcp.pop %v3062
  %v3079 = vmul.f32 %v3062, %v3078
  %v3080 = vsub.f32 1.0, %v3079
  %v3081 = vmul.f32 %v3078, %v3080
  %v3082 = vadd.f32 %v3078, %v3081
  %vm3083 = vweird.f32 %v3062
  %vm3084 = vweird.f32 %v3078
  %vm3085 = vmor %vm3083, %vm3084
  %v3086 = vsel %vm3085, %v3078, %v3082
  %v3087 = vand.u32 2147483647, %v3062
  %vm3088 = vcmp.eq.f32.partialorder %v3087, 8.507059e+37
  %v3089 = vand.u32 %v3062, 2147483648
  %v3090 = vor.u32 1.1754944e-38, %v3089
  %v3091 = vsel %vm3088, %v3090, %v3086
  %v3092 = vmul.f32 1.0, %v3091
  %v3093 = vtanh.pop %v2990
  %v3094 = vtanh.pop %v2992
  %v3097 = vrot.slane %v2990, 4
  %v3098 = vrot.slane %v2992, 4
  %v3101 = vxor.u32 %v3097, 2147483648
  %v3102 = vxor.u32 %v3098, 2147483648
  %v3103 = vmul.f32 %v3101, 1.442695
  %v3104 = vpow.pop %v3103
  %v3105 = vmul.f32 %v3102, 1.442695
  %v3106 = vpow.pop %v3105
  %v3107 = vadd.f32 %v3104, 1.0
  %v3108 = vadd.f32 %v3106, 1.0
  %v3109 = vrcp.pop %v3107
  %v3110 = vmul.f32 %v3107, %v3109
  %v3111 = vsub.f32 1.0, %v3110
  %v3112 = vmul.f32 %v3109, %v3111
  %v3113 = vadd.f32 %v3109, %v3112
  %vm3114 = vweird.f32 %v3107
  %vm3115 = vweird.f32 %v3109
  %vm3116 = vmor %vm3114, %vm3115
  %v3117 = vsel %vm3116, %v3109, %v3113
  %v3118 = vand.u32 2147483647, %v3107
  %vm3119 = vcmp.eq.f32.partialorder %v3118, 8.507059e+37
  %v3120 = vand.u32 %v3107, 2147483648
  %v3121 = vor.u32 1.1754944e-38, %v3120
  %v3122 = vsel %vm3119, %v3121, %v3117
  %v3123 = vmul.f32 1.0, %v3122
  %v3124 = vrcp.pop %v3108
  %v3125 = vmul.f32 %v3108, %v3124
  %v3126 = vsub.f32 1.0, %v3125
  %v3127 = vmul.f32 %v3124, %v3126
  %v3128 = vadd.f32 %v3124, %v3127
  %vm3129 = vweird.f32 %v3108
  %vm3130 = vweird.f32 %v3124
  %vm3131 = vmor %vm3129, %vm3130
  %v3132 = vsel %vm3131, %v3124, %v3128
  %v3133 = vand.u32 2147483647, %v3108
  %vm3134 = vcmp.eq.f32.partialorder %v3133, 8.507059e+37
  %v3135 = vand.u32 %v3108, 2147483648
  %v3136 = vor.u32 1.1754944e-38, %v3135
  %v3137 = vsel %vm3134, %v3136, %v3132
  %v3138 = vmul.f32 1.0, %v3137
  %v3141 = vrot.slane %v2486, 7
  %v3142 = vrot.slane %v2487, 7
  %v3145 = vmul.f32 %v3077, %v3141
  %v3146 = vmul.f32 %v3092, %v3142
  %v3147 = vmul.f32 %v3033, %v3093
  %v3148 = vmul.f32 %v3048, %v3094
  %v3149 = vadd.f32 %v3145, %v3147
  %v3150 = vadd.f32 %v3146, %v3148
  %v3151 = vtanh.pop %v3149
  %v3152 = vtanh.pop %v3150
  %v3153 = vmul.f32 %v3123, %v3151
  %v3154 = vmul.f32 %v3138, %v3152
  %v3155 = vxor.u32 %v3007, 2147483648
  %v3156 = vxor.u32 %v3009, 2147483648
  %v3157 = vmul.f32 %v3155, 1.442695
  %v3158 = vpow.pop %v3157
  %v3159 = vmul.f32 %v3156, 1.442695
  %v3160 = vpow.pop %v3159
  %v3161 = vadd.f32 %v3158, 1.0
  %v3162 = vadd.f32 %v3160, 1.0
  %v3163 = vrcp.pop %v3161
  %v3164 = vmul.f32 %v3161, %v3163
  %v3165 = vsub.f32 1.0, %v3164
  %v3166 = vmul.f32 %v3163, %v3165
  %v3167 = vadd.f32 %v3163, %v3166
  %vm3168 = vweird.f32 %v3161
  %vm3169 = vweird.f32 %v3163
  %vm3170 = vmor %vm3168, %vm3169
  %v3171 = vsel %vm3170, %v3163, %v3167
  %v3172 = vand.u32 2147483647, %v3161
  %vm3173 = vcmp.eq.f32.partialorder %v3172, 8.507059e+37
  %v3174 = vand.u32 %v3161, 2147483648
  %v3175 = vor.u32 1.1754944e-38, %v3174
  %v3176 = vsel %vm3173, %v3175, %v3171
  %v3177 = vmul.f32 1.0, %v3176
  %v3178 = vrcp.pop %v3162
  %v3179 = vmul.f32 %v3162, %v3178
  %v3180 = vsub.f32 1.0, %v3179
  %v3181 = vmul.f32 %v3178, %v3180
  %v3182 = vadd.f32 %v3178, %v3181
  %vm3183 = vweird.f32 %v3162
  %vm3184 = vweird.f32 %v3178
  %vm3185 = vmor %vm3183, %vm3184
  %v3186 = vsel %vm3185, %v3178, %v3182
  %v3187 = vand.u32 2147483647, %v3162
  %vm3188 = vcmp.eq.f32.partialorder %v3187, 8.507059e+37
  %v3189 = vand.u32 %v3162, 2147483648
  %v3190 = vor.u32 1.1754944e-38, %v3189
  %v3191 = vsel %vm3188, %v3190, %v3186
  %v3192 = vmul.f32 1.0, %v3191
  %v3195 = vrot.slane %v3007, 4
  %v3196 = vrot.slane %v3009, 4
  %v3199 = vxor.u32 %v3195, 2147483648
  %v3200 = vxor.u32 %v3196, 2147483648
  %v3201 = vmul.f32 %v3199, 1.442695
  %v3202 = vpow.pop %v3201
  %v3203 = vmul.f32 %v3200, 1.442695
  %v3204 = vpow.pop %v3203
  %v3205 = vadd.f32 %v3202, 1.0
  %v3206 = vadd.f32 %v3204, 1.0
  %v3207 = vrcp.pop %v3205
  %v3208 = vmul.f32 %v3205, %v3207
  %v3209 = vsub.f32 1.0, %v3208
  %v3210 = vmul.f32 %v3207, %v3209
  %v3211 = vadd.f32 %v3207, %v3210
  %vm3212 = vweird.f32 %v3205
  %vm3213 = vweird.f32 %v3207
  %vm3214 = vmor %vm3212, %vm3213
  %v3215 = vsel %vm3214, %v3207, %v3211
  %v3216 = vand.u32 2147483647, %v3205
  %vm3217 = vcmp.eq.f32.partialorder %v3216, 8.507059e+37
  %v3218 = vand.u32 %v3205, 2147483648
  %v3219 = vor.u32 1.1754944e-38, %v3218
  %v3220 = vsel %vm3217, %v3219, %v3215
  %v3221 = vmul.f32 1.0, %v3220
  %v3222 = vrcp.pop %v3206
  %v3223 = vmul.f32 %v3206, %v3222
  %v3224 = vsub.f32 1.0, %v3223
  %v3225 = vmul.f32 %v3222, %v3224
  %v3226 = vadd.f32 %v3222, %v3225
  %vm3227 = vweird.f32 %v3206
  %vm3228 = vweird.f32 %v3222
  %vm3229 = vmor %vm3227, %vm3228
  %v3230 = vsel %vm3229, %v3222, %v3226
  %v3231 = vand.u32 2147483647, %v3206
  %vm3232 = vcmp.eq.f32.partialorder %v3231, 8.507059e+37
  %v3233 = vand.u32 %v3206, 2147483648
  %v3234 = vor.u32 1.1754944e-38, %v3233
  %v3235 = vsel %vm3232, %v3234, %v3230
  %v3236 = vmul.f32 1.0, %v3235
  %v3237 = vtanh.pop %v3008
  %v3238 = vtanh.pop %v3010
  %v3241 = vrot.slane %v3008, 4
  %v3242 = vrot.slane %v3010, 4
  %v3245 = vxor.u32 %v3241, 2147483648
  %v3246 = vxor.u32 %v3242, 2147483648
  %v3247 = vmul.f32 %v3245, 1.442695
  %v3248 = vpow.pop %v3247
  %v3249 = vmul.f32 %v3246, 1.442695
  %v3250 = vpow.pop %v3249
  %v3251 = vadd.f32 %v3248, 1.0
  %v3252 = vadd.f32 %v3250, 1.0
  %v3253 = vrcp.pop %v3251
  %v3254 = vmul.f32 %v3251, %v3253
  %v3255 = vsub.f32 1.0, %v3254
  %v3256 = vmul.f32 %v3253, %v3255
  %v3257 = vadd.f32 %v3253, %v3256
  %vm3258 = vweird.f32 %v3251
  %vm3259 = vweird.f32 %v3253
  %vm3260 = vmor %vm3258, %vm3259
  %v3261 = vsel %vm3260, %v3253, %v3257
  %v3262 = vand.u32 2147483647, %v3251
  %vm3263 = vcmp.eq.f32.partialorder %v3262, 8.507059e+37
  %v3264 = vand.u32 %v3251, 2147483648
  %v3265 = vor.u32 1.1754944e-38, %v3264
  %v3266 = vsel %vm3263, %v3265, %v3261
  %v3267 = vmul.f32 1.0, %v3266
  %v3268 = vrcp.pop %v3252
  %v3269 = vmul.f32 %v3252, %v3268
  %v3270 = vsub.f32 1.0, %v3269
  %v3271 = vmul.f32 %v3268, %v3270
  %v3272 = vadd.f32 %v3268, %v3271
  %vm3273 = vweird.f32 %v3252
  %vm3274 = vweird.f32 %v3268
  %vm3275 = vmor %vm3273, %vm3274
  %v3276 = vsel %vm3275, %v3268, %v3272
  %v3277 = vand.u32 2147483647, %v3252
  %vm3278 = vcmp.eq.f32.partialorder %v3277, 8.507059e+37
  %v3279 = vand.u32 %v3252, 2147483648
  %v3280 = vor.u32 1.1754944e-38, %v3279
  %v3281 = vsel %vm3278, %v3280, %v3276
  %v3282 = vmul.f32 1.0, %v3281
  %v3285 = vrot.slane %v2632, 5
  %v3286 = vrot.slane %v3285, 4
  %v3287 = vrot.slane %v2633, 5
  %v3288 = vrot.slane %v3287, 4
  %v3291 = vmul.f32 %v3221, %v3286
  %v3292 = vmul.f32 %v3236, %v3288
  %v3293 = vmul.f32 %v3177, %v3237
  %v3294 = vmul.f32 %v3192, %v3238
  %v3295 = vadd.f32 %v3291, %v3293
  %v3296 = vadd.f32 %v3292, %v3294
  %v3297 = vtanh.pop %v3295
  %v3298 = vtanh.pop %v3296
  %v3299 = vmul.f32 %v3267, %v3297
  %v3300 = vmul.f32 %v3282, %v3298
  %v3303 = vperm.slane %v3153, 2
  %v3304 = vperm.slane %v3154, 2
  %vm3305 = vcmask 1043459
  %v3306 = vsel %vm3305, %v3304, %v3303
  %v3309 = vperm.slane %v3299, 1
  %v3310 = vperm.slane %v3300, 1
  %v3311 = vsel %vm3305, %v3310, %v3309
  %v3312 = vrot.slane %v3306, 2
  %v3313 = vrot.slane %v3311, 2
  %3316 = vmatpush.msra.mxu0 %v1207
  %3317 = vmatpush.msra.mxu0 %v1199
  %3318 = vmatpush.msra.mxu0 %v1191
  %3319 = vmatpush.msra.mxu0 %v1183
  %3320 = vmatpush.msra.mxu0 %v1175
  %3321 = vmatpush.msra.mxu0 %v1167
  %3322 = vmatpush.msra.mxu0 %v1159
  %3323 = vmatpush.msra.mxu0 %v1151
  %3324 = vmatpush.msra.mxu0 %v1143
  %3325 = vmatpush.msra.mxu0 %v1135
  %3326 = vmatpush.msra.mxu0 %v1127
  %3327 = vmatpush.msra.mxu0 %v1119
  %3328 = vmatpush.msra.mxu0 %v1111
  %3329 = vmatpush.msra.mxu0 %v1103
  %3330 = vmatpush.msra.mxu0 %v1095
  %3331 = vmatpush.msra.mxu0 %v1087
  %3332 = vmatmul.f32.gmra.mxu0 %v3312
  %v3333 = vpop.f32.mrf.mxu0
  %v3334 = vadd.f32 0.0, %v3333
  %3335 = vdwg.mxu0
  %3336 = vmatpush.msra.mxu0 %v1335
  %3337 = vmatpush.msra.mxu0 %v1327
  %3338 = vmatpush.msra.mxu0 %v1319
  %3339 = vmatpush.msra.mxu0 %v1311
  %3340 = vmatpush.msra.mxu0 %v1303
  %3341 = vmatpush.msra.mxu0 %v1295
  %3342 = vmatpush.msra.mxu0 %v1287
  %3343 = vmatpush.msra.mxu0 %v1279
  %3344 = vmatpush.msra.mxu0 %v1271
  %3345 = vmatpush.msra.mxu0 %v1263
  %3346 = vmatpush.msra.mxu0 %v1255
  %3347 = vmatpush.msra.mxu0 %v1247
  %3348 = vmatpush.msra.mxu0 %v1239
  %3349 = vmatpush.msra.mxu0 %v1231
  %3350 = vmatpush.msra.mxu0 %v1223
  %3351 = vmatpush.msra.mxu0 %v1215
  %3352 = vmatmul.f32.gmra.mxu0 %v3313
  %v3353 = vpop.f32.mrf.mxu0
  %v3354 = vadd.f32 %v3334, %v3353
  %3355 = vdwg.mxu0
  %3356 = vmatpush.msra.mxu0 %v1208
  %3357 = vmatpush.msra.mxu0 %v1200
  %3358 = vmatpush.msra.mxu0 %v1192
  %3359 = vmatpush.msra.mxu0 %v1184
  %3360 = vmatpush.msra.mxu0 %v1176
  %3361 = vmatpush.msra.mxu0 %v1168
  %3362 = vmatpush.msra.mxu0 %v1160
  %3363 = vmatpush.msra.mxu0 %v1152
  %3364 = vmatpush.msra.mxu0 %v1144
  %3365 = vmatpush.msra.mxu0 %v1136
  %3366 = vmatpush.msra.mxu0 %v1128
  %3367 = vmatpush.msra.mxu0 %v1120
  %3368 = vmatpush.msra.mxu0 %v1112
  %3369 = vmatpush.msra.mxu0 %v1104
  %3370 = vmatpush.msra.mxu0 %v1096
  %3371 = vmatpush.msra.mxu0 %v1088
  %3372 = vmatmul.f32.gmra.mxu0 %v3312
  %v3373 = vpop.f32.mrf.mxu0
  %v3374 = vadd.f32 0.0, %v3373
  %3375 = vdwg.mxu0
  %3376 = vmatpush.msra.mxu0 %v1336
  %3377 = vmatpush.msra.mxu0 %v1328
  %3378 = vmatpush.msra.mxu0 %v1320
  %3379 = vmatpush.msra.mxu0 %v1312
  %3380 = vmatpush.msra.mxu0 %v1304
  %3381 = vmatpush.msra.mxu0 %v1296
  %3382 = vmatpush.msra.mxu0 %v1288
  %3383 = vmatpush.msra.mxu0 %v1280
  %3384 = vmatpush.msra.mxu0 %v1272
  %3385 = vmatpush.msra.mxu0 %v1264
  %3386 = vmatpush.msra.mxu0 %v1256
  %3387 = vmatpush.msra.mxu0 %v1248
  %3388 = vmatpush.msra.mxu0 %v1240
  %3389 = vmatpush.msra.mxu0 %v1232
  %3390 = vmatpush.msra.mxu0 %v1224
  %3391 = vmatpush.msra.mxu0 %v1216
  %3392 = vmatmul.f32.gmra.mxu0 %v3313
  %v3393 = vpop.f32.mrf.mxu0
  %v3394 = vadd.f32 %v3374, %v3393
  %3395 = vdwg.mxu0
  %3396 = vmatpush.msra.mxu0 %v1209
  %3397 = vmatpush.msra.mxu0 %v1201
  %3398 = vmatpush.msra.mxu0 %v1193
  %3399 = vmatpush.msra.mxu0 %v1185
  %3400 = vmatpush.msra.mxu0 %v1177
  %3401 = vmatpush.msra.mxu0 %v1169
  %3402 = vmatpush.msra.mxu0 %v1161
  %3403 = vmatpush.msra.mxu0 %v1153
  %3404 = vmatpush.msra.mxu0 %v1145
  %3405 = vmatpush.msra.mxu0 %v1137
  %3406 = vmatpush.msra.mxu0 %v1129
  %3407 = vmatpush.msra.mxu0 %v1121
  %3408 = vmatpush.msra.mxu0 %v1113
  %3409 = vmatpush.msra.mxu0 %v1105
  %3410 = vmatpush.msra.mxu0 %v1097
  %3411 = vmatpush.msra.mxu0 %v1089
  %3412 = vmatmul.f32.gmra.mxu0 %v3312
  %v3413 = vpop.f32.mrf.mxu0
  %v3414 = vadd.f32 0.0, %v3413
  %3415 = vdwg.mxu0
  %3416 = vmatpush.msra.mxu0 %v1337
  %3417 = vmatpush.msra.mxu0 %v1329
  %3418 = vmatpush.msra.mxu0 %v1321
  %3419 = vmatpush.msra.mxu0 %v1313
  %3420 = vmatpush.msra.mxu0 %v1305
  %3421 = vmatpush.msra.mxu0 %v1297
  %3422 = vmatpush.msra.mxu0 %v1289
  %3423 = vmatpush.msra.mxu0 %v1281
  %3424 = vmatpush.msra.mxu0 %v1273
  %3425 = vmatpush.msra.mxu0 %v1265
  %3426 = vmatpush.msra.mxu0 %v1257
  %3427 = vmatpush.msra.mxu0 %v1249
  %3428 = vmatpush.msra.mxu0 %v1241
  %3429 = vmatpush.msra.mxu0 %v1233
  %3430 = vmatpush.msra.mxu0 %v1225
  %3431 = vmatpush.msra.mxu0 %v1217
  %3432 = vmatmul.f32.gmra.mxu0 %v3313
  %v3433 = vpop.f32.mrf.mxu0
  %v3434 = vadd.f32 %v3414, %v3433
  %3435 = vdwg.mxu0
  %3436 = vmatpush.msra.mxu0 %v1210
  %3437 = vmatpush.msra.mxu0 %v1202
  %3438 = vmatpush.msra.mxu0 %v1194
  %3439 = vmatpush.msra.mxu0 %v1186
  %3440 = vmatpush.msra.mxu0 %v1178
  %3441 = vmatpush.msra.mxu0 %v1170
  %3442 = vmatpush.msra.mxu0 %v1162
  %3443 = vmatpush.msra.mxu0 %v1154
  %3444 = vmatpush.msra.mxu0 %v1146
  %3445 = vmatpush.msra.mxu0 %v1138
  %3446 = vmatpush.msra.mxu0 %v1130
  %3447 = vmatpush.msra.mxu0 %v1122
  %3448 = vmatpush.msra.mxu0 %v1114
  %3449 = vmatpush.msra.mxu0 %v1106
  %3450 = vmatpush.msra.mxu0 %v1098
  %3451 = vmatpush.msra.mxu0 %v1090
  %3452 = vmatmul.f32.gmra.mxu0 %v3312
  %v3453 = vpop.f32.mrf.mxu0
  %v3454 = vadd.f32 0.0, %v3453
  %3455 = vdwg.mxu0
  %3456 = vmatpush.msra.mxu0 %v1338
  %3457 = vmatpush.msra.mxu0 %v1330
  %3458 = vmatpush.msra.mxu0 %v1322
  %3459 = vmatpush.msra.mxu0 %v1314
  %3460 = vmatpush.msra.mxu0 %v1306
  %3461 = vmatpush.msra.mxu0 %v1298
  %3462 = vmatpush.msra.mxu0 %v1290
  %3463 = vmatpush.msra.mxu0 %v1282
  %3464 = vmatpush.msra.mxu0 %v1274
  %3465 = vmatpush.msra.mxu0 %v1266
  %3466 = vmatpush.msra.mxu0 %v1258
  %3467 = vmatpush.msra.mxu0 %v1250
  %3468 = vmatpush.msra.mxu0 %v1242
  %3469 = vmatpush.msra.mxu0 %v1234
  %3470 = vmatpush.msra.mxu0 %v1226
  %3471 = vmatpush.msra.mxu0 %v1218
  %3472 = vmatmul.f32.gmra.mxu0 %v3313
  %v3473 = vpop.f32.mrf.mxu0
  %v3474 = vadd.f32 %v3454, %v3473
  %3475 = vdwg.mxu0
  %3476 = vmatpush.msra.mxu0 %v1211
  %3477 = vmatpush.msra.mxu0 %v1203
  %3478 = vmatpush.msra.mxu0 %v1195
  %3479 = vmatpush.msra.mxu0 %v1187
  %3480 = vmatpush.msra.mxu0 %v1179
  %3481 = vmatpush.msra.mxu0 %v1171
  %3482 = vmatpush.msra.mxu0 %v1163
  %3483 = vmatpush.msra.mxu0 %v1155
  %3484 = vmatpush.msra.mxu0 %v1147
  %3485 = vmatpush.msra.mxu0 %v1139
  %3486 = vmatpush.msra.mxu0 %v1131
  %3487 = vmatpush.msra.mxu0 %v1123
  %3488 = vmatpush.msra.mxu0 %v1115
  %3489 = vmatpush.msra.mxu0 %v1107
  %3490 = vmatpush.msra.mxu0 %v1099
  %3491 = vmatpush.msra.mxu0 %v1091
  %3492 = vmatmul.f32.gmra.mxu0 %v3312
  %v3493 = vpop.f32.mrf.mxu0
  %v3494 = vadd.f32 0.0, %v3493
  %3495 = vdwg.mxu0
  %3496 = vmatpush.msra.mxu0 %v1339
  %3497 = vmatpush.msra.mxu0 %v1331
  %3498 = vmatpush.msra.mxu0 %v1323
  %3499 = vmatpush.msra.mxu0 %v1315
  %3500 = vmatpush.msra.mxu0 %v1307
  %3501 = vmatpush.msra.mxu0 %v1299
  %3502 = vmatpush.msra.mxu0 %v1291
  %3503 = vmatpush.msra.mxu0 %v1283
  %3504 = vmatpush.msra.mxu0 %v1275
  %3505 = vmatpush.msra.mxu0 %v1267
  %3506 = vmatpush.msra.mxu0 %v1259
  %3507 = vmatpush.msra.mxu0 %v1251
  %3508 = vmatpush.msra.mxu0 %v1243
  %3509 = vmatpush.msra.mxu0 %v1235
  %3510 = vmatpush.msra.mxu0 %v1227
  %3511 = vmatpush.msra.mxu0 %v1219
  %3512 = vmatmul.f32.gmra.mxu0 %v3313
  %v3513 = vpop.f32.mrf.mxu0
  %v3514 = vadd.f32 %v3494, %v3513
  %3515 = vdwg.mxu0
  %3516 = vmatpush.msra.mxu0 %v1212
  %3517 = vmatpush.msra.mxu0 %v1204
  %3518 = vmatpush.msra.mxu0 %v1196
  %3519 = vmatpush.msra.mxu0 %v1188
  %3520 = vmatpush.msra.mxu0 %v1180
  %3521 = vmatpush.msra.mxu0 %v1172
  %3522 = vmatpush.msra.mxu0 %v1164
  %3523 = vmatpush.msra.mxu0 %v1156
  %3524 = vmatpush.msra.mxu0 %v1148
  %3525 = vmatpush.msra.mxu0 %v1140
  %3526 = vmatpush.msra.mxu0 %v1132
  %3527 = vmatpush.msra.mxu0 %v1124
  %3528 = vmatpush.msra.mxu0 %v1116
  %3529 = vmatpush.msra.mxu0 %v1108
  %3530 = vmatpush.msra.mxu0 %v1100
  %3531 = vmatpush.msra.mxu0 %v1092
  %3532 = vmatmul.f32.gmra.mxu0 %v3312
  %v3533 = vpop.f32.mrf.mxu0
  %v3534 = vadd.f32 0.0, %v3533
  %3535 = vdwg.mxu0
  %3536 = vmatpush.msra.mxu0 %v1340
  %3537 = vmatpush.msra.mxu0 %v1332
  %3538 = vmatpush.msra.mxu0 %v1324
  %3539 = vmatpush.msra.mxu0 %v1316
  %3540 = vmatpush.msra.mxu0 %v1308
  %3541 = vmatpush.msra.mxu0 %v1300
  %3542 = vmatpush.msra.mxu0 %v1292
  %3543 = vmatpush.msra.mxu0 %v1284
  %3544 = vmatpush.msra.mxu0 %v1276
  %3545 = vmatpush.msra.mxu0 %v1268
  %3546 = vmatpush.msra.mxu0 %v1260
  %3547 = vmatpush.msra.mxu0 %v1252
  %3548 = vmatpush.msra.mxu0 %v1244
  %3549 = vmatpush.msra.mxu0 %v1236
  %3550 = vmatpush.msra.mxu0 %v1228
  %3551 = vmatpush.msra.mxu0 %v1220
  %3552 = vmatmul.f32.gmra.mxu0 %v3313
  %v3553 = vpop.f32.mrf.mxu0
  %v3554 = vadd.f32 %v3534, %v3553
  %3555 = vdwg.mxu0
  %3556 = vmatpush.msra.mxu0 %v1213
  %3557 = vmatpush.msra.mxu0 %v1205
  %3558 = vmatpush.msra.mxu0 %v1197
  %3559 = vmatpush.msra.mxu0 %v1189
  %3560 = vmatpush.msra.mxu0 %v1181
  %3561 = vmatpush.msra.mxu0 %v1173
  %3562 = vmatpush.msra.mxu0 %v1165
  %3563 = vmatpush.msra.mxu0 %v1157
  %3564 = vmatpush.msra.mxu0 %v1149
  %3565 = vmatpush.msra.mxu0 %v1141
  %3566 = vmatpush.msra.mxu0 %v1133
  %3567 = vmatpush.msra.mxu0 %v1125
  %3568 = vmatpush.msra.mxu0 %v1117
  %3569 = vmatpush.msra.mxu0 %v1109
  %3570 = vmatpush.msra.mxu0 %v1101
  %3571 = vmatpush.msra.mxu0 %v1093
  %3572 = vmatmul.f32.gmra.mxu0 %v3312
  %v3573 = vpop.f32.mrf.mxu0
  %v3574 = vadd.f32 0.0, %v3573
  %3575 = vdwg.mxu0
  %3576 = vmatpush.msra.mxu0 %v1341
  %3577 = vmatpush.msra.mxu0 %v1333
  %3578 = vmatpush.msra.mxu0 %v1325
  %3579 = vmatpush.msra.mxu0 %v1317
  %3580 = vmatpush.msra.mxu0 %v1309
  %3581 = vmatpush.msra.mxu0 %v1301
  %3582 = vmatpush.msra.mxu0 %v1293
  %3583 = vmatpush.msra.mxu0 %v1285
  %3584 = vmatpush.msra.mxu0 %v1277
  %3585 = vmatpush.msra.mxu0 %v1269
  %3586 = vmatpush.msra.mxu0 %v1261
  %3587 = vmatpush.msra.mxu0 %v1253
  %3588 = vmatpush.msra.mxu0 %v1245
  %3589 = vmatpush.msra.mxu0 %v1237
  %3590 = vmatpush.msra.mxu0 %v1229
  %3591 = vmatpush.msra.mxu0 %v1221
  %3592 = vmatmul.f32.gmra.mxu0 %v3313
  %v3593 = vpop.f32.mrf.mxu0
  %v3594 = vadd.f32 %v3574, %v3593
  %3595 = vdwg.mxu0
  %3596 = vmatpush.msra.mxu0 %v1214
  %3597 = vmatpush.msra.mxu0 %v1206
  %3598 = vmatpush.msra.mxu0 %v1198
  %3599 = vmatpush.msra.mxu0 %v1190
  %3600 = vmatpush.msra.mxu0 %v1182
  %3601 = vmatpush.msra.mxu0 %v1174
  %3602 = vmatpush.msra.mxu0 %v1166
  %3603 = vmatpush.msra.mxu0 %v1158
  %3604 = vmatpush.msra.mxu0 %v1150
  %3605 = vmatpush.msra.mxu0 %v1142
  %3606 = vmatpush.msra.mxu0 %v1134
  %3607 = vmatpush.msra.mxu0 %v1126
  %3608 = vmatpush.msra.mxu0 %v1118
  %3609 = vmatpush.msra.mxu0 %v1110
  %3610 = vmatpush.msra.mxu0 %v1102
  %3611 = vmatpush.msra.mxu0 %v1094
  %3612 = vmatmul.f32.gmra.mxu0 %v3312
  %v3613 = vpop.f32.mrf.mxu0
  %v3614 = vadd.f32 0.0, %v3613
  %3615 = vdwg.mxu0
  %3616 = vmatpush.msra.mxu0 %v1342
  %3617 = vmatpush.msra.mxu0 %v1334
  %3618 = vmatpush.msra.mxu0 %v1326
  %3619 = vmatpush.msra.mxu0 %v1318
  %3620 = vmatpush.msra.mxu0 %v1310
  %3621 = vmatpush.msra.mxu0 %v1302
  %3622 = vmatpush.msra.mxu0 %v1294
  %3623 = vmatpush.msra.mxu0 %v1286
  %3624 = vmatpush.msra.mxu0 %v1278
  %3625 = vmatpush.msra.mxu0 %v1270
  %3626 = vmatpush.msra.mxu0 %v1262
  %3627 = vmatpush.msra.mxu0 %v1254
  %3628 = vmatpush.msra.mxu0 %v1246
  %3629 = vmatpush.msra.mxu0 %v1238
  %3630 = vmatpush.msra.mxu0 %v1230
  %3631 = vmatpush.msra.mxu0 %v1222
  %3632 = vmatmul.f32.gmra.mxu0 %v3313
  %v3633 = vpop.f32.mrf.mxu0
  %v3634 = vadd.f32 %v3614, %v3633
  %3635 = vdwg.mxu0
  %v3640 = vrot.slane %v3394, 4
  %v3641 = vrot.slane %v3474, 4
  %v3642 = vsel %vm1066, %v3354, %v3640
  %v3643 = vsel %vm1066, %v3434, %v3641
  %v3644 = vrot.slane %v3642, 5
  %v3645 = vrot.slane %v3643, 5
  %v3646 = vrot.slane %v3642, 6
  %v3647 = vrot.slane %v3643, 6
  %v3652 = vadd.f32 %v1067, %v3644
  %v3653 = vadd.f32 %v1068, %v3645
  %v3654 = vadd.f32 %v1072, %v3646
  %v3655 = vadd.f32 %v1074, %v3647
  %v3660 = vrot.slane %v3554, 4
  %v3661 = vrot.slane %v3634, 4
  %v3662 = vsel %vm1066, %v3514, %v3660
  %v3663 = vsel %vm1066, %v3594, %v3661
  %v3664 = vrot.slane %v3662, 1
  %v3665 = vrot.slane %v3663, 1
  %v3670 = vadd.f32 %v1069, %v3662
  %v3671 = vadd.f32 %v1070, %v3663
  %v3672 = vadd.f32 %v1076, %v3664
  %v3673 = vadd.f32 %v1078, %v3665
  %v3674 = vxor.u32 %v3652, 2147483648
  %v3675 = vxor.u32 %v3654, 2147483648
  %v3676 = vmul.f32 %v3674, 1.442695
  %v3677 = vpow.pop %v3676
  %v3678 = vmul.f32 %v3675, 1.442695
  %v3679 = vpow.pop %v3678
  %v3680 = vadd.f32 %v3677, 1.0
  %v3681 = vadd.f32 %v3679, 1.0
  %v3682 = vrcp.pop %v3680
  %v3683 = vmul.f32 %v3680, %v3682
  %v3684 = vsub.f32 1.0, %v3683
  %v3685 = vmul.f32 %v3682, %v3684
  %v3686 = vadd.f32 %v3682, %v3685
  %vm3687 = vweird.f32 %v3680
  %vm3688 = vweird.f32 %v3682
  %vm3689 = vmor %vm3687, %vm3688
  %v3690 = vsel %vm3689, %v3682, %v3686
  %v3691 = vand.u32 2147483647, %v3680
  %vm3692 = vcmp.eq.f32.partialorder %v3691, 8.507059e+37
  %v3693 = vand.u32 %v3680, 2147483648
  %v3694 = vor.u32 1.1754944e-38, %v3693
  %v3695 = vsel %vm3692, %v3694, %v3690
  %v3696 = vmul.f32 1.0, %v3695
  %v3697 = vrcp.pop %v3681
  %v3698 = vmul.f32 %v3681, %v3697
  %v3699 = vsub.f32 1.0, %v3698
  %v3700 = vmul.f32 %v3697, %v3699
  %v3701 = vadd.f32 %v3697, %v3700
  %vm3702 = vweird.f32 %v3681
  %vm3703 = vweird.f32 %v3697
  %vm3704 = vmor %vm3702, %vm3703
  %v3705 = vsel %vm3704, %v3697, %v3701
  %v3706 = vand.u32 2147483647, %v3681
  %vm3707 = vcmp.eq.f32.partialorder %v3706, 8.507059e+37
  %v3708 = vand.u32 %v3681, 2147483648
  %v3709 = vor.u32 1.1754944e-38, %v3708
  %v3710 = vsel %vm3707, %v3709, %v3705
  %v3711 = vmul.f32 1.0, %v3710
  %v3714 = vrot.slane %v3652, 4
  %v3715 = vrot.slane %v3654, 4
  %v3718 = vxor.u32 %v3714, 2147483648
  %v3719 = vxor.u32 %v3715, 2147483648
  %v3720 = vmul.f32 %v3718, 1.442695
  %v3721 = vpow.pop %v3720
  %v3722 = vmul.f32 %v3719, 1.442695
  %v3723 = vpow.pop %v3722
  %v3724 = vadd.f32 %v3721, 1.0
  %v3725 = vadd.f32 %v3723, 1.0
  %v3726 = vrcp.pop %v3724
  %v3727 = vmul.f32 %v3724, %v3726
  %v3728 = vsub.f32 1.0, %v3727
  %v3729 = vmul.f32 %v3726, %v3728
  %v3730 = vadd.f32 %v3726, %v3729
  %vm3731 = vweird.f32 %v3724
  %vm3732 = vweird.f32 %v3726
  %vm3733 = vmor %vm3731, %vm3732
  %v3734 = vsel %vm3733, %v3726, %v3730
  %v3735 = vand.u32 2147483647, %v3724
  %vm3736 = vcmp.eq.f32.partialorder %v3735, 8.507059e+37
  %v3737 = vand.u32 %v3724, 2147483648
  %v3738 = vor.u32 1.1754944e-38, %v3737
  %v3739 = vsel %vm3736, %v3738, %v3734
  %v3740 = vmul.f32 1.0, %v3739
  %v3741 = vrcp.pop %v3725
  %v3742 = vmul.f32 %v3725, %v3741
  %v3743 = vsub.f32 1.0, %v3742
  %v3744 = vmul.f32 %v3741, %v3743
  %v3745 = vadd.f32 %v3741, %v3744
  %vm3746 = vweird.f32 %v3725
  %vm3747 = vweird.f32 %v3741
  %vm3748 = vmor %vm3746, %vm3747
  %v3749 = vsel %vm3748, %v3741, %v3745
  %v3750 = vand.u32 2147483647, %v3725
  %vm3751 = vcmp.eq.f32.partialorder %v3750, 8.507059e+37
  %v3752 = vand.u32 %v3725, 2147483648
  %v3753 = vor.u32 1.1754944e-38, %v3752
  %v3754 = vsel %vm3751, %v3753, %v3749
  %v3755 = vmul.f32 1.0, %v3754
  %v3756 = vtanh.pop %v3653
  %v3757 = vtanh.pop %v3655
  %v3760 = vrot.slane %v3653, 4
  %v3761 = vrot.slane %v3655, 4
  %v3764 = vxor.u32 %v3760, 2147483648
  %v3765 = vxor.u32 %v3761, 2147483648
  %v3766 = vmul.f32 %v3764, 1.442695
  %v3767 = vpow.pop %v3766
  %v3768 = vmul.f32 %v3765, 1.442695
  %v3769 = vpow.pop %v3768
  %v3770 = vadd.f32 %v3767, 1.0
  %v3771 = vadd.f32 %v3769, 1.0
  %v3772 = vrcp.pop %v3770
  %v3773 = vmul.f32 %v3770, %v3772
  %v3774 = vsub.f32 1.0, %v3773
  %v3775 = vmul.f32 %v3772, %v3774
  %v3776 = vadd.f32 %v3772, %v3775
  %vm3777 = vweird.f32 %v3770
  %vm3778 = vweird.f32 %v3772
  %vm3779 = vmor %vm3777, %vm3778
  %v3780 = vsel %vm3779, %v3772, %v3776
  %v3781 = vand.u32 2147483647, %v3770
  %vm3782 = vcmp.eq.f32.partialorder %v3781, 8.507059e+37
  %v3783 = vand.u32 %v3770, 2147483648
  %v3784 = vor.u32 1.1754944e-38, %v3783
  %v3785 = vsel %vm3782, %v3784, %v3780
  %v3786 = vmul.f32 1.0, %v3785
  %v3787 = vrcp.pop %v3771
  %v3788 = vmul.f32 %v3771, %v3787
  %v3789 = vsub.f32 1.0, %v3788
  %v3790 = vmul.f32 %v3787, %v3789
  %v3791 = vadd.f32 %v3787, %v3790
  %vm3792 = vweird.f32 %v3771
  %vm3793 = vweird.f32 %v3787
  %vm3794 = vmor %vm3792, %vm3793
  %v3795 = vsel %vm3794, %v3787, %v3791
  %v3796 = vand.u32 2147483647, %v3771
  %vm3797 = vcmp.eq.f32.partialorder %v3796, 8.507059e+37
  %v3798 = vand.u32 %v3771, 2147483648
  %v3799 = vor.u32 1.1754944e-38, %v3798
  %v3800 = vsel %vm3797, %v3799, %v3795
  %v3801 = vmul.f32 1.0, %v3800
  %v3804 = vrot.slane %v3149, 7
  %v3805 = vrot.slane %v3150, 7
  %v3808 = vmul.f32 %v3740, %v3804
  %v3809 = vmul.f32 %v3755, %v3805
  %v3810 = vmul.f32 %v3696, %v3756
  %v3811 = vmul.f32 %v3711, %v3757
  %v3812 = vadd.f32 %v3808, %v3810
  %v3813 = vadd.f32 %v3809, %v3811
  %v3814 = vtanh.pop %v3812
  %v3815 = vtanh.pop %v3813
  %v3816 = vmul.f32 %v3786, %v3814
  %v3817 = vmul.f32 %v3801, %v3815
  %v3818 = vxor.u32 %v3670, 2147483648
  %v3819 = vxor.u32 %v3672, 2147483648
  %v3820 = vmul.f32 %v3818, 1.442695
  %v3821 = vpow.pop %v3820
  %v3822 = vmul.f32 %v3819, 1.442695
  %v3823 = vpow.pop %v3822
  %v3824 = vadd.f32 %v3821, 1.0
  %v3825 = vadd.f32 %v3823, 1.0
  %v3826 = vrcp.pop %v3824
  %v3827 = vmul.f32 %v3824, %v3826
  %v3828 = vsub.f32 1.0, %v3827
  %v3829 = vmul.f32 %v3826, %v3828
  %v3830 = vadd.f32 %v3826, %v3829
  %vm3831 = vweird.f32 %v3824
  %vm3832 = vweird.f32 %v3826
  %vm3833 = vmor %vm3831, %vm3832
  %v3834 = vsel %vm3833, %v3826, %v3830
  %v3835 = vand.u32 2147483647, %v3824
  %vm3836 = vcmp.eq.f32.partialorder %v3835, 8.507059e+37
  %v3837 = vand.u32 %v3824, 2147483648
  %v3838 = vor.u32 1.1754944e-38, %v3837
  %v3839 = vsel %vm3836, %v3838, %v3834
  %v3840 = vmul.f32 1.0, %v3839
  %v3841 = vrcp.pop %v3825
  %v3842 = vmul.f32 %v3825, %v3841
  %v3843 = vsub.f32 1.0, %v3842
  %v3844 = vmul.f32 %v3841, %v3843
  %v3845 = vadd.f32 %v3841, %v3844
  %vm3846 = vweird.f32 %v3825
  %vm3847 = vweird.f32 %v3841
  %vm3848 = vmor %vm3846, %vm3847
  %v3849 = vsel %vm3848, %v3841, %v3845
  %v3850 = vand.u32 2147483647, %v3825
  %vm3851 = vcmp.eq.f32.partialorder %v3850, 8.507059e+37
  %v3852 = vand.u32 %v3825, 2147483648
  %v3853 = vor.u32 1.1754944e-38, %v3852
  %v3854 = vsel %vm3851, %v3853, %v3849
  %v3855 = vmul.f32 1.0, %v3854
  %v3858 = vrot.slane %v3670, 4
  %v3859 = vrot.slane %v3672, 4
  %v3862 = vxor.u32 %v3858, 2147483648
  %v3863 = vxor.u32 %v3859, 2147483648
  %v3864 = vmul.f32 %v3862, 1.442695
  %v3865 = vpow.pop %v3864
  %v3866 = vmul.f32 %v3863, 1.442695
  %v3867 = vpow.pop %v3866
  %v3868 = vadd.f32 %v3865, 1.0
  %v3869 = vadd.f32 %v3867, 1.0
  %v3870 = vrcp.pop %v3868
  %v3871 = vmul.f32 %v3868, %v3870
  %v3872 = vsub.f32 1.0, %v3871
  %v3873 = vmul.f32 %v3870, %v3872
  %v3874 = vadd.f32 %v3870, %v3873
  %vm3875 = vweird.f32 %v3868
  %vm3876 = vweird.f32 %v3870
  %vm3877 = vmor %vm3875, %vm3876
  %v3878 = vsel %vm3877, %v3870, %v3874
  %v3879 = vand.u32 2147483647, %v3868
  %vm3880 = vcmp.eq.f32.partialorder %v3879, 8.507059e+37
  %v3881 = vand.u32 %v3868, 2147483648
  %v3882 = vor.u32 1.1754944e-38, %v3881
  %v3883 = vsel %vm3880, %v3882, %v3878
  %v3884 = vmul.f32 1.0, %v3883
  %v3885 = vrcp.pop %v3869
  %v3886 = vmul.f32 %v3869, %v3885
  %v3887 = vsub.f32 1.0, %v3886
  %v3888 = vmul.f32 %v3885, %v3887
  %v3889 = vadd.f32 %v3885, %v3888
  %vm3890 = vweird.f32 %v3869
  %vm3891 = vweird.f32 %v3885
  %vm3892 = vmor %vm3890, %vm3891
  %v3893 = vsel %vm3892, %v3885, %v3889
  %v3894 = vand.u32 2147483647, %v3869
  %vm3895 = vcmp.eq.f32.partialorder %v3894, 8.507059e+37
  %v3896 = vand.u32 %v3869, 2147483648
  %v3897 = vor.u32 1.1754944e-38, %v3896
  %v3898 = vsel %vm3895, %v3897, %v3893
  %v3899 = vmul.f32 1.0, %v3898
  %v3900 = vtanh.pop %v3671
  %v3901 = vtanh.pop %v3673
  %v3904 = vrot.slane %v3671, 4
  %v3905 = vrot.slane %v3673, 4
  %v3908 = vxor.u32 %v3904, 2147483648
  %v3909 = vxor.u32 %v3905, 2147483648
  %v3910 = vmul.f32 %v3908, 1.442695
  %v3911 = vpow.pop %v3910
  %v3912 = vmul.f32 %v3909, 1.442695
  %v3913 = vpow.pop %v3912
  %v3914 = vadd.f32 %v3911, 1.0
  %v3915 = vadd.f32 %v3913, 1.0
  %v3916 = vrcp.pop %v3914
  %v3917 = vmul.f32 %v3914, %v3916
  %v3918 = vsub.f32 1.0, %v3917
  %v3919 = vmul.f32 %v3916, %v3918
  %v3920 = vadd.f32 %v3916, %v3919
  %vm3921 = vweird.f32 %v3914
  %vm3922 = vweird.f32 %v3916
  %vm3923 = vmor %vm3921, %vm3922
  %v3924 = vsel %vm3923, %v3916, %v3920
  %v3925 = vand.u32 2147483647, %v3914
  %vm3926 = vcmp.eq.f32.partialorder %v3925, 8.507059e+37
  %v3927 = vand.u32 %v3914, 2147483648
  %v3928 = vor.u32 1.1754944e-38, %v3927
  %v3929 = vsel %vm3926, %v3928, %v3924
  %v3930 = vmul.f32 1.0, %v3929
  %v3931 = vrcp.pop %v3915
  %v3932 = vmul.f32 %v3915, %v3931
  %v3933 = vsub.f32 1.0, %v3932
  %v3934 = vmul.f32 %v3931, %v3933
  %v3935 = vadd.f32 %v3931, %v3934
  %vm3936 = vweird.f32 %v3915
  %vm3937 = vweird.f32 %v3931
  %vm3938 = vmor %vm3936, %vm3937
  %v3939 = vsel %vm3938, %v3931, %v3935
  %v3940 = vand.u32 2147483647, %v3915
  %vm3941 = vcmp.eq.f32.partialorder %v3940, 8.507059e+37
  %v3942 = vand.u32 %v3915, 2147483648
  %v3943 = vor.u32 1.1754944e-38, %v3942
  %v3944 = vsel %vm3941, %v3943, %v3939
  %v3945 = vmul.f32 1.0, %v3944
  %v3948 = vrot.slane %v3295, 5
  %v3949 = vrot.slane %v3948, 4
  %v3950 = vrot.slane %v3296, 5
  %v3951 = vrot.slane %v3950, 4
  %v3954 = vmul.f32 %v3884, %v3949
  %v3955 = vmul.f32 %v3899, %v3951
  %v3956 = vmul.f32 %v3840, %v3900
  %v3957 = vmul.f32 %v3855, %v3901
  %v3958 = vadd.f32 %v3954, %v3956
  %v3959 = vadd.f32 %v3955, %v3957
  %v3960 = vtanh.pop %v3958
  %v3961 = vtanh.pop %v3959
  %v3962 = vmul.f32 %v3930, %v3960
  %v3963 = vmul.f32 %v3945, %v3961
  %v3966 = vperm.slane %v3962, 0
  %v3967 = vperm.slane %v3963, 0
  %v3968 = vsel %vm1981, %v3967, %v3966
  %v3970 = vsel %vm2642, %v3310, %v3309
  %v3971 = vsel %vm3305, %v2647, %v2646
  %v3974 = vperm.slane %v3816, 3
  %v3975 = vperm.slane %v3817, 3
  %vm3976 = vcmask 1044484
  %v3977 = vsel %vm3976, %v3975, %v3974
  %v3978 = vsel %vm3976, %v1987, %v1986
  %v3979 = vrot.slane %v2643, 7
  %v3980 = vrot.slane %v3970, 7
  %v3983 = vrot.slane %v3306, 6
  %v3984 = vrot.slane %v3971, 6
  %v3987 = vrot.slane %v3977, 5
  %v3988 = vrot.slane %v3978, 5
  %vm3991 = vcmask 1041408
  %v3992 = vsel %vm3991, %v1982, %v3979
  %v3993 = vsel %vm3991, %v3968, %v3980
  %v3994 = vsel %vm1066, %v3992, %v3983
  %v3995 = vsel %vm1066, %v3993, %v3984
  %vm3996 = vcmask 1045504
  %v3997 = vsel %vm3996, %v3994, %v3987
  %v3998 = vsel %vm3996, %v3995, %v3988
  %v3999 = vpack.c.bf16 %v3997, %v3997
  %v4000 = vpack.c.bf16 %v3998, %v3998
  %v4001 = vld [vmem:[%s8] sm:$0xff]
  %v4002 = vld [vmem:[%s8 + $0x8] sm:$0xff]
  %v4003 = vld [vmem:[%s8 + $0x10] sm:$0xff]
  %v4004 = vld [vmem:[%s8 + $0x18] sm:$0xff]
  %v4005 = vld [vmem:[%s8 + $0x20] sm:$0xff]
  %v4006 = vld [vmem:[%s8 + $0x28] sm:$0xff]
  %v4007 = vld [vmem:[%s8 + $0x30] sm:$0xff]
  %v4008 = vld [vmem:[%s8 + $0x38] sm:$0xff]
  %v4009 = vld [vmem:[%s8 + $0x40] sm:$0xff]
  %v4010 = vld [vmem:[%s8 + $0x48] sm:$0xff]
  %v4011 = vld [vmem:[%s8 + $0x50] sm:$0xff]
  %v4012 = vld [vmem:[%s8 + $0x58] sm:$0xff]
  %v4013 = vld [vmem:[%s8 + $0x60] sm:$0xff]
  %v4014 = vld [vmem:[%s8 + $0x68] sm:$0xff]
  %v4015 = vld [vmem:[%s8 + $0x70] sm:$0xff]
  %v4016 = vld [vmem:[%s8 + $0x78] sm:$0xff]
  %v4017 = vld [vmem:[%s8 + $0x80] sm:$0xff]
  %v4018 = vld [vmem:[%s8 + $0x88] sm:$0xff]
  %v4019 = vld [vmem:[%s8 + $0x90] sm:$0xff]
  %v4020 = vld [vmem:[%s8 + $0x98] sm:$0xff]
  %v4021 = vld [vmem:[%s8 + $0xa0] sm:$0xff]
  %v4022 = vld [vmem:[%s8 + $0xa8] sm:$0xff]
  %v4023 = vld [vmem:[%s8 + $0xb0] sm:$0xff]
  %v4024 = vld [vmem:[%s8 + $0xb8] sm:$0xff]
  %v4025 = vld [vmem:[%s8 + $0xc0] sm:$0xff]
  %v4026 = vld [vmem:[%s8 + $0xc8] sm:$0xff]
  %v4027 = vld [vmem:[%s8 + $0xd0] sm:$0xff]
  %v4028 = vld [vmem:[%s8 + $0xd8] sm:$0xff]
  %v4029 = vld [vmem:[%s8 + $0xe0] sm:$0xff]
  %v4030 = vld [vmem:[%s8 + $0xe8] sm:$0xff]
  %v4031 = vld [vmem:[%s8 + $0xf0] sm:$0xff]
  %v4032 = vld [vmem:[%s8 + $0xf8] sm:$0xff]
  %v4033 = vld [vmem:[%s9] sm:$0x3]
  %v4035 = vperm.slane %v4033, 0
  %v4036 = vperm.slane %v4033, 1
  %v4071 = vunpack.c.l.b16 %v4001
  %v4072 = vunpack.c.h.b16 %v4001
  %v4073 = vunpack.c.l.b16 %v4002
  %v4074 = vunpack.c.h.b16 %v4002
  %v4075 = vunpack.c.l.b16 %v4003
  %v4076 = vunpack.c.h.b16 %v4003
  %v4077 = vunpack.c.l.b16 %v4004
  %v4078 = vunpack.c.h.b16 %v4004
  %v4079 = vunpack.c.l.b16 %v4005
  %v4080 = vunpack.c.h.b16 %v4005
  %v4081 = vunpack.c.l.b16 %v4006
  %v4082 = vunpack.c.h.b16 %v4006
  %v4083 = vunpack.c.l.b16 %v4007
  %v4084 = vunpack.c.h.b16 %v4007
  %v4085 = vunpack.c.l.b16 %v4008
  %v4086 = vunpack.c.h.b16 %v4008
  %v4087 = vunpack.c.l.b16 %v4009
  %v4088 = vunpack.c.h.b16 %v4009
  %v4089 = vunpack.c.l.b16 %v4010
  %v4090 = vunpack.c.h.b16 %v4010
  %v4091 = vunpack.c.l.b16 %v4011
  %v4092 = vunpack.c.h.b16 %v4011
  %v4093 = vunpack.c.l.b16 %v4012
  %v4094 = vunpack.c.h.b16 %v4012
  %v4095 = vunpack.c.l.b16 %v4013
  %v4096 = vunpack.c.h.b16 %v4013
  %v4097 = vunpack.c.l.b16 %v4014
  %v4098 = vunpack.c.h.b16 %v4014
  %v4099 = vunpack.c.l.b16 %v4015
  %v4100 = vunpack.c.h.b16 %v4015
  %v4101 = vunpack.c.l.b16 %v4016
  %v4102 = vunpack.c.h.b16 %v4016
  %v4103 = vunpack.c.l.b16 %v4017
  %v4104 = vunpack.c.h.b16 %v4017
  %v4105 = vunpack.c.l.b16 %v4018
  %v4106 = vunpack.c.h.b16 %v4018
  %v4107 = vunpack.c.l.b16 %v4019
  %v4108 = vunpack.c.h.b16 %v4019
  %v4109 = vunpack.c.l.b16 %v4020
  %v4110 = vunpack.c.h.b16 %v4020
  %v4111 = vunpack.c.l.b16 %v4021
  %v4112 = vunpack.c.h.b16 %v4021
  %v4113 = vunpack.c.l.b16 %v4022
  %v4114 = vunpack.c.h.b16 %v4022
  %v4115 = vunpack.c.l.b16 %v4023
  %v4116 = vunpack.c.h.b16 %v4023
  %v4117 = vunpack.c.l.b16 %v4024
  %v4118 = vunpack.c.h.b16 %v4024
  %v4119 = vunpack.c.l.b16 %v4025
  %v4120 = vunpack.c.h.b16 %v4025
  %v4121 = vunpack.c.l.b16 %v4026
  %v4122 = vunpack.c.h.b16 %v4026
  %v4123 = vunpack.c.l.b16 %v4027
  %v4124 = vunpack.c.h.b16 %v4027
  %v4125 = vunpack.c.l.b16 %v4028
  %v4126 = vunpack.c.h.b16 %v4028
  %v4127 = vunpack.c.l.b16 %v4029
  %v4128 = vunpack.c.h.b16 %v4029
  %v4129 = vunpack.c.l.b16 %v4030
  %v4130 = vunpack.c.h.b16 %v4030
  %v4131 = vunpack.c.l.b16 %v4031
  %v4132 = vunpack.c.h.b16 %v4031
  %v4133 = vunpack.c.l.b16 %v4032
  %v4134 = vunpack.c.h.b16 %v4032
  %v4135 = vpack.c.b16 %v4073, %v4071
  %v4136 = vpack.c.b16 %v4074, %v4072
  %v4137 = vpack.c.b16 %v4077, %v4075
  %v4138 = vpack.c.b16 %v4078, %v4076
  %v4139 = vpack.c.b16 %v4081, %v4079
  %v4140 = vpack.c.b16 %v4082, %v4080
  %v4141 = vpack.c.b16 %v4085, %v4083
  %v4142 = vpack.c.b16 %v4086, %v4084
  %v4143 = vpack.c.b16 %v4089, %v4087
  %v4144 = vpack.c.b16 %v4090, %v4088
  %v4145 = vpack.c.b16 %v4093, %v4091
  %v4146 = vpack.c.b16 %v4094, %v4092
  %v4147 = vpack.c.b16 %v4097, %v4095
  %v4148 = vpack.c.b16 %v4098, %v4096
  %v4149 = vpack.c.b16 %v4101, %v4099
  %v4150 = vpack.c.b16 %v4102, %v4100
  %v4151 = vpack.c.b16 %v4105, %v4103
  %v4152 = vpack.c.b16 %v4106, %v4104
  %v4153 = vpack.c.b16 %v4109, %v4107
  %v4154 = vpack.c.b16 %v4110, %v4108
  %v4155 = vpack.c.b16 %v4113, %v4111
  %v4156 = vpack.c.b16 %v4114, %v4112
  %v4157 = vpack.c.b16 %v4117, %v4115
  %v4158 = vpack.c.b16 %v4118, %v4116
  %v4159 = vpack.c.b16 %v4121, %v4119
  %v4160 = vpack.c.b16 %v4122, %v4120
  %v4161 = vpack.c.b16 %v4125, %v4123
  %v4162 = vpack.c.b16 %v4126, %v4124
  %v4163 = vpack.c.b16 %v4129, %v4127
  %v4164 = vpack.c.b16 %v4130, %v4128
  %v4165 = vpack.c.b16 %v4133, %v4131
  %v4166 = vpack.c.b16 %v4134, %v4132
  %4199 = vmatpush.bf16.msra.mxu0 %v4149
  %4200 = vmatpush.bf16.msra.mxu0 %v4147
  %4201 = vmatpush.bf16.msra.mxu0 %v4145
  %4202 = vmatpush.bf16.msra.mxu0 %v4143
  %4203 = vmatpush.bf16.msra.mxu0 %v4141
  %4204 = vmatpush.bf16.msra.mxu0 %v4139
  %4205 = vmatpush.bf16.msra.mxu0 %v4137
  %4206 = vmatpush.bf16.msra.mxu0 %v4135
  %4207 = vmatmul.bf16.gmra.mxu0 %v3999
  %v4208 = vpop.f32.mrf.mxu0
  %v4209 = vadd.f32 %v4035, %v4208
  %v4210 = vpop.f32.mrf.mxu0
  %4211 = vdwg.mxu0
  %4212 = vmatpush.bf16.msra.mxu0 %v4165
  %4213 = vmatpush.bf16.msra.mxu0 %v4163
  %4214 = vmatpush.bf16.msra.mxu0 %v4161
  %4215 = vmatpush.bf16.msra.mxu0 %v4159
  %4216 = vmatpush.bf16.msra.mxu0 %v4157
  %4217 = vmatpush.bf16.msra.mxu0 %v4155
  %4218 = vmatpush.bf16.msra.mxu0 %v4153
  %4219 = vmatpush.bf16.msra.mxu0 %v4151
  %4220 = vmatmul.bf16.gmra.mxu0 %v4000
  %v4221 = vpop.f32.mrf.mxu0
  %v4222 = vadd.f32 %v4209, %v4221
  %v4223 = vpop.f32.mrf.mxu0
  %4224 = vdwg.mxu0
  %4225 = vmatpush.bf16.msra.mxu0 %v4150
  %4226 = vmatpush.bf16.msra.mxu0 %v4148
  %4227 = vmatpush.bf16.msra.mxu0 %v4146
  %4228 = vmatpush.bf16.msra.mxu0 %v4144
  %4229 = vmatpush.bf16.msra.mxu0 %v4142
  %4230 = vmatpush.bf16.msra.mxu0 %v4140
  %4231 = vmatpush.bf16.msra.mxu0 %v4138
  %4232 = vmatpush.bf16.msra.mxu0 %v4136
  %4233 = vmatmul.bf16.gmra.mxu0 %v3999
  %v4234 = vpop.f32.mrf.mxu0
  %v4235 = vadd.f32 %v4036, %v4234
  %v4236 = vpop.f32.mrf.mxu0
  %4237 = vdwg.mxu0
  %4238 = vmatpush.bf16.msra.mxu0 %v4166
  %4239 = vmatpush.bf16.msra.mxu0 %v4164
  %4240 = vmatpush.bf16.msra.mxu0 %v4162
  %4241 = vmatpush.bf16.msra.mxu0 %v4160
  %4242 = vmatpush.bf16.msra.mxu0 %v4158
  %4243 = vmatpush.bf16.msra.mxu0 %v4156
  %4244 = vmatpush.bf16.msra.mxu0 %v4154
  %4245 = vmatpush.bf16.msra.mxu0 %v4152
  %4246 = vmatmul.bf16.gmra.mxu0 %v4000
  %v4247 = vpop.f32.mrf.mxu0
  %v4248 = vadd.f32 %v4235, %v4247
  %v4249 = vpop.f32.mrf.mxu0
  %4250 = vdwg.mxu0
  %v4251 = vtanh.pop %v4222
  %v4252 = vtanh.pop %v4248
  %v4253 = vld [vmem:[%s4] sm:$0xff]
  %v4254 = vld [vmem:[%s4 + $0x8] sm:$0xff]
  %v4255 = vld [vmem:[%s4 + $0x10] sm:$0xff]
  %v4256 = vld [vmem:[%s4 + $0x18] sm:$0xff]
  %v4257 = vld [vmem:[%s4 + $0x20] sm:$0xff]
  %v4258 = vld [vmem:[%s4 + $0x28] sm:$0xff]
  %v4259 = vld [vmem:[%s4 + $0x30] sm:$0xff]
  %v4260 = vld [vmem:[%s4 + $0x38] sm:$0xff]
  %v4261 = vld [vmem:[%s4 + $0x40] sm:$0xff]
  %v4262 = vld [vmem:[%s4 + $0x48] sm:$0xff]
  %v4263 = vld [vmem:[%s4 + $0x50] sm:$0xff]
  %v4264 = vld [vmem:[%s4 + $0x58] sm:$0xff]
  %v4265 = vld [vmem:[%s4 + $0x60] sm:$0xff]
  %v4266 = vld [vmem:[%s4 + $0x68] sm:$0xff]
  %v4267 = vld [vmem:[%s4 + $0x70] sm:$0xff]
  %v4268 = vld [vmem:[%s4 + $0x78] sm:$0xff]
  %v4269 = vld [vmem:[%s4 + $0x80] sm:$0xff]
  %v4270 = vld [vmem:[%s4 + $0x88] sm:$0xff]
  %v4271 = vld [vmem:[%s4 + $0x90] sm:$0xff]
  %v4272 = vld [vmem:[%s4 + $0x98] sm:$0xff]
  %v4273 = vld [vmem:[%s4 + $0xa0] sm:$0xff]
  %v4274 = vld [vmem:[%s4 + $0xa8] sm:$0xff]
  %v4275 = vld [vmem:[%s4 + $0xb0] sm:$0xff]
  %v4276 = vld [vmem:[%s4 + $0xb8] sm:$0xff]
  %v4277 = vld [vmem:[%s4 + $0xc0] sm:$0xff]
  %v4278 = vld [vmem:[%s4 + $0xc8] sm:$0xff]
  %v4279 = vld [vmem:[%s4 + $0xd0] sm:$0xff]
  %v4280 = vld [vmem:[%s4 + $0xd8] sm:$0xff]
  %v4281 = vld [vmem:[%s4 + $0xe0] sm:$0xff]
  %v4282 = vld [vmem:[%s4 + $0xe8] sm:$0xff]
  %v4283 = vld [vmem:[%s4 + $0xf0] sm:$0xff]
  %v4284 = vld [vmem:[%s4 + $0xf8] sm:$0xff]
  %v4285 = vld [vmem:[%s4 + $0x100] sm:$0xff]
  %v4286 = vld [vmem:[%s4 + $0x108] sm:$0xff]
  %v4287 = vld [vmem:[%s4 + $0x110] sm:$0xff]
  %v4288 = vld [vmem:[%s4 + $0x118] sm:$0xff]
  %v4289 = vld [vmem:[%s4 + $0x120] sm:$0xff]
  %v4290 = vld [vmem:[%s4 + $0x128] sm:$0xff]
  %v4291 = vld [vmem:[%s4 + $0x130] sm:$0xff]
  %v4292 = vld [vmem:[%s4 + $0x138] sm:$0xff]
  %v4293 = vld [vmem:[%s4 + $0x140] sm:$0xff]
  %v4294 = vld [vmem:[%s4 + $0x148] sm:$0xff]
  %v4295 = vld [vmem:[%s4 + $0x150] sm:$0xff]
  %v4296 = vld [vmem:[%s4 + $0x158] sm:$0xff]
  %v4297 = vld [vmem:[%s4 + $0x160] sm:$0xff]
  %v4298 = vld [vmem:[%s4 + $0x168] sm:$0xff]
  %v4299 = vld [vmem:[%s4 + $0x170] sm:$0xff]
  %v4300 = vld [vmem:[%s4 + $0x178] sm:$0xff]
  %v4301 = vld [vmem:[%s4 + $0x180] sm:$0xff]
  %v4302 = vld [vmem:[%s4 + $0x188] sm:$0xff]
  %v4303 = vld [vmem:[%s4 + $0x190] sm:$0xff]
  %v4304 = vld [vmem:[%s4 + $0x198] sm:$0xff]
  %v4305 = vld [vmem:[%s4 + $0x1a0] sm:$0xff]
  %v4306 = vld [vmem:[%s4 + $0x1a8] sm:$0xff]
  %v4307 = vld [vmem:[%s4 + $0x1b0] sm:$0xff]
  %v4308 = vld [vmem:[%s4 + $0x1b8] sm:$0xff]
  %v4309 = vld [vmem:[%s4 + $0x1c0] sm:$0xff]
  %v4310 = vld [vmem:[%s4 + $0x1c8] sm:$0xff]
  %v4311 = vld [vmem:[%s4 + $0x1d0] sm:$0xff]
  %v4312 = vld [vmem:[%s4 + $0x1d8] sm:$0xff]
  %v4313 = vld [vmem:[%s4 + $0x1e0] sm:$0xff]
  %v4314 = vld [vmem:[%s4 + $0x1e8] sm:$0xff]
  %v4315 = vld [vmem:[%s4 + $0x1f0] sm:$0xff]
  %v4316 = vld [vmem:[%s4 + $0x1f8] sm:$0xff]
  %v4317 = vpack.c.bf16 %v4257, %v4253
  %v4318 = vpack.c.bf16 %v4258, %v4254
  %v4319 = vpack.c.bf16 %v4259, %v4255
  %v4320 = vpack.c.bf16 %v4260, %v4256
  %v4321 = vpack.c.bf16 %v4265, %v4261
  %v4322 = vpack.c.bf16 %v4266, %v4262
  %v4323 = vpack.c.bf16 %v4267, %v4263
  %v4324 = vpack.c.bf16 %v4268, %v4264
  %v4325 = vpack.c.bf16 %v4273, %v4269
  %v4326 = vpack.c.bf16 %v4274, %v4270
  %v4327 = vpack.c.bf16 %v4275, %v4271
  %v4328 = vpack.c.bf16 %v4276, %v4272
  %v4329 = vpack.c.bf16 %v4281, %v4277
  %v4330 = vpack.c.bf16 %v4282, %v4278
  %v4331 = vpack.c.bf16 %v4283, %v4279
  %v4332 = vpack.c.bf16 %v4284, %v4280
  %v4333 = vpack.c.bf16 %v4289, %v4285
  %v4334 = vpack.c.bf16 %v4290, %v4286
  %v4335 = vpack.c.bf16 %v4291, %v4287
  %v4336 = vpack.c.bf16 %v4292, %v4288
  %v4337 = vpack.c.bf16 %v4297, %v4293
  %v4338 = vpack.c.bf16 %v4298, %v4294
  %v4339 = vpack.c.bf16 %v4299, %v4295
  %v4340 = vpack.c.bf16 %v4300, %v4296
  %v4341 = vpack.c.bf16 %v4305, %v4301
  %v4342 = vpack.c.bf16 %v4306, %v4302
  %v4343 = vpack.c.bf16 %v4307, %v4303
  %v4344 = vpack.c.bf16 %v4308, %v4304
  %v4345 = vpack.c.bf16 %v4313, %v4309
  %v4346 = vpack.c.bf16 %v4314, %v4310
  %v4347 = vpack.c.bf16 %v4315, %v4311
  %v4348 = vpack.c.bf16 %v4316, %v4312
  %v4349 = vld [vmem:[%s10] sm:$0xff]
  %v4350 = vld [vmem:[%s10 + $0x8] sm:$0xff]
  %v4351 = vld [vmem:[%s10 + $0x10] sm:$0xff]
  %v4352 = vld [vmem:[%s10 + $0x18] sm:$0xff]
  %v4353 = vld [vmem:[%s10 + $0x20] sm:$0xff]
  %v4354 = vld [vmem:[%s10 + $0x28] sm:$0xff]
  %v4355 = vld [vmem:[%s10 + $0x30] sm:$0xff]
  %v4356 = vld [vmem:[%s10 + $0x38] sm:$0xff]
  %v4357 = vld [vmem:[%s10 + $0x40] sm:$0xff]
  %v4358 = vld [vmem:[%s10 + $0x48] sm:$0xff]
  %v4359 = vld [vmem:[%s10 + $0x50] sm:$0xff]
  %v4360 = vld [vmem:[%s10 + $0x58] sm:$0xff]
  %v4361 = vld [vmem:[%s10 + $0x60] sm:$0xff]
  %v4362 = vld [vmem:[%s10 + $0x68] sm:$0xff]
  %v4363 = vld [vmem:[%s10 + $0x70] sm:$0xff]
  %v4364 = vld [vmem:[%s10 + $0x78] sm:$0xff]
  %v4365 = vld [vmem:[%s10 + $0x80] sm:$0xff]
  %v4366 = vld [vmem:[%s10 + $0x88] sm:$0xff]
  %v4367 = vld [vmem:[%s10 + $0x90] sm:$0xff]
  %v4368 = vld [vmem:[%s10 + $0x98] sm:$0xff]
  %v4369 = vld [vmem:[%s10 + $0xa0] sm:$0xff]
  %v4370 = vld [vmem:[%s10 + $0xa8] sm:$0xff]
  %v4371 = vld [vmem:[%s10 + $0xb0] sm:$0xff]
  %v4372 = vld [vmem:[%s10 + $0xb8] sm:$0xff]
  %v4373 = vld [vmem:[%s10 + $0xc0] sm:$0xff]
  %v4374 = vld [vmem:[%s10 + $0xc8] sm:$0xff]
  %v4375 = vld [vmem:[%s10 + $0xd0] sm:$0xff]
  %v4376 = vld [vmem:[%s10 + $0xd8] sm:$0xff]
  %v4377 = vld [vmem:[%s10 + $0xe0] sm:$0xff]
  %v4378 = vld [vmem:[%s10 + $0xe8] sm:$0xff]
  %v4379 = vld [vmem:[%s10 + $0xf0] sm:$0xff]
  %v4380 = vld [vmem:[%s10 + $0xf8] sm:$0xff]
  %v4381 = vld [vmem:[%s10 + $0x100] sm:$0xff]
  %v4382 = vld [vmem:[%s10 + $0x108] sm:$0xff]
  %v4383 = vld [vmem:[%s10 + $0x110] sm:$0xff]
  %v4384 = vld [vmem:[%s10 + $0x118] sm:$0xff]
  %v4385 = vld [vmem:[%s10 + $0x120] sm:$0xff]
  %v4386 = vld [vmem:[%s10 + $0x128] sm:$0xff]
  %v4387 = vld [vmem:[%s10 + $0x130] sm:$0xff]
  %v4388 = vld [vmem:[%s10 + $0x138] sm:$0xff]
  %v4389 = vld [vmem:[%s10 + $0x140] sm:$0xff]
  %v4390 = vld [vmem:[%s10 + $0x148] sm:$0xff]
  %v4391 = vld [vmem:[%s10 + $0x150] sm:$0xff]
  %v4392 = vld [vmem:[%s10 + $0x158] sm:$0xff]
  %v4393 = vld [vmem:[%s10 + $0x160] sm:$0xff]
  %v4394 = vld [vmem:[%s10 + $0x168] sm:$0xff]
  %v4395 = vld [vmem:[%s10 + $0x170] sm:$0xff]
  %v4396 = vld [vmem:[%s10 + $0x178] sm:$0xff]
  %v4397 = vld [vmem:[%s10 + $0x180] sm:$0xff]
  %v4398 = vld [vmem:[%s10 + $0x188] sm:$0xff]
  %v4399 = vld [vmem:[%s10 + $0x190] sm:$0xff]
  %v4400 = vld [vmem:[%s10 + $0x198] sm:$0xff]
  %v4401 = vld [vmem:[%s10 + $0x1a0] sm:$0xff]
  %v4402 = vld [vmem:[%s10 + $0x1a8] sm:$0xff]
  %v4403 = vld [vmem:[%s10 + $0x1b0] sm:$0xff]
  %v4404 = vld [vmem:[%s10 + $0x1b8] sm:$0xff]
  %v4405 = vld [vmem:[%s10 + $0x1c0] sm:$0xff]
  %v4406 = vld [vmem:[%s10 + $0x1c8] sm:$0xff]
  %v4407 = vld [vmem:[%s10 + $0x1d0] sm:$0xff]
  %v4408 = vld [vmem:[%s10 + $0x1d8] sm:$0xff]
  %v4409 = vld [vmem:[%s10 + $0x1e0] sm:$0xff]
  %v4410 = vld [vmem:[%s10 + $0x1e8] sm:$0xff]
  %v4411 = vld [vmem:[%s10 + $0x1f0] sm:$0xff]
  %v4412 = vld [vmem:[%s10 + $0x1f8] sm:$0xff]
  %v4413 = vld [vmem:[%s11] sm:$0x3]
  %v4415 = vperm.slane %v4413, 0
  %v4416 = vperm.slane %v4413, 1
  %v4483 = vunpack.c.l.b16 %v4349
  %v4484 = vunpack.c.h.b16 %v4349
  %v4485 = vunpack.c.l.b16 %v4350
  %v4486 = vunpack.c.h.b16 %v4350
  %v4487 = vunpack.c.l.b16 %v4351
  %v4488 = vunpack.c.h.b16 %v4351
  %v4489 = vunpack.c.l.b16 %v4352
  %v4490 = vunpack.c.h.b16 %v4352
  %v4491 = vunpack.c.l.b16 %v4353
  %v4492 = vunpack.c.h.b16 %v4353
  %v4493 = vunpack.c.l.b16 %v4354
  %v4494 = vunpack.c.h.b16 %v4354
  %v4495 = vunpack.c.l.b16 %v4355
  %v4496 = vunpack.c.h.b16 %v4355
  %v4497 = vunpack.c.l.b16 %v4356
  %v4498 = vunpack.c.h.b16 %v4356
  %v4499 = vunpack.c.l.b16 %v4357
  %v4500 = vunpack.c.h.b16 %v4357
  %v4501 = vunpack.c.l.b16 %v4358
  %v4502 = vunpack.c.h.b16 %v4358
  %v4503 = vunpack.c.l.b16 %v4359
  %v4504 = vunpack.c.h.b16 %v4359
  %v4505 = vunpack.c.l.b16 %v4360
  %v4506 = vunpack.c.h.b16 %v4360
  %v4507 = vunpack.c.l.b16 %v4361
  %v4508 = vunpack.c.h.b16 %v4361
  %v4509 = vunpack.c.l.b16 %v4362
  %v4510 = vunpack.c.h.b16 %v4362
  %v4511 = vunpack.c.l.b16 %v4363
  %v4512 = vunpack.c.h.b16 %v4363
  %v4513 = vunpack.c.l.b16 %v4364
  %v4514 = vunpack.c.h.b16 %v4364
  %v4515 = vunpack.c.l.b16 %v4365
  %v4516 = vunpack.c.h.b16 %v4365
  %v4517 = vunpack.c.l.b16 %v4366
  %v4518 = vunpack.c.h.b16 %v4366
  %v4519 = vunpack.c.l.b16 %v4367
  %v4520 = vunpack.c.h.b16 %v4367
  %v4521 = vunpack.c.l.b16 %v4368
  %v4522 = vunpack.c.h.b16 %v4368
  %v4523 = vunpack.c.l.b16 %v4369
  %v4524 = vunpack.c.h.b16 %v4369
  %v4525 = vunpack.c.l.b16 %v4370
  %v4526 = vunpack.c.h.b16 %v4370
  %v4527 = vunpack.c.l.b16 %v4371
  %v4528 = vunpack.c.h.b16 %v4371
  %v4529 = vunpack.c.l.b16 %v4372
  %v4530 = vunpack.c.h.b16 %v4372
  %v4531 = vunpack.c.l.b16 %v4373
  %v4532 = vunpack.c.h.b16 %v4373
  %v4533 = vunpack.c.l.b16 %v4374
  %v4534 = vunpack.c.h.b16 %v4374
  %v4535 = vunpack.c.l.b16 %v4375
  %v4536 = vunpack.c.h.b16 %v4375
  %v4537 = vunpack.c.l.b16 %v4376
  %v4538 = vunpack.c.h.b16 %v4376
  %v4539 = vunpack.c.l.b16 %v4377
  %v4540 = vunpack.c.h.b16 %v4377
  %v4541 = vunpack.c.l.b16 %v4378
  %v4542 = vunpack.c.h.b16 %v4378
  %v4543 = vunpack.c.l.b16 %v4379
  %v4544 = vunpack.c.h.b16 %v4379
  %v4545 = vunpack.c.l.b16 %v4380
  %v4546 = vunpack.c.h.b16 %v4380
  %v4547 = vunpack.c.l.b16 %v4381
  %v4548 = vunpack.c.h.b16 %v4381
  %v4549 = vunpack.c.l.b16 %v4382
  %v4550 = vunpack.c.h.b16 %v4382
  %v4551 = vunpack.c.l.b16 %v4383
  %v4552 = vunpack.c.h.b16 %v4383
  %v4553 = vunpack.c.l.b16 %v4384
  %v4554 = vunpack.c.h.b16 %v4384
  %v4555 = vunpack.c.l.b16 %v4385
  %v4556 = vunpack.c.h.b16 %v4385
  %v4557 = vunpack.c.l.b16 %v4386
  %v4558 = vunpack.c.h.b16 %v4386
  %v4559 = vunpack.c.l.b16 %v4387
  %v4560 = vunpack.c.h.b16 %v4387
  %v4561 = vunpack.c.l.b16 %v4388
  %v4562 = vunpack.c.h.b16 %v4388
  %v4563 = vunpack.c.l.b16 %v4389
  %v4564 = vunpack.c.h.b16 %v4389
  %v4565 = vunpack.c.l.b16 %v4390
  %v4566 = vunpack.c.h.b16 %v4390
  %v4567 = vunpack.c.l.b16 %v4391
  %v4568 = vunpack.c.h.b16 %v4391
  %v4569 = vunpack.c.l.b16 %v4392
  %v4570 = vunpack.c.h.b16 %v4392
  %v4571 = vunpack.c.l.b16 %v4393
  %v4572 = vunpack.c.h.b16 %v4393
  %v4573 = vunpack.c.l.b16 %v4394
  %v4574 = vunpack.c.h.b16 %v4394
  %v4575 = vunpack.c.l.b16 %v4395
  %v4576 = vunpack.c.h.b16 %v4395
  %v4577 = vunpack.c.l.b16 %v4396
  %v4578 = vunpack.c.h.b16 %v4396
  %v4579 = vunpack.c.l.b16 %v4397
  %v4580 = vunpack.c.h.b16 %v4397
  %v4581 = vunpack.c.l.b16 %v4398
  %v4582 = vunpack.c.h.b16 %v4398
  %v4583 = vunpack.c.l.b16 %v4399
  %v4584 = vunpack.c.h.b16 %v4399
  %v4585 = vunpack.c.l.b16 %v4400
  %v4586 = vunpack.c.h.b16 %v4400
  %v4587 = vunpack.c.l.b16 %v4401
  %v4588 = vunpack.c.h.b16 %v4401
  %v4589 = vunpack.c.l.b16 %v4402
  %v4590 = vunpack.c.h.b16 %v4402
  %v4591 = vunpack.c.l.b16 %v4403
  %v4592 = vunpack.c.h.b16 %v4403
  %v4593 = vunpack.c.l.b16 %v4404
  %v4594 = vunpack.c.h.b16 %v4404
  %v4595 = vunpack.c.l.b16 %v4405
  %v4596 = vunpack.c.h.b16 %v4405
  %v4597 = vunpack.c.l.b16 %v4406
  %v4598 = vunpack.c.h.b16 %v4406
  %v4599 = vunpack.c.l.b16 %v4407
  %v4600 = vunpack.c.h.b16 %v4407
  %v4601 = vunpack.c.l.b16 %v4408
  %v4602 = vunpack.c.h.b16 %v4408
  %v4603 = vunpack.c.l.b16 %v4409
  %v4604 = vunpack.c.h.b16 %v4409
  %v4605 = vunpack.c.l.b16 %v4410
  %v4606 = vunpack.c.h.b16 %v4410
  %v4607 = vunpack.c.l.b16 %v4411
  %v4608 = vunpack.c.h.b16 %v4411
  %v4609 = vunpack.c.l.b16 %v4412
  %v4610 = vunpack.c.h.b16 %v4412
  %v4611 = vpack.c.b16 %v4485, %v4483
  %v4612 = vpack.c.b16 %v4486, %v4484
  %v4613 = vpack.c.b16 %v4489, %v4487
  %v4614 = vpack.c.b16 %v4490, %v4488
  %v4615 = vpack.c.b16 %v4493, %v4491
  %v4616 = vpack.c.b16 %v4494, %v4492
  %v4617 = vpack.c.b16 %v4497, %v4495
  %v4618 = vpack.c.b16 %v4498, %v4496
  %v4619 = vpack.c.b16 %v4501, %v4499
  %v4620 = vpack.c.b16 %v4502, %v4500
  %v4621 = vpack.c.b16 %v4505, %v4503
  %v4622 = vpack.c.b16 %v4506, %v4504
  %v4623 = vpack.c.b16 %v4509, %v4507
  %v4624 = vpack.c.b16 %v4510, %v4508
  %v4625 = vpack.c.b16 %v4513, %v4511
  %v4626 = vpack.c.b16 %v4514, %v4512
  %v4627 = vpack.c.b16 %v4517, %v4515
  %v4628 = vpack.c.b16 %v4518, %v4516
  %v4629 = vpack.c.b16 %v4521, %v4519
  %v4630 = vpack.c.b16 %v4522, %v4520
  %v4631 = vpack.c.b16 %v4525, %v4523
  %v4632 = vpack.c.b16 %v4526, %v4524
  %v4633 = vpack.c.b16 %v4529, %v4527
  %v4634 = vpack.c.b16 %v4530, %v4528
  %v4635 = vpack.c.b16 %v4533, %v4531
  %v4636 = vpack.c.b16 %v4534, %v4532
  %v4637 = vpack.c.b16 %v4537, %v4535
  %v4638 = vpack.c.b16 %v4538, %v4536
  %v4639 = vpack.c.b16 %v4541, %v4539
  %v4640 = vpack.c.b16 %v4542, %v4540
  %v4641 = vpack.c.b16 %v4545, %v4543
  %v4642 = vpack.c.b16 %v4546, %v4544
  %v4643 = vpack.c.b16 %v4549, %v4547
  %v4644 = vpack.c.b16 %v4550, %v4548
  %v4645 = vpack.c.b16 %v4553, %v4551
  %v4646 = vpack.c.b16 %v4554, %v4552
  %v4647 = vpack.c.b16 %v4557, %v4555
  %v4648 = vpack.c.b16 %v4558, %v4556
  %v4649 = vpack.c.b16 %v4561, %v4559
  %v4650 = vpack.c.b16 %v4562, %v4560
  %v4651 = vpack.c.b16 %v4565, %v4563
  %v4652 = vpack.c.b16 %v4566, %v4564
  %v4653 = vpack.c.b16 %v4569, %v4567
  %v4654 = vpack.c.b16 %v4570, %v4568
  %v4655 = vpack.c.b16 %v4573, %v4571
  %v4656 = vpack.c.b16 %v4574, %v4572
  %v4657 = vpack.c.b16 %v4577, %v4575
  %v4658 = vpack.c.b16 %v4578, %v4576
  %v4659 = vpack.c.b16 %v4581, %v4579
  %v4660 = vpack.c.b16 %v4582, %v4580
  %v4661 = vpack.c.b16 %v4585, %v4583
  %v4662 = vpack.c.b16 %v4586, %v4584
  %v4663 = vpack.c.b16 %v4589, %v4587
  %v4664 = vpack.c.b16 %v4590, %v4588
  %v4665 = vpack.c.b16 %v4593, %v4591
  %v4666 = vpack.c.b16 %v4594, %v4592
  %v4667 = vpack.c.b16 %v4597, %v4595
  %v4668 = vpack.c.b16 %v4598, %v4596
  %v4669 = vpack.c.b16 %v4601, %v4599
  %v4670 = vpack.c.b16 %v4602, %v4600
  %v4671 = vpack.c.b16 %v4605, %v4603
  %v4672 = vpack.c.b16 %v4606, %v4604
  %v4673 = vpack.c.b16 %v4609, %v4607
  %v4674 = vpack.c.b16 %v4610, %v4608
  %4739 = vmatpush.bf16.msra.mxu0 %v4625
  %4740 = vmatpush.bf16.msra.mxu0 %v4623
  %4741 = vmatpush.bf16.msra.mxu0 %v4621
  %4742 = vmatpush.bf16.msra.mxu0 %v4619
  %4743 = vmatpush.bf16.msra.mxu0 %v4617
  %4744 = vmatpush.bf16.msra.mxu0 %v4615
  %4745 = vmatpush.bf16.msra.mxu0 %v4613
  %4746 = vmatpush.bf16.msra.mxu0 %v4611
  %4747 = vmatmul.bf16.gmra.mxu0 %v4317
  %v4748 = vpop.f32.mrf.mxu0
  %v4749 = vadd.f32 %v4415, %v4748
  %v4750 = vpop.f32.mrf.mxu0
  %v4751 = vadd.f32 %v4415, %v4750
  %4752 = vmatmul.bf16.gmra.mxu0 %v4321
  %v4753 = vpop.f32.mrf.mxu0
  %v4754 = vadd.f32 %v4415, %v4753
  %v4755 = vpop.f32.mrf.mxu0
  %v4756 = vadd.f32 %v4415, %v4755
  %4757 = vmatmul.bf16.gmra.mxu0 %v4325
  %v4758 = vpop.f32.mrf.mxu0
  %v4759 = vadd.f32 %v4415, %v4758
  %v4760 = vpop.f32.mrf.mxu0
  %v4761 = vadd.f32 %v4415, %v4760
  %4762 = vmatmul.bf16.gmra.mxu0 %v4329
  %v4763 = vpop.f32.mrf.mxu0
  %v4764 = vadd.f32 %v4415, %v4763
  %v4765 = vpop.f32.mrf.mxu0
  %v4766 = vadd.f32 %v4415, %v4765
  %4767 = vmatmul.bf16.gmra.mxu0 %v4333
  %v4768 = vpop.f32.mrf.mxu0
  %v4769 = vadd.f32 %v4415, %v4768
  %v4770 = vpop.f32.mrf.mxu0
  %v4771 = vadd.f32 %v4415, %v4770
  %4772 = vmatmul.bf16.gmra.mxu0 %v4337
  %v4773 = vpop.f32.mrf.mxu0
  %v4774 = vadd.f32 %v4415, %v4773
  %v4775 = vpop.f32.mrf.mxu0
  %v4776 = vadd.f32 %v4415, %v4775
  %4777 = vmatmul.bf16.gmra.mxu0 %v4341
  %v4778 = vpop.f32.mrf.mxu0
  %v4779 = vadd.f32 %v4415, %v4778
  %v4780 = vpop.f32.mrf.mxu0
  %v4781 = vadd.f32 %v4415, %v4780
  %4782 = vmatmul.bf16.gmra.mxu0 %v4345
  %v4783 = vpop.f32.mrf.mxu0
  %v4784 = vadd.f32 %v4415, %v4783
  %v4785 = vpop.f32.mrf.mxu0
  %v4786 = vadd.f32 %v4415, %v4785
  %4787 = vdwg.mxu0
  %4788 = vmatpush.bf16.msra.mxu0 %v4641
  %4789 = vmatpush.bf16.msra.mxu0 %v4639
  %4790 = vmatpush.bf16.msra.mxu0 %v4637
  %4791 = vmatpush.bf16.msra.mxu0 %v4635
  %4792 = vmatpush.bf16.msra.mxu0 %v4633
  %4793 = vmatpush.bf16.msra.mxu0 %v4631
  %4794 = vmatpush.bf16.msra.mxu0 %v4629
  %4795 = vmatpush.bf16.msra.mxu0 %v4627
  %4796 = vmatmul.bf16.gmra.mxu0 %v4318
  %v4797 = vpop.f32.mrf.mxu0
  %v4798 = vadd.f32 %v4749, %v4797
  %v4799 = vpop.f32.mrf.mxu0
  %v4800 = vadd.f32 %v4751, %v4799
  %4801 = vmatmul.bf16.gmra.mxu0 %v4322
  %v4802 = vpop.f32.mrf.mxu0
  %v4803 = vadd.f32 %v4754, %v4802
  %v4804 = vpop.f32.mrf.mxu0
  %v4805 = vadd.f32 %v4756, %v4804
  %4806 = vmatmul.bf16.gmra.mxu0 %v4326
  %v4807 = vpop.f32.mrf.mxu0
  %v4808 = vadd.f32 %v4759, %v4807
  %v4809 = vpop.f32.mrf.mxu0
  %v4810 = vadd.f32 %v4761, %v4809
  %4811 = vmatmul.bf16.gmra.mxu0 %v4330
  %v4812 = vpop.f32.mrf.mxu0
  %v4813 = vadd.f32 %v4764, %v4812
  %v4814 = vpop.f32.mrf.mxu0
  %v4815 = vadd.f32 %v4766, %v4814
  %4816 = vmatmul.bf16.gmra.mxu0 %v4334
  %v4817 = vpop.f32.mrf.mxu0
  %v4818 = vadd.f32 %v4769, %v4817
  %v4819 = vpop.f32.mrf.mxu0
  %v4820 = vadd.f32 %v4771, %v4819
  %4821 = vmatmul.bf16.gmra.mxu0 %v4338
  %v4822 = vpop.f32.mrf.mxu0
  %v4823 = vadd.f32 %v4774, %v4822
  %v4824 = vpop.f32.mrf.mxu0
  %v4825 = vadd.f32 %v4776, %v4824
  %4826 = vmatmul.bf16.gmra.mxu0 %v4342
  %v4827 = vpop.f32.mrf.mxu0
  %v4828 = vadd.f32 %v4779, %v4827
  %v4829 = vpop.f32.mrf.mxu0
  %v4830 = vadd.f32 %v4781, %v4829
  %4831 = vmatmul.bf16.gmra.mxu0 %v4346
  %v4832 = vpop.f32.mrf.mxu0
  %v4833 = vadd.f32 %v4784, %v4832
  %v4834 = vpop.f32.mrf.mxu0
  %v4835 = vadd.f32 %v4786, %v4834
  %4836 = vdwg.mxu0
  %4837 = vmatpush.bf16.msra.mxu0 %v4657
  %4838 = vmatpush.bf16.msra.mxu0 %v4655
  %4839 = vmatpush.bf16.msra.mxu0 %v4653
  %4840 = vmatpush.bf16.msra.mxu0 %v4651
  %4841 = vmatpush.bf16.msra.mxu0 %v4649
  %4842 = vmatpush.bf16.msra.mxu0 %v4647
  %4843 = vmatpush.bf16.msra.mxu0 %v4645
  %4844 = vmatpush.bf16.msra.mxu0 %v4643
  %4845 = vmatmul.bf16.gmra.mxu0 %v4319
  %v4846 = vpop.f32.mrf.mxu0
  %v4847 = vadd.f32 %v4798, %v4846
  %v4848 = vpop.f32.mrf.mxu0
  %v4849 = vadd.f32 %v4800, %v4848
  %4850 = vmatmul.bf16.gmra.mxu0 %v4323
  %v4851 = vpop.f32.mrf.mxu0
  %v4852 = vadd.f32 %v4803, %v4851
  %v4853 = vpop.f32.mrf.mxu0
  %v4854 = vadd.f32 %v4805, %v4853
  %4855 = vmatmul.bf16.gmra.mxu0 %v4327
  %v4856 = vpop.f32.mrf.mxu0
  %v4857 = vadd.f32 %v4808, %v4856
  %v4858 = vpop.f32.mrf.mxu0
  %v4859 = vadd.f32 %v4810, %v4858
  %4860 = vmatmul.bf16.gmra.mxu0 %v4331
  %v4861 = vpop.f32.mrf.mxu0
  %v4862 = vadd.f32 %v4813, %v4861
  %v4863 = vpop.f32.mrf.mxu0
  %v4864 = vadd.f32 %v4815, %v4863
  %4865 = vmatmul.bf16.gmra.mxu0 %v4335
  %v4866 = vpop.f32.mrf.mxu0
  %v4867 = vadd.f32 %v4818, %v4866
  %v4868 = vpop.f32.mrf.mxu0
  %v4869 = vadd.f32 %v4820, %v4868
  %4870 = vmatmul.bf16.gmra.mxu0 %v4339
  %v4871 = vpop.f32.mrf.mxu0
  %v4872 = vadd.f32 %v4823, %v4871
  %v4873 = vpop.f32.mrf.mxu0
  %v4874 = vadd.f32 %v4825, %v4873
  %4875 = vmatmul.bf16.gmra.mxu0 %v4343
  %v4876 = vpop.f32.mrf.mxu0
  %v4877 = vadd.f32 %v4828, %v4876
  %v4878 = vpop.f32.mrf.mxu0
  %v4879 = vadd.f32 %v4830, %v4878
  %4880 = vmatmul.bf16.gmra.mxu0 %v4347
  %v4881 = vpop.f32.mrf.mxu0
  %v4882 = vadd.f32 %v4833, %v4881
  %v4883 = vpop.f32.mrf.mxu0
  %v4884 = vadd.f32 %v4835, %v4883
  %4885 = vdwg.mxu0
  %4886 = vmatpush.bf16.msra.mxu0 %v4673
  %4887 = vmatpush.bf16.msra.mxu0 %v4671
  %4888 = vmatpush.bf16.msra.mxu0 %v4669
  %4889 = vmatpush.bf16.msra.mxu0 %v4667
  %4890 = vmatpush.bf16.msra.mxu0 %v4665
  %4891 = vmatpush.bf16.msra.mxu0 %v4663
  %4892 = vmatpush.bf16.msra.mxu0 %v4661
  %4893 = vmatpush.bf16.msra.mxu0 %v4659
  %4894 = vmatmul.bf16.gmra.mxu0 %v4320
  %v4895 = vpop.f32.mrf.mxu0
  %v4896 = vadd.f32 %v4847, %v4895
  %v4897 = vpop.f32.mrf.mxu0
  %v4898 = vadd.f32 %v4849, %v4897
  %4899 = vmatmul.bf16.gmra.mxu0 %v4324
  %v4900 = vpop.f32.mrf.mxu0
  %v4901 = vadd.f32 %v4852, %v4900
  %v4902 = vpop.f32.mrf.mxu0
  %v4903 = vadd.f32 %v4854, %v4902
  %4904 = vmatmul.bf16.gmra.mxu0 %v4328
  %v4905 = vpop.f32.mrf.mxu0
  %v4906 = vadd.f32 %v4857, %v4905
  %v4907 = vpop.f32.mrf.mxu0
  %v4908 = vadd.f32 %v4859, %v4907
  %4909 = vmatmul.bf16.gmra.mxu0 %v4332
  %v4910 = vpop.f32.mrf.mxu0
  %v4911 = vadd.f32 %v4862, %v4910
  %v4912 = vpop.f32.mrf.mxu0
  %v4913 = vadd.f32 %v4864, %v4912
  %4914 = vmatmul.bf16.gmra.mxu0 %v4336
  %v4915 = vpop.f32.mrf.mxu0
  %v4916 = vadd.f32 %v4867, %v4915
  %v4917 = vpop.f32.mrf.mxu0
  %v4918 = vadd.f32 %v4869, %v4917
  %4919 = vmatmul.bf16.gmra.mxu0 %v4340
  %v4920 = vpop.f32.mrf.mxu0
  %v4921 = vadd.f32 %v4872, %v4920
  %v4922 = vpop.f32.mrf.mxu0
  %v4923 = vadd.f32 %v4874, %v4922
  %4924 = vmatmul.bf16.gmra.mxu0 %v4344
  %v4925 = vpop.f32.mrf.mxu0
  %v4926 = vadd.f32 %v4877, %v4925
  %v4927 = vpop.f32.mrf.mxu0
  %v4928 = vadd.f32 %v4879, %v4927
  %4929 = vmatmul.bf16.gmra.mxu0 %v4348
  %v4930 = vpop.f32.mrf.mxu0
  %v4931 = vadd.f32 %v4882, %v4930
  %v4932 = vpop.f32.mrf.mxu0
  %v4933 = vadd.f32 %v4884, %v4932
  %4934 = vdwg.mxu0
  %4935 = vmatpush.bf16.msra.mxu0 %v4626
  %4936 = vmatpush.bf16.msra.mxu0 %v4624
  %4937 = vmatpush.bf16.msra.mxu0 %v4622
  %4938 = vmatpush.bf16.msra.mxu0 %v4620
  %4939 = vmatpush.bf16.msra.mxu0 %v4618
  %4940 = vmatpush.bf16.msra.mxu0 %v4616
  %4941 = vmatpush.bf16.msra.mxu0 %v4614
  %4942 = vmatpush.bf16.msra.mxu0 %v4612
  %4943 = vmatmul.bf16.gmra.mxu0 %v4317
  %v4944 = vpop.f32.mrf.mxu0
  %v4945 = vadd.f32 %v4416, %v4944
  %v4946 = vpop.f32.mrf.mxu0
  %v4947 = vadd.f32 %v4416, %v4946
  %4948 = vmatmul.bf16.gmra.mxu0 %v4321
  %v4949 = vpop.f32.mrf.mxu0
  %v4950 = vadd.f32 %v4416, %v4949
  %v4951 = vpop.f32.mrf.mxu0
  %v4952 = vadd.f32 %v4416, %v4951
  %4953 = vmatmul.bf16.gmra.mxu0 %v4325
  %v4954 = vpop.f32.mrf.mxu0
  %v4955 = vadd.f32 %v4416, %v4954
  %v4956 = vpop.f32.mrf.mxu0
  %v4957 = vadd.f32 %v4416, %v4956
  %4958 = vmatmul.bf16.gmra.mxu0 %v4329
  %v4959 = vpop.f32.mrf.mxu0
  %v4960 = vadd.f32 %v4416, %v4959
  %v4961 = vpop.f32.mrf.mxu0
  %v4962 = vadd.f32 %v4416, %v4961
  %4963 = vmatmul.bf16.gmra.mxu0 %v4333
  %v4964 = vpop.f32.mrf.mxu0
  %v4965 = vadd.f32 %v4416, %v4964
  %v4966 = vpop.f32.mrf.mxu0
  %v4967 = vadd.f32 %v4416, %v4966
  %4968 = vmatmul.bf16.gmra.mxu0 %v4337
  %v4969 = vpop.f32.mrf.mxu0
  %v4970 = vadd.f32 %v4416, %v4969
  %v4971 = vpop.f32.mrf.mxu0
  %v4972 = vadd.f32 %v4416, %v4971
  %4973 = vmatmul.bf16.gmra.mxu0 %v4341
  %v4974 = vpop.f32.mrf.mxu0
  %v4975 = vadd.f32 %v4416, %v4974
  %v4976 = vpop.f32.mrf.mxu0
  %v4977 = vadd.f32 %v4416, %v4976
  %4978 = vmatmul.bf16.gmra.mxu0 %v4345
  %v4979 = vpop.f32.mrf.mxu0
  %v4980 = vadd.f32 %v4416, %v4979
  %v4981 = vpop.f32.mrf.mxu0
  %v4982 = vadd.f32 %v4416, %v4981
  %4983 = vdwg.mxu0
  %4984 = vmatpush.bf16.msra.mxu0 %v4642
  %4985 = vmatpush.bf16.msra.mxu0 %v4640
  %4986 = vmatpush.bf16.msra.mxu0 %v4638
  %4987 = vmatpush.bf16.msra.mxu0 %v4636
  %4988 = vmatpush.bf16.msra.mxu0 %v4634
  %4989 = vmatpush.bf16.msra.mxu0 %v4632
  %4990 = vmatpush.bf16.msra.mxu0 %v4630
  %4991 = vmatpush.bf16.msra.mxu0 %v4628
  %4992 = vmatmul.bf16.gmra.mxu0 %v4318
  %v4993 = vpop.f32.mrf.mxu0
  %v4994 = vadd.f32 %v4945, %v4993
  %v4995 = vpop.f32.mrf.mxu0
  %v4996 = vadd.f32 %v4947, %v4995
  %4997 = vmatmul.bf16.gmra.mxu0 %v4322
  %v4998 = vpop.f32.mrf.mxu0
  %v4999 = vadd.f32 %v4950, %v4998
  %v5000 = vpop.f32.mrf.mxu0
  %v5001 = vadd.f32 %v4952, %v5000
  %5002 = vmatmul.bf16.gmra.mxu0 %v4326
  %v5003 = vpop.f32.mrf.mxu0
  %v5004 = vadd.f32 %v4955, %v5003
  %v5005 = vpop.f32.mrf.mxu0
  %v5006 = vadd.f32 %v4957, %v5005
  %5007 = vmatmul.bf16.gmra.mxu0 %v4330
  %v5008 = vpop.f32.mrf.mxu0
  %v5009 = vadd.f32 %v4960, %v5008
  %v5010 = vpop.f32.mrf.mxu0
  %v5011 = vadd.f32 %v4962, %v5010
  %5012 = vmatmul.bf16.gmra.mxu0 %v4334
  %v5013 = vpop.f32.mrf.mxu0
  %v5014 = vadd.f32 %v4965, %v5013
  %v5015 = vpop.f32.mrf.mxu0
  %v5016 = vadd.f32 %v4967, %v5015
  %5017 = vmatmul.bf16.gmra.mxu0 %v4338
  %v5018 = vpop.f32.mrf.mxu0
  %v5019 = vadd.f32 %v4970, %v5018
  %v5020 = vpop.f32.mrf.mxu0
  %v5021 = vadd.f32 %v4972, %v5020
  %5022 = vmatmul.bf16.gmra.mxu0 %v4342
  %v5023 = vpop.f32.mrf.mxu0
  %v5024 = vadd.f32 %v4975, %v5023
  %v5025 = vpop.f32.mrf.mxu0
  %v5026 = vadd.f32 %v4977, %v5025
  %5027 = vmatmul.bf16.gmra.mxu0 %v4346
  %v5028 = vpop.f32.mrf.mxu0
  %v5029 = vadd.f32 %v4980, %v5028
  %v5030 = vpop.f32.mrf.mxu0
  %v5031 = vadd.f32 %v4982, %v5030
  %5032 = vdwg.mxu0
  %5033 = vmatpush.bf16.msra.mxu0 %v4658
  %5034 = vmatpush.bf16.msra.mxu0 %v4656
  %5035 = vmatpush.bf16.msra.mxu0 %v4654
  %5036 = vmatpush.bf16.msra.mxu0 %v4652
  %5037 = vmatpush.bf16.msra.mxu0 %v4650
  %5038 = vmatpush.bf16.msra.mxu0 %v4648
  %5039 = vmatpush.bf16.msra.mxu0 %v4646
  %5040 = vmatpush.bf16.msra.mxu0 %v4644
  %5041 = vmatmul.bf16.gmra.mxu0 %v4319
  %v5042 = vpop.f32.mrf.mxu0
  %v5043 = vadd.f32 %v4994, %v5042
  %v5044 = vpop.f32.mrf.mxu0
  %v5045 = vadd.f32 %v4996, %v5044
  %5046 = vmatmul.bf16.gmra.mxu0 %v4323
  %v5047 = vpop.f32.mrf.mxu0
  %v5048 = vadd.f32 %v4999, %v5047
  %v5049 = vpop.f32.mrf.mxu0
  %v5050 = vadd.f32 %v5001, %v5049
  %5051 = vmatmul.bf16.gmra.mxu0 %v4327
  %v5052 = vpop.f32.mrf.mxu0
  %v5053 = vadd.f32 %v5004, %v5052
  %v5054 = vpop.f32.mrf.mxu0
  %v5055 = vadd.f32 %v5006, %v5054
  %5056 = vmatmul.bf16.gmra.mxu0 %v4331
  %v5057 = vpop.f32.mrf.mxu0
  %v5058 = vadd.f32 %v5009, %v5057
  %v5059 = vpop.f32.mrf.mxu0
  %v5060 = vadd.f32 %v5011, %v5059
  %5061 = vmatmul.bf16.gmra.mxu0 %v4335
  %v5062 = vpop.f32.mrf.mxu0
  %v5063 = vadd.f32 %v5014, %v5062
  %v5064 = vpop.f32.mrf.mxu0
  %v5065 = vadd.f32 %v5016, %v5064
  %5066 = vmatmul.bf16.gmra.mxu0 %v4339
  %v5067 = vpop.f32.mrf.mxu0
  %v5068 = vadd.f32 %v5019, %v5067
  %v5069 = vpop.f32.mrf.mxu0
  %v5070 = vadd.f32 %v5021, %v5069
  %5071 = vmatmul.bf16.gmra.mxu0 %v4343
  %v5072 = vpop.f32.mrf.mxu0
  %v5073 = vadd.f32 %v5024, %v5072
  %v5074 = vpop.f32.mrf.mxu0
  %v5075 = vadd.f32 %v5026, %v5074
  %5076 = vmatmul.bf16.gmra.mxu0 %v4347
  %v5077 = vpop.f32.mrf.mxu0
  %v5078 = vadd.f32 %v5029, %v5077
  %v5079 = vpop.f32.mrf.mxu0
  %v5080 = vadd.f32 %v5031, %v5079
  %5081 = vdwg.mxu0
  %5082 = vmatpush.bf16.msra.mxu0 %v4674
  %5083 = vmatpush.bf16.msra.mxu0 %v4672
  %5084 = vmatpush.bf16.msra.mxu0 %v4670
  %5085 = vmatpush.bf16.msra.mxu0 %v4668
  %5086 = vmatpush.bf16.msra.mxu0 %v4666
  %5087 = vmatpush.bf16.msra.mxu0 %v4664
  %5088 = vmatpush.bf16.msra.mxu0 %v4662
  %5089 = vmatpush.bf16.msra.mxu0 %v4660
  %5090 = vmatmul.bf16.gmra.mxu0 %v4320
  %v5091 = vpop.f32.mrf.mxu0
  %v5092 = vadd.f32 %v5043, %v5091
  %v5093 = vpop.f32.mrf.mxu0
  %v5094 = vadd.f32 %v5045, %v5093
  %5095 = vmatmul.bf16.gmra.mxu0 %v4324
  %v5096 = vpop.f32.mrf.mxu0
  %v5097 = vadd.f32 %v5048, %v5096
  %v5098 = vpop.f32.mrf.mxu0
  %v5099 = vadd.f32 %v5050, %v5098
  %5100 = vmatmul.bf16.gmra.mxu0 %v4328
  %v5101 = vpop.f32.mrf.mxu0
  %v5102 = vadd.f32 %v5053, %v5101
  %v5103 = vpop.f32.mrf.mxu0
  %v5104 = vadd.f32 %v5055, %v5103
  %5105 = vmatmul.bf16.gmra.mxu0 %v4332
  %v5106 = vpop.f32.mrf.mxu0
  %v5107 = vadd.f32 %v5058, %v5106
  %v5108 = vpop.f32.mrf.mxu0
  %v5109 = vadd.f32 %v5060, %v5108
  %5110 = vmatmul.bf16.gmra.mxu0 %v4336
  %v5111 = vpop.f32.mrf.mxu0
  %v5112 = vadd.f32 %v5063, %v5111
  %v5113 = vpop.f32.mrf.mxu0
  %v5114 = vadd.f32 %v5065, %v5113
  %5115 = vmatmul.bf16.gmra.mxu0 %v4340
  %v5116 = vpop.f32.mrf.mxu0
  %v5117 = vadd.f32 %v5068, %v5116
  %v5118 = vpop.f32.mrf.mxu0
  %v5119 = vadd.f32 %v5070, %v5118
  %5120 = vmatmul.bf16.gmra.mxu0 %v4344
  %v5121 = vpop.f32.mrf.mxu0
  %v5122 = vadd.f32 %v5073, %v5121
  %v5123 = vpop.f32.mrf.mxu0
  %v5124 = vadd.f32 %v5075, %v5123
  %5125 = vmatmul.bf16.gmra.mxu0 %v4348
  %v5126 = vpop.f32.mrf.mxu0
  %v5127 = vadd.f32 %v5078, %v5126
  %v5128 = vpop.f32.mrf.mxu0
  %v5129 = vadd.f32 %v5080, %v5128
  %5130 = vdwg.mxu0
  %v5131 = vpack.c.bf16 %v4251, %v4251
  %v5132 = vpack.c.bf16 %v4252, %v4252
  %v5133 = vpack.c.bf16 %v4898, %v4896
  %v5134 = vpack.c.bf16 %v5094, %v5092
  %v5135 = vpack.c.bf16 %v4903, %v4901
  %v5136 = vpack.c.bf16 %v5099, %v5097
  %v5137 = vpack.c.bf16 %v4908, %v4906
  %v5138 = vpack.c.bf16 %v5104, %v5102
  %v5139 = vpack.c.bf16 %v4913, %v4911
  %v5140 = vpack.c.bf16 %v5109, %v5107
  %v5141 = vpack.c.bf16 %v4918, %v4916
  %v5142 = vpack.c.bf16 %v5114, %v5112
  %v5143 = vpack.c.bf16 %v4923, %v4921
  %v5144 = vpack.c.bf16 %v5119, %v5117
  %v5145 = vpack.c.bf16 %v4928, %v4926
  %v5146 = vpack.c.bf16 %v5124, %v5122
  %v5147 = vpack.c.bf16 %v4933, %v4931
  %v5148 = vpack.c.bf16 %v5129, %v5127
  %5149 = vmatpush.bf16.xpose.msra.mxu0 %v5147
  %5150 = vmatpush.bf16.xpose.msra.mxu0 %v5145
  %5151 = vmatpush.bf16.xpose.msra.mxu0 %v5143
  %5152 = vmatpush.bf16.xpose.msra.mxu0 %v5141
  %5153 = vmatpush.bf16.xpose.msra.mxu0 %v5139
  %5154 = vmatpush.bf16.xpose.msra.mxu0 %v5137
  %5155 = vmatpush.bf16.xpose.msra.mxu0 %v5135
  %5156 = vmatpush.bf16.xpose.msra.mxu0 %v5133
  %5157 = vmatmul.bf16.gmra.mxu0 %v5131
  %v5158 = vpop.f32.mrf.mxu0
  %v5159 = vadd.f32 0.0, %v5158
  %v5160 = vpop.f32.mrf.mxu0
  %5161 = vdwg.mxu0
  %5162 = vmatpush.bf16.xpose.msra.mxu0 %v5148
  %5163 = vmatpush.bf16.xpose.msra.mxu0 %v5146
  %5164 = vmatpush.bf16.xpose.msra.mxu0 %v5144
  %5165 = vmatpush.bf16.xpose.msra.mxu0 %v5142
  %5166 = vmatpush.bf16.xpose.msra.mxu0 %v5140
  %5167 = vmatpush.bf16.xpose.msra.mxu0 %v5138
  %5168 = vmatpush.bf16.xpose.msra.mxu0 %v5136
  %5169 = vmatpush.bf16.xpose.msra.mxu0 %v5134
  %5170 = vmatmul.bf16.gmra.mxu0 %v5132
  %v5171 = vpop.f32.mrf.mxu0
  %v5172 = vadd.f32 %v5159, %v5171
  %v5173 = vpop.f32.mrf.mxu0
  %5174 = vdwg.mxu0
  %v5176 = vrot.slane %v5172, 2
  %v5177 = vrot.slane %v5172, 4
  %v5178 = vrot.slane %v5172, 6
  %v5182 = vld [vmem:[%s1] sm:$0x3]
  %v5183 = vld [vmem:[%s1 + $0x2] sm:$0x3]
  %v5184 = vld [vmem:[%s1 + $0x4] sm:$0x3]
  %v5185 = vld [vmem:[%s1 + $0x6] sm:$0x3]
  %vm5186 = vcmp.gt.f32.partialorder %v5182, 0.0
  %vm5187 = vcmp.gt.f32.partialorder %v5183, 0.0
  %vm5188 = vcmp.gt.f32.partialorder %v5184, 0.0
  %vm5189 = vcmp.gt.f32.partialorder %v5185, 0.0
  %v5190 = vsel %vm5186, 1, 0
  %v5191 = vsel %vm5187, 1, 0
  %v5192 = vsel %vm5188, 1, 0
  %v5193 = vsel %vm5189, 1, 0
  %5194 = vset.pattern.permute.xlu0 0
  %5195 = vperm.xlu0 %5194, %v5190
  %v5196 = vpop.permute.xlu0 %5195
  %5197 = vset.pattern.permute.xlu0 0
  %5198 = vperm.xlu0 %5197, %v5191
  %v5199 = vpop.permute.xlu0 %5198
  %5200 = vset.pattern.permute.xlu0 0
  %5201 = vperm.xlu0 %5200, %v5192
  %v5202 = vpop.permute.xlu0 %5201
  %5203 = vset.pattern.permute.xlu0 0
  %5204 = vperm.xlu0 %5203, %v5193
  %v5205 = vpop.permute.xlu0 %5204
  %vm5206 = vcmp.eq.s32.totalorder %v5196, 1
  %vm5207 = vcmp.eq.s32.totalorder %v5199, 1
  %vm5208 = vcmp.eq.s32.totalorder %v5202, 1
  %vm5209 = vcmp.eq.s32.totalorder %v5205, 1
  %v5210 = vsel %vm5206, %v5172, -1e-32
  %v5211 = vsel %vm5207, %v5176, -1e-32
  %v5212 = vsel %vm5208, %v5177, -1e-32
  %v5213 = vsel %vm5209, %v5178, -1e-32
  %v5214 = vsel %vm3991, %v5210, -inf
  %v5215 = vsel %vm3991, %v5211, -inf
  %v5216 = vsel %vm3991, %v5212, -inf
  %v5217 = vsel %vm3991, %v5213, -inf
  %v5218 = vmax.f32 %v5214, %v5215
  %v5219 = vmax.f32 %v5216, %v5217
  %v5220 = vmax.f32 %v5218, %v5219
  %v5221 = vsub.f32 %v5210, %v5220
  %v5222 = vsub.f32 %v5211, %v5220
  %v5223 = vsub.f32 %v5212, %v5220
  %v5224 = vsub.f32 %v5213, %v5220
  %v5225 = vmul.f32 %v5221, 1.442695
  %v5226 = vpow.pop %v5225
  %v5227 = vmul.f32 %v5222, 1.442695
  %v5228 = vpow.pop %v5227
  %v5229 = vmul.f32 %v5223, 1.442695
  %v5230 = vpow.pop %v5229
  %v5231 = vmul.f32 %v5224, 1.442695
  %v5232 = vpow.pop %v5231
  %v5233 = vsel %vm3991, %v5226, 0.0
  %v5234 = vsel %vm3991, %v5228, 0.0
  %v5235 = vadd.f32 %v5233, %v5234
  %v5236 = vsel %vm3991, %v5230, 0.0
  %v5237 = vadd.f32 %v5235, %v5236
  %v5238 = vsel %vm3991, %v5232, 0.0
  %v5239 = vadd.f32 %v5237, %v5238
  %v5240 = vrcp.pop %v5239
  %v5241 = vmul.f32 %v5239, %v5240
  %v5242 = vsub.f32 1.0, %v5241
  %v5243 = vmul.f32 %v5240, %v5242
  %v5244 = vadd.f32 %v5240, %v5243
  %vm5245 = vweird.f32 %v5239
  %vm5246 = vweird.f32 %v5240
  %vm5247 = vmor %vm5245, %vm5246
  %v5248 = vsel %vm5247, %v5240, %v5244
  %v5249 = vand.u32 2147483647, %v5239
  %vm5250 = vcmp.eq.f32.partialorder %v5249, 8.507059e+37
  %v5251 = vand.u32 %v5239, 2147483648
  %v5252 = vor.u32 1.1754944e-38, %v5251
  %v5253 = vsel %vm5250, %v5252, %v5248
  %v5254 = vmul.f32 %v5226, %v5253
  %v5255 = vmul.f32 %v5228, %v5253
  %v5256 = vmul.f32 %v5230, %v5253
  %v5257 = vmul.f32 %v5232, %v5253
  %v5258 = vld [vmem:[%s3] sm:$0x3]
  %v5259 = vmul.f32 %v5258, %v5254
  %v5260 = vmul.f32 %v5258, %v5255
  %v5261 = vmul.f32 %v5258, %v5256
  %v5262 = vmul.f32 %v5258, %v5257
  %v5263 = vsel %vm3991, %v5259, 0.0
  %5264 = vadd.xlane.f32.xlu0 %v5263
  %v5265 = vpop.xlane.xlu0 %5264
  %v5266 = vsel %vm3991, %v5260, 0.0
  %5267 = vadd.xlane.f32.xlu0 %v5266
  %v5268 = vpop.xlane.xlu0 %5267
  %v5269 = vsel %vm3991, %v5261, 0.0
  %5270 = vadd.xlane.f32.xlu0 %v5269
  %v5271 = vpop.xlane.xlu0 %5270
  %v5272 = vsel %vm3991, %v5262, 0.0
  %5273 = vadd.xlane.f32.xlu0 %v5272
  %v5274 = vpop.xlane.xlu0 %5273
  %v5277 = vrot.slane %v3998, 6
  %v5278 = vsel %vm3991, %v3997, %v5277
  %vm5279 = vcmask 1043458
  %v5280 = vsel %vm5279, %v3997, %v5277
  %v5281 = vrot.slane %v5280, 2
  %vm5282 = vcmask 1045508
  %v5283 = vsel %vm5282, %v3997, %v5277
  %v5284 = vrot.slane %v5283, 4
  %v5285 = vsel %vm3996, %v5277, %v3997
  %v5286 = vrot.slane %v5285, 6
  %v5296 = vunpack.c.l.s4 269488144
  %v5297 = vunpack.c.0.s8 %v5296
  %v5298 = vperm.slane %v5265, %v5297
  %v5300 = vunpack.c.l.s4 269488144
  %v5301 = vunpack.c.0.s8 %v5300
  %v5302 = vperm.slane %v5268, %v5301
  %v5304 = vunpack.c.l.s4 269488144
  %v5305 = vunpack.c.0.s8 %v5304
  %v5306 = vperm.slane %v5271, %v5305
  %v5308 = vunpack.c.l.s4 269488144
  %v5309 = vunpack.c.0.s8 %v5308
  %v5310 = vperm.slane %v5274, %v5309
  %v5315 = vmul.f32 %v5278, %v5298
  %v5316 = vmul.f32 %v5281, %v5302
  %v5317 = vmul.f32 %v5284, %v5306
  %v5318 = vmul.f32 %v5286, %v5310
  %5323 = vst [vmem:[#allocation1] ss:$4 sm:$0xff] %v5315
  %v5324 = vld.sshfl [vmem:[#allocation1] sm:$0xff pattern:$0x73625140]
  %v5325 = vld.sshfl [vmem:[#allocation1 + $0x8] sm:$0xff pattern:$0x73625140]
  %s5326 = scalar_lea.vmem [#allocation1], 32
  %5327 = vst [vmem:[%s5326] ss:$4 sm:$0xff] %v5316
  %v5328 = vld.sshfl [vmem:[#allocation1 + $0x20] sm:$0xff pattern:$0x73625140]
  %v5329 = vld.sshfl [vmem:[#allocation1 + $0x28] sm:$0xff pattern:$0x73625140]
  %5330 = vst [vmem:[#allocation1] ss:$4 sm:$0xff] %v5317
  %v5331 = vld.sshfl [vmem:[#allocation1] sm:$0xff pattern:$0x73625140]
  %v5332 = vld.sshfl [vmem:[#allocation1 + $0x8] sm:$0xff pattern:$0x73625140]
  %5333 = vst [vmem:[%s5326] ss:$4 sm:$0xff] %v5318
  %v5334 = vld.sshfl [vmem:[#allocation1 + $0x20] sm:$0xff pattern:$0x73625140]
  %v5335 = vld.sshfl [vmem:[#allocation1 + $0x28] sm:$0xff pattern:$0x73625140]
  %v5344 = vsel %vm3991, %v5324, 0.0
  %v5345 = vsel %vm3991, %v5328, 0.0
  %v5346 = vadd.f32 %v5344, %v5345
  %v5347 = vsel %vm3991, %v5331, 0.0
  %v5348 = vadd.f32 %v5346, %v5347
  %v5349 = vsel %vm3991, %v5334, 0.0
  %v5350 = vadd.f32 %v5348, %v5349
  %v5351 = vsel %vm3991, %v5325, 0.0
  %v5352 = vsel %vm3991, %v5329, 0.0
  %v5353 = vadd.f32 %v5351, %v5352
  %v5354 = vsel %vm3991, %v5332, 0.0
  %v5355 = vadd.f32 %v5353, %v5354
  %v5356 = vsel %vm3991, %v5335, 0.0
  %v5357 = vadd.f32 %v5355, %v5356
  %v5358 = vld [vmem:[%s2] sm:$0xf]
  %v5361 = vrot.slane %v5357, 6
  %v5362 = vsel %vm3991, %v5350, %v5361
  %v5364 = vadd.f32 %v5358, %v5362
  %5366 = vst [vmem:[#allocation1] ss:$4 sm:$0xff] %v5364
  %v5367 = vld.sshfl [vmem:[#allocation1] sm:$0xff pattern:$0x73625140]
  %v5368 = vld.sshfl [vmem:[#allocation1 + $0x8] sm:$0xff pattern:$0x73625140]
  %v5371 = vpack.c.bf16 %v5367, %v5367
  %v5372 = vpack.c.bf16 %v5368, %v5368
  %v5373 = vld [vmem:[%s12] sm:$0xf]
  %v5374 = vld [vmem:[%s12 + $0x4] sm:$0xf]
  %v5375 = vld [vmem:[%s12 + $0x8] sm:$0xf]
  %v5376 = vld [vmem:[%s12 + $0xc] sm:$0xf]
  %v5377 = vld [vmem:[%s12 + $0x10] sm:$0xf]
  %v5378 = vld [vmem:[%s12 + $0x14] sm:$0xf]
  %v5379 = vld [vmem:[%s12 + $0x18] sm:$0xf]
  %v5380 = vld [vmem:[%s12 + $0x1c] sm:$0xf]
  %v5381 = vld [vmem:[%s12 + $0x20] sm:$0xf]
  %v5382 = vld [vmem:[%s12 + $0x24] sm:$0xf]
  %v5383 = vld [vmem:[%s12 + $0x28] sm:$0xf]
  %v5384 = vld [vmem:[%s12 + $0x2c] sm:$0xf]
  %v5385 = vld [vmem:[%s12 + $0x30] sm:$0xf]
  %v5386 = vld [vmem:[%s12 + $0x34] sm:$0xf]
  %v5387 = vld [vmem:[%s12 + $0x38] sm:$0xf]
  %v5388 = vld [vmem:[%s12 + $0x3c] sm:$0xf]
  %v5389 = vld [vmem:[%s12 + $0x40] sm:$0xf]
  %v5390 = vld [vmem:[%s12 + $0x44] sm:$0xf]
  %v5391 = vld [vmem:[%s12 + $0x48] sm:$0xf]
  %v5392 = vld [vmem:[%s12 + $0x4c] sm:$0xf]
  %v5393 = vld [vmem:[%s12 + $0x50] sm:$0xf]
  %v5394 = vld [vmem:[%s12 + $0x54] sm:$0xf]
  %v5395 = vld [vmem:[%s12 + $0x58] sm:$0xf]
  %v5396 = vld [vmem:[%s12 + $0x5c] sm:$0xf]
  %v5397 = vld [vmem:[%s12 + $0x60] sm:$0xf]
  %v5398 = vld [vmem:[%s12 + $0x64] sm:$0xf]
  %v5399 = vld [vmem:[%s12 + $0x68] sm:$0xf]
  %v5400 = vld [vmem:[%s12 + $0x6c] sm:$0xf]
  %v5401 = vld [vmem:[%s12 + $0x70] sm:$0xf]
  %v5402 = vld [vmem:[%s12 + $0x74] sm:$0xf]
  %v5403 = vld [vmem:[%s12 + $0x78] sm:$0xf]
  %v5404 = vld [vmem:[%s12 + $0x7c] sm:$0xf]
  %v5405 = vld [vmem:[%s13] sm:$0x1]
  %v5407 = vperm.slane %v5405, 0
  %v5441 = vunpack.c.l.b16 %v5373
  %v5442 = vunpack.c.l.b16 %v5374
  %v5443 = vunpack.c.l.b16 %v5375
  %v5444 = vunpack.c.l.b16 %v5376
  %v5445 = vunpack.c.l.b16 %v5377
  %v5446 = vunpack.c.l.b16 %v5378
  %v5447 = vunpack.c.l.b16 %v5379
  %v5448 = vunpack.c.l.b16 %v5380
  %v5449 = vunpack.c.l.b16 %v5381
  %v5450 = vunpack.c.l.b16 %v5382
  %v5451 = vunpack.c.l.b16 %v5383
  %v5452 = vunpack.c.l.b16 %v5384
  %v5453 = vunpack.c.l.b16 %v5385
  %v5454 = vunpack.c.l.b16 %v5386
  %v5455 = vunpack.c.l.b16 %v5387
  %v5456 = vunpack.c.l.b16 %v5388
  %v5457 = vunpack.c.l.b16 %v5389
  %v5458 = vunpack.c.l.b16 %v5390
  %v5459 = vunpack.c.l.b16 %v5391
  %v5460 = vunpack.c.l.b16 %v5392
  %v5461 = vunpack.c.l.b16 %v5393
  %v5462 = vunpack.c.l.b16 %v5394
  %v5463 = vunpack.c.l.b16 %v5395
  %v5464 = vunpack.c.l.b16 %v5396
  %v5465 = vunpack.c.l.b16 %v5397
  %v5466 = vunpack.c.l.b16 %v5398
  %v5467 = vunpack.c.l.b16 %v5399
  %v5468 = vunpack.c.l.b16 %v5400
  %v5469 = vunpack.c.l.b16 %v5401
  %v5470 = vunpack.c.l.b16 %v5402
  %v5471 = vunpack.c.l.b16 %v5403
  %v5472 = vunpack.c.l.b16 %v5404
  %v5473 = vpack.c.b16 %v5442, %v5441
  %v5474 = vpack.c.b16 %v5444, %v5443
  %v5475 = vpack.c.b16 %v5446, %v5445
  %v5476 = vpack.c.b16 %v5448, %v5447
  %v5477 = vpack.c.b16 %v5450, %v5449
  %v5478 = vpack.c.b16 %v5452, %v5451
  %v5479 = vpack.c.b16 %v5454, %v5453
  %v5480 = vpack.c.b16 %v5456, %v5455
  %v5481 = vpack.c.b16 %v5458, %v5457
  %v5482 = vpack.c.b16 %v5460, %v5459
  %v5483 = vpack.c.b16 %v5462, %v5461
  %v5484 = vpack.c.b16 %v5464, %v5463
  %v5485 = vpack.c.b16 %v5466, %v5465
  %v5486 = vpack.c.b16 %v5468, %v5467
  %v5487 = vpack.c.b16 %v5470, %v5469
  %v5488 = vpack.c.b16 %v5472, %v5471
  %5505 = vmatpush.bf16.msra.mxu0 %v5480
  %5506 = vmatpush.bf16.msra.mxu0 %v5479
  %5507 = vmatpush.bf16.msra.mxu0 %v5478
  %5508 = vmatpush.bf16.msra.mxu0 %v5477
  %5509 = vmatpush.bf16.msra.mxu0 %v5476
  %5510 = vmatpush.bf16.msra.mxu0 %v5475
  %5511 = vmatpush.bf16.msra.mxu0 %v5474
  %5512 = vmatpush.bf16.msra.mxu0 %v5473
  %5513 = vmatmul.bf16.gmra.mxu0 %v5371
  %v5514 = vpop.f32.mrf.mxu0
  %v5515 = vadd.f32 %v5407, %v5514
  %v5516 = vpop.f32.mrf.mxu0
  %5517 = vdwg.mxu0
  %5518 = vmatpush.bf16.msra.mxu0 %v5488
  %5519 = vmatpush.bf16.msra.mxu0 %v5487
  %5520 = vmatpush.bf16.msra.mxu0 %v5486
  %5521 = vmatpush.bf16.msra.mxu0 %v5485
  %5522 = vmatpush.bf16.msra.mxu0 %v5484
  %5523 = vmatpush.bf16.msra.mxu0 %v5483
  %5524 = vmatpush.bf16.msra.mxu0 %v5482
  %5525 = vmatpush.bf16.msra.mxu0 %v5481
  %5526 = vmatmul.bf16.gmra.mxu0 %v5372
  %v5527 = vpop.f32.mrf.mxu0
  %v5528 = vadd.f32 %v5515, %v5527
  %v5529 = vpop.f32.mrf.mxu0
  %5530 = vdwg.mxu0
  %5531 = vst [vmem:[%s14] sm:$0x3] %v5528
  // Predicated region
  $region58: #{ladan_forward.3} parent=0 // pred_check
    _
  $region59: #{ladan_forward.3} parent=0 // pred_check_branch
    %5533 = sbr.rel (0) target = $region61
  $region60: #{ladan_forward.3} parent=0 // pred_region
    _
  $region61: #{ladan_forward.3} parent=0 // pred_fallthru
    _
  // Predicated region
  $region62: #{ladan_forward.3} parent=0 // pred_check
    _
  $region63: #{ladan_forward.3} parent=0 // pred_check_branch
    %5535 = sbr.rel (0) target = $region65
  $region64: #{ladan_forward.3} parent=0 // pred_region
    _
  $region65: #{ladan_forward.3} parent=0 // pred_fallthru
    _

</llo_original>
